<compile_context>
chip_gen: v5e
topology: v5e:2x2
jax: 0.10.0
libtpu: 0.0.40
codegen_flags: <defaults>
</compile_context>

<pallas_src>
import numpy as np
import jax
import jax.numpy as jnp
from jax.experimental import pallas as pl
from jax.experimental.pallas import tpu as pltpu

_VMEM_LIMIT = 32 * 1024 * 1024   # explicit scoped-VMEM limit (safe on v5e/v6e/v7x)


def _vmem():
    return pl.BlockSpec(memory_space=pltpu.MemorySpace.VMEM)


def _smem():
    return pl.BlockSpec(memory_space=pltpu.MemorySpace.SMEM)


# ----------------------------- Pallas kernels ------------------------------ #

def _encoder_kernel(emb_ref, wih_ref, b_ref, whh_ref,
                    out_ref, hN_ref, cN_ref, x_scr):
    """One encoder direction per grid step (grid=(2,), 'parallel').

    emb_ref : (S*B, E) source embeddings (shared by both directions)
    wih_ref : (E, 4H)  this direction's input weights
    b_ref   : (1, 4H)  this direction's bias
    whh_ref : (H, 4H)  this direction's recurrent weights
    out_ref : (S, B, H) per-direction hidden states
    x_scr   : VMEM (S, B, 4H) hoisted input projection
    """
    S, B, G = x_scr.shape
    H = G // 4
    reverse = pl.program_id(0) == 1          # direction 1 walks time backwards

    # Hoisted input projection: one big MXU matmul instead of S small ones.
    x = (jnp.dot(emb_ref[...], wih_ref[...], preferred_element_type=jnp.float32)
         + b_ref[...])                                              # (S*B, 4H)
    for s in range(S):                        # static, lane-dense stores
        x_scr[s] = x[s * B:(s + 1) * B, :]

    def body(i, carry):
        h, c = carry
        t = jnp.where(reverse, S - 1 - i, i)
        gates = x_scr[t] + jnp.dot(h, whh_ref[...],
                                   preferred_element_type=jnp.float32)
        ig = jax.nn.sigmoid(gates[:, 0 * H:1 * H])
        fg = jax.nn.sigmoid(gates[:, 1 * H:2 * H])
        gg = jnp.tanh(gates[:, 2 * H:3 * H])
        og = jax.nn.sigmoid(gates[:, 3 * H:4 * H])
        c_new = fg * c + ig * gg
        h_new = og * jnp.tanh(c_new)
        out_ref[t] = h_new
        return h_new, c_new

    zeros = jnp.zeros((B, H), jnp.float32)
    # Static trip count -> full unroll: lets the LLO scheduler interleave the
    # next step's h@Whh MXU push with this step's EUP/VPU gate math.
    h, c = jax.lax.fori_loop(0, S, body, (zeros, zeros), unroll=True)
    hN_ref[...] = h
    cN_ref[...] = c


def _decoder_kernel(tf_ref, trg_ref, enc_ref, h0_ref, c0_ref,
                    w_ihh_ref, wih_c_ref, b_ref, fc_w_ref, fc_b_ref, out_ref):
    """Fused decode loop: attention + LSTM cell + projection + feedback.

    tf_ref    : SMEM (T,) int32 teacher-forcing flags
    trg_ref   : (T, B, 1) int32 target tokens (one-hot built in-kernel)
    enc_ref   : (2, S, B, H) per-direction encoder outputs (dir-summed here)
    h0_ref/c0_ref : (2, B, H) per-direction final encoder states (summed here)
    w_ihh_ref : (V+H, 4H) fused [dec_emb @ Wih_emb ; Whh]
    wih_c_ref : (H, 4H)   context part of the decoder input weights
    out_ref   : (T, B, V) logits; row 0 stays zero (matches PyTorch forward)
    """
    T, B, V = out_ref.shape
    H = h0_ref.shape[2]

    enc = enc_ref[0] + enc_ref[1]                     # (S, B, H) direction sum
    h0 = h0_ref[0] + h0_ref[1]
    c0 = c0_ref[0] + c0_ref[1]

    out_ref[0] = jnp.zeros((B, V), jnp.float32)

    iota_v = jax.lax.broadcasted_iota(jnp.int32, (B, V), 1)

    def tok_onehot(t):
        # one-hot of the target token at step t, built from int32 tokens
        return (iota_v == trg_ref[t]).astype(jnp.float32)          # (B, V)

    def step(t, carry):
        inp_oh, h, c = carry
        # Dot-product attention over the previous hidden state as VPU
        # broadcast-multiplies + XLU reductions (no M=1 batched matmuls).
        scores = jnp.sum(enc * h[None, :, :], axis=-1, keepdims=True)  # (S,B,1)
        m = jnp.max(scores, axis=0, keepdims=True)
        ex = jnp.exp(scores - m)
        w = ex * pl.reciprocal(jnp.sum(ex, axis=0, keepdims=True), approx=True)
        ctx = jnp.sum(w * enc, axis=0)                                  # (B, H)
        # Fused gate matmul: [one_hot ; h] @ [W_embgate ; Whh].  The ctx term
        # is kept separate so it can overlap with the attention computation.
        xih = jnp.concatenate([inp_oh, h], axis=1)                      # (B,V+H)
        gates = (jnp.dot(xih, w_ihh_ref[...], preferred_element_type=jnp.float32)
                 + jnp.dot(ctx, wih_c_ref[...], preferred_element_type=jnp.float32)
                 + b_ref[...])
        ig = jax.nn.sigmoid(gates[:, 0 * H:1 * H])
        fg = jax.nn.sigmoid(gates[:, 1 * H:2 * H])
        gg = jnp.tanh(gates[:, 2 * H:3 * H])
        og = jax.nn.sigmoid(gates[:, 3 * H:4 * H])
        c_new = fg * c + ig * gg
        h_new = og * jnp.tanh(c_new)
        logits = (jnp.dot(h_new, fc_w_ref[...], preferred_element_type=jnp.float32)
                  + fc_b_ref[...])
        out_ref[t] = logits
        # Greedy next-token one-hot (first-occurrence argmax, no index extract).
        maxv = jnp.max(logits, axis=-1, keepdims=True)
        idx = jnp.min(jnp.where(logits == maxv, iota_v, V), axis=-1, keepdims=True)
        pred_oh = (iota_v == idx).astype(jnp.float32)
        tf = tf_ref[t].astype(jnp.float32)             # scalar flag from SMEM
        next_oh = tf * tok_onehot(t) + (1.0 - tf) * pred_oh
        return next_oh, h_new, c_new

    # T is static -> full unroll for cross-step MXU/EUP/VPU interleaving.
    jax.lax.fori_loop(1, T, step, (tok_onehot(0), h0, c0), unroll=True)


# ------------------------------ model wiring ------------------------------- #

def init_params(key, src_vocab, trg_vocab, emb_dim, hidden):
    ks = jax.random.split(key, 13)
    s = 0.1

    def n(k, shape):
        return (s * jax.random.normal(k, shape)).astype(jnp.float32)

    return dict(
        enc_emb=n(ks[0], (src_vocab, emb_dim)),
        # encoder weights pre-stacked over directions [fwd, bwd] at init
        enc_wih=jnp.stack([n(ks[1], (emb_dim, 4 * hidden)),
                           n(ks[4], (emb_dim, 4 * hidden))]),
        enc_whh=jnp.stack([n(ks[2], (hidden, 4 * hidden)),
                           n(ks[5], (hidden, 4 * hidden))]),
        enc_b=jnp.stack([n(ks[3], (1, 4 * hidden)),
                         n(ks[6], (1, 4 * hidden))]),
        dec_emb=n(ks[7], (trg_vocab, emb_dim)),
        dec_wih_e=n(ks[8], (emb_dim, 4 * hidden)),   # dec Wih: embedding part
        dec_wih_c=n(ks[9], (hidden, 4 * hidden)),    # dec Wih: context part
        dec_whh=n(ks[10], (hidden, 4 * hidden)),
        dec_b=n(ks[11], (1, 4 * hidden)),
        fc_w=n(ks[12], (hidden, trg_vocab)),
        fc_b=jnp.zeros((1, trg_vocab), jnp.float32),
    )


def encoder_forward(params, src):
    B, S = src.shape
    E = params['enc_emb'].shape[1]
    H = params['enc_whh'].shape[1]
    G = 4 * H

    # Embedding gather stays XLA glue; gather with src.T so no transpose needed.
    emb2 = params['enc_emb'][src.T].reshape(S * B, E)              # (S*B, E)

    dir_out, hN, cN = pl.pallas_call(
        _encoder_kernel,
        grid=(2,),
        in_specs=[pl.BlockSpec((S * B, E), lambda d: (0, 0)),
                  pl.BlockSpec((None, E, G), lambda d: (d, 0, 0)),
                  pl.BlockSpec((None, 1, G), lambda d: (d, 0, 0)),
                  pl.BlockSpec((None, H, G), lambda d: (d, 0, 0))],
        out_specs=(pl.BlockSpec((None, S, B, H), lambda d: (d, 0, 0, 0)),
                   pl.BlockSpec((None, B, H), lambda d: (d, 0, 0)),
                   pl.BlockSpec((None, B, H), lambda d: (d, 0, 0))),
        out_shape=(jax.ShapeDtypeStruct((2, S, B, H), jnp.float32),
                   jax.ShapeDtypeStruct((2, B, H), jnp.float32),
                   jax.ShapeDtypeStruct((2, B, H), jnp.float32)),
        scratch_shapes=[pltpu.VMEM((S, B, G), jnp.float32)],
        compiler_params=pltpu.CompilerParams(
            dimension_semantics=("parallel",),
            vmem_limit_bytes=_VMEM_LIMIT),
    )(emb2, params['enc_wih'], params['enc_b'], params['enc_whh'])
    return dir_out, hN, cN


def decoder_forward(params, trg, dir_out, hN, cN, tf_flags):
    B, T = trg.shape
    V = params['fc_w'].shape[1]

    # Fold the decoder embedding into the gate weights (exact: the embedding
    # is consumed only by the gate matmul) and fuse with the recurrent weights.
    w_embgate = jnp.dot(params['dec_emb'], params['dec_wih_e'],
                        preferred_element_type=jnp.float32)        # (V, 4H)
    w_ihh = jnp.concatenate([w_embgate, params['dec_whh']], axis=0)  # (V+H, 4H)

    trg_tb1 = trg.T[:, :, None]                                    # (T, B, 1) int32

    out_tbv = pl.pallas_call(
        _decoder_kernel,
        in_specs=[_smem()] + [_vmem()] * 9,
        out_specs=_vmem(),
        out_shape=jax.ShapeDtypeStruct((T, B, V), jnp.float32),
        compiler_params=pltpu.CompilerParams(vmem_limit_bytes=_VMEM_LIMIT),
    )(tf_flags, trg_tb1, dir_out, hN, cN,
      w_ihh, params['dec_wih_c'], params['dec_b'],
      params['fc_w'], params['fc_b'])

    return jnp.transpose(out_tbv, (1, 0, 2))                       # (B, T, V)


@jax.jit
def _seq2seq_forward_jit(params, src, trg, tf_flags):
    dir_out, hN, cN = encoder_forward(params, src)
    return decoder_forward(params, trg, dir_out, hN, cN, tf_flags)


def seq2seq_forward(params, src, trg, teacher_forcing_ratio=0.5, tf_seed=0):
    """Mirrors Seq2Seq.forward: outputs[:, 0] stays zero; per-step TF flags
    drawn on the host (torch.rand(1).item() equivalent) and passed as data."""
    T = trg.shape[1]
    rng = np.random.default_rng(tf_seed)
    tf_flags = jnp.asarray(
        (rng.random(T) < teacher_forcing_ratio).astype(np.int32))
    return _seq2seq_forward_jit(params, src, trg, tf_flags)


# --------------------------------- driver ---------------------------------- #

if __name__ == "__main__":
    # (8,128)-aligned small sizes: batch multiple of 8 sublanes, E/H/V = 128 lanes.
    B, S, T = 8, 8, 8            # batch, src length, trg length
    SRC_V, TRG_V = 128, 128      # vocab sizes (lane-padded)
    E, H = 128, 128              # embedding dim, hidden dim (lane-aligned gates)

    key = jax.random.PRNGKey(0)
    kp, ks, kt = jax.random.split(key, 3)
    params = init_params(kp, SRC_V, TRG_V, E, H)
    src = jax.random.randint(ks, (B, S), 0, SRC_V, dtype=jnp.int32)
    trg = jax.random.randint(kt, (B, T), 0, TRG_V, dtype=jnp.int32)

    out = seq2seq_forward(params, src, trg, teacher_forcing_ratio=0.5, tf_seed=0)
    out = jax.block_until_ready(out)
    assert out.shape == (B, T, TRG_V) and out.dtype == jnp.float32
    assert bool(jnp.all(out[:, 0, :] == 0.0))
    # TODO(synk): translate() (beam search, inference-only host loop) is host
    # control flow, not a tensor hot path, and is not implemented as a kernel.
    print("KERNEL_OK")
</pallas_src>

<mosaic_0001>
module attributes {stable_mosaic.version = 11 : i64} {
  func.func @_encoder_kernel(%arg0: i32, %arg1: memref<64x128xf32, #tpu.memory_space<vmem>>, %arg2: memref<1x128x512xf32, #tpu.memory_space<vmem>>, %arg3: memref<1x1x512xf32, #tpu.memory_space<vmem>>, %arg4: memref<1x128x512xf32, #tpu.memory_space<vmem>>, %arg5: memref<1x8x8x128xf32, #tpu.memory_space<vmem>>, %arg6: memref<1x8x128xf32, #tpu.memory_space<vmem>>, %arg7: memref<1x8x128xf32, #tpu.memory_space<vmem>>, %arg8: memref<8x8x512xf32, #tpu.memory_space<vmem>>) attributes {dimension_semantics = [#tpu.dimension_semantics<parallel>], iteration_bounds = array<i64: 2>, scalar_prefetch = 0 : i64, scratch_operands = 1 : i64, tpu.core_type = #tpu.core_type<tc>, window_params = [{pipeline_mode = #tpu.pipeline_mode<synchronous>, transform_indices = @transform_0, window_bounds = array<i64: 64, 128>}, {transform_indices = @transform_1, window_bounds = array<i64: 1, 128, 512>}, {transform_indices = @transform_2, window_bounds = array<i64: 1, 1, 512>}, {transform_indices = @transform_3, window_bounds = array<i64: 1, 128, 512>}, {transform_indices = @transform_4, window_bounds = array<i64: 1, 8, 8, 128>}, {transform_indices = @transform_5, window_bounds = array<i64: 1, 8, 128>}, {transform_indices = @transform_6, window_bounds = array<i64: 1, 8, 128>}]} {
    %c1_i32 = arith.constant 1 : i32
    %0 = arith.cmpi eq, %arg0, %c1_i32 : i32
    %c0 = arith.constant 0 : index
    %c0_0 = arith.constant 0 : index
    %1 = vector.load %arg1[%c0, %c0_0] : memref<64x128xf32, #tpu.memory_space<vmem>>, vector<64x128xf32>
    %c0_1 = arith.constant 0 : index
    %c0_2 = arith.constant 0 : index
    %c0_3 = arith.constant 0 : index
    %2 = vector.load %arg2[%c0_1, %c0_2, %c0_3] : memref<1x128x512xf32, #tpu.memory_space<vmem>>, vector<1x128x512xf32>
    %3 = vector.shape_cast %2 : vector<1x128x512xf32> to vector<128x512xf32>
    %cst = arith.constant dense<0.000000e+00> : vector<64x512xf32>
    %4 = tpu.matmul %1, %3, %cst {dimension_numbers = #tpu.dot_dimension_numbers<[1], [0], [0], [1], [0, 0, 1, 1], [], []>} : vector<64x128xf32>, vector<128x512xf32>, vector<64x512xf32> -> vector<64x512xf32>
    %c0_4 = arith.constant 0 : index
    %c0_5 = arith.constant 0 : index
    %c0_6 = arith.constant 0 : index
    %5 = vector.load %arg3[%c0_4, %c0_5, %c0_6] : memref<1x1x512xf32, #tpu.memory_space<vmem>>, vector<1x1x512xf32>
    %6 = vector.shape_cast %5 : vector<1x1x512xf32> to vector<1x512xf32>
    %7 = vector.broadcast %6 : vector<1x512xf32> to vector<64x512xf32>
    %8 = arith.addf %4, %7 : vector<64x512xf32>
    %9 = vector.extract_strided_slice %8 {offsets = [0, 0], sizes = [8, 512], strides = [1, 1]} : vector<64x512xf32> to vector<8x512xf32>
    %c0_7 = arith.constant 0 : index
    %c0_8 = arith.constant 0 : index
    %c0_9 = arith.constant 0 : index
    %10 = vector.load %arg8[%c0_7, %c0_8, %c0_9] : memref<8x8x512xf32, #tpu.memory_space<vmem>>, vector<1x8x512xf32>
    %11 = vector.shape_cast %10 : vector<1x8x512xf32> to vector<8x512xf32>
    %12 = vector.shape_cast %9 : vector<8x512xf32> to vector<1x8x512xf32>
    tpu.vector_store %arg8[%c0_7, %c0_8, %c0_9], %12 {strides = array<i32>} : memref<8x8x512xf32, #tpu.memory_space<vmem>>, vector<1x8x512xf32>,
    %13 = vector.extract_strided_slice %8 {offsets = [8, 0], sizes = [8, 512], strides = [1, 1]} : vector<64x512xf32> to vector<8x512xf32>
    %c1 = arith.constant 1 : index
    %c0_10 = arith.constant 0 : index
    %c0_11 = arith.constant 0 : index
    %14 = vector.load %arg8[%c1, %c0_10, %c0_11] : memref<8x8x512xf32, #tpu.memory_space<vmem>>, vector<1x8x512xf32>
    %15 = vector.shape_cast %14 : vector<1x8x512xf32> to vector<8x512xf32>
    %16 = vector.shape_cast %13 : vector<8x512xf32> to vector<1x8x512xf32>
    tpu.vector_store %arg8[%c1, %c0_10, %c0_11], %16 {strides = array<i32>} : memref<8x8x512xf32, #tpu.memory_space<vmem>>, vector<1x8x512xf32>,
    %17 = vector.extract_strided_slice %8 {offsets = [16, 0], sizes = [8, 512], strides = [1, 1]} : vector<64x512xf32> to vector<8x512xf32>
    %c2 = arith.constant 2 : index
    %c0_12 = arith.constant 0 : index
    %c0_13 = arith.constant 0 : index
    %18 = vector.load %arg8[%c2, %c0_12, %c0_13] : memref<8x8x512xf32, #tpu.memory_space<vmem>>, vector<1x8x512xf32>
    %19 = vector.shape_cast %18 : vector<1x8x512xf32> to vector<8x512xf32>
    %20 = vector.shape_cast %17 : vector<8x512xf32> to vector<1x8x512xf32>
    tpu.vector_store %arg8[%c2, %c0_12, %c0_13], %20 {strides = array<i32>} : memref<8x8x512xf32, #tpu.memory_space<vmem>>, vector<1x8x512xf32>,
    %21 = vector.extract_strided_slice %8 {offsets = [24, 0], sizes = [8, 512], strides = [1, 1]} : vector<64x512xf32> to vector<8x512xf32>
    %c3 = arith.constant 3 : index
    %c0_14 = arith.constant 0 : index
    %c0_15 = arith.constant 0 : index
    %22 = vector.load %arg8[%c3, %c0_14, %c0_15] : memref<8x8x512xf32, #tpu.memory_space<vmem>>, vector<1x8x512xf32>
    %23 = vector.shape_cast %22 : vector<1x8x512xf32> to vector<8x512xf32>
    %24 = vector.shape_cast %21 : vector<8x512xf32> to vector<1x8x512xf32>
    tpu.vector_store %arg8[%c3, %c0_14, %c0_15], %24 {strides = array<i32>} : memref<8x8x512xf32, #tpu.memory_space<vmem>>, vector<1x8x512xf32>,
    %25 = vector.extract_strided_slice %8 {offsets = [32, 0], sizes = [8, 512], strides = [1, 1]} : vector<64x512xf32> to vector<8x512xf32>
    %c4 = arith.constant 4 : index
    %c0_16 = arith.constant 0 : index
    %c0_17 = arith.constant 0 : index
    %26 = vector.load %arg8[%c4, %c0_16, %c0_17] : memref<8x8x512xf32, #tpu.memory_space<vmem>>, vector<1x8x512xf32>
    %27 = vector.shape_cast %26 : vector<1x8x512xf32> to vector<8x512xf32>
    %28 = vector.shape_cast %25 : vector<8x512xf32> to vector<1x8x512xf32>
    tpu.vector_store %arg8[%c4, %c0_16, %c0_17], %28 {strides = array<i32>} : memref<8x8x512xf32, #tpu.memory_space<vmem>>, vector<1x8x512xf32>,
    %29 = vector.extract_strided_slice %8 {offsets = [40, 0], sizes = [8, 512], strides = [1, 1]} : vector<64x512xf32> to vector<8x512xf32>
    %c5 = arith.constant 5 : index
    %c0_18 = arith.constant 0 : index
    %c0_19 = arith.constant 0 : index
    %30 = vector.load %arg8[%c5, %c0_18, %c0_19] : memref<8x8x512xf32, #tpu.memory_space<vmem>>, vector<1x8x512xf32>
    %31 = vector.shape_cast %30 : vector<1x8x512xf32> to vector<8x512xf32>
    %32 = vector.shape_cast %29 : vector<8x512xf32> to vector<1x8x512xf32>
    tpu.vector_store %arg8[%c5, %c0_18, %c0_19], %32 {strides = array<i32>} : memref<8x8x512xf32, #tpu.memory_space<vmem>>, vector<1x8x512xf32>,
    %33 = vector.extract_strided_slice %8 {offsets = [48, 0], sizes = [8, 512], strides = [1, 1]} : vector<64x512xf32> to vector<8x512xf32>
    %c6 = arith.constant 6 : index
    %c0_20 = arith.constant 0 : index
    %c0_21 = arith.constant 0 : index
    %34 = vector.load %arg8[%c6, %c0_20, %c0_21] : memref<8x8x512xf32, #tpu.memory_space<vmem>>, vector<1x8x512xf32>
    %35 = vector.shape_cast %34 : vector<1x8x512xf32> to vector<8x512xf32>
    %36 = vector.shape_cast %33 : vector<8x512xf32> to vector<1x8x512xf32>
    tpu.vector_store %arg8[%c6, %c0_20, %c0_21], %36 {strides = array<i32>} : memref<8x8x512xf32, #tpu.memory_space<vmem>>, vector<1x8x512xf32>,
    %37 = vector.extract_strided_slice %8 {offsets = [56, 0], sizes = [8, 512], strides = [1, 1]} : vector<64x512xf32> to vector<8x512xf32>
    %c7 = arith.constant 7 : index
    %c0_22 = arith.constant 0 : index
    %c0_23 = arith.constant 0 : index
    %38 = vector.load %arg8[%c7, %c0_22, %c0_23] : memref<8x8x512xf32, #tpu.memory_space<vmem>>, vector<1x8x512xf32>
    %39 = vector.shape_cast %38 : vector<1x8x512xf32> to vector<8x512xf32>
    %40 = vector.shape_cast %37 : vector<8x512xf32> to vector<1x8x512xf32>
    tpu.vector_store %arg8[%c7, %c0_22, %c0_23], %40 {strides = array<i32>} : memref<8x8x512xf32, #tpu.memory_space<vmem>>, vector<1x8x512xf32>,
    %cst_24 = arith.constant 0.000000e+00 : f32
    %41 = vector.broadcast %cst_24 : f32 to vector<8x128xf32>
    %c0_i32 = arith.constant 0 : i32
    %c7_i32 = arith.constant 7 : i32
    %42 = arith.subi %c7_i32, %c0_i32 : i32
    %43 = arith.select %0, %42, %c0_i32 : i32
    %44 = arith.index_cast %43 : i32 to index
    %c0_25 = arith.constant 0 : index
    %c0_26 = arith.constant 0 : index
    %45 = vector.load %arg8[%44, %c0_25, %c0_26] : memref<8x8x512xf32, #tpu.memory_space<vmem>>, vector<1x8x512xf32>
    %46 = vector.shape_cast %45 : vector<1x8x512xf32> to vector<8x512xf32>
    %c0_27 = arith.constant 0 : index
    %c0_28 = arith.constant 0 : index
    %c0_29 = arith.constant 0 : index
    %47 = vector.load %arg4[%c0_27, %c0_28, %c0_29] : memref<1x128x512xf32, #tpu.memory_space<vmem>>, vector<1x128x512xf32>
    %48 = vector.shape_cast %47 : vector<1x128x512xf32> to vector<128x512xf32>
    %cst_30 = arith.constant dense<0.000000e+00> : vector<8x512xf32>
    %49 = tpu.matmul %41, %48, %cst_30 {dimension_numbers = #tpu.dot_dimension_numbers<[1], [0], [0], [1], [0, 0, 1, 1], [], []>} : vector<8x128xf32>, vector<128x512xf32>, vector<8x512xf32> -> vector<8x512xf32>
    %50 = arith.addf %46, %49 : vector<8x512xf32>
    %51 = vector.extract_strided_slice %50 {offsets = [0, 0], sizes = [8, 128], strides = [1, 1]} : vector<8x512xf32> to vector<8x128xf32>
    %52 = arith.negf %51 : vector<8x128xf32>
    %53 = math.exp %52 : vector<8x128xf32>
    %cst_31 = arith.constant 1.000000e+00 : f32
    %54 = vector.broadcast %cst_31 : f32 to vector<8x128xf32>
    %55 = arith.addf %54, %53 : vector<8x128xf32>
    %56 = arith.divf %54, %55 : vector<8x128xf32>
    %57 = vector.extract_strided_slice %50 {offsets = [0, 128], sizes = [8, 128], strides = [1, 1]} : vector<8x512xf32> to vector<8x128xf32>
    %58 = arith.negf %57 : vector<8x128xf32>
    %59 = math.exp %58 : vector<8x128xf32>
    %cst_32 = arith.constant 1.000000e+00 : f32
    %60 = vector.broadcast %cst_32 : f32 to vector<8x128xf32>
    %61 = arith.addf %60, %59 : vector<8x128xf32>
    %62 = arith.divf %60, %61 : vector<8x128xf32>
    %63 = vector.extract_strided_slice %50 {offsets = [0, 256], sizes = [8, 128], strides = [1, 1]} : vector<8x512xf32> to vector<8x128xf32>
    %64 = math.tanh %63 : vector<8x128xf32>
    %65 = vector.extract_strided_slice %50 {offsets = [0, 384], sizes = [8, 128], strides = [1, 1]} : vector<8x512xf32> to vector<8x128xf32>
    %66 = arith.negf %65 : vector<8x128xf32>
    %67 = math.exp %66 : vector<8x128xf32>
    %cst_33 = arith.constant 1.000000e+00 : f32
    %68 = vector.broadcast %cst_33 : f32 to vector<8x128xf32>
    %69 = arith.addf %68, %67 : vector<8x128xf32>
    %70 = arith.divf %68, %69 : vector<8x128xf32>
    %71 = arith.mulf %62, %41 : vector<8x128xf32>
    %72 = arith.mulf %56, %64 : vector<8x128xf32>
    %73 = arith.addf %71, %72 : vector<8x128xf32>
    %74 = math.tanh %73 : vector<8x128xf32>
    %75 = arith.mulf %70, %74 : vector<8x128xf32>
    %c0_34 = arith.constant 0 : index
    %76 = arith.index_cast %43 : i32 to index
    %c0_35 = arith.constant 0 : index
    %c0_36 = arith.constant 0 : index
    %77 = vector.load %arg5[%c0_34, %76, %c0_35, %c0_36] : memref<1x8x8x128xf32, #tpu.memory_space<vmem>>, vector<1x1x8x128xf32>
    %78 = vector.shape_cast %77 : vector<1x1x8x128xf32> to vector<8x128xf32>
    %79 = vector.shape_cast %75 : vector<8x128xf32> to vector<1x1x8x128xf32>
    tpu.vector_store %arg5[%c0_34, %76, %c0_35, %c0_36], %79 {strides = array<i32>} : memref<1x8x8x128xf32, #tpu.memory_space<vmem>>, vector<1x1x8x128xf32>,
    %c1_i32_37 = arith.constant 1 : i32
    %c7_i32_38 = arith.constant 7 : i32
    %80 = arith.subi %c7_i32_38, %c1_i32_37 : i32
    %81 = arith.select %0, %80, %c1_i32_37 : i32
    %82 = arith.index_cast %81 : i32 to index
    %c0_39 = arith.constant 0 : index
    %c0_40 = arith.constant 0 : index
    %83 = vector.load %arg8[%82, %c0_39, %c0_40] : memref<8x8x512xf32, #tpu.memory_space<vmem>>, vector<1x8x512xf32>
    %84 = vector.shape_cast %83 : vector<1x8x512xf32> to vector<8x512xf32>
    %c0_41 = arith.constant 0 : index
    %c0_42 = arith.constant 0 : index
    %c0_43 = arith.constant 0 : index
    %85 = vector.load %arg4[%c0_41, %c0_42, %c0_43] : memref<1x128x512xf32, #tpu.memory_space<vmem>>, vector<1x128x512xf32>
    %86 = vector.shape_cast %85 : vector<1x128x512xf32> to vector<128x512xf32>
    %cst_44 = arith.constant dense<0.000000e+00> : vector<8x512xf32>
    %87 = tpu.matmul %75, %86, %cst_44 {dimension_numbers = #tpu.dot_dimension_numbers<[1], [0], [0], [1], [0, 0, 1, 1], [], []>} : vector<8x128xf32>, vector<128x512xf32>, vector<8x512xf32> -> vector<8x512xf32>
    %88 = arith.addf %84, %87 : vector<8x512xf32>
    %89 = vector.extract_strided_slice %88 {offsets = [0, 0], sizes = [8, 128], strides = [1, 1]} : vector<8x512xf32> to vector<8x128xf32>
    %90 = arith.negf %89 : vector<8x128xf32>
    %91 = math.exp %90 : vector<8x128xf32>
    %cst_45 = arith.constant 1.000000e+00 : f32
    %92 = vector.broadcast %cst_45 : f32 to vector<8x128xf32>
    %93 = arith.addf %92, %91 : vector<8x128xf32>
    %94 = arith.divf %92, %93 : vector<8x128xf32>
    %95 = vector.extract_strided_slice %88 {offsets = [0, 128], sizes = [8, 128], strides = [1, 1]} : vector<8x512xf32> to vector<8x128xf32>
    %96 = arith.negf %95 : vector<8x128xf32>
    %97 = math.exp %96 : vector<8x128xf32>
    %cst_46 = arith.constant 1.000000e+00 : f32
    %98 = vector.broadcast %cst_46 : f32 to vector<8x128xf32>
    %99 = arith.addf %98, %97 : vector<8x128xf32>
    %100 = arith.divf %98, %99 : vector<8x128xf32>
    %101 = vector.extract_strided_slice %88 {offsets = [0, 256], sizes = [8, 128], strides = [1, 1]} : vector<8x512xf32> to vector<8x128xf32>
    %102 = math.tanh %101 : vector<8x128xf32>
    %103 = vector.extract_strided_slice %88 {offsets = [0, 384], sizes = [8, 128], strides = [1, 1]} : vector<8x512xf32> to vector<8x128xf32>
    %104 = arith.negf %103 : vector<8x128xf32>
    %105 = math.exp %104 : vector<8x128xf32>
    %cst_47 = arith.constant 1.000000e+00 : f32
    %106 = vector.broadcast %cst_47 : f32 to vector<8x128xf32>
    %107 = arith.addf %106, %105 : vector<8x128xf32>
    %108 = arith.divf %106, %107 : vector<8x128xf32>
    %109 = arith.mulf %100, %73 : vector<8x128xf32>
    %110 = arith.mulf %94, %102 : vector<8x128xf32>
    %111 = arith.addf %109, %110 : vector<8x128xf32>
    %112 = math.tanh %111 : vector<8x128xf32>
    %113 = arith.mulf %108, %112 : vector<8x128xf32>
    %c0_48 = arith.constant 0 : index
    %114 = arith.index_cast %81 : i32 to index
    %c0_49 = arith.constant 0 : index
    %c0_50 = arith.constant 0 : index
    %115 = vector.load %arg5[%c0_48, %114, %c0_49, %c0_50] : memref<1x8x8x128xf32, #tpu.memory_space<vmem>>, vector<1x1x8x128xf32>
    %116 = vector.shape_cast %115 : vector<1x1x8x128xf32> to vector<8x128xf32>
    %117 = vector.shape_cast %113 : vector<8x128xf32> to vector<1x1x8x128xf32>
    tpu.vector_store %arg5[%c0_48, %114, %c0_49, %c0_50], %117 {strides = array<i32>} : memref<1x8x8x128xf32, #tpu.memory_space<vmem>>, vector<1x1x8x128xf32>,
    %c2_i32 = arith.constant 2 : i32
    %c7_i32_51 = arith.constant 7 : i32
    %118 = arith.subi %c7_i32_51, %c2_i32 : i32
    %119 = arith.select %0, %118, %c2_i32 : i32
    %120 = arith.index_cast %119 : i32 to index
    %c0_52 = arith.constant 0 : index
    %c0_53 = arith.constant 0 : index
    %121 = vector.load %arg8[%120, %c0_52, %c0_53] : memref<8x8x512xf32, #tpu.memory_space<vmem>>, vector<1x8x512xf32>
    %122 = vector.shape_cast %121 : vector<1x8x512xf32> to vector<8x512xf32>
    %c0_54 = arith.constant 0 : index
    %c0_55 = arith.constant 0 : index
    %c0_56 = arith.constant 0 : index
    %123 = vector.load %arg4[%c0_54, %c0_55, %c0_56] : memref<1x128x512xf32, #tpu.memory_space<vmem>>, vector<1x128x512xf32>
    %124 = vector.shape_cast %123 : vector<1x128x512xf32> to vector<128x512xf32>
    %cst_57 = arith.constant dense<0.000000e+00> : vector<8x512xf32>
    %125 = tpu.matmul %113, %124, %cst_57 {dimension_numbers = #tpu.dot_dimension_numbers<[1], [0], [0], [1], [0, 0, 1, 1], [], []>} : vector<8x128xf32>, vector<128x512xf32>, vector<8x512xf32> -> vector<8x512xf32>
    %126 = arith.addf %122, %125 : vector<8x512xf32>
    %127 = vector.extract_strided_slice %126 {offsets = [0, 0], sizes = [8, 128], strides = [1, 1]} : vector<8x512xf32> to vector<8x128xf32>
    %128 = arith.negf %127 : vector<8x128xf32>
    %129 = math.exp %128 : vector<8x128xf32>
    %cst_58 = arith.constant 1.000000e+00 : f32
    %130 = vector.broadcast %cst_58 : f32 to vector<8x128xf32>
    %131 = arith.addf %130, %129 : vector<8x128xf32>
    %132 = arith.divf %130, %131 : vector<8x128xf32>
    %133 = vector.extract_strided_slice %126 {offsets = [0, 128], sizes = [8, 128], strides = [1, 1]} : vector<8x512xf32> to vector<8x128xf32>
    %134 = arith.negf %133 : vector<8x128xf32>
    %135 = math.exp %134 : vector<8x128xf32>
    %cst_59 = arith.constant 1.000000e+00 : f32
    %136 = vector.broadcast %cst_59 : f32 to vector<8x128xf32>
    %137 = arith.addf %136, %135 : vector<8x128xf32>
    %138 = arith.divf %136, %137 : vector<8x128xf32>
    %139 = vector.extract_strided_slice %126 {offsets = [0, 256], sizes = [8, 128], strides = [1, 1]} : vector<8x512xf32> to vector<8x128xf32>
    %140 = math.tanh %139 : vector<8x128xf32>
    %141 = vector.extract_strided_slice %126 {offsets = [0, 384], sizes = [8, 128], strides = [1, 1]} : vector<8x512xf32> to vector<8x128xf32>
    %142 = arith.negf %141 : vector<8x128xf32>
    %143 = math.exp %142 : vector<8x128xf32>
    %cst_60 = arith.constant 1.000000e+00 : f32
    %144 = vector.broadcast %cst_60 : f32 to vector<8x128xf32>
    %145 = arith.addf %144, %143 : vector<8x128xf32>
    %146 = arith.divf %144, %145 : vector<8x128xf32>
    %147 = arith.mulf %138, %111 : vector<8x128xf32>
    %148 = arith.mulf %132, %140 : vector<8x128xf32>
    %149 = arith.addf %147, %148 : vector<8x128xf32>
    %150 = math.tanh %149 : vector<8x128xf32>
    %151 = arith.mulf %146, %150 : vector<8x128xf32>
    %c0_61 = arith.constant 0 : index
    %152 = arith.index_cast %119 : i32 to index
    %c0_62 = arith.constant 0 : index
    %c0_63 = arith.constant 0 : index
    %153 = vector.load %arg5[%c0_61, %152, %c0_62, %c0_63] : memref<1x8x8x128xf32, #tpu.memory_space<vmem>>, vector<1x1x8x128xf32>
    %154 = vector.shape_cast %153 : vector<1x1x8x128xf32> to vector<8x128xf32>
    %155 = vector.shape_cast %151 : vector<8x128xf32> to vector<1x1x8x128xf32>
    tpu.vector_store %arg5[%c0_61, %152, %c0_62, %c0_63], %155 {strides = array<i32>} : memref<1x8x8x128xf32, #tpu.memory_space<vmem>>, vector<1x1x8x128xf32>,
    %c3_i32 = arith.constant 3 : i32
    %c7_i32_64 = arith.constant 7 : i32
    %156 = arith.subi %c7_i32_64, %c3_i32 : i32
    %157 = arith.select %0, %156, %c3_i32 : i32
    %158 = arith.index_cast %157 : i32 to index
    %c0_65 = arith.constant 0 : index
    %c0_66 = arith.constant 0 : index
    %159 = vector.load %arg8[%158, %c0_65, %c0_66] : memref<8x8x512xf32, #tpu.memory_space<vmem>>, vector<1x8x512xf32>
    %160 = vector.shape_cast %159 : vector<1x8x512xf32> to vector<8x512xf32>
    %c0_67 = arith.constant 0 : index
    %c0_68 = arith.constant 0 : index
    %c0_69 = arith.constant 0 : index
    %161 = vector.load %arg4[%c0_67, %c0_68, %c0_69] : memref<1x128x512xf32, #tpu.memory_space<vmem>>, vector<1x128x512xf32>
    %162 = vector.shape_cast %161 : vector<1x128x512xf32> to vector<128x512xf32>
    %cst_70 = arith.constant dense<0.000000e+00> : vector<8x512xf32>
    %163 = tpu.matmul %151, %162, %cst_70 {dimension_numbers = #tpu.dot_dimension_numbers<[1], [0], [0], [1], [0, 0, 1, 1], [], []>} : vector<8x128xf32>, vector<128x512xf32>, vector<8x512xf32> -> vector<8x512xf32>
    %164 = arith.addf %160, %163 : vector<8x512xf32>
    %165 = vector.extract_strided_slice %164 {offsets = [0, 0], sizes = [8, 128], strides = [1, 1]} : vector<8x512xf32> to vector<8x128xf32>
    %166 = arith.negf %165 : vector<8x128xf32>
    %167 = math.exp %166 : vector<8x128xf32>
    %cst_71 = arith.constant 1.000000e+00 : f32
    %168 = vector.broadcast %cst_71 : f32 to vector<8x128xf32>
    %169 = arith.addf %168, %167 : vector<8x128xf32>
    %170 = arith.divf %168, %169 : vector<8x128xf32>
    %171 = vector.extract_strided_slice %164 {offsets = [0, 128], sizes = [8, 128], strides = [1, 1]} : vector<8x512xf32> to vector<8x128xf32>
    %172 = arith.negf %171 : vector<8x128xf32>
    %173 = math.exp %172 : vector<8x128xf32>
    %cst_72 = arith.constant 1.000000e+00 : f32
    %174 = vector.broadcast %cst_72 : f32 to vector<8x128xf32>
    %175 = arith.addf %174, %173 : vector<8x128xf32>
    %176 = arith.divf %174, %175 : vector<8x128xf32>
    %177 = vector.extract_strided_slice %164 {offsets = [0, 256], sizes = [8, 128], strides = [1, 1]} : vector<8x512xf32> to vector<8x128xf32>
    %178 = math.tanh %177 : vector<8x128xf32>
    %179 = vector.extract_strided_slice %164 {offsets = [0, 384], sizes = [8, 128], strides = [1, 1]} : vector<8x512xf32> to vector<8x128xf32>
    %180 = arith.negf %179 : vector<8x128xf32>
    %181 = math.exp %180 : vector<8x128xf32>
    %cst_73 = arith.constant 1.000000e+00 : f32
    %182 = vector.broadcast %cst_73 : f32 to vector<8x128xf32>
    %183 = arith.addf %182, %181 : vector<8x128xf32>
    %184 = arith.divf %182, %183 : vector<8x128xf32>
    %185 = arith.mulf %176, %149 : vector<8x128xf32>
    %186 = arith.mulf %170, %178 : vector<8x128xf32>
    %187 = arith.addf %185, %186 : vector<8x128xf32>
    %188 = math.tanh %187 : vector<8x128xf32>
    %189 = arith.mulf %184, %188 : vector<8x128xf32>
    %c0_74 = arith.constant 0 : index
    %190 = arith.index_cast %157 : i32 to index
    %c0_75 = arith.constant 0 : index
    %c0_76 = arith.constant 0 : index
    %191 = vector.load %arg5[%c0_74, %190, %c0_75, %c0_76] : memref<1x8x8x128xf32, #tpu.memory_space<vmem>>, vector<1x1x8x128xf32>
    %192 = vector.shape_cast %191 : vector<1x1x8x128xf32> to vector<8x128xf32>
    %193 = vector.shape_cast %189 : vector<8x128xf32> to vector<1x1x8x128xf32>
    tpu.vector_store %arg5[%c0_74, %190, %c0_75, %c0_76], %193 {strides = array<i32>} : memref<1x8x8x128xf32, #tpu.memory_space<vmem>>, vector<1x1x8x128xf32>,
    %c4_i32 = arith.constant 4 : i32
    %c7_i32_77 = arith.constant 7 : i32
    %194 = arith.subi %c7_i32_77, %c4_i32 : i32
    %195 = arith.select %0, %194, %c4_i32 : i32
    %196 = arith.index_cast %195 : i32 to index
    %c0_78 = arith.constant 0 : index
    %c0_79 = arith.constant 0 : index
    %197 = vector.load %arg8[%196, %c0_78, %c0_79] : memref<8x8x512xf32, #tpu.memory_space<vmem>>, vector<1x8x512xf32>
    %198 = vector.shape_cast %197 : vector<1x8x512xf32> to vector<8x512xf32>
    %c0_80 = arith.constant 0 : index
    %c0_81 = arith.constant 0 : index
    %c0_82 = arith.constant 0 : index
    %199 = vector.load %arg4[%c0_80, %c0_81, %c0_82] : memref<1x128x512xf32, #tpu.memory_space<vmem>>, vector<1x128x512xf32>
    %200 = vector.shape_cast %199 : vector<1x128x512xf32> to vector<128x512xf32>
    %cst_83 = arith.constant dense<0.000000e+00> : vector<8x512xf32>
    %201 = tpu.matmul %189, %200, %cst_83 {dimension_numbers = #tpu.dot_dimension_numbers<[1], [0], [0], [1], [0, 0, 1, 1], [], []>} : vector<8x128xf32>, vector<128x512xf32>, vector<8x512xf32> -> vector<8x512xf32>
    %202 = arith.addf %198, %201 : vector<8x512xf32>
    %203 = vector.extract_strided_slice %202 {offsets = [0, 0], sizes = [8, 128], strides = [1, 1]} : vector<8x512xf32> to vector<8x128xf32>
    %204 = arith.negf %203 : vector<8x128xf32>
    %205 = math.exp %204 : vector<8x128xf32>
    %cst_84 = arith.constant 1.000000e+00 : f32
    %206 = vector.broadcast %cst_84 : f32 to vector<8x128xf32>
    %207 = arith.addf %206, %205 : vector<8x128xf32>
    %208 = arith.divf %206, %207 : vector<8x128xf32>
    %209 = vector.extract_strided_slice %202 {offsets = [0, 128], sizes = [8, 128], strides = [1, 1]} : vector<8x512xf32> to vector<8x128xf32>
    %210 = arith.negf %209 : vector<8x128xf32>
    %211 = math.exp %210 : vector<8x128xf32>
    %cst_85 = arith.constant 1.000000e+00 : f32
    %212 = vector.broadcast %cst_85 : f32 to vector<8x128xf32>
    %213 = arith.addf %212, %211 : vector<8x128xf32>
    %214 = arith.divf %212, %213 : vector<8x128xf32>
    %215 = vector.extract_strided_slice %202 {offsets = [0, 256], sizes = [8, 128], strides = [1, 1]} : vector<8x512xf32> to vector<8x128xf32>
    %216 = math.tanh %215 : vector<8x128xf32>
    %217 = vector.extract_strided_slice %202 {offsets = [0, 384], sizes = [8, 128], strides = [1, 1]} : vector<8x512xf32> to vector<8x128xf32>
    %218 = arith.negf %217 : vector<8x128xf32>
    %219 = math.exp %218 : vector<8x128xf32>
    %cst_86 = arith.constant 1.000000e+00 : f32
    %220 = vector.broadcast %cst_86 : f32 to vector<8x128xf32>
    %221 = arith.addf %220, %219 : vector<8x128xf32>
    %222 = arith.divf %220, %221 : vector<8x128xf32>
    %223 = arith.mulf %214, %187 : vector<8x128xf32>
    %224 = arith.mulf %208, %216 : vector<8x128xf32>
    %225 = arith.addf %223, %224 : vector<8x128xf32>
    %226 = math.tanh %225 : vector<8x128xf32>
    %227 = arith.mulf %222, %226 : vector<8x128xf32>
    %c0_87 = arith.constant 0 : index
    %228 = arith.index_cast %195 : i32 to index
    %c0_88 = arith.constant 0 : index
    %c0_89 = arith.constant 0 : index
    %229 = vector.load %arg5[%c0_87, %228, %c0_88, %c0_89] : memref<1x8x8x128xf32, #tpu.memory_space<vmem>>, vector<1x1x8x128xf32>
    %230 = vector.shape_cast %229 : vector<1x1x8x128xf32> to vector<8x128xf32>
    %231 = vector.shape_cast %227 : vector<8x128xf32> to vector<1x1x8x128xf32>
    tpu.vector_store %arg5[%c0_87, %228, %c0_88, %c0_89], %231 {strides = array<i32>} : memref<1x8x8x128xf32, #tpu.memory_space<vmem>>, vector<1x1x8x128xf32>,
    %c5_i32 = arith.constant 5 : i32
    %c7_i32_90 = arith.constant 7 : i32
    %232 = arith.subi %c7_i32_90, %c5_i32 : i32
    %233 = arith.select %0, %232, %c5_i32 : i32
    %234 = arith.index_cast %233 : i32 to index
    %c0_91 = arith.constant 0 : index
    %c0_92 = arith.constant 0 : index
    %235 = vector.load %arg8[%234, %c0_91, %c0_92] : memref<8x8x512xf32, #tpu.memory_space<vmem>>, vector<1x8x512xf32>
    %236 = vector.shape_cast %235 : vector<1x8x512xf32> to vector<8x512xf32>
    %c0_93 = arith.constant 0 : index
    %c0_94 = arith.constant 0 : index
    %c0_95 = arith.constant 0 : index
    %237 = vector.load %arg4[%c0_93, %c0_94, %c0_95] : memref<1x128x512xf32, #tpu.memory_space<vmem>>, vector<1x128x512xf32>
    %238 = vector.shape_cast %237 : vector<1x128x512xf32> to vector<128x512xf32>
    %cst_96 = arith.constant dense<0.000000e+00> : vector<8x512xf32>
    %239 = tpu.matmul %227, %238, %cst_96 {dimension_numbers = #tpu.dot_dimension_numbers<[1], [0], [0], [1], [0, 0, 1, 1], [], []>} : vector<8x128xf32>, vector<128x512xf32>, vector<8x512xf32> -> vector<8x512xf32>
    %240 = arith.addf %236, %239 : vector<8x512xf32>
    %241 = vector.extract_strided_slice %240 {offsets = [0, 0], sizes = [8, 128], strides = [1, 1]} : vector<8x512xf32> to vector<8x128xf32>
    %242 = arith.negf %241 : vector<8x128xf32>
    %243 = math.exp %242 : vector<8x128xf32>
    %cst_97 = arith.constant 1.000000e+00 : f32
    %244 = vector.broadcast %cst_97 : f32 to vector<8x128xf32>
    %245 = arith.addf %244, %243 : vector<8x128xf32>
    %246 = arith.divf %244, %245 : vector<8x128xf32>
    %247 = vector.extract_strided_slice %240 {offsets = [0, 128], sizes = [8, 128], strides = [1, 1]} : vector<8x512xf32> to vector<8x128xf32>
    %248 = arith.negf %247 : vector<8x128xf32>
    %249 = math.exp %248 : vector<8x128xf32>
    %cst_98 = arith.constant 1.000000e+00 : f32
    %250 = vector.broadcast %cst_98 : f32 to vector<8x128xf32>
    %251 = arith.addf %250, %249 : vector<8x128xf32>
    %252 = arith.divf %250, %251 : vector<8x128xf32>
    %253 = vector.extract_strided_slice %240 {offsets = [0, 256], sizes = [8, 128], strides = [1, 1]} : vector<8x512xf32> to vector<8x128xf32>
    %254 = math.tanh %253 : vector<8x128xf32>
    %255 = vector.extract_strided_slice %240 {offsets = [0, 384], sizes = [8, 128], strides = [1, 1]} : vector<8x512xf32> to vector<8x128xf32>
    %256 = arith.negf %255 : vector<8x128xf32>
    %257 = math.exp %256 : vector<8x128xf32>
    %cst_99 = arith.constant 1.000000e+00 : f32
    %258 = vector.broadcast %cst_99 : f32 to vector<8x128xf32>
    %259 = arith.addf %258, %257 : vector<8x128xf32>
    %260 = arith.divf %258, %259 : vector<8x128xf32>
    %261 = arith.mulf %252, %225 : vector<8x128xf32>
    %262 = arith.mulf %246, %254 : vector<8x128xf32>
    %263 = arith.addf %261, %262 : vector<8x128xf32>
    %264 = math.tanh %263 : vector<8x128xf32>
    %265 = arith.mulf %260, %264 : vector<8x128xf32>
    %c0_100 = arith.constant 0 : index
    %266 = arith.index_cast %233 : i32 to index
    %c0_101 = arith.constant 0 : index
    %c0_102 = arith.constant 0 : index
    %267 = vector.load %arg5[%c0_100, %266, %c0_101, %c0_102] : memref<1x8x8x128xf32, #tpu.memory_space<vmem>>, vector<1x1x8x128xf32>
    %268 = vector.shape_cast %267 : vector<1x1x8x128xf32> to vector<8x128xf32>
    %269 = vector.shape_cast %265 : vector<8x128xf32> to vector<1x1x8x128xf32>
    tpu.vector_store %arg5[%c0_100, %266, %c0_101, %c0_102], %269 {strides = array<i32>} : memref<1x8x8x128xf32, #tpu.memory_space<vmem>>, vector<1x1x8x128xf32>,
    %c6_i32 = arith.constant 6 : i32
    %c7_i32_103 = arith.constant 7 : i32
    %270 = arith.subi %c7_i32_103, %c6_i32 : i32
    %271 = arith.select %0, %270, %c6_i32 : i32
    %272 = arith.index_cast %271 : i32 to index
    %c0_104 = arith.constant 0 : index
    %c0_105 = arith.constant 0 : index
    %273 = vector.load %arg8[%272, %c0_104, %c0_105] : memref<8x8x512xf32, #tpu.memory_space<vmem>>, vector<1x8x512xf32>
    %274 = vector.shape_cast %273 : vector<1x8x512xf32> to vector<8x512xf32>
    %c0_106 = arith.constant 0 : index
    %c0_107 = arith.constant 0 : index
    %c0_108 = arith.constant 0 : index
    %275 = vector.load %arg4[%c0_106, %c0_107, %c0_108] : memref<1x128x512xf32, #tpu.memory_space<vmem>>, vector<1x128x512xf32>
    %276 = vector.shape_cast %275 : vector<1x128x512xf32> to vector<128x512xf32>
    %cst_109 = arith.constant dense<0.000000e+00> : vector<8x512xf32>
    %277 = tpu.matmul %265, %276, %cst_109 {dimension_numbers = #tpu.dot_dimension_numbers<[1], [0], [0], [1], [0, 0, 1, 1], [], []>} : vector<8x128xf32>, vector<128x512xf32>, vector<8x512xf32> -> vector<8x512xf32>
    %278 = arith.addf %274, %277 : vector<8x512xf32>
    %279 = vector.extract_strided_slice %278 {offsets = [0, 0], sizes = [8, 128], strides = [1, 1]} : vector<8x512xf32> to vector<8x128xf32>
    %280 = arith.negf %279 : vector<8x128xf32>
    %281 = math.exp %280 : vector<8x128xf32>
    %cst_110 = arith.constant 1.000000e+00 : f32
    %282 = vector.broadcast %cst_110 : f32 to vector<8x128xf32>
    %283 = arith.addf %282, %281 : vector<8x128xf32>
    %284 = arith.divf %282, %283 : vector<8x128xf32>
    %285 = vector.extract_strided_slice %278 {offsets = [0, 128], sizes = [8, 128], strides = [1, 1]} : vector<8x512xf32> to vector<8x128xf32>
    %286 = arith.negf %285 : vector<8x128xf32>
    %287 = math.exp %286 : vector<8x128xf32>
    %cst_111 = arith.constant 1.000000e+00 : f32
    %288 = vector.broadcast %cst_111 : f32 to vector<8x128xf32>
    %289 = arith.addf %288, %287 : vector<8x128xf32>
    %290 = arith.divf %288, %289 : vector<8x128xf32>
    %291 = vector.extract_strided_slice %278 {offsets = [0, 256], sizes = [8, 128], strides = [1, 1]} : vector<8x512xf32> to vector<8x128xf32>
    %292 = math.tanh %291 : vector<8x128xf32>
    %293 = vector.extract_strided_slice %278 {offsets = [0, 384], sizes = [8, 128], strides = [1, 1]} : vector<8x512xf32> to vector<8x128xf32>
    %294 = arith.negf %293 : vector<8x128xf32>
    %295 = math.exp %294 : vector<8x128xf32>
    %cst_112 = arith.constant 1.000000e+00 : f32
    %296 = vector.broadcast %cst_112 : f32 to vector<8x128xf32>
    %297 = arith.addf %296, %295 : vector<8x128xf32>
    %298 = arith.divf %296, %297 : vector<8x128xf32>
    %299 = arith.mulf %290, %263 : vector<8x128xf32>
    %300 = arith.mulf %284, %292 : vector<8x128xf32>
    %301 = arith.addf %299, %300 : vector<8x128xf32>
    %302 = math.tanh %301 : vector<8x128xf32>
    %303 = arith.mulf %298, %302 : vector<8x128xf32>
    %c0_113 = arith.constant 0 : index
    %304 = arith.index_cast %271 : i32 to index
    %c0_114 = arith.constant 0 : index
    %c0_115 = arith.constant 0 : index
    %305 = vector.load %arg5[%c0_113, %304, %c0_114, %c0_115] : memref<1x8x8x128xf32, #tpu.memory_space<vmem>>, vector<1x1x8x128xf32>
    %306 = vector.shape_cast %305 : vector<1x1x8x128xf32> to vector<8x128xf32>
    %307 = vector.shape_cast %303 : vector<8x128xf32> to vector<1x1x8x128xf32>
    tpu.vector_store %arg5[%c0_113, %304, %c0_114, %c0_115], %307 {strides = array<i32>} : memref<1x8x8x128xf32, #tpu.memory_space<vmem>>, vector<1x1x8x128xf32>,
    %c7_i32_116 = arith.constant 7 : i32
    %c7_i32_117 = arith.constant 7 : i32
    %308 = arith.subi %c7_i32_117, %c7_i32_116 : i32
    %309 = arith.select %0, %308, %c7_i32_116 : i32
    %310 = arith.index_cast %309 : i32 to index
    %c0_118 = arith.constant 0 : index
    %c0_119 = arith.constant 0 : index
    %311 = vector.load %arg8[%310, %c0_118, %c0_119] : memref<8x8x512xf32, #tpu.memory_space<vmem>>, vector<1x8x512xf32>
    %312 = vector.shape_cast %311 : vector<1x8x512xf32> to vector<8x512xf32>
    %c0_120 = arith.constant 0 : index
    %c0_121 = arith.constant 0 : index
    %c0_122 = arith.constant 0 : index
    %313 = vector.load %arg4[%c0_120, %c0_121, %c0_122] : memref<1x128x512xf32, #tpu.memory_space<vmem>>, vector<1x128x512xf32>
    %314 = vector.shape_cast %313 : vector<1x128x512xf32> to vector<128x512xf32>
    %cst_123 = arith.constant dense<0.000000e+00> : vector<8x512xf32>
    %315 = tpu.matmul %303, %314, %cst_123 {dimension_numbers = #tpu.dot_dimension_numbers<[1], [0], [0], [1], [0, 0, 1, 1], [], []>} : vector<8x128xf32>, vector<128x512xf32>, vector<8x512xf32> -> vector<8x512xf32>
    %316 = arith.addf %312, %315 : vector<8x512xf32>
    %317 = vector.extract_strided_slice %316 {offsets = [0, 0], sizes = [8, 128], strides = [1, 1]} : vector<8x512xf32> to vector<8x128xf32>
    %318 = arith.negf %317 : vector<8x128xf32>
    %319 = math.exp %318 : vector<8x128xf32>
    %cst_124 = arith.constant 1.000000e+00 : f32
    %320 = vector.broadcast %cst_124 : f32 to vector<8x128xf32>
    %321 = arith.addf %320, %319 : vector<8x128xf32>
    %322 = arith.divf %320, %321 : vector<8x128xf32>
    %323 = vector.extract_strided_slice %316 {offsets = [0, 128], sizes = [8, 128], strides = [1, 1]} : vector<8x512xf32> to vector<8x128xf32>
    %324 = arith.negf %323 : vector<8x128xf32>
    %325 = math.exp %324 : vector<8x128xf32>
    %cst_125 = arith.constant 1.000000e+00 : f32
    %326 = vector.broadcast %cst_125 : f32 to vector<8x128xf32>
    %327 = arith.addf %326, %325 : vector<8x128xf32>
    %328 = arith.divf %326, %327 : vector<8x128xf32>
    %329 = vector.extract_strided_slice %316 {offsets = [0, 256], sizes = [8, 128], strides = [1, 1]} : vector<8x512xf32> to vector<8x128xf32>
    %330 = math.tanh %329 : vector<8x128xf32>
    %331 = vector.extract_strided_slice %316 {offsets = [0, 384], sizes = [8, 128], strides = [1, 1]} : vector<8x512xf32> to vector<8x128xf32>
    %332 = arith.negf %331 : vector<8x128xf32>
    %333 = math.exp %332 : vector<8x128xf32>
    %cst_126 = arith.constant 1.000000e+00 : f32
    %334 = vector.broadcast %cst_126 : f32 to vector<8x128xf32>
    %335 = arith.addf %334, %333 : vector<8x128xf32>
    %336 = arith.divf %334, %335 : vector<8x128xf32>
    %337 = arith.mulf %328, %301 : vector<8x128xf32>
    %338 = arith.mulf %322, %330 : vector<8x128xf32>
    %339 = arith.addf %337, %338 : vector<8x128xf32>
    %340 = math.tanh %339 : vector<8x128xf32>
    %341 = arith.mulf %336, %340 : vector<8x128xf32>
    %c0_127 = arith.constant 0 : index
    %342 = arith.index_cast %309 : i32 to index
    %c0_128 = arith.constant 0 : index
    %c0_129 = arith.constant 0 : index
    %343 = vector.load %arg5[%c0_127, %342, %c0_128, %c0_129] : memref<1x8x8x128xf32, #tpu.memory_space<vmem>>, vector<1x1x8x128xf32>
    %344 = vector.shape_cast %343 : vector<1x1x8x128xf32> to vector<8x128xf32>
    %345 = vector.shape_cast %341 : vector<8x128xf32> to vector<1x1x8x128xf32>
    tpu.vector_store %arg5[%c0_127, %342, %c0_128, %c0_129], %345 {strides = array<i32>} : memref<1x8x8x128xf32, #tpu.memory_space<vmem>>, vector<1x1x8x128xf32>,
    %c8_i32 = arith.constant 8 : i32
    %c0_130 = arith.constant 0 : index
    %c0_131 = arith.constant 0 : index
    %c0_132 = arith.constant 0 : index
    %346 = vector.load %arg6[%c0_130, %c0_131, %c0_132] : memref<1x8x128xf32, #tpu.memory_space<vmem>>, vector<1x8x128xf32>
    %347 = vector.shape_cast %346 : vector<1x8x128xf32> to vector<8x128xf32>
    %348 = vector.shape_cast %341 : vector<8x128xf32> to vector<1x8x128xf32>
    tpu.vector_store %arg6[%c0_130, %c0_131, %c0_132], %348 {strides = array<i32>} : memref<1x8x128xf32, #tpu.memory_space<vmem>>, vector<1x8x128xf32>,
    %c0_133 = arith.constant 0 : index
    %c0_134 = arith.constant 0 : index
    %c0_135 = arith.constant 0 : index
    %349 = vector.load %arg7[%c0_133, %c0_134, %c0_135] : memref<1x8x128xf32, #tpu.memory_space<vmem>>, vector<1x8x128xf32>
    %350 = vector.shape_cast %349 : vector<1x8x128xf32> to vector<8x128xf32>
    %351 = vector.shape_cast %339 : vector<8x128xf32> to vector<1x8x128xf32>
    tpu.vector_store %arg7[%c0_133, %c0_134, %c0_135], %351 {strides = array<i32>} : memref<1x8x128xf32, #tpu.memory_space<vmem>>, vector<1x8x128xf32>,
    return
  }
  func.func @transform_0(%arg0: i32) -> (i32, i32) {
    %c0_i32 = arith.constant 0 : i32
    %c0_i32_0 = arith.constant 0 : i32
    %c0_i32_1 = arith.constant 0 : i32
    return %c0_i32, %c0_i32_0 : i32, i32
  }
  func.func @transform_1(%arg0: i32) -> (i32, i32, i32) {
    %c0_i32 = arith.constant 0 : i32
    %c0_i32_0 = arith.constant 0 : i32
    %c0_i32_1 = arith.constant 0 : i32
    return %arg0, %c0_i32, %c0_i32_0 : i32, i32, i32
  }
  func.func @transform_2(%arg0: i32) -> (i32, i32, i32) {
    %c0_i32 = arith.constant 0 : i32
    %c0_i32_0 = arith.constant 0 : i32
    %c0_i32_1 = arith.constant 0 : i32
    return %arg0, %c0_i32, %c0_i32_0 : i32, i32, i32
  }
  func.func @transform_3(%arg0: i32) -> (i32, i32, i32) {
    %c0_i32 = arith.constant 0 : i32
    %c0_i32_0 = arith.constant 0 : i32
    %c0_i32_1 = arith.constant 0 : i32
    return %arg0, %c0_i32, %c0_i32_0 : i32, i32, i32
  }
  func.func @transform_4(%arg0: i32) -> (i32, i32, i32, i32) {
    %c0_i32 = arith.constant 0 : i32
    %c0_i32_0 = arith.constant 0 : i32
    %c0_i32_1 = arith.constant 0 : i32
    %c0_i32_2 = arith.constant 0 : i32
    return %arg0, %c0_i32, %c0_i32_0, %c0_i32_1 : i32, i32, i32, i32
  }
  func.func @transform_5(%arg0: i32) -> (i32, i32, i32) {
    %c0_i32 = arith.constant 0 : i32
    %c0_i32_0 = arith.constant 0 : i32
    %c0_i32_1 = arith.constant 0 : i32
    return %arg0, %c0_i32, %c0_i32_0 : i32, i32, i32
  }
  func.func @transform_6(%arg0: i32) -> (i32, i32, i32) {
    %c0_i32 = arith.constant 0 : i32
    %c0_i32_0 = arith.constant 0 : i32
    %c0_i32_1 = arith.constant 0 : i32
    return %arg0, %c0_i32, %c0_i32_0 : i32, i32, i32
  }
}

module attributes {stable_mosaic.version = 11 : i64} {
  func.func @_decoder_kernel(%arg0: memref<8xi32, #tpu.memory_space<smem>>, %arg1: memref<8x8x1xi32, #tpu.memory_space<vmem>>, %arg2: memref<2x8x8x128xf32, #tpu.memory_space<vmem>>, %arg3: memref<2x8x128xf32, #tpu.memory_space<vmem>>, %arg4: memref<2x8x128xf32, #tpu.memory_space<vmem>>, %arg5: memref<256x512xf32, #tpu.memory_space<vmem>>, %arg6: memref<128x512xf32, #tpu.memory_space<vmem>>, %arg7: memref<1x512xf32, #tpu.memory_space<vmem>>, %arg8: memref<128x128xf32, #tpu.memory_space<vmem>>, %arg9: memref<1x128xf32, #tpu.memory_space<vmem>>, %arg10: memref<8x8x128xf32, #tpu.memory_space<vmem>>) attributes {dimension_semantics = [], scalar_prefetch = 0 : i64, scratch_operands = 0 : i64, tpu.core_type = #tpu.core_type<tc>} {
    %c0 = arith.constant 0 : index
    %c0_0 = arith.constant 0 : index
    %c0_1 = arith.constant 0 : index
    %c0_2 = arith.constant 0 : index
    %0 = vector.load %arg2[%c0, %c0_0, %c0_1, %c0_2] : memref<2x8x8x128xf32, #tpu.memory_space<vmem>>, vector<1x8x8x128xf32>
    %1 = vector.shape_cast %0 : vector<1x8x8x128xf32> to vector<8x8x128xf32>
    %c1 = arith.constant 1 : index
    %c0_3 = arith.constant 0 : index
    %c0_4 = arith.constant 0 : index
    %c0_5 = arith.constant 0 : index
    %2 = vector.load %arg2[%c1, %c0_3, %c0_4, %c0_5] : memref<2x8x8x128xf32, #tpu.memory_space<vmem>>, vector<1x8x8x128xf32>
    %3 = vector.shape_cast %2 : vector<1x8x8x128xf32> to vector<8x8x128xf32>
    %4 = arith.addf %1, %3 : vector<8x8x128xf32>
    %c0_6 = arith.constant 0 : index
    %c0_7 = arith.constant 0 : index
    %c0_8 = arith.constant 0 : index
    %5 = vector.load %arg3[%c0_6, %c0_7, %c0_8] : memref<2x8x128xf32, #tpu.memory_space<vmem>>, vector<1x8x128xf32>
    %6 = vector.shape_cast %5 : vector<1x8x128xf32> to vector<8x128xf32>
    %c1_9 = arith.constant 1 : index
    %c0_10 = arith.constant 0 : index
    %c0_11 = arith.constant 0 : index
    %7 = vector.load %arg3[%c1_9, %c0_10, %c0_11] : memref<2x8x128xf32, #tpu.memory_space<vmem>>, vector<1x8x128xf32>
    %8 = vector.shape_cast %7 : vector<1x8x128xf32> to vector<8x128xf32>
    %9 = arith.addf %6, %8 : vector<8x128xf32>
    %c0_12 = arith.constant 0 : index
    %c0_13 = arith.constant 0 : index
    %c0_14 = arith.constant 0 : index
    %10 = vector.load %arg4[%c0_12, %c0_13, %c0_14] : memref<2x8x128xf32, #tpu.memory_space<vmem>>, vector<1x8x128xf32>
    %11 = vector.shape_cast %10 : vector<1x8x128xf32> to vector<8x128xf32>
    %c1_15 = arith.constant 1 : index
    %c0_16 = arith.constant 0 : index
    %c0_17 = arith.constant 0 : index
    %12 = vector.load %arg4[%c1_15, %c0_16, %c0_17] : memref<2x8x128xf32, #tpu.memory_space<vmem>>, vector<1x8x128xf32>
    %13 = vector.shape_cast %12 : vector<1x8x128xf32> to vector<8x128xf32>
    %14 = arith.addf %11, %13 : vector<8x128xf32>
    %cst = arith.constant 0.000000e+00 : f32
    %15 = vector.broadcast %cst : f32 to vector<8x128xf32>
    %c0_18 = arith.constant 0 : index
    %c0_19 = arith.constant 0 : index
    %c0_20 = arith.constant 0 : index
    %16 = vector.load %arg10[%c0_18, %c0_19, %c0_20] : memref<8x8x128xf32, #tpu.memory_space<vmem>>, vector<1x8x128xf32>
    %17 = vector.shape_cast %16 : vector<1x8x128xf32> to vector<8x128xf32>
    %18 = vector.shape_cast %15 : vector<8x128xf32> to vector<1x8x128xf32>
    tpu.vector_store %arg10[%c0_18, %c0_19, %c0_20], %18 {strides = array<i32>} : memref<8x8x128xf32, #tpu.memory_space<vmem>>, vector<1x8x128xf32>,
    %19 = tpu.iota {dimensions = array<i32: 1>} : vector<8x128xi32>
    %c0_21 = arith.constant 0 : index
    %c0_22 = arith.constant 0 : index
    %c0_23 = arith.constant 0 : index
    %20 = vector.load %arg1[%c0_21, %c0_22, %c0_23] : memref<8x8x1xi32, #tpu.memory_space<vmem>>, vector<1x8x1xi32>
    %21 = vector.shape_cast %20 : vector<1x8x1xi32> to vector<8x1xi32>
    %22 = vector.broadcast %21 : vector<8x1xi32> to vector<8x128xi32>
    %23 = arith.cmpi eq, %19, %22 : vector<8x128xi32>
    %24 = arith.extui %23 : vector<8x128xi1> to vector<8x128xi32>
    %25 = arith.sitofp %24 : vector<8x128xi32> to vector<8x128xf32>
    %c1_i32 = arith.constant 1 : i32
    %26 = vector.shape_cast %9 : vector<8x128xf32> to vector<1x8x128xf32>
    %27 = vector.broadcast %26 : vector<1x8x128xf32> to vector<8x8x128xf32>
    %28 = arith.mulf %4, %27 : vector<8x8x128xf32>
    %cst_24 = arith.constant dense<0.000000e+00> : vector<8x8xf32>
    %29 = vector.multi_reduction <add>, %28, %cst_24 [2] : vector<8x8x128xf32> to vector<8x8xf32>
    %30 = vector.shape_cast %29 : vector<8x8xf32> to vector<8x8x1xf32>
    %cst_25 = arith.constant dense<0xFF800000> : vector<8x1xf32>
    %31 = vector.multi_reduction <maximumf>, %30, %cst_25 [0] : vector<8x8x1xf32> to vector<8x1xf32>
    %32 = vector.shape_cast %31 : vector<8x1xf32> to vector<1x8x1xf32>
    %33 = vector.broadcast %32 : vector<1x8x1xf32> to vector<8x8x1xf32>
    %34 = arith.subf %30, %33 : vector<8x8x1xf32>
    %35 = math.exp %34 : vector<8x8x1xf32>
    %cst_26 = arith.constant dense<0.000000e+00> : vector<8x1xf32>
    %36 = vector.multi_reduction <add>, %35, %cst_26 [0] : vector<8x8x1xf32> to vector<8x1xf32>
    %37 = vector.shape_cast %36 : vector<8x1xf32> to vector<1x8x1xf32>
    %38 = tpu.reciprocal %37 {approx = true} : vector<1x8x1xf32> -> vector<1x8x1xf32>
    %39 = vector.broadcast %38 : vector<1x8x1xf32> to vector<8x8x1xf32>
    %40 = arith.mulf %35, %39 : vector<8x8x1xf32>
    %41 = vector.broadcast %40 : vector<8x8x1xf32> to vector<8x8x128xf32>
    %42 = arith.mulf %41, %4 : vector<8x8x128xf32>
    %cst_27 = arith.constant dense<0.000000e+00> : vector<8x128xf32>
    %43 = vector.multi_reduction <add>, %42, %cst_27 [0] : vector<8x8x128xf32> to vector<8x128xf32>
    %44 = tpu.concatenate %25, %9 in 1 : vector<8x128xf32>, vector<8x128xf32> -> vector<8x256xf32>
    %c0_28 = arith.constant 0 : index
    %c0_29 = arith.constant 0 : index
    %45 = vector.load %arg5[%c0_28, %c0_29] : memref<256x512xf32, #tpu.memory_space<vmem>>, vector<256x512xf32>
    %cst_30 = arith.constant dense<0.000000e+00> : vector<8x512xf32>
    %46 = tpu.matmul %44, %45, %cst_30 {dimension_numbers = #tpu.dot_dimension_numbers<[1], [0], [0], [1], [0, 0, 1, 1], [], []>} : vector<8x256xf32>, vector<256x512xf32>, vector<8x512xf32> -> vector<8x512xf32>
    %c0_31 = arith.constant 0 : index
    %c0_32 = arith.constant 0 : index
    %47 = vector.load %arg6[%c0_31, %c0_32] : memref<128x512xf32, #tpu.memory_space<vmem>>, vector<128x512xf32>
    %cst_33 = arith.constant dense<0.000000e+00> : vector<8x512xf32>
    %48 = tpu.matmul %43, %47, %cst_33 {dimension_numbers = #tpu.dot_dimension_numbers<[1], [0], [0], [1], [0, 0, 1, 1], [], []>} : vector<8x128xf32>, vector<128x512xf32>, vector<8x512xf32> -> vector<8x512xf32>
    %49 = arith.addf %46, %48 : vector<8x512xf32>
    %c0_34 = arith.constant 0 : index
    %c0_35 = arith.constant 0 : index
    %50 = vector.load %arg7[%c0_34, %c0_35] : memref<1x512xf32, #tpu.memory_space<vmem>>, vector<1x512xf32>
    %51 = vector.broadcast %50 : vector<1x512xf32> to vector<8x512xf32>
    %52 = arith.addf %49, %51 : vector<8x512xf32>
    %53 = vector.extract_strided_slice %52 {offsets = [0, 0], sizes = [8, 128], strides = [1, 1]} : vector<8x512xf32> to vector<8x128xf32>
    %54 = arith.negf %53 : vector<8x128xf32>
    %55 = math.exp %54 : vector<8x128xf32>
    %cst_36 = arith.constant 1.000000e+00 : f32
    %56 = vector.broadcast %cst_36 : f32 to vector<8x128xf32>
    %57 = arith.addf %56, %55 : vector<8x128xf32>
    %58 = arith.divf %56, %57 : vector<8x128xf32>
    %59 = vector.extract_strided_slice %52 {offsets = [0, 128], sizes = [8, 128], strides = [1, 1]} : vector<8x512xf32> to vector<8x128xf32>
    %60 = arith.negf %59 : vector<8x128xf32>
    %61 = math.exp %60 : vector<8x128xf32>
    %cst_37 = arith.constant 1.000000e+00 : f32
    %62 = vector.broadcast %cst_37 : f32 to vector<8x128xf32>
    %63 = arith.addf %62, %61 : vector<8x128xf32>
    %64 = arith.divf %62, %63 : vector<8x128xf32>
    %65 = vector.extract_strided_slice %52 {offsets = [0, 256], sizes = [8, 128], strides = [1, 1]} : vector<8x512xf32> to vector<8x128xf32>
    %66 = math.tanh %65 : vector<8x128xf32>
    %67 = vector.extract_strided_slice %52 {offsets = [0, 384], sizes = [8, 128], strides = [1, 1]} : vector<8x512xf32> to vector<8x128xf32>
    %68 = arith.negf %67 : vector<8x128xf32>
    %69 = math.exp %68 : vector<8x128xf32>
    %cst_38 = arith.constant 1.000000e+00 : f32
    %70 = vector.broadcast %cst_38 : f32 to vector<8x128xf32>
    %71 = arith.addf %70, %69 : vector<8x128xf32>
    %72 = arith.divf %70, %71 : vector<8x128xf32>
    %73 = arith.mulf %64, %14 : vector<8x128xf32>
    %74 = arith.mulf %58, %66 : vector<8x128xf32>
    %75 = arith.addf %73, %74 : vector<8x128xf32>
    %76 = math.tanh %75 : vector<8x128xf32>
    %77 = arith.mulf %72, %76 : vector<8x128xf32>
    %c0_39 = arith.constant 0 : index
    %c0_40 = arith.constant 0 : index
    %78 = vector.load %arg8[%c0_39, %c0_40] : memref<128x128xf32, #tpu.memory_space<vmem>>, vector<128x128xf32>
    %cst_41 = arith.constant dense<0.000000e+00> : vector<8x128xf32>
    %79 = tpu.matmul %77, %78, %cst_41 {dimension_numbers = #tpu.dot_dimension_numbers<[1], [0], [0], [1], [0, 0, 1, 1], [], []>} : vector<8x128xf32>, vector<128x128xf32>, vector<8x128xf32> -> vector<8x128xf32>
    %c0_42 = arith.constant 0 : index
    %c0_43 = arith.constant 0 : index
    %80 = vector.load %arg9[%c0_42, %c0_43] : memref<1x128xf32, #tpu.memory_space<vmem>>, vector<1x128xf32>
    %81 = vector.broadcast %80 : vector<1x128xf32> to vector<8x128xf32>
    %82 = arith.addf %79, %81 : vector<8x128xf32>
    %83 = arith.index_cast %c1_i32 : i32 to index
    %c0_44 = arith.constant 0 : index
    %c0_45 = arith.constant 0 : index
    %84 = vector.load %arg10[%83, %c0_44, %c0_45] : memref<8x8x128xf32, #tpu.memory_space<vmem>>, vector<1x8x128xf32>
    %85 = vector.shape_cast %84 : vector<1x8x128xf32> to vector<8x128xf32>
    %86 = vector.shape_cast %82 : vector<8x128xf32> to vector<1x8x128xf32>
    tpu.vector_store %arg10[%83, %c0_44, %c0_45], %86 {strides = array<i32>} : memref<8x8x128xf32, #tpu.memory_space<vmem>>, vector<1x8x128xf32>,
    %cst_46 = arith.constant dense<0xFF800000> : vector<8xf32>
    %87 = vector.multi_reduction <maximumf>, %82, %cst_46 [1] : vector<8x128xf32> to vector<8xf32>
    %88 = vector.shape_cast %87 : vector<8xf32> to vector<8x1xf32>
    %89 = vector.broadcast %88 : vector<8x1xf32> to vector<8x128xf32>
    %90 = arith.cmpf oeq, %82, %89 : vector<8x128xf32>
    %c128_i32 = arith.constant 128 : i32
    %91 = vector.broadcast %c128_i32 : i32 to vector<8x128xi32>
    %92 = arith.select %90, %19, %91 : vector<8x128xi1>, vector<8x128xi32>
    %cst_47 = arith.constant dense<2147483647> : vector<8xi32>
    %93 = vector.multi_reduction <minsi>, %92, %cst_47 [1] : vector<8x128xi32> to vector<8xi32>
    %94 = vector.shape_cast %93 : vector<8xi32> to vector<8x1xi32>
    %95 = vector.broadcast %94 : vector<8x1xi32> to vector<8x128xi32>
    %96 = arith.cmpi eq, %19, %95 : vector<8x128xi32>
    %97 = arith.extui %96 : vector<8x128xi1> to vector<8x128xi32>
    %98 = arith.sitofp %97 : vector<8x128xi32> to vector<8x128xf32>
    %99 = arith.index_cast %c1_i32 : i32 to index
    %100 = memref.load %arg0[%99] : memref<8xi32, #tpu.memory_space<smem>>
    %101 = arith.sitofp %100 : i32 to f32
    %102 = arith.index_cast %c1_i32 : i32 to index
    %c0_48 = arith.constant 0 : index
    %c0_49 = arith.constant 0 : index
    %103 = vector.load %arg1[%102, %c0_48, %c0_49] : memref<8x8x1xi32, #tpu.memory_space<vmem>>, vector<1x8x1xi32>
    %104 = vector.shape_cast %103 : vector<1x8x1xi32> to vector<8x1xi32>
    %105 = vector.broadcast %104 : vector<8x1xi32> to vector<8x128xi32>
    %106 = arith.cmpi eq, %19, %105 : vector<8x128xi32>
    %107 = arith.extui %106 : vector<8x128xi1> to vector<8x128xi32>
    %108 = arith.sitofp %107 : vector<8x128xi32> to vector<8x128xf32>
    %109 = vector.broadcast %101 : f32 to vector<8x128xf32>
    %110 = arith.mulf %109, %108 : vector<8x128xf32>
    %cst_50 = arith.constant 1.000000e+00 : f32
    %111 = arith.subf %cst_50, %101 : f32
    %112 = vector.broadcast %111 : f32 to vector<8x128xf32>
    %113 = arith.mulf %112, %98 : vector<8x128xf32>
    %114 = arith.addf %110, %113 : vector<8x128xf32>
    %c2_i32 = arith.constant 2 : i32
    %115 = vector.shape_cast %77 : vector<8x128xf32> to vector<1x8x128xf32>
    %116 = vector.broadcast %115 : vector<1x8x128xf32> to vector<8x8x128xf32>
    %117 = arith.mulf %4, %116 : vector<8x8x128xf32>
    %cst_51 = arith.constant dense<0.000000e+00> : vector<8x8xf32>
    %118 = vector.multi_reduction <add>, %117, %cst_51 [2] : vector<8x8x128xf32> to vector<8x8xf32>
    %119 = vector.shape_cast %118 : vector<8x8xf32> to vector<8x8x1xf32>
    %cst_52 = arith.constant dense<0xFF800000> : vector<8x1xf32>
    %120 = vector.multi_reduction <maximumf>, %119, %cst_52 [0] : vector<8x8x1xf32> to vector<8x1xf32>
    %121 = vector.shape_cast %120 : vector<8x1xf32> to vector<1x8x1xf32>
    %122 = vector.broadcast %121 : vector<1x8x1xf32> to vector<8x8x1xf32>
    %123 = arith.subf %119, %122 : vector<8x8x1xf32>
    %124 = math.exp %123 : vector<8x8x1xf32>
    %cst_53 = arith.constant dense<0.000000e+00> : vector<8x1xf32>
    %125 = vector.multi_reduction <add>, %124, %cst_53 [0] : vector<8x8x1xf32> to vector<8x1xf32>
    %126 = vector.shape_cast %125 : vector<8x1xf32> to vector<1x8x1xf32>
    %127 = tpu.reciprocal %126 {approx = true} : vector<1x8x1xf32> -> vector<1x8x1xf32>
    %128 = vector.broadcast %127 : vector<1x8x1xf32> to vector<8x8x1xf32>
    %129 = arith.mulf %124, %128 : vector<8x8x1xf32>
    %130 = vector.broadcast %129 : vector<8x8x1xf32> to vector<8x8x128xf32>
    %131 = arith.mulf %130, %4 : vector<8x8x128xf32>
    %cst_54 = arith.constant dense<0.000000e+00> : vector<8x128xf32>
    %132 = vector.multi_reduction <add>, %131, %cst_54 [0] : vector<8x8x128xf32> to vector<8x128xf32>
    %133 = tpu.concatenate %114, %77 in 1 : vector<8x128xf32>, vector<8x128xf32> -> vector<8x256xf32>
    %c0_55 = arith.constant 0 : index
    %c0_56 = arith.constant 0 : index
    %134 = vector.load %arg5[%c0_55, %c0_56] : memref<256x512xf32, #tpu.memory_space<vmem>>, vector<256x512xf32>
    %cst_57 = arith.constant dense<0.000000e+00> : vector<8x512xf32>
    %135 = tpu.matmul %133, %134, %cst_57 {dimension_numbers = #tpu.dot_dimension_numbers<[1], [0], [0], [1], [0, 0, 1, 1], [], []>} : vector<8x256xf32>, vector<256x512xf32>, vector<8x512xf32> -> vector<8x512xf32>
    %c0_58 = arith.constant 0 : index
    %c0_59 = arith.constant 0 : index
    %136 = vector.load %arg6[%c0_58, %c0_59] : memref<128x512xf32, #tpu.memory_space<vmem>>, vector<128x512xf32>
    %cst_60 = arith.constant dense<0.000000e+00> : vector<8x512xf32>
    %137 = tpu.matmul %132, %136, %cst_60 {dimension_numbers = #tpu.dot_dimension_numbers<[1], [0], [0], [1], [0, 0, 1, 1], [], []>} : vector<8x128xf32>, vector<128x512xf32>, vector<8x512xf32> -> vector<8x512xf32>
    %138 = arith.addf %135, %137 : vector<8x512xf32>
    %c0_61 = arith.constant 0 : index
    %c0_62 = arith.constant 0 : index
    %139 = vector.load %arg7[%c0_61, %c0_62] : memref<1x512xf32, #tpu.memory_space<vmem>>, vector<1x512xf32>
    %140 = vector.broadcast %139 : vector<1x512xf32> to vector<8x512xf32>
    %141 = arith.addf %138, %140 : vector<8x512xf32>
    %142 = vector.extract_strided_slice %141 {offsets = [0, 0], sizes = [8, 128], strides = [1, 1]} : vector<8x512xf32> to vector<8x128xf32>
    %143 = arith.negf %142 : vector<8x128xf32>
    %144 = math.exp %143 : vector<8x128xf32>
    %cst_63 = arith.constant 1.000000e+00 : f32
    %145 = vector.broadcast %cst_63 : f32 to vector<8x128xf32>
    %146 = arith.addf %145, %144 : vector<8x128xf32>
    %147 = arith.divf %145, %146 : vector<8x128xf32>
    %148 = vector.extract_strided_slice %141 {offsets = [0, 128], sizes = [8, 128], strides = [1, 1]} : vector<8x512xf32> to vector<8x128xf32>
    %149 = arith.negf %148 : vector<8x128xf32>
    %150 = math.exp %149 : vector<8x128xf32>
    %cst_64 = arith.constant 1.000000e+00 : f32
    %151 = vector.broadcast %cst_64 : f32 to vector<8x128xf32>
    %152 = arith.addf %151, %150 : vector<8x128xf32>
    %153 = arith.divf %151, %152 : vector<8x128xf32>
    %154 = vector.extract_strided_slice %141 {offsets = [0, 256], sizes = [8, 128], strides = [1, 1]} : vector<8x512xf32> to vector<8x128xf32>
    %155 = math.tanh %154 : vector<8x128xf32>
    %156 = vector.extract_strided_slice %141 {offsets = [0, 384], sizes = [8, 128], strides = [1, 1]} : vector<8x512xf32> to vector<8x128xf32>
    %157 = arith.negf %156 : vector<8x128xf32>
    %158 = math.exp %157 : vector<8x128xf32>
    %cst_65 = arith.constant 1.000000e+00 : f32
    %159 = vector.broadcast %cst_65 : f32 to vector<8x128xf32>
    %160 = arith.addf %159, %158 : vector<8x128xf32>
    %161 = arith.divf %159, %160 : vector<8x128xf32>
    %162 = arith.mulf %153, %75 : vector<8x128xf32>
    %163 = arith.mulf %147, %155 : vector<8x128xf32>
    %164 = arith.addf %162, %163 : vector<8x128xf32>
    %165 = math.tanh %164 : vector<8x128xf32>
    %166 = arith.mulf %161, %165 : vector<8x128xf32>
    %c0_66 = arith.constant 0 : index
    %c0_67 = arith.constant 0 : index
    %167 = vector.load %arg8[%c0_66, %c0_67] : memref<128x128xf32, #tpu.memory_space<vmem>>, vector<128x128xf32>
    %cst_68 = arith.constant dense<0.000000e+00> : vector<8x128xf32>
    %168 = tpu.matmul %166, %167, %cst_68 {dimension_numbers = #tpu.dot_dimension_numbers<[1], [0], [0], [1], [0, 0, 1, 1], [], []>} : vector<8x128xf32>, vector<128x128xf32>, vector<8x128xf32> -> vector<8x128xf32>
    %c0_69 = arith.constant 0 : index
    %c0_70 = arith.constant 0 : index
    %169 = vector.load %arg9[%c0_69, %c0_70] : memref<1x128xf32, #tpu.memory_space<vmem>>, vector<1x128xf32>
    %170 = vector.broadcast %169 : vector<1x128xf32> to vector<8x128xf32>
    %171 = arith.addf %168, %170 : vector<8x128xf32>
    %172 = arith.index_cast %c2_i32 : i32 to index
    %c0_71 = arith.constant 0 : index
    %c0_72 = arith.constant 0 : index
    %173 = vector.load %arg10[%172, %c0_71, %c0_72] : memref<8x8x128xf32, #tpu.memory_space<vmem>>, vector<1x8x128xf32>
    %174 = vector.shape_cast %173 : vector<1x8x128xf32> to vector<8x128xf32>
    %175 = vector.shape_cast %171 : vector<8x128xf32> to vector<1x8x128xf32>
    tpu.vector_store %arg10[%172, %c0_71, %c0_72], %175 {strides = array<i32>} : memref<8x8x128xf32, #tpu.memory_space<vmem>>, vector<1x8x128xf32>,
    %cst_73 = arith.constant dense<0xFF800000> : vector<8xf32>
    %176 = vector.multi_reduction <maximumf>, %171, %cst_73 [1] : vector<8x128xf32> to vector<8xf32>
    %177 = vector.shape_cast %176 : vector<8xf32> to vector<8x1xf32>
    %178 = vector.broadcast %177 : vector<8x1xf32> to vector<8x128xf32>
    %179 = arith.cmpf oeq, %171, %178 : vector<8x128xf32>
    %c128_i32_74 = arith.constant 128 : i32
    %180 = vector.broadcast %c128_i32_74 : i32 to vector<8x128xi32>
    %181 = arith.select %179, %19, %180 : vector<8x128xi1>, vector<8x128xi32>
    %cst_75 = arith.constant dense<2147483647> : vector<8xi32>
    %182 = vector.multi_reduction <minsi>, %181, %cst_75 [1] : vector<8x128xi32> to vector<8xi32>
    %183 = vector.shape_cast %182 : vector<8xi32> to vector<8x1xi32>
    %184 = vector.broadcast %183 : vector<8x1xi32> to vector<8x128xi32>
    %185 = arith.cmpi eq, %19, %184 : vector<8x128xi32>
    %186 = arith.extui %185 : vector<8x128xi1> to vector<8x128xi32>
    %187 = arith.sitofp %186 : vector<8x128xi32> to vector<8x128xf32>
    %188 = arith.index_cast %c2_i32 : i32 to index
    %189 = memref.load %arg0[%188] : memref<8xi32, #tpu.memory_space<smem>>
    %190 = arith.sitofp %189 : i32 to f32
    %191 = arith.index_cast %c2_i32 : i32 to index
    %c0_76 = arith.constant 0 : index
    %c0_77 = arith.constant 0 : index
    %192 = vector.load %arg1[%191, %c0_76, %c0_77] : memref<8x8x1xi32, #tpu.memory_space<vmem>>, vector<1x8x1xi32>
    %193 = vector.shape_cast %192 : vector<1x8x1xi32> to vector<8x1xi32>
    %194 = vector.broadcast %193 : vector<8x1xi32> to vector<8x128xi32>
    %195 = arith.cmpi eq, %19, %194 : vector<8x128xi32>
    %196 = arith.extui %195 : vector<8x128xi1> to vector<8x128xi32>
    %197 = arith.sitofp %196 : vector<8x128xi32> to vector<8x128xf32>
    %198 = vector.broadcast %190 : f32 to vector<8x128xf32>
    %199 = arith.mulf %198, %197 : vector<8x128xf32>
    %cst_78 = arith.constant 1.000000e+00 : f32
    %200 = arith.subf %cst_78, %190 : f32
    %201 = vector.broadcast %200 : f32 to vector<8x128xf32>
    %202 = arith.mulf %201, %187 : vector<8x128xf32>
    %203 = arith.addf %199, %202 : vector<8x128xf32>
    %c3_i32 = arith.constant 3 : i32
    %204 = vector.shape_cast %166 : vector<8x128xf32> to vector<1x8x128xf32>
    %205 = vector.broadcast %204 : vector<1x8x128xf32> to vector<8x8x128xf32>
    %206 = arith.mulf %4, %205 : vector<8x8x128xf32>
    %cst_79 = arith.constant dense<0.000000e+00> : vector<8x8xf32>
    %207 = vector.multi_reduction <add>, %206, %cst_79 [2] : vector<8x8x128xf32> to vector<8x8xf32>
    %208 = vector.shape_cast %207 : vector<8x8xf32> to vector<8x8x1xf32>
    %cst_80 = arith.constant dense<0xFF800000> : vector<8x1xf32>
    %209 = vector.multi_reduction <maximumf>, %208, %cst_80 [0] : vector<8x8x1xf32> to vector<8x1xf32>
    %210 = vector.shape_cast %209 : vector<8x1xf32> to vector<1x8x1xf32>
    %211 = vector.broadcast %210 : vector<1x8x1xf32> to vector<8x8x1xf32>
    %212 = arith.subf %208, %211 : vector<8x8x1xf32>
    %213 = math.exp %212 : vector<8x8x1xf32>
    %cst_81 = arith.constant dense<0.000000e+00> : vector<8x1xf32>
    %214 = vector.multi_reduction <add>, %213, %cst_81 [0] : vector<8x8x1xf32> to vector<8x1xf32>
    %215 = vector.shape_cast %214 : vector<8x1xf32> to vector<1x8x1xf32>
    %216 = tpu.reciprocal %215 {approx = true} : vector<1x8x1xf32> -> vector<1x8x1xf32>
    %217 = vector.broadcast %216 : vector<1x8x1xf32> to vector<8x8x1xf32>
    %218 = arith.mulf %213, %217 : vector<8x8x1xf32>
    %219 = vector.broadcast %218 : vector<8x8x1xf32> to vector<8x8x128xf32>
    %220 = arith.mulf %219, %4 : vector<8x8x128xf32>
    %cst_82 = arith.constant dense<0.000000e+00> : vector<8x128xf32>
    %221 = vector.multi_reduction <add>, %220, %cst_82 [0] : vector<8x8x128xf32> to vector<8x128xf32>
    %222 = tpu.concatenate %203, %166 in 1 : vector<8x128xf32>, vector<8x128xf32> -> vector<8x256xf32>
    %c0_83 = arith.constant 0 : index
    %c0_84 = arith.constant 0 : index
    %223 = vector.load %arg5[%c0_83, %c0_84] : memref<256x512xf32, #tpu.memory_space<vmem>>, vector<256x512xf32>
    %cst_85 = arith.constant dense<0.000000e+00> : vector<8x512xf32>
    %224 = tpu.matmul %222, %223, %cst_85 {dimension_numbers = #tpu.dot_dimension_numbers<[1], [0], [0], [1], [0, 0, 1, 1], [], []>} : vector<8x256xf32>, vector<256x512xf32>, vector<8x512xf32> -> vector<8x512xf32>
    %c0_86 = arith.constant 0 : index
    %c0_87 = arith.constant 0 : index
    %225 = vector.load %arg6[%c0_86, %c0_87] : memref<128x512xf32, #tpu.memory_space<vmem>>, vector<128x512xf32>
    %cst_88 = arith.constant dense<0.000000e+00> : vector<8x512xf32>
    %226 = tpu.matmul %221, %225, %cst_88 {dimension_numbers = #tpu.dot_dimension_numbers<[1], [0], [0], [1], [0, 0, 1, 1], [], []>} : vector<8x128xf32>, vector<128x512xf32>, vector<8x512xf32> -> vector<8x512xf32>
    %227 = arith.addf %224, %226 : vector<8x512xf32>
    %c0_89 = arith.constant 0 : index
    %c0_90 = arith.constant 0 : index
    %228 = vector.load %arg7[%c0_89, %c0_90] : memref<1x512xf32, #tpu.memory_space<vmem>>, vector<1x512xf32>
    %229 = vector.broadcast %228 : vector<1x512xf32> to vector<8x512xf32>
    %230 = arith.addf %227, %229 : vector<8x512xf32>
    %231 = vector.extract_strided_slice %230 {offsets = [0, 0], sizes = [8, 128], strides = [1, 1]} : vector<8x512xf32> to vector<8x128xf32>
    %232 = arith.negf %231 : vector<8x128xf32>
    %233 = math.exp %232 : vector<8x128xf32>
    %cst_91 = arith.constant 1.000000e+00 : f32
    %234 = vector.broadcast %cst_91 : f32 to vector<8x128xf32>
    %235 = arith.addf %234, %233 : vector<8x128xf32>
    %236 = arith.divf %234, %235 : vector<8x128xf32>
    %237 = vector.extract_strided_slice %230 {offsets = [0, 128], sizes = [8, 128], strides = [1, 1]} : vector<8x512xf32> to vector<8x128xf32>
    %238 = arith.negf %237 : vector<8x128xf32>
    %239 = math.exp %238 : vector<8x128xf32>
    %cst_92 = arith.constant 1.000000e+00 : f32
    %240 = vector.broadcast %cst_92 : f32 to vector<8x128xf32>
    %241 = arith.addf %240, %239 : vector<8x128xf32>
    %242 = arith.divf %240, %241 : vector<8x128xf32>
    %243 = vector.extract_strided_slice %230 {offsets = [0, 256], sizes = [8, 128], strides = [1, 1]} : vector<8x512xf32> to vector<8x128xf32>
    %244 = math.tanh %243 : vector<8x128xf32>
    %245 = vector.extract_strided_slice %230 {offsets = [0, 384], sizes = [8, 128], strides = [1, 1]} : vector<8x512xf32> to vector<8x128xf32>
    %246 = arith.negf %245 : vector<8x128xf32>
    %247 = math.exp %246 : vector<8x128xf32>
    %cst_93 = arith.constant 1.000000e+00 : f32
    %248 = vector.broadcast %cst_93 : f32 to vector<8x128xf32>
    %249 = arith.addf %248, %247 : vector<8x128xf32>
    %250 = arith.divf %248, %249 : vector<8x128xf32>
    %251 = arith.mulf %242, %164 : vector<8x128xf32>
    %252 = arith.mulf %236, %244 : vector<8x128xf32>
    %253 = arith.addf %251, %252 : vector<8x128xf32>
    %254 = math.tanh %253 : vector<8x128xf32>
    %255 = arith.mulf %250, %254 : vector<8x128xf32>
    %c0_94 = arith.constant 0 : index
    %c0_95 = arith.constant 0 : index
    %256 = vector.load %arg8[%c0_94, %c0_95] : memref<128x128xf32, #tpu.memory_space<vmem>>, vector<128x128xf32>
    %cst_96 = arith.constant dense<0.000000e+00> : vector<8x128xf32>
    %257 = tpu.matmul %255, %256, %cst_96 {dimension_numbers = #tpu.dot_dimension_numbers<[1], [0], [0], [1], [0, 0, 1, 1], [], []>} : vector<8x128xf32>, vector<128x128xf32>, vector<8x128xf32> -> vector<8x128xf32>
    %c0_97 = arith.constant 0 : index
    %c0_98 = arith.constant 0 : index
    %258 = vector.load %arg9[%c0_97, %c0_98] : memref<1x128xf32, #tpu.memory_space<vmem>>, vector<1x128xf32>
    %259 = vector.broadcast %258 : vector<1x128xf32> to vector<8x128xf32>
    %260 = arith.addf %257, %259 : vector<8x128xf32>
    %261 = arith.index_cast %c3_i32 : i32 to index
    %c0_99 = arith.constant 0 : index
    %c0_100 = arith.constant 0 : index
    %262 = vector.load %arg10[%261, %c0_99, %c0_100] : memref<8x8x128xf32, #tpu.memory_space<vmem>>, vector<1x8x128xf32>
    %263 = vector.shape_cast %262 : vector<1x8x128xf32> to vector<8x128xf32>
    %264 = vector.shape_cast %260 : vector<8x128xf32> to vector<1x8x128xf32>
    tpu.vector_store %arg10[%261, %c0_99, %c0_100], %264 {strides = array<i32>} : memref<8x8x128xf32, #tpu.memory_space<vmem>>, vector<1x8x128xf32>,
    %cst_101 = arith.constant dense<0xFF800000> : vector<8xf32>
    %265 = vector.multi_reduction <maximumf>, %260, %cst_101 [1] : vector<8x128xf32> to vector<8xf32>
    %266 = vector.shape_cast %265 : vector<8xf32> to vector<8x1xf32>
    %267 = vector.broadcast %266 : vector<8x1xf32> to vector<8x128xf32>
    %268 = arith.cmpf oeq, %260, %267 : vector<8x128xf32>
    %c128_i32_102 = arith.constant 128 : i32
    %269 = vector.broadcast %c128_i32_102 : i32 to vector<8x128xi32>
    %270 = arith.select %268, %19, %269 : vector<8x128xi1>, vector<8x128xi32>
    %cst_103 = arith.constant dense<2147483647> : vector<8xi32>
    %271 = vector.multi_reduction <minsi>, %270, %cst_103 [1] : vector<8x128xi32> to vector<8xi32>
    %272 = vector.shape_cast %271 : vector<8xi32> to vector<8x1xi32>
    %273 = vector.broadcast %272 : vector<8x1xi32> to vector<8x128xi32>
    %274 = arith.cmpi eq, %19, %273 : vector<8x128xi32>
    %275 = arith.extui %274 : vector<8x128xi1> to vector<8x128xi32>
    %276 = arith.sitofp %275 : vector<8x128xi32> to vector<8x128xf32>
    %277 = arith.index_cast %c3_i32 : i32 to index
    %278 = memref.load %arg0[%277] : memref<8xi32, #tpu.memory_space<smem>>
    %279 = arith.sitofp %278 : i32 to f32
    %280 = arith.index_cast %c3_i32 : i32 to index
    %c0_104 = arith.constant 0 : index
    %c0_105 = arith.constant 0 : index
    %281 = vector.load %arg1[%280, %c0_104, %c0_105] : memref<8x8x1xi32, #tpu.memory_space<vmem>>, vector<1x8x1xi32>
    %282 = vector.shape_cast %281 : vector<1x8x1xi32> to vector<8x1xi32>
    %283 = vector.broadcast %282 : vector<8x1xi32> to vector<8x128xi32>
    %284 = arith.cmpi eq, %19, %283 : vector<8x128xi32>
    %285 = arith.extui %284 : vector<8x128xi1> to vector<8x128xi32>
    %286 = arith.sitofp %285 : vector<8x128xi32> to vector<8x128xf32>
    %287 = vector.broadcast %279 : f32 to vector<8x128xf32>
    %288 = arith.mulf %287, %286 : vector<8x128xf32>
    %cst_106 = arith.constant 1.000000e+00 : f32
    %289 = arith.subf %cst_106, %279 : f32
    %290 = vector.broadcast %289 : f32 to vector<8x128xf32>
    %291 = arith.mulf %290, %276 : vector<8x128xf32>
    %292 = arith.addf %288, %291 : vector<8x128xf32>
    %c4_i32 = arith.constant 4 : i32
    %293 = vector.shape_cast %255 : vector<8x128xf32> to vector<1x8x128xf32>
    %294 = vector.broadcast %293 : vector<1x8x128xf32> to vector<8x8x128xf32>
    %295 = arith.mulf %4, %294 : vector<8x8x128xf32>
    %cst_107 = arith.constant dense<0.000000e+00> : vector<8x8xf32>
    %296 = vector.multi_reduction <add>, %295, %cst_107 [2] : vector<8x8x128xf32> to vector<8x8xf32>
    %297 = vector.shape_cast %296 : vector<8x8xf32> to vector<8x8x1xf32>
    %cst_108 = arith.constant dense<0xFF800000> : vector<8x1xf32>
    %298 = vector.multi_reduction <maximumf>, %297, %cst_108 [0] : vector<8x8x1xf32> to vector<8x1xf32>
    %299 = vector.shape_cast %298 : vector<8x1xf32> to vector<1x8x1xf32>
    %300 = vector.broadcast %299 : vector<1x8x1xf32> to vector<8x8x1xf32>
    %301 = arith.subf %297, %300 : vector<8x8x1xf32>
    %302 = math.exp %301 : vector<8x8x1xf32>
    %cst_109 = arith.constant dense<0.000000e+00> : vector<8x1xf32>
    %303 = vector.multi_reduction <add>, %302, %cst_109 [0] : vector<8x8x1xf32> to vector<8x1xf32>
    %304 = vector.shape_cast %303 : vector<8x1xf32> to vector<1x8x1xf32>
    %305 = tpu.reciprocal %304 {approx = true} : vector<1x8x1xf32> -> vector<1x8x1xf32>
    %306 = vector.broadcast %305 : vector<1x8x1xf32> to vector<8x8x1xf32>
    %307 = arith.mulf %302, %306 : vector<8x8x1xf32>
    %308 = vector.broadcast %307 : vector<8x8x1xf32> to vector<8x8x128xf32>
    %309 = arith.mulf %308, %4 : vector<8x8x128xf32>
    %cst_110 = arith.constant dense<0.000000e+00> : vector<8x128xf32>
    %310 = vector.multi_reduction <add>, %309, %cst_110 [0] : vector<8x8x128xf32> to vector<8x128xf32>
    %311 = tpu.concatenate %292, %255 in 1 : vector<8x128xf32>, vector<8x128xf32> -> vector<8x256xf32>
    %c0_111 = arith.constant 0 : index
    %c0_112 = arith.constant 0 : index
    %312 = vector.load %arg5[%c0_111, %c0_112] : memref<256x512xf32, #tpu.memory_space<vmem>>, vector<256x512xf32>
    %cst_113 = arith.constant dense<0.000000e+00> : vector<8x512xf32>
    %313 = tpu.matmul %311, %312, %cst_113 {dimension_numbers = #tpu.dot_dimension_numbers<[1], [0], [0], [1], [0, 0, 1, 1], [], []>} : vector<8x256xf32>, vector<256x512xf32>, vector<8x512xf32> -> vector<8x512xf32>
    %c0_114 = arith.constant 0 : index
    %c0_115 = arith.constant 0 : index
    %314 = vector.load %arg6[%c0_114, %c0_115] : memref<128x512xf32, #tpu.memory_space<vmem>>, vector<128x512xf32>
    %cst_116 = arith.constant dense<0.000000e+00> : vector<8x512xf32>
    %315 = tpu.matmul %310, %314, %cst_116 {dimension_numbers = #tpu.dot_dimension_numbers<[1], [0], [0], [1], [0, 0, 1, 1], [], []>} : vector<8x128xf32>, vector<128x512xf32>, vector<8x512xf32> -> vector<8x512xf32>
    %316 = arith.addf %313, %315 : vector<8x512xf32>
    %c0_117 = arith.constant 0 : index
    %c0_118 = arith.constant 0 : index
    %317 = vector.load %arg7[%c0_117, %c0_118] : memref<1x512xf32, #tpu.memory_space<vmem>>, vector<1x512xf32>
    %318 = vector.broadcast %317 : vector<1x512xf32> to vector<8x512xf32>
    %319 = arith.addf %316, %318 : vector<8x512xf32>
    %320 = vector.extract_strided_slice %319 {offsets = [0, 0], sizes = [8, 128], strides = [1, 1]} : vector<8x512xf32> to vector<8x128xf32>
    %321 = arith.negf %320 : vector<8x128xf32>
    %322 = math.exp %321 : vector<8x128xf32>
    %cst_119 = arith.constant 1.000000e+00 : f32
    %323 = vector.broadcast %cst_119 : f32 to vector<8x128xf32>
    %324 = arith.addf %323, %322 : vector<8x128xf32>
    %325 = arith.divf %323, %324 : vector<8x128xf32>
    %326 = vector.extract_strided_slice %319 {offsets = [0, 128], sizes = [8, 128], strides = [1, 1]} : vector<8x512xf32> to vector<8x128xf32>
    %327 = arith.negf %326 : vector<8x128xf32>
    %328 = math.exp %327 : vector<8x128xf32>
    %cst_120 = arith.constant 1.000000e+00 : f32
    %329 = vector.broadcast %cst_120 : f32 to vector<8x128xf32>
    %330 = arith.addf %329, %328 : vector<8x128xf32>
    %331 = arith.divf %329, %330 : vector<8x128xf32>
    %332 = vector.extract_strided_slice %319 {offsets = [0, 256], sizes = [8, 128], strides = [1, 1]} : vector<8x512xf32> to vector<8x128xf32>
    %333 = math.tanh %332 : vector<8x128xf32>
    %334 = vector.extract_strided_slice %319 {offsets = [0, 384], sizes = [8, 128], strides = [1, 1]} : vector<8x512xf32> to vector<8x128xf32>
    %335 = arith.negf %334 : vector<8x128xf32>
    %336 = math.exp %335 : vector<8x128xf32>
    %cst_121 = arith.constant 1.000000e+00 : f32
    %337 = vector.broadcast %cst_121 : f32 to vector<8x128xf32>
    %338 = arith.addf %337, %336 : vector<8x128xf32>
    %339 = arith.divf %337, %338 : vector<8x128xf32>
    %340 = arith.mulf %331, %253 : vector<8x128xf32>
    %341 = arith.mulf %325, %333 : vector<8x128xf32>
    %342 = arith.addf %340, %341 : vector<8x128xf32>
    %343 = math.tanh %342 : vector<8x128xf32>
    %344 = arith.mulf %339, %343 : vector<8x128xf32>
    %c0_122 = arith.constant 0 : index
    %c0_123 = arith.constant 0 : index
    %345 = vector.load %arg8[%c0_122, %c0_123] : memref<128x128xf32, #tpu.memory_space<vmem>>, vector<128x128xf32>
    %cst_124 = arith.constant dense<0.000000e+00> : vector<8x128xf32>
    %346 = tpu.matmul %344, %345, %cst_124 {dimension_numbers = #tpu.dot_dimension_numbers<[1], [0], [0], [1], [0, 0, 1, 1], [], []>} : vector<8x128xf32>, vector<128x128xf32>, vector<8x128xf32> -> vector<8x128xf32>
    %c0_125 = arith.constant 0 : index
    %c0_126 = arith.constant 0 : index
    %347 = vector.load %arg9[%c0_125, %c0_126] : memref<1x128xf32, #tpu.memory_space<vmem>>, vector<1x128xf32>
    %348 = vector.broadcast %347 : vector<1x128xf32> to vector<8x128xf32>
    %349 = arith.addf %346, %348 : vector<8x128xf32>
    %350 = arith.index_cast %c4_i32 : i32 to index
    %c0_127 = arith.constant 0 : index
    %c0_128 = arith.constant 0 : index
    %351 = vector.load %arg10[%350, %c0_127, %c0_128] : memref<8x8x128xf32, #tpu.memory_space<vmem>>, vector<1x8x128xf32>
    %352 = vector.shape_cast %351 : vector<1x8x128xf32> to vector<8x128xf32>
    %353 = vector.shape_cast %349 : vector<8x128xf32> to vector<1x8x128xf32>
    tpu.vector_store %arg10[%350, %c0_127, %c0_128], %353 {strides = array<i32>} : memref<8x8x128xf32, #tpu.memory_space<vmem>>, vector<1x8x128xf32>,
    %cst_129 = arith.constant dense<0xFF800000> : vector<8xf32>
    %354 = vector.multi_reduction <maximumf>, %349, %cst_129 [1] : vector<8x128xf32> to vector<8xf32>
    %355 = vector.shape_cast %354 : vector<8xf32> to vector<8x1xf32>
    %356 = vector.broadcast %355 : vector<8x1xf32> to vector<8x128xf32>
    %357 = arith.cmpf oeq, %349, %356 : vector<8x128xf32>
    %c128_i32_130 = arith.constant 128 : i32
    %358 = vector.broadcast %c128_i32_130 : i32 to vector<8x128xi32>
    %359 = arith.select %357, %19, %358 : vector<8x128xi1>, vector<8x128xi32>
    %cst_131 = arith.constant dense<2147483647> : vector<8xi32>
    %360 = vector.multi_reduction <minsi>, %359, %cst_131 [1] : vector<8x128xi32> to vector<8xi32>
    %361 = vector.shape_cast %360 : vector<8xi32> to vector<8x1xi32>
    %362 = vector.broadcast %361 : vector<8x1xi32> to vector<8x128xi32>
    %363 = arith.cmpi eq, %19, %362 : vector<8x128xi32>
    %364 = arith.extui %363 : vector<8x128xi1> to vector<8x128xi32>
    %365 = arith.sitofp %364 : vector<8x128xi32> to vector<8x128xf32>
    %366 = arith.index_cast %c4_i32 : i32 to index
    %367 = memref.load %arg0[%366] : memref<8xi32, #tpu.memory_space<smem>>
    %368 = arith.sitofp %367 : i32 to f32
    %369 = arith.index_cast %c4_i32 : i32 to index
    %c0_132 = arith.constant 0 : index
    %c0_133 = arith.constant 0 : index
    %370 = vector.load %arg1[%369, %c0_132, %c0_133] : memref<8x8x1xi32, #tpu.memory_space<vmem>>, vector<1x8x1xi32>
    %371 = vector.shape_cast %370 : vector<1x8x1xi32> to vector<8x1xi32>
    %372 = vector.broadcast %371 : vector<8x1xi32> to vector<8x128xi32>
    %373 = arith.cmpi eq, %19, %372 : vector<8x128xi32>
    %374 = arith.extui %373 : vector<8x128xi1> to vector<8x128xi32>
    %375 = arith.sitofp %374 : vector<8x128xi32> to vector<8x128xf32>
    %376 = vector.broadcast %368 : f32 to vector<8x128xf32>
    %377 = arith.mulf %376, %375 : vector<8x128xf32>
    %cst_134 = arith.constant 1.000000e+00 : f32
    %378 = arith.subf %cst_134, %368 : f32
    %379 = vector.broadcast %378 : f32 to vector<8x128xf32>
    %380 = arith.mulf %379, %365 : vector<8x128xf32>
    %381 = arith.addf %377, %380 : vector<8x128xf32>
    %c5_i32 = arith.constant 5 : i32
    %382 = vector.shape_cast %344 : vector<8x128xf32> to vector<1x8x128xf32>
    %383 = vector.broadcast %382 : vector<1x8x128xf32> to vector<8x8x128xf32>
    %384 = arith.mulf %4, %383 : vector<8x8x128xf32>
    %cst_135 = arith.constant dense<0.000000e+00> : vector<8x8xf32>
    %385 = vector.multi_reduction <add>, %384, %cst_135 [2] : vector<8x8x128xf32> to vector<8x8xf32>
    %386 = vector.shape_cast %385 : vector<8x8xf32> to vector<8x8x1xf32>
    %cst_136 = arith.constant dense<0xFF800000> : vector<8x1xf32>
    %387 = vector.multi_reduction <maximumf>, %386, %cst_136 [0] : vector<8x8x1xf32> to vector<8x1xf32>
    %388 = vector.shape_cast %387 : vector<8x1xf32> to vector<1x8x1xf32>
    %389 = vector.broadcast %388 : vector<1x8x1xf32> to vector<8x8x1xf32>
    %390 = arith.subf %386, %389 : vector<8x8x1xf32>
    %391 = math.exp %390 : vector<8x8x1xf32>
    %cst_137 = arith.constant dense<0.000000e+00> : vector<8x1xf32>
    %392 = vector.multi_reduction <add>, %391, %cst_137 [0] : vector<8x8x1xf32> to vector<8x1xf32>
    %393 = vector.shape_cast %392 : vector<8x1xf32> to vector<1x8x1xf32>
    %394 = tpu.reciprocal %393 {approx = true} : vector<1x8x1xf32> -> vector<1x8x1xf32>
    %395 = vector.broadcast %394 : vector<1x8x1xf32> to vector<8x8x1xf32>
    %396 = arith.mulf %391, %395 : vector<8x8x1xf32>
    %397 = vector.broadcast %396 : vector<8x8x1xf32> to vector<8x8x128xf32>
    %398 = arith.mulf %397, %4 : vector<8x8x128xf32>
    %cst_138 = arith.constant dense<0.000000e+00> : vector<8x128xf32>
    %399 = vector.multi_reduction <add>, %398, %cst_138 [0] : vector<8x8x128xf32> to vector<8x128xf32>
    %400 = tpu.concatenate %381, %344 in 1 : vector<8x128xf32>, vector<8x128xf32> -> vector<8x256xf32>
    %c0_139 = arith.constant 0 : index
    %c0_140 = arith.constant 0 : index
    %401 = vector.load %arg5[%c0_139, %c0_140] : memref<256x512xf32, #tpu.memory_space<vmem>>, vector<256x512xf32>
    %cst_141 = arith.constant dense<0.000000e+00> : vector<8x512xf32>
    %402 = tpu.matmul %400, %401, %cst_141 {dimension_numbers = #tpu.dot_dimension_numbers<[1], [0], [0], [1], [0, 0, 1, 1], [], []>} : vector<8x256xf32>, vector<256x512xf32>, vector<8x512xf32> -> vector<8x512xf32>
    %c0_142 = arith.constant 0 : index
    %c0_143 = arith.constant 0 : index
    %403 = vector.load %arg6[%c0_142, %c0_143] : memref<128x512xf32, #tpu.memory_space<vmem>>, vector<128x512xf32>
    %cst_144 = arith.constant dense<0.000000e+00> : vector<8x512xf32>
    %404 = tpu.matmul %399, %403, %cst_144 {dimension_numbers = #tpu.dot_dimension_numbers<[1], [0], [0], [1], [0, 0, 1, 1], [], []>} : vector<8x128xf32>, vector<128x512xf32>, vector<8x512xf32> -> vector<8x512xf32>
    %405 = arith.addf %402, %404 : vector<8x512xf32>
    %c0_145 = arith.constant 0 : index
    %c0_146 = arith.constant 0 : index
    %406 = vector.load %arg7[%c0_145, %c0_146] : memref<1x512xf32, #tpu.memory_space<vmem>>, vector<1x512xf32>
    %407 = vector.broadcast %406 : vector<1x512xf32> to vector<8x512xf32>
    %408 = arith.addf %405, %407 : vector<8x512xf32>
    %409 = vector.extract_strided_slice %408 {offsets = [0, 0], sizes = [8, 128], strides = [1, 1]} : vector<8x512xf32> to vector<8x128xf32>
    %410 = arith.negf %409 : vector<8x128xf32>
    %411 = math.exp %410 : vector<8x128xf32>
    %cst_147 = arith.constant 1.000000e+00 : f32
    %412 = vector.broadcast %cst_147 : f32 to vector<8x128xf32>
    %413 = arith.addf %412, %411 : vector<8x128xf32>
    %414 = arith.divf %412, %413 : vector<8x128xf32>
    %415 = vector.extract_strided_slice %408 {offsets = [0, 128], sizes = [8, 128], strides = [1, 1]} : vector<8x512xf32> to vector<8x128xf32>
    %416 = arith.negf %415 : vector<8x128xf32>
    %417 = math.exp %416 : vector<8x128xf32>
    %cst_148 = arith.constant 1.000000e+00 : f32
    %418 = vector.broadcast %cst_148 : f32 to vector<8x128xf32>
    %419 = arith.addf %418, %417 : vector<8x128xf32>
    %420 = arith.divf %418, %419 : vector<8x128xf32>
    %421 = vector.extract_strided_slice %408 {offsets = [0, 256], sizes = [8, 128], strides = [1, 1]} : vector<8x512xf32> to vector<8x128xf32>
    %422 = math.tanh %421 : vector<8x128xf32>
    %423 = vector.extract_strided_slice %408 {offsets = [0, 384], sizes = [8, 128], strides = [1, 1]} : vector<8x512xf32> to vector<8x128xf32>
    %424 = arith.negf %423 : vector<8x128xf32>
    %425 = math.exp %424 : vector<8x128xf32>
    %cst_149 = arith.constant 1.000000e+00 : f32
    %426 = vector.broadcast %cst_149 : f32 to vector<8x128xf32>
    %427 = arith.addf %426, %425 : vector<8x128xf32>
    %428 = arith.divf %426, %427 : vector<8x128xf32>
    %429 = arith.mulf %420, %342 : vector<8x128xf32>
    %430 = arith.mulf %414, %422 : vector<8x128xf32>
    %431 = arith.addf %429, %430 : vector<8x128xf32>
    %432 = math.tanh %431 : vector<8x128xf32>
    %433 = arith.mulf %428, %432 : vector<8x128xf32>
    %c0_150 = arith.constant 0 : index
    %c0_151 = arith.constant 0 : index
    %434 = vector.load %arg8[%c0_150, %c0_151] : memref<128x128xf32, #tpu.memory_space<vmem>>, vector<128x128xf32>
    %cst_152 = arith.constant dense<0.000000e+00> : vector<8x128xf32>
    %435 = tpu.matmul %433, %434, %cst_152 {dimension_numbers = #tpu.dot_dimension_numbers<[1], [0], [0], [1], [0, 0, 1, 1], [], []>} : vector<8x128xf32>, vector<128x128xf32>, vector<8x128xf32> -> vector<8x128xf32>
    %c0_153 = arith.constant 0 : index
    %c0_154 = arith.constant 0 : index
    %436 = vector.load %arg9[%c0_153, %c0_154] : memref<1x128xf32, #tpu.memory_space<vmem>>, vector<1x128xf32>
    %437 = vector.broadcast %436 : vector<1x128xf32> to vector<8x128xf32>
    %438 = arith.addf %435, %437 : vector<8x128xf32>
    %439 = arith.index_cast %c5_i32 : i32 to index
    %c0_155 = arith.constant 0 : index
    %c0_156 = arith.constant 0 : index
    %440 = vector.load %arg10[%439, %c0_155, %c0_156] : memref<8x8x128xf32, #tpu.memory_space<vmem>>, vector<1x8x128xf32>
    %441 = vector.shape_cast %440 : vector<1x8x128xf32> to vector<8x128xf32>
    %442 = vector.shape_cast %438 : vector<8x128xf32> to vector<1x8x128xf32>
    tpu.vector_store %arg10[%439, %c0_155, %c0_156], %442 {strides = array<i32>} : memref<8x8x128xf32, #tpu.memory_space<vmem>>, vector<1x8x128xf32>,
    %cst_157 = arith.constant dense<0xFF800000> : vector<8xf32>
    %443 = vector.multi_reduction <maximumf>, %438, %cst_157 [1] : vector<8x128xf32> to vector<8xf32>
    %444 = vector.shape_cast %443 : vector<8xf32> to vector<8x1xf32>
    %445 = vector.broadcast %444 : vector<8x1xf32> to vector<8x128xf32>
    %446 = arith.cmpf oeq, %438, %445 : vector<8x128xf32>
    %c128_i32_158 = arith.constant 128 : i32
    %447 = vector.broadcast %c128_i32_158 : i32 to vector<8x128xi32>
    %448 = arith.select %446, %19, %447 : vector<8x128xi1>, vector<8x128xi32>
    %cst_159 = arith.constant dense<2147483647> : vector<8xi32>
    %449 = vector.multi_reduction <minsi>, %448, %cst_159 [1] : vector<8x128xi32> to vector<8xi32>
    %450 = vector.shape_cast %449 : vector<8xi32> to vector<8x1xi32>
    %451 = vector.broadcast %450 : vector<8x1xi32> to vector<8x128xi32>
    %452 = arith.cmpi eq, %19, %451 : vector<8x128xi32>
    %453 = arith.extui %452 : vector<8x128xi1> to vector<8x128xi32>
    %454 = arith.sitofp %453 : vector<8x128xi32> to vector<8x128xf32>
    %455 = arith.index_cast %c5_i32 : i32 to index
    %456 = memref.load %arg0[%455] : memref<8xi32, #tpu.memory_space<smem>>
    %457 = arith.sitofp %456 : i32 to f32
    %458 = arith.index_cast %c5_i32 : i32 to index
    %c0_160 = arith.constant 0 : index
    %c0_161 = arith.constant 0 : index
    %459 = vector.load %arg1[%458, %c0_160, %c0_161] : memref<8x8x1xi32, #tpu.memory_space<vmem>>, vector<1x8x1xi32>
    %460 = vector.shape_cast %459 : vector<1x8x1xi32> to vector<8x1xi32>
    %461 = vector.broadcast %460 : vector<8x1xi32> to vector<8x128xi32>
    %462 = arith.cmpi eq, %19, %461 : vector<8x128xi32>
    %463 = arith.extui %462 : vector<8x128xi1> to vector<8x128xi32>
    %464 = arith.sitofp %463 : vector<8x128xi32> to vector<8x128xf32>
    %465 = vector.broadcast %457 : f32 to vector<8x128xf32>
    %466 = arith.mulf %465, %464 : vector<8x128xf32>
    %cst_162 = arith.constant 1.000000e+00 : f32
    %467 = arith.subf %cst_162, %457 : f32
    %468 = vector.broadcast %467 : f32 to vector<8x128xf32>
    %469 = arith.mulf %468, %454 : vector<8x128xf32>
    %470 = arith.addf %466, %469 : vector<8x128xf32>
    %c6_i32 = arith.constant 6 : i32
    %471 = vector.shape_cast %433 : vector<8x128xf32> to vector<1x8x128xf32>
    %472 = vector.broadcast %471 : vector<1x8x128xf32> to vector<8x8x128xf32>
    %473 = arith.mulf %4, %472 : vector<8x8x128xf32>
    %cst_163 = arith.constant dense<0.000000e+00> : vector<8x8xf32>
    %474 = vector.multi_reduction <add>, %473, %cst_163 [2] : vector<8x8x128xf32> to vector<8x8xf32>
    %475 = vector.shape_cast %474 : vector<8x8xf32> to vector<8x8x1xf32>
    %cst_164 = arith.constant dense<0xFF800000> : vector<8x1xf32>
    %476 = vector.multi_reduction <maximumf>, %475, %cst_164 [0] : vector<8x8x1xf32> to vector<8x1xf32>
    %477 = vector.shape_cast %476 : vector<8x1xf32> to vector<1x8x1xf32>
    %478 = vector.broadcast %477 : vector<1x8x1xf32> to vector<8x8x1xf32>
    %479 = arith.subf %475, %478 : vector<8x8x1xf32>
    %480 = math.exp %479 : vector<8x8x1xf32>
    %cst_165 = arith.constant dense<0.000000e+00> : vector<8x1xf32>
    %481 = vector.multi_reduction <add>, %480, %cst_165 [0] : vector<8x8x1xf32> to vector<8x1xf32>
    %482 = vector.shape_cast %481 : vector<8x1xf32> to vector<1x8x1xf32>
    %483 = tpu.reciprocal %482 {approx = true} : vector<1x8x1xf32> -> vector<1x8x1xf32>
    %484 = vector.broadcast %483 : vector<1x8x1xf32> to vector<8x8x1xf32>
    %485 = arith.mulf %480, %484 : vector<8x8x1xf32>
    %486 = vector.broadcast %485 : vector<8x8x1xf32> to vector<8x8x128xf32>
    %487 = arith.mulf %486, %4 : vector<8x8x128xf32>
    %cst_166 = arith.constant dense<0.000000e+00> : vector<8x128xf32>
    %488 = vector.multi_reduction <add>, %487, %cst_166 [0] : vector<8x8x128xf32> to vector<8x128xf32>
    %489 = tpu.concatenate %470, %433 in 1 : vector<8x128xf32>, vector<8x128xf32> -> vector<8x256xf32>
    %c0_167 = arith.constant 0 : index
    %c0_168 = arith.constant 0 : index
    %490 = vector.load %arg5[%c0_167, %c0_168] : memref<256x512xf32, #tpu.memory_space<vmem>>, vector<256x512xf32>
    %cst_169 = arith.constant dense<0.000000e+00> : vector<8x512xf32>
    %491 = tpu.matmul %489, %490, %cst_169 {dimension_numbers = #tpu.dot_dimension_numbers<[1], [0], [0], [1], [0, 0, 1, 1], [], []>} : vector<8x256xf32>, vector<256x512xf32>, vector<8x512xf32> -> vector<8x512xf32>
    %c0_170 = arith.constant 0 : index
    %c0_171 = arith.constant 0 : index
    %492 = vector.load %arg6[%c0_170, %c0_171] : memref<128x512xf32, #tpu.memory_space<vmem>>, vector<128x512xf32>
    %cst_172 = arith.constant dense<0.000000e+00> : vector<8x512xf32>
    %493 = tpu.matmul %488, %492, %cst_172 {dimension_numbers = #tpu.dot_dimension_numbers<[1], [0], [0], [1], [0, 0, 1, 1], [], []>} : vector<8x128xf32>, vector<128x512xf32>, vector<8x512xf32> -> vector<8x512xf32>
    %494 = arith.addf %491, %493 : vector<8x512xf32>
    %c0_173 = arith.constant 0 : index
    %c0_174 = arith.constant 0 : index
    %495 = vector.load %arg7[%c0_173, %c0_174] : memref<1x512xf32, #tpu.memory_space<vmem>>, vector<1x512xf32>
    %496 = vector.broadcast %495 : vector<1x512xf32> to vector<8x512xf32>
    %497 = arith.addf %494, %496 : vector<8x512xf32>
    %498 = vector.extract_strided_slice %497 {offsets = [0, 0], sizes = [8, 128], strides = [1, 1]} : vector<8x512xf32> to vector<8x128xf32>
    %499 = arith.negf %498 : vector<8x128xf32>
    %500 = math.exp %499 : vector<8x128xf32>
    %cst_175 = arith.constant 1.000000e+00 : f32
    %501 = vector.broadcast %cst_175 : f32 to vector<8x128xf32>
    %502 = arith.addf %501, %500 : vector<8x128xf32>
    %503 = arith.divf %501, %502 : vector<8x128xf32>
    %504 = vector.extract_strided_slice %497 {offsets = [0, 128], sizes = [8, 128], strides = [1, 1]} : vector<8x512xf32> to vector<8x128xf32>
    %505 = arith.negf %504 : vector<8x128xf32>
    %506 = math.exp %505 : vector<8x128xf32>
    %cst_176 = arith.constant 1.000000e+00 : f32
    %507 = vector.broadcast %cst_176 : f32 to vector<8x128xf32>
    %508 = arith.addf %507, %506 : vector<8x128xf32>
    %509 = arith.divf %507, %508 : vector<8x128xf32>
    %510 = vector.extract_strided_slice %497 {offsets = [0, 256], sizes = [8, 128], strides = [1, 1]} : vector<8x512xf32> to vector<8x128xf32>
    %511 = math.tanh %510 : vector<8x128xf32>
    %512 = vector.extract_strided_slice %497 {offsets = [0, 384], sizes = [8, 128], strides = [1, 1]} : vector<8x512xf32> to vector<8x128xf32>
    %513 = arith.negf %512 : vector<8x128xf32>
    %514 = math.exp %513 : vector<8x128xf32>
    %cst_177 = arith.constant 1.000000e+00 : f32
    %515 = vector.broadcast %cst_177 : f32 to vector<8x128xf32>
    %516 = arith.addf %515, %514 : vector<8x128xf32>
    %517 = arith.divf %515, %516 : vector<8x128xf32>
    %518 = arith.mulf %509, %431 : vector<8x128xf32>
    %519 = arith.mulf %503, %511 : vector<8x128xf32>
    %520 = arith.addf %518, %519 : vector<8x128xf32>
    %521 = math.tanh %520 : vector<8x128xf32>
    %522 = arith.mulf %517, %521 : vector<8x128xf32>
    %c0_178 = arith.constant 0 : index
    %c0_179 = arith.constant 0 : index
    %523 = vector.load %arg8[%c0_178, %c0_179] : memref<128x128xf32, #tpu.memory_space<vmem>>, vector<128x128xf32>
    %cst_180 = arith.constant dense<0.000000e+00> : vector<8x128xf32>
    %524 = tpu.matmul %522, %523, %cst_180 {dimension_numbers = #tpu.dot_dimension_numbers<[1], [0], [0], [1], [0, 0, 1, 1], [], []>} : vector<8x128xf32>, vector<128x128xf32>, vector<8x128xf32> -> vector<8x128xf32>
    %c0_181 = arith.constant 0 : index
    %c0_182 = arith.constant 0 : index
    %525 = vector.load %arg9[%c0_181, %c0_182] : memref<1x128xf32, #tpu.memory_space<vmem>>, vector<1x128xf32>
    %526 = vector.broadcast %525 : vector<1x128xf32> to vector<8x128xf32>
    %527 = arith.addf %524, %526 : vector<8x128xf32>
    %528 = arith.index_cast %c6_i32 : i32 to index
    %c0_183 = arith.constant 0 : index
    %c0_184 = arith.constant 0 : index
    %529 = vector.load %arg10[%528, %c0_183, %c0_184] : memref<8x8x128xf32, #tpu.memory_space<vmem>>, vector<1x8x128xf32>
    %530 = vector.shape_cast %529 : vector<1x8x128xf32> to vector<8x128xf32>
    %531 = vector.shape_cast %527 : vector<8x128xf32> to vector<1x8x128xf32>
    tpu.vector_store %arg10[%528, %c0_183, %c0_184], %531 {strides = array<i32>} : memref<8x8x128xf32, #tpu.memory_space<vmem>>, vector<1x8x128xf32>,
    %cst_185 = arith.constant dense<0xFF800000> : vector<8xf32>
    %532 = vector.multi_reduction <maximumf>, %527, %cst_185 [1] : vector<8x128xf32> to vector<8xf32>
    %533 = vector.shape_cast %532 : vector<8xf32> to vector<8x1xf32>
    %534 = vector.broadcast %533 : vector<8x1xf32> to vector<8x128xf32>
    %535 = arith.cmpf oeq, %527, %534 : vector<8x128xf32>
    %c128_i32_186 = arith.constant 128 : i32
    %536 = vector.broadcast %c128_i32_186 : i32 to vector<8x128xi32>
    %537 = arith.select %535, %19, %536 : vector<8x128xi1>, vector<8x128xi32>
    %cst_187 = arith.constant dense<2147483647> : vector<8xi32>
    %538 = vector.multi_reduction <minsi>, %537, %cst_187 [1] : vector<8x128xi32> to vector<8xi32>
    %539 = vector.shape_cast %538 : vector<8xi32> to vector<8x1xi32>
    %540 = vector.broadcast %539 : vector<8x1xi32> to vector<8x128xi32>
    %541 = arith.cmpi eq, %19, %540 : vector<8x128xi32>
    %542 = arith.extui %541 : vector<8x128xi1> to vector<8x128xi32>
    %543 = arith.sitofp %542 : vector<8x128xi32> to vector<8x128xf32>
    %544 = arith.index_cast %c6_i32 : i32 to index
    %545 = memref.load %arg0[%544] : memref<8xi32, #tpu.memory_space<smem>>
    %546 = arith.sitofp %545 : i32 to f32
    %547 = arith.index_cast %c6_i32 : i32 to index
    %c0_188 = arith.constant 0 : index
    %c0_189 = arith.constant 0 : index
    %548 = vector.load %arg1[%547, %c0_188, %c0_189] : memref<8x8x1xi32, #tpu.memory_space<vmem>>, vector<1x8x1xi32>
    %549 = vector.shape_cast %548 : vector<1x8x1xi32> to vector<8x1xi32>
    %550 = vector.broadcast %549 : vector<8x1xi32> to vector<8x128xi32>
    %551 = arith.cmpi eq, %19, %550 : vector<8x128xi32>
    %552 = arith.extui %551 : vector<8x128xi1> to vector<8x128xi32>
    %553 = arith.sitofp %552 : vector<8x128xi32> to vector<8x128xf32>
    %554 = vector.broadcast %546 : f32 to vector<8x128xf32>
    %555 = arith.mulf %554, %553 : vector<8x128xf32>
    %cst_190 = arith.constant 1.000000e+00 : f32
    %556 = arith.subf %cst_190, %546 : f32
    %557 = vector.broadcast %556 : f32 to vector<8x128xf32>
    %558 = arith.mulf %557, %543 : vector<8x128xf32>
    %559 = arith.addf %555, %558 : vector<8x128xf32>
    %c7_i32 = arith.constant 7 : i32
    %560 = vector.shape_cast %522 : vector<8x128xf32> to vector<1x8x128xf32>
    %561 = vector.broadcast %560 : vector<1x8x128xf32> to vector<8x8x128xf32>
    %562 = arith.mulf %4, %561 : vector<8x8x128xf32>
    %cst_191 = arith.constant dense<0.000000e+00> : vector<8x8xf32>
    %563 = vector.multi_reduction <add>, %562, %cst_191 [2] : vector<8x8x128xf32> to vector<8x8xf32>
    %564 = vector.shape_cast %563 : vector<8x8xf32> to vector<8x8x1xf32>
    %cst_192 = arith.constant dense<0xFF800000> : vector<8x1xf32>
    %565 = vector.multi_reduction <maximumf>, %564, %cst_192 [0] : vector<8x8x1xf32> to vector<8x1xf32>
    %566 = vector.shape_cast %565 : vector<8x1xf32> to vector<1x8x1xf32>
    %567 = vector.broadcast %566 : vector<1x8x1xf32> to vector<8x8x1xf32>
    %568 = arith.subf %564, %567 : vector<8x8x1xf32>
    %569 = math.exp %568 : vector<8x8x1xf32>
    %cst_193 = arith.constant dense<0.000000e+00> : vector<8x1xf32>
    %570 = vector.multi_reduction <add>, %569, %cst_193 [0] : vector<8x8x1xf32> to vector<8x1xf32>
    %571 = vector.shape_cast %570 : vector<8x1xf32> to vector<1x8x1xf32>
    %572 = tpu.reciprocal %571 {approx = true} : vector<1x8x1xf32> -> vector<1x8x1xf32>
    %573 = vector.broadcast %572 : vector<1x8x1xf32> to vector<8x8x1xf32>
    %574 = arith.mulf %569, %573 : vector<8x8x1xf32>
    %575 = vector.broadcast %574 : vector<8x8x1xf32> to vector<8x8x128xf32>
    %576 = arith.mulf %575, %4 : vector<8x8x128xf32>
    %cst_194 = arith.constant dense<0.000000e+00> : vector<8x128xf32>
    %577 = vector.multi_reduction <add>, %576, %cst_194 [0] : vector<8x8x128xf32> to vector<8x128xf32>
    %578 = tpu.concatenate %559, %522 in 1 : vector<8x128xf32>, vector<8x128xf32> -> vector<8x256xf32>
    %c0_195 = arith.constant 0 : index
    %c0_196 = arith.constant 0 : index
    %579 = vector.load %arg5[%c0_195, %c0_196] : memref<256x512xf32, #tpu.memory_space<vmem>>, vector<256x512xf32>
    %cst_197 = arith.constant dense<0.000000e+00> : vector<8x512xf32>
    %580 = tpu.matmul %578, %579, %cst_197 {dimension_numbers = #tpu.dot_dimension_numbers<[1], [0], [0], [1], [0, 0, 1, 1], [], []>} : vector<8x256xf32>, vector<256x512xf32>, vector<8x512xf32> -> vector<8x512xf32>
    %c0_198 = arith.constant 0 : index
    %c0_199 = arith.constant 0 : index
    %581 = vector.load %arg6[%c0_198, %c0_199] : memref<128x512xf32, #tpu.memory_space<vmem>>, vector<128x512xf32>
    %cst_200 = arith.constant dense<0.000000e+00> : vector<8x512xf32>
    %582 = tpu.matmul %577, %581, %cst_200 {dimension_numbers = #tpu.dot_dimension_numbers<[1], [0], [0], [1], [0, 0, 1, 1], [], []>} : vector<8x128xf32>, vector<128x512xf32>, vector<8x512xf32> -> vector<8x512xf32>
    %583 = arith.addf %580, %582 : vector<8x512xf32>
    %c0_201 = arith.constant 0 : index
    %c0_202 = arith.constant 0 : index
    %584 = vector.load %arg7[%c0_201, %c0_202] : memref<1x512xf32, #tpu.memory_space<vmem>>, vector<1x512xf32>
    %585 = vector.broadcast %584 : vector<1x512xf32> to vector<8x512xf32>
    %586 = arith.addf %583, %585 : vector<8x512xf32>
    %587 = vector.extract_strided_slice %586 {offsets = [0, 0], sizes = [8, 128], strides = [1, 1]} : vector<8x512xf32> to vector<8x128xf32>
    %588 = arith.negf %587 : vector<8x128xf32>
    %589 = math.exp %588 : vector<8x128xf32>
    %cst_203 = arith.constant 1.000000e+00 : f32
    %590 = vector.broadcast %cst_203 : f32 to vector<8x128xf32>
    %591 = arith.addf %590, %589 : vector<8x128xf32>
    %592 = arith.divf %590, %591 : vector<8x128xf32>
    %593 = vector.extract_strided_slice %586 {offsets = [0, 128], sizes = [8, 128], strides = [1, 1]} : vector<8x512xf32> to vector<8x128xf32>
    %594 = arith.negf %593 : vector<8x128xf32>
    %595 = math.exp %594 : vector<8x128xf32>
    %cst_204 = arith.constant 1.000000e+00 : f32
    %596 = vector.broadcast %cst_204 : f32 to vector<8x128xf32>
    %597 = arith.addf %596, %595 : vector<8x128xf32>
    %598 = arith.divf %596, %597 : vector<8x128xf32>
    %599 = vector.extract_strided_slice %586 {offsets = [0, 256], sizes = [8, 128], strides = [1, 1]} : vector<8x512xf32> to vector<8x128xf32>
    %600 = math.tanh %599 : vector<8x128xf32>
    %601 = vector.extract_strided_slice %586 {offsets = [0, 384], sizes = [8, 128], strides = [1, 1]} : vector<8x512xf32> to vector<8x128xf32>
    %602 = arith.negf %601 : vector<8x128xf32>
    %603 = math.exp %602 : vector<8x128xf32>
    %cst_205 = arith.constant 1.000000e+00 : f32
    %604 = vector.broadcast %cst_205 : f32 to vector<8x128xf32>
    %605 = arith.addf %604, %603 : vector<8x128xf32>
    %606 = arith.divf %604, %605 : vector<8x128xf32>
    %607 = arith.mulf %598, %520 : vector<8x128xf32>
    %608 = arith.mulf %592, %600 : vector<8x128xf32>
    %609 = arith.addf %607, %608 : vector<8x128xf32>
    %610 = math.tanh %609 : vector<8x128xf32>
    %611 = arith.mulf %606, %610 : vector<8x128xf32>
    %c0_206 = arith.constant 0 : index
    %c0_207 = arith.constant 0 : index
    %612 = vector.load %arg8[%c0_206, %c0_207] : memref<128x128xf32, #tpu.memory_space<vmem>>, vector<128x128xf32>
    %cst_208 = arith.constant dense<0.000000e+00> : vector<8x128xf32>
    %613 = tpu.matmul %611, %612, %cst_208 {dimension_numbers = #tpu.dot_dimension_numbers<[1], [0], [0], [1], [0, 0, 1, 1], [], []>} : vector<8x128xf32>, vector<128x128xf32>, vector<8x128xf32> -> vector<8x128xf32>
    %c0_209 = arith.constant 0 : index
    %c0_210 = arith.constant 0 : index
    %614 = vector.load %arg9[%c0_209, %c0_210] : memref<1x128xf32, #tpu.memory_space<vmem>>, vector<1x128xf32>
    %615 = vector.broadcast %614 : vector<1x128xf32> to vector<8x128xf32>
    %616 = arith.addf %613, %615 : vector<8x128xf32>
    %617 = arith.index_cast %c7_i32 : i32 to index
    %c0_211 = arith.constant 0 : index
    %c0_212 = arith.constant 0 : index
    %618 = vector.load %arg10[%617, %c0_211, %c0_212] : memref<8x8x128xf32, #tpu.memory_space<vmem>>, vector<1x8x128xf32>
    %619 = vector.shape_cast %618 : vector<1x8x128xf32> to vector<8x128xf32>
    %620 = vector.shape_cast %616 : vector<8x128xf32> to vector<1x8x128xf32>
    tpu.vector_store %arg10[%617, %c0_211, %c0_212], %620 {strides = array<i32>} : memref<8x8x128xf32, #tpu.memory_space<vmem>>, vector<1x8x128xf32>,
    %cst_213 = arith.constant dense<0xFF800000> : vector<8xf32>
    %621 = vector.multi_reduction <maximumf>, %616, %cst_213 [1] : vector<8x128xf32> to vector<8xf32>
    %622 = vector.shape_cast %621 : vector<8xf32> to vector<8x1xf32>
    %623 = vector.broadcast %622 : vector<8x1xf32> to vector<8x128xf32>
    %624 = arith.cmpf oeq, %616, %623 : vector<8x128xf32>
    %c128_i32_214 = arith.constant 128 : i32
    %625 = vector.broadcast %c128_i32_214 : i32 to vector<8x128xi32>
    %626 = arith.select %624, %19, %625 : vector<8x128xi1>, vector<8x128xi32>
    %cst_215 = arith.constant dense<2147483647> : vector<8xi32>
    %627 = vector.multi_reduction <minsi>, %626, %cst_215 [1] : vector<8x128xi32> to vector<8xi32>
    %628 = vector.shape_cast %627 : vector<8xi32> to vector<8x1xi32>
    %629 = vector.broadcast %628 : vector<8x1xi32> to vector<8x128xi32>
    %630 = arith.cmpi eq, %19, %629 : vector<8x128xi32>
    %631 = arith.extui %630 : vector<8x128xi1> to vector<8x128xi32>
    %632 = arith.sitofp %631 : vector<8x128xi32> to vector<8x128xf32>
    %633 = arith.index_cast %c7_i32 : i32 to index
    %634 = memref.load %arg0[%633] : memref<8xi32, #tpu.memory_space<smem>>
    %635 = arith.sitofp %634 : i32 to f32
    %636 = arith.index_cast %c7_i32 : i32 to index
    %c0_216 = arith.constant 0 : index
    %c0_217 = arith.constant 0 : index
    %637 = vector.load %arg1[%636, %c0_216, %c0_217] : memref<8x8x1xi32, #tpu.memory_space<vmem>>, vector<1x8x1xi32>
    %638 = vector.shape_cast %637 : vector<1x8x1xi32> to vector<8x1xi32>
    %639 = vector.broadcast %638 : vector<8x1xi32> to vector<8x128xi32>
    %640 = arith.cmpi eq, %19, %639 : vector<8x128xi32>
    %641 = arith.extui %640 : vector<8x128xi1> to vector<8x128xi32>
    %642 = arith.sitofp %641 : vector<8x128xi32> to vector<8x128xf32>
    %643 = vector.broadcast %635 : f32 to vector<8x128xf32>
    %644 = arith.mulf %643, %642 : vector<8x128xf32>
    %cst_218 = arith.constant 1.000000e+00 : f32
    %645 = arith.subf %cst_218, %635 : f32
    %646 = vector.broadcast %645 : f32 to vector<8x128xf32>
    %647 = arith.mulf %646, %632 : vector<8x128xf32>
    %648 = arith.addf %644, %647 : vector<8x128xf32>
    %c7_i32_219 = arith.constant 7 : i32
    return
  }
}

</mosaic_0001>

<llo_original>
// kernel: _seq2seq_forward_jit.2
$region0: #{_seq2seq_forward_jit.2}
  #allocation0 [shape = 'u32[]', space=smem, size = 0x4, offset = 0x4, fixed_abs, tag = 'smem constant byte address 0x4 - core index']
  #allocation1 [shape = 'u32[72,128]{1,0:T(1,128)}', space=vmem, size = 0x9000, scoped, tag = 'internal scratch']
  #allocation2 [shape = 'f32[8,8,512]{2,1,0:T(8,128)}', space=vmem, size = 0x20000, scoped, tag = 'scratch operand']
  %s0 = inlined_call_operand.vmem [shape: f32[64,128], index: 0, kind: input, shape index: {}]
  %s1 = inlined_call_operand.hbm [shape: f32[2,128,512], index: 1, kind: input, shape index: {}]
  %s2 = inlined_call_operand.vmem [shape: f32[2,1,512], index: 2, kind: input, shape index: {}]
  %s3 = inlined_call_operand.hbm [shape: f32[2,128,512], index: 3, kind: input, shape index: {}]
  %s4 = inlined_call_operand.vmem [shape: f32[2,8,8,128], index: 4, kind: output, shape index: {0}]
  %s5 = inlined_call_operand.vmem [shape: f32[2,8,128], index: 5, kind: output, shape index: {1}]
  %s6 = inlined_call_operand.vmem [shape: f32[2,8,128], index: 6, kind: output, shape index: {2}]
  %7 = xla_tuple %s4, %s5, %s6
  %s8 = sld [smem:[#allocation0]]
  $region73: #{_seq2seq_forward_jit.2} parent=0
    _
  %s10 = ssub.s32 1, %s8
  %s11 = scalar_select 0, %s10, %s8
  $region1: #{_seq2seq_forward_jit.2} parent=0
    #allocation3 [shape = 'u8[524288]{0}', space=vmem, size = 0x80000, scoped, tag = 'input window, operand 1']
    #allocation4 [shape = 's32[2]{0}', space=sflag, size = 0x8, scoped, tag = 'scoped memory for _seq2seq_forward_jit.2']
    #allocation5 [shape = 'u8[524288]{0}', space=vmem, size = 0x80000, scoped, tag = 'input window, operand 3']
    #allocation6 [shape = 's32[2]{0}', space=sflag, size = 0x8, scoped, tag = 'scoped memory for _seq2seq_forward_jit.2']
    %12 = vsyncpa [#allocation4], 0
    %s13 = scalar_lea.sflag [#allocation4], 1
    %14 = vsyncpa %s13, 0
    %15 = vsyncpa [#allocation6], 0
    %s16 = scalar_lea.sflag [#allocation6], 1
    %17 = vsyncpa %s16, 0
    loop: start=0, step=1, limit=4
    $region2: #{_seq2seq_forward_jit.2} parent=1 // loop_pre_header
      _
    $region3: #{_seq2seq_forward_jit.2} parent=1 // loop_header
      %s19 = sphi 0, %s23
      %p20 = scmp.ge.s32.totalorder %s19, 4
      %s27 = sphi 0, %s27
      %s29 = sphi 0, %s27
      %s30 = sphi 0, %s29
      %s44 = sphi 0, %s30
      %s50 = sphi 0, %s52
      %s53 = sphi 0, %s50
      %s54 = sphi 0, %s53
      %s70 = sphi 0, %s54
      %s76 = sphi 0, %s78
      %s79 = sphi 0, %s76
      %s80 = sphi 0, %s79
      %s96 = sphi 0, %s80
      %s102 = sphi 0, %s104
      %s105 = sphi 0, %s102
      %s106 = sphi 0, %s105
      %s122 = sphi 0, %s106
      %s128 = sphi 0, %s130
      %s131 = sphi 0, %s128
      %s132 = sphi 0, %s131
      %s148 = sphi 0, %s132
      %s154 = sphi 0, %s156
      %s157 = sphi 0, %s154
      %s158 = sphi 0, %s157
      %s174 = sphi 0, %s158
      %s180 = sphi 0, %s182
      %s183 = sphi 0, %s180
      %s184 = sphi 0, %s183
      %s200 = sphi 0, %s184
    $region4: #{_seq2seq_forward_jit.2} parent=1 // loop_header_branch
      %22 = sbr.rel (%p20) target = $region8
    $region5: #{_seq2seq_forward_jit.2} parent=1 // loop_body
      %s24 = ssub.s32 %s19, 1
      %s25 = ssub.s32 %s19, 2
      %s26 = sadd.s32 %s19, 1
      %s28 = sadd.s32 %s27, 1
      %p31 = scmp.eq.s32.totalorder %s19, 1
      %p32 = scmp.ne.s32.totalorder %s27, %s29
      %p33 = scmp.eq.s32.totalorder %s19, 0
      %p34 = por %p32, %p33
      %p35 = scmp.ne.s32.totalorder %s27, %s29
      %p36 = scmp.eq.s32.totalorder %s24, 1
      %p37 = por %p35, %p36
      %p38 = scmp.ne.s32.totalorder %s29, %s30
      %p39 = scmp.eq.s32.totalorder %s24, 0
      %p40 = por %p38, %p39
      %p41 = scmp.ne.s32.totalorder %s29, %s30
      %p42 = scmp.eq.s32.totalorder %s25, 1
      %p43 = por %p41, %p42
      %p45 = scmp.ne.s32.totalorder %s30, %s44
      %p46 = scmp.eq.s32.totalorder %s25, 0
      %p47 = por %p45, %p46
      %s48 = ssub.s32 %s19, %s26
      %p49 = scmp.eq.s32.totalorder %s48, 0
      %s51 = sadd.s32 %s50, 1
      %s52 = scalar_select %p49, %s50, %s51
      %p55 = pneg %p49
      %p56 = scmp.eq.s32.totalorder %s19, 1
      %p57 = por %p55, %p56
      %p58 = scmp.ne.s32.totalorder %s50, %s53
      %p59 = scmp.eq.s32.totalorder %s19, 0
      %p60 = por %p58, %p59
      %p61 = scmp.ne.s32.totalorder %s50, %s53
      %p62 = scmp.eq.s32.totalorder %s24, 1
      %p63 = por %p61, %p62
      %p64 = scmp.ne.s32.totalorder %s53, %s54
      %p65 = scmp.eq.s32.totalorder %s24, 0
      %p66 = por %p64, %p65
      %p67 = scmp.ne.s32.totalorder %s53, %s54
      %p68 = scmp.eq.s32.totalorder %s25, 1
      %p69 = por %p67, %p68
      %p71 = scmp.ne.s32.totalorder %s54, %s70
      %p72 = scmp.eq.s32.totalorder %s25, 0
      %p73 = por %p71, %p72
      %s74 = ssub.s32 %s19, %s26
      %p75 = scmp.eq.s32.totalorder %s74, 0
      %s77 = sadd.s32 %s76, 1
      %s78 = scalar_select %p75, %s76, %s77
      %p81 = pneg %p75
      %p82 = scmp.eq.s32.totalorder %s19, 1
      %p83 = por %p81, %p82
      %p84 = scmp.ne.s32.totalorder %s76, %s79
      %p85 = scmp.eq.s32.totalorder %s19, 0
      %p86 = por %p84, %p85
      %p87 = scmp.ne.s32.totalorder %s76, %s79
      %p88 = scmp.eq.s32.totalorder %s24, 1
      %p89 = por %p87, %p88
      %p90 = scmp.ne.s32.totalorder %s79, %s80
      %p91 = scmp.eq.s32.totalorder %s24, 0
      %p92 = por %p90, %p91
      %p93 = scmp.ne.s32.totalorder %s79, %s80
      %p94 = scmp.eq.s32.totalorder %s25, 1
      %p95 = por %p93, %p94
      %p97 = scmp.ne.s32.totalorder %s80, %s96
      %p98 = scmp.eq.s32.totalorder %s25, 0
      %p99 = por %p97, %p98
      %s100 = ssub.s32 %s19, %s26
      %p101 = scmp.eq.s32.totalorder %s100, 0
      %s103 = sadd.s32 %s102, 1
      %s104 = scalar_select %p101, %s102, %s103
      %p107 = pneg %p101
      %p108 = scmp.eq.s32.totalorder %s19, 1
      %p109 = por %p107, %p108
      %p110 = scmp.ne.s32.totalorder %s102, %s105
      %p111 = scmp.eq.s32.totalorder %s19, 0
      %p112 = por %p110, %p111
      %p113 = scmp.ne.s32.totalorder %s102, %s105
      %p114 = scmp.eq.s32.totalorder %s24, 1
      %p115 = por %p113, %p114
      %p116 = scmp.ne.s32.totalorder %s105, %s106
      %p117 = scmp.eq.s32.totalorder %s24, 0
      %p118 = por %p116, %p117
      %p119 = scmp.ne.s32.totalorder %s105, %s106
      %p120 = scmp.eq.s32.totalorder %s25, 1
      %p121 = por %p119, %p120
      %p123 = scmp.ne.s32.totalorder %s106, %s122
      %p124 = scmp.eq.s32.totalorder %s25, 0
      %p125 = por %p123, %p124
      %s126 = ssub.s32 %s19, %s26
      %p127 = scmp.eq.s32.totalorder %s126, 0
      %s129 = sadd.s32 %s128, 1
      %s130 = scalar_select %p127, %s128, %s129
      %p133 = pneg %p127
      %p134 = scmp.eq.s32.totalorder %s19, 1
      %p135 = por %p133, %p134
      %p136 = scmp.ne.s32.totalorder %s128, %s131
      %p137 = scmp.eq.s32.totalorder %s19, 0
      %p138 = por %p136, %p137
      %p139 = scmp.ne.s32.totalorder %s128, %s131
      %p140 = scmp.eq.s32.totalorder %s24, 1
      %p141 = por %p139, %p140
      %p142 = scmp.ne.s32.totalorder %s131, %s132
      %p143 = scmp.eq.s32.totalorder %s24, 0
      %p144 = por %p142, %p143
      %p145 = scmp.ne.s32.totalorder %s131, %s132
      %p146 = scmp.eq.s32.totalorder %s25, 1
      %p147 = por %p145, %p146
      %p149 = scmp.ne.s32.totalorder %s132, %s148
      %p150 = scmp.eq.s32.totalorder %s25, 0
      %p151 = por %p149, %p150
      %s152 = ssub.s32 %s19, %s26
      %p153 = scmp.eq.s32.totalorder %s152, 0
      %s155 = sadd.s32 %s154, 1
      %s156 = scalar_select %p153, %s154, %s155
      %p159 = pneg %p153
      %p160 = scmp.eq.s32.totalorder %s19, 1
      %p161 = por %p159, %p160
      %p162 = scmp.ne.s32.totalorder %s154, %s157
      %p163 = scmp.eq.s32.totalorder %s19, 0
      %p164 = por %p162, %p163
      %p165 = scmp.ne.s32.totalorder %s154, %s157
      %p166 = scmp.eq.s32.totalorder %s24, 1
      %p167 = por %p165, %p166
      %p168 = scmp.ne.s32.totalorder %s157, %s158
      %p169 = scmp.eq.s32.totalorder %s24, 0
      %p170 = por %p168, %p169
      %p171 = scmp.ne.s32.totalorder %s157, %s158
      %p172 = scmp.eq.s32.totalorder %s25, 1
      %p173 = por %p171, %p172
      %p175 = scmp.ne.s32.totalorder %s158, %s174
      %p176 = scmp.eq.s32.totalorder %s25, 0
      %p177 = por %p175, %p176
      %s178 = ssub.s32 %s19, %s26
      %p179 = scmp.eq.s32.totalorder %s178, 0
      %s181 = sadd.s32 %s180, 1
      %s182 = scalar_select %p179, %s180, %s181
      %p185 = pneg %p179
      %p186 = scmp.eq.s32.totalorder %s19, 1
      %p187 = por %p185, %p186
      %p188 = scmp.ne.s32.totalorder %s180, %s183
      %p189 = scmp.eq.s32.totalorder %s19, 0
      %p190 = por %p188, %p189
      %p191 = scmp.ne.s32.totalorder %s180, %s183
      %p192 = scmp.eq.s32.totalorder %s24, 1
      %p193 = por %p191, %p192
      %p194 = scmp.ne.s32.totalorder %s183, %s184
      %p195 = scmp.eq.s32.totalorder %s24, 0
      %p196 = por %p194, %p195
      %p197 = scmp.ne.s32.totalorder %s183, %s184
      %p198 = scmp.eq.s32.totalorder %s25, 1
      %p199 = por %p197, %p198
      %p201 = scmp.ne.s32.totalorder %s184, %s200
      %p202 = scmp.eq.s32.totalorder %s25, 0
      %p203 = por %p201, %p202
      %p204 = scmp.le.s32.totalorder 1, %s19
      %p205 = scmp.lt.s32.totalorder %s19, 3
      %p206 = pnand %p204, %p205
      %p207 = pneg %p206
      // Predicated region
      $region9: #{_seq2seq_forward_jit.2} parent=5 // pred_check
        _
      $region10: #{_seq2seq_forward_jit.2} parent=5 // pred_check_branch
        %209 = sbr.rel (%p206) target = $region12
      $region11: #{_seq2seq_forward_jit.2} parent=5 // pred_region
        %s210 = ssub.s32 %s19, 1
        // Predicated region
        $region13: #{_seq2seq_forward_jit.2} parent=11 // pred_check
          %p211 = pneg %p40
        $region14: #{_seq2seq_forward_jit.2} parent=11 // pred_check_branch
          %213 = sbr.rel (%p211) target = $region16
        $region15: #{_seq2seq_forward_jit.2} parent=11 // pred_region
          _
        $region16: #{_seq2seq_forward_jit.2} parent=11 // pred_fallthru
          _
      $region12: #{_seq2seq_forward_jit.2} parent=5 // pred_fallthru
        _
      %p214 = scmp.lt.s32.totalorder %s19, 2
      // Predicated region
      $region17: #{_seq2seq_forward_jit.2} parent=5 // pred_check
        %p215 = pneg %p214
      $region18: #{_seq2seq_forward_jit.2} parent=5 // pred_check_branch
        %217 = sbr.rel (%p215) target = $region20
      $region19: #{_seq2seq_forward_jit.2} parent=5 // pred_region
        // Predicated region
        $region21: #{_seq2seq_forward_jit.2} parent=19 // pred_check
          %p218 = pneg %p60
        $region22: #{_seq2seq_forward_jit.2} parent=19 // pred_check_branch
          %220 = sbr.rel (%p218) target = $region24
        $region23: #{_seq2seq_forward_jit.2} parent=19 // pred_region
          %s221 = sand.u32 %s50, 1
          %s222 = scalar_lea.sflag [#allocation4], %s221
          %s223 = sand.u32 %s50, 1
          %s224 = smul.addr %s223, 512
          %s225 = scalar_lea.vmem [#allocation3], %s224
          %227 = vsyncadd %s222, 0
          %s228 = smul.addr %s19, 64
          %s229 = smul.addr %s228, 8
          %s230 = scalar_lea.hbm %s1, %s229
          %s231 = sshll.u32 %s230, 4
          %s232 = int_to_ptr.hbm [resolvable:$true] %s231
          %s233 = sshll.u32 %s225, 4
          %s234 = int_to_ptr.vmem [resolvable:$true] %s233
          %239 = dma.hbm_to_vmem [thread:$0]  %s232, 8192, %s234, %s222, 512, 512, 32
        $region24: #{_seq2seq_forward_jit.2} parent=19 // pred_fallthru
          _
        // Predicated region
        $region25: #{_seq2seq_forward_jit.2} parent=19 // pred_check
          %p240 = pneg %p86
        $region26: #{_seq2seq_forward_jit.2} parent=19 // pred_check_branch
          %242 = sbr.rel (%p240) target = $region28
        $region27: #{_seq2seq_forward_jit.2} parent=19 // pred_region
          %p243 = scmp.lt.s32.totalorder %s19, 1
          %s244 = scalar_select %p243, %s19, 1
          %s245 = smul.addr %s244, 4
          %s246 = scalar_lea.vmem %s2, %s245
        $region28: #{_seq2seq_forward_jit.2} parent=19 // pred_fallthru
          _
        // Predicated region
        $region29: #{_seq2seq_forward_jit.2} parent=19 // pred_check
          %p247 = pneg %p112
        $region30: #{_seq2seq_forward_jit.2} parent=19 // pred_check_branch
          %249 = sbr.rel (%p247) target = $region32
        $region31: #{_seq2seq_forward_jit.2} parent=19 // pred_region
          %s250 = sand.u32 %s102, 1
          %s251 = scalar_lea.sflag [#allocation6], %s250
          %s252 = sand.u32 %s102, 1
          %s253 = smul.addr %s252, 512
          %s254 = scalar_lea.vmem [#allocation5], %s253
          %256 = vsyncadd %s251, 0
          %s257 = smul.addr %s19, 64
          %s258 = smul.addr %s257, 8
          %s259 = scalar_lea.hbm %s3, %s258
          %s260 = sshll.u32 %s259, 4
          %s261 = int_to_ptr.hbm [resolvable:$true] %s260
          %s262 = sshll.u32 %s254, 4
          %s263 = int_to_ptr.vmem [resolvable:$true] %s262
          %268 = dma.hbm_to_vmem [thread:$0]  %s261, 8192, %s263, %s251, 512, 512, 32
        $region32: #{_seq2seq_forward_jit.2} parent=19 // pred_fallthru
          _
      $region20: #{_seq2seq_forward_jit.2} parent=5 // pred_fallthru
        _
      %p269 = scmp.le.s32.totalorder 1, %s19
      %p270 = scmp.lt.s32.totalorder %s19, 3
      %p271 = pnand %p269, %p270
      %p272 = pneg %p271
      // Predicated region
      $region33: #{_seq2seq_forward_jit.2} parent=5 // pred_check
        _
      $region34: #{_seq2seq_forward_jit.2} parent=5 // pred_check_branch
        %274 = sbr.rel (%p271) target = $region36
      $region35: #{_seq2seq_forward_jit.2} parent=5 // pred_region
        %s275 = ssub.s32 %s19, 1
        %s276 = sand.u32 %s53, 1
        %s277 = scalar_lea.sflag [#allocation4], %s276
        %s278 = sand.u32 %s53, 1
        %s279 = smul.addr %s278, 512
        %s280 = scalar_lea.vmem [#allocation3], %s279
        // Predicated region
        $region37: #{_seq2seq_forward_jit.2} parent=35 // pred_check
          %p281 = pneg %p66
        $region38: #{_seq2seq_forward_jit.2} parent=35 // pred_check_branch
          %283 = sbr.rel (%p281) target = $region40
        $region39: #{_seq2seq_forward_jit.2} parent=35 // pred_region
          %285 = dma.done %s277, 8192
        $region40: #{_seq2seq_forward_jit.2} parent=35 // pred_fallthru
          _
        %s286 = sand.u32 %s105, 1
        %s287 = scalar_lea.sflag [#allocation6], %s286
        %s288 = sand.u32 %s105, 1
        %s289 = smul.addr %s288, 512
        %s290 = scalar_lea.vmem [#allocation5], %s289
        // Predicated region
        $region41: #{_seq2seq_forward_jit.2} parent=35 // pred_check
          %p291 = pneg %p118
        $region42: #{_seq2seq_forward_jit.2} parent=35 // pred_check_branch
          %293 = sbr.rel (%p291) target = $region44
        $region43: #{_seq2seq_forward_jit.2} parent=35 // pred_region
          %295 = dma.done %s287, 8192
        $region44: #{_seq2seq_forward_jit.2} parent=35 // pred_fallthru
          _
        %p296 = pneg %p40
        %p297 = pneg %p37
        %s298 = sand.u32 %s53, 1
        %s299 = scalar_lea.sflag [#allocation4], %s298
        %s300 = sand.u32 %s53, 1
        %s301 = smul.addr %s300, 512
        %s302 = scalar_lea.vmem [#allocation3], %s301
        %p303 = pneg %p66
        %p304 = pneg %p63
        %p305 = scmp.lt.s32.totalorder %s24, 1
        %s306 = scalar_select %p305, %s24, 1
        %s307 = smul.addr %s306, 4
        %s308 = scalar_lea.vmem %s2, %s307
        %p309 = pneg %p92
        %p310 = pneg %p89
        %s311 = sand.u32 %s105, 1
        %s312 = scalar_lea.sflag [#allocation6], %s311
        %s313 = sand.u32 %s105, 1
        %s314 = smul.addr %s313, 512
        %s315 = scalar_lea.vmem [#allocation5], %s314
        %p316 = pneg %p118
        %p317 = pneg %p115
        %p318 = pneg %p144
        %p319 = pneg %p141
        %p320 = scmp.lt.s32.totalorder %s24, 1
        %s321 = scalar_select %p320, %s24, 1
        %s322 = smul.addr %s321, 8
        %s323 = smul.addr %s322, 8
        %s324 = scalar_lea.vmem %s4, %s323
        %p325 = pneg %p170
        %p326 = pneg %p167
        %p327 = scmp.lt.s32.totalorder %s24, 1
        %s328 = scalar_select %p327, %s24, 1
        %s329 = smul.addr %s328, 8
        %s330 = scalar_lea.vmem %s5, %s329
        %p331 = pneg %p196
        %p332 = pneg %p193
        %p333 = scmp.lt.s32.totalorder %s24, 1
        %s334 = scalar_select %p333, %s24, 1
        %s335 = smul.addr %s334, 8
        %s336 = scalar_lea.vmem %s6, %s335
        %p337 = scmp.lt.s32.totalorder %s24, 1
        %s338 = scalar_select %p337, %s24, 1
        %s339 = smul.addr %s338, 4
        %s340 = scalar_lea.vmem %s2, %s339
        %p341 = scmp.lt.s32.totalorder %s24, 1
        %s342 = scalar_select %p341, %s24, 1
        %s343 = smul.addr %s342, 8
        %s344 = smul.addr %s343, 8
        %s345 = scalar_lea.vmem %s4, %s344
        %p346 = scmp.lt.s32.totalorder %s24, 1
        %s347 = scalar_select %p346, %s24, 1
        %s348 = smul.addr %s347, 8
        %s349 = scalar_lea.vmem %s5, %s348
        %p350 = scmp.lt.s32.totalorder %s24, 1
        %s351 = scalar_select %p350, %s24, 1
        %s352 = smul.addr %s351, 8
        %s353 = scalar_lea.vmem %s6, %s352
        %p354 = scmp.eq.s32.totalorder %s24, 1
        %v355 = vld [vmem:[%s0] sm:$0xff]
        %v356 = vld [vmem:[%s0 + $0x8] sm:$0xff]
        %v357 = vld [vmem:[%s0 + $0x10] sm:$0xff]
        %v358 = vld [vmem:[%s0 + $0x18] sm:$0xff]
        %v359 = vld [vmem:[%s0 + $0x20] sm:$0xff]
        %v360 = vld [vmem:[%s0 + $0x28] sm:$0xff]
        %v361 = vld [vmem:[%s0 + $0x30] sm:$0xff]
        %v362 = vld [vmem:[%s0 + $0x38] sm:$0xff]
        %v363 = vld [vmem:[%s280] sm:$0xff]
        %v364 = vld [vmem:[%s280 + $0x8] sm:$0xff]
        %v365 = vld [vmem:[%s280 + $0x10] sm:$0xff]
        %v366 = vld [vmem:[%s280 + $0x18] sm:$0xff]
        %v367 = vld [vmem:[%s280 + $0x20] sm:$0xff]
        %v368 = vld [vmem:[%s280 + $0x28] sm:$0xff]
        %v369 = vld [vmem:[%s280 + $0x30] sm:$0xff]
        %v370 = vld [vmem:[%s280 + $0x38] sm:$0xff]
        %v371 = vld [vmem:[%s280 + $0x40] sm:$0xff]
        %v372 = vld [vmem:[%s280 + $0x48] sm:$0xff]
        %v373 = vld [vmem:[%s280 + $0x50] sm:$0xff]
        %v374 = vld [vmem:[%s280 + $0x58] sm:$0xff]
        %v375 = vld [vmem:[%s280 + $0x60] sm:$0xff]
        %v376 = vld [vmem:[%s280 + $0x68] sm:$0xff]
        %v377 = vld [vmem:[%s280 + $0x70] sm:$0xff]
        %v378 = vld [vmem:[%s280 + $0x78] sm:$0xff]
        %v379 = vld [vmem:[%s280 + $0x80] sm:$0xff]
        %v380 = vld [vmem:[%s280 + $0x88] sm:$0xff]
        %v381 = vld [vmem:[%s280 + $0x90] sm:$0xff]
        %v382 = vld [vmem:[%s280 + $0x98] sm:$0xff]
        %v383 = vld [vmem:[%s280 + $0xa0] sm:$0xff]
        %v384 = vld [vmem:[%s280 + $0xa8] sm:$0xff]
        %v385 = vld [vmem:[%s280 + $0xb0] sm:$0xff]
        %v386 = vld [vmem:[%s280 + $0xb8] sm:$0xff]
        %v387 = vld [vmem:[%s280 + $0xc0] sm:$0xff]
        %v388 = vld [vmem:[%s280 + $0xc8] sm:$0xff]
        %v389 = vld [vmem:[%s280 + $0xd0] sm:$0xff]
        %v390 = vld [vmem:[%s280 + $0xd8] sm:$0xff]
        %v391 = vld [vmem:[%s280 + $0xe0] sm:$0xff]
        %v392 = vld [vmem:[%s280 + $0xe8] sm:$0xff]
        %v393 = vld [vmem:[%s280 + $0xf0] sm:$0xff]
        %v394 = vld [vmem:[%s280 + $0xf8] sm:$0xff]
        %v395 = vld [vmem:[%s280 + $0x100] sm:$0xff]
        %v396 = vld [vmem:[%s280 + $0x108] sm:$0xff]
        %v397 = vld [vmem:[%s280 + $0x110] sm:$0xff]
        %v398 = vld [vmem:[%s280 + $0x118] sm:$0xff]
        %v399 = vld [vmem:[%s280 + $0x120] sm:$0xff]
        %v400 = vld [vmem:[%s280 + $0x128] sm:$0xff]
        %v401 = vld [vmem:[%s280 + $0x130] sm:$0xff]
        %v402 = vld [vmem:[%s280 + $0x138] sm:$0xff]
        %v403 = vld [vmem:[%s280 + $0x140] sm:$0xff]
        %v404 = vld [vmem:[%s280 + $0x148] sm:$0xff]
        %v405 = vld [vmem:[%s280 + $0x150] sm:$0xff]
        %v406 = vld [vmem:[%s280 + $0x158] sm:$0xff]
        %v407 = vld [vmem:[%s280 + $0x160] sm:$0xff]
        %v408 = vld [vmem:[%s280 + $0x168] sm:$0xff]
        %v409 = vld [vmem:[%s280 + $0x170] sm:$0xff]
        %v410 = vld [vmem:[%s280 + $0x178] sm:$0xff]
        %v411 = vld [vmem:[%s280 + $0x180] sm:$0xff]
        %v412 = vld [vmem:[%s280 + $0x188] sm:$0xff]
        %v413 = vld [vmem:[%s280 + $0x190] sm:$0xff]
        %v414 = vld [vmem:[%s280 + $0x198] sm:$0xff]
        %v415 = vld [vmem:[%s280 + $0x1a0] sm:$0xff]
        %v416 = vld [vmem:[%s280 + $0x1a8] sm:$0xff]
        %v417 = vld [vmem:[%s280 + $0x1b0] sm:$0xff]
        %v418 = vld [vmem:[%s280 + $0x1b8] sm:$0xff]
        %v419 = vld [vmem:[%s280 + $0x1c0] sm:$0xff]
        %v420 = vld [vmem:[%s280 + $0x1c8] sm:$0xff]
        %v421 = vld [vmem:[%s280 + $0x1d0] sm:$0xff]
        %v422 = vld [vmem:[%s280 + $0x1d8] sm:$0xff]
        %v423 = vld [vmem:[%s280 + $0x1e0] sm:$0xff]
        %v424 = vld [vmem:[%s280 + $0x1e8] sm:$0xff]
        %v425 = vld [vmem:[%s280 + $0x1f0] sm:$0xff]
        %v426 = vld [vmem:[%s280 + $0x1f8] sm:$0xff]
        %v427 = vld [vmem:[%s340] sm:$0xf]
        %v429 = vperm.slane %v427, 0
        %v430 = vperm.slane %v427, 1
        %v431 = vperm.slane %v427, 2
        %v432 = vperm.slane %v427, 3
        %437 = vmatpush.msra.mxu0 %v423
        %438 = vmatpush.msra.mxu0 %v419
        %439 = vmatpush.msra.mxu0 %v415
        %440 = vmatpush.msra.mxu0 %v411
        %441 = vmatpush.msra.mxu0 %v407
        %442 = vmatpush.msra.mxu0 %v403
        %443 = vmatpush.msra.mxu0 %v399
        %444 = vmatpush.msra.mxu0 %v395
        %445 = vmatpush.msra.mxu0 %v391
        %446 = vmatpush.msra.mxu0 %v387
        %447 = vmatpush.msra.mxu0 %v383
        %448 = vmatpush.msra.mxu0 %v379
        %449 = vmatpush.msra.mxu0 %v375
        %450 = vmatpush.msra.mxu0 %v371
        %451 = vmatpush.msra.mxu0 %v367
        %452 = vmatpush.msra.mxu0 %v363
        %453 = vmatmul.f32.gmra.mxu0 %v355
        %v454 = vpop.f32.mrf.mxu0
        %v455 = vadd.f32 %v429, %v454
        %456 = vmatmul.f32.gmra.mxu0 %v356
        %v457 = vpop.f32.mrf.mxu0
        %v458 = vadd.f32 %v429, %v457
        %459 = vmatmul.f32.gmra.mxu0 %v357
        %v460 = vpop.f32.mrf.mxu0
        %v461 = vadd.f32 %v429, %v460
        %462 = vmatmul.f32.gmra.mxu0 %v358
        %v463 = vpop.f32.mrf.mxu0
        %v464 = vadd.f32 %v429, %v463
        %465 = vmatmul.f32.gmra.mxu0 %v359
        %v466 = vpop.f32.mrf.mxu0
        %v467 = vadd.f32 %v429, %v466
        %468 = vmatmul.f32.gmra.mxu0 %v360
        %v469 = vpop.f32.mrf.mxu0
        %v470 = vadd.f32 %v429, %v469
        %471 = vmatmul.f32.gmra.mxu0 %v361
        %v472 = vpop.f32.mrf.mxu0
        %v473 = vadd.f32 %v429, %v472
        %474 = vmatmul.f32.gmra.mxu0 %v362
        %v475 = vpop.f32.mrf.mxu0
        %v476 = vadd.f32 %v429, %v475
        %477 = vdwg.mxu0
        %478 = vmatpush.msra.mxu0 %v424
        %479 = vmatpush.msra.mxu0 %v420
        %480 = vmatpush.msra.mxu0 %v416
        %481 = vmatpush.msra.mxu0 %v412
        %482 = vmatpush.msra.mxu0 %v408
        %483 = vmatpush.msra.mxu0 %v404
        %484 = vmatpush.msra.mxu0 %v400
        %485 = vmatpush.msra.mxu0 %v396
        %486 = vmatpush.msra.mxu0 %v392
        %487 = vmatpush.msra.mxu0 %v388
        %488 = vmatpush.msra.mxu0 %v384
        %489 = vmatpush.msra.mxu0 %v380
        %490 = vmatpush.msra.mxu0 %v376
        %491 = vmatpush.msra.mxu0 %v372
        %492 = vmatpush.msra.mxu0 %v368
        %493 = vmatpush.msra.mxu0 %v364
        %494 = vmatmul.f32.gmra.mxu0 %v355
        %v495 = vpop.f32.mrf.mxu0
        %v496 = vadd.f32 %v430, %v495
        %497 = vmatmul.f32.gmra.mxu0 %v356
        %v498 = vpop.f32.mrf.mxu0
        %v499 = vadd.f32 %v430, %v498
        %500 = vmatmul.f32.gmra.mxu0 %v357
        %v501 = vpop.f32.mrf.mxu0
        %v502 = vadd.f32 %v430, %v501
        %503 = vmatmul.f32.gmra.mxu0 %v358
        %v504 = vpop.f32.mrf.mxu0
        %v505 = vadd.f32 %v430, %v504
        %506 = vmatmul.f32.gmra.mxu0 %v359
        %v507 = vpop.f32.mrf.mxu0
        %v508 = vadd.f32 %v430, %v507
        %509 = vmatmul.f32.gmra.mxu0 %v360
        %v510 = vpop.f32.mrf.mxu0
        %v511 = vadd.f32 %v430, %v510
        %512 = vmatmul.f32.gmra.mxu0 %v361
        %v513 = vpop.f32.mrf.mxu0
        %v514 = vadd.f32 %v430, %v513
        %515 = vmatmul.f32.gmra.mxu0 %v362
        %v516 = vpop.f32.mrf.mxu0
        %v517 = vadd.f32 %v430, %v516
        %518 = vdwg.mxu0
        %519 = vmatpush.msra.mxu0 %v425
        %520 = vmatpush.msra.mxu0 %v421
        %521 = vmatpush.msra.mxu0 %v417
        %522 = vmatpush.msra.mxu0 %v413
        %523 = vmatpush.msra.mxu0 %v409
        %524 = vmatpush.msra.mxu0 %v405
        %525 = vmatpush.msra.mxu0 %v401
        %526 = vmatpush.msra.mxu0 %v397
        %527 = vmatpush.msra.mxu0 %v393
        %528 = vmatpush.msra.mxu0 %v389
        %529 = vmatpush.msra.mxu0 %v385
        %530 = vmatpush.msra.mxu0 %v381
        %531 = vmatpush.msra.mxu0 %v377
        %532 = vmatpush.msra.mxu0 %v373
        %533 = vmatpush.msra.mxu0 %v369
        %534 = vmatpush.msra.mxu0 %v365
        %535 = vmatmul.f32.gmra.mxu0 %v355
        %v536 = vpop.f32.mrf.mxu0
        %v537 = vadd.f32 %v431, %v536
        %538 = vmatmul.f32.gmra.mxu0 %v356
        %v539 = vpop.f32.mrf.mxu0
        %v540 = vadd.f32 %v431, %v539
        %541 = vmatmul.f32.gmra.mxu0 %v357
        %v542 = vpop.f32.mrf.mxu0
        %v543 = vadd.f32 %v431, %v542
        %544 = vmatmul.f32.gmra.mxu0 %v358
        %v545 = vpop.f32.mrf.mxu0
        %v546 = vadd.f32 %v431, %v545
        %547 = vmatmul.f32.gmra.mxu0 %v359
        %v548 = vpop.f32.mrf.mxu0
        %v549 = vadd.f32 %v431, %v548
        %550 = vmatmul.f32.gmra.mxu0 %v360
        %v551 = vpop.f32.mrf.mxu0
        %v552 = vadd.f32 %v431, %v551
        %553 = vmatmul.f32.gmra.mxu0 %v361
        %v554 = vpop.f32.mrf.mxu0
        %v555 = vadd.f32 %v431, %v554
        %556 = vmatmul.f32.gmra.mxu0 %v362
        %v557 = vpop.f32.mrf.mxu0
        %v558 = vadd.f32 %v431, %v557
        %559 = vdwg.mxu0
        %560 = vmatpush.msra.mxu0 %v426
        %561 = vmatpush.msra.mxu0 %v422
        %562 = vmatpush.msra.mxu0 %v418
        %563 = vmatpush.msra.mxu0 %v414
        %564 = vmatpush.msra.mxu0 %v410
        %565 = vmatpush.msra.mxu0 %v406
        %566 = vmatpush.msra.mxu0 %v402
        %567 = vmatpush.msra.mxu0 %v398
        %568 = vmatpush.msra.mxu0 %v394
        %569 = vmatpush.msra.mxu0 %v390
        %570 = vmatpush.msra.mxu0 %v386
        %571 = vmatpush.msra.mxu0 %v382
        %572 = vmatpush.msra.mxu0 %v378
        %573 = vmatpush.msra.mxu0 %v374
        %574 = vmatpush.msra.mxu0 %v370
        %575 = vmatpush.msra.mxu0 %v366
        %576 = vmatmul.f32.gmra.mxu0 %v355
        %v577 = vpop.f32.mrf.mxu0
        %v578 = vadd.f32 %v432, %v577
        %579 = vmatmul.f32.gmra.mxu0 %v356
        %v580 = vpop.f32.mrf.mxu0
        %v581 = vadd.f32 %v432, %v580
        %582 = vmatmul.f32.gmra.mxu0 %v357
        %v583 = vpop.f32.mrf.mxu0
        %v584 = vadd.f32 %v432, %v583
        %585 = vmatmul.f32.gmra.mxu0 %v358
        %v586 = vpop.f32.mrf.mxu0
        %v587 = vadd.f32 %v432, %v586
        %588 = vmatmul.f32.gmra.mxu0 %v359
        %v589 = vpop.f32.mrf.mxu0
        %v590 = vadd.f32 %v432, %v589
        %591 = vmatmul.f32.gmra.mxu0 %v360
        %v592 = vpop.f32.mrf.mxu0
        %v593 = vadd.f32 %v432, %v592
        %594 = vmatmul.f32.gmra.mxu0 %v361
        %v595 = vpop.f32.mrf.mxu0
        %v596 = vadd.f32 %v432, %v595
        %597 = vmatmul.f32.gmra.mxu0 %v362
        %v598 = vpop.f32.mrf.mxu0
        %v599 = vadd.f32 %v432, %v598
        %600 = vdwg.mxu0
        %601 = vst [vmem:[#allocation2] sm:$0xff] %v455
        %602 = vst [vmem:[#allocation2 + $0x8] sm:$0xff] %v496
        %603 = vst [vmem:[#allocation2 + $0x10] sm:$0xff] %v537
        %604 = vst [vmem:[#allocation2 + $0x18] sm:$0xff] %v578
        %s605 = scalar_lea.vmem [#allocation2], 32
        %606 = vst [vmem:[%s605] sm:$0xff] %v458
        %607 = vst [vmem:[%s605 + $0x8] sm:$0xff] %v499
        %608 = vst [vmem:[%s605 + $0x10] sm:$0xff] %v540
        %609 = vst [vmem:[%s605 + $0x18] sm:$0xff] %v581
        %s610 = scalar_lea.vmem [#allocation2], 64
        %611 = vst [vmem:[%s610] sm:$0xff] %v461
        %612 = vst [vmem:[%s610 + $0x8] sm:$0xff] %v502
        %613 = vst [vmem:[%s610 + $0x10] sm:$0xff] %v543
        %614 = vst [vmem:[%s610 + $0x18] sm:$0xff] %v584
        %s615 = scalar_lea.vmem [#allocation2], 96
        %616 = vst [vmem:[%s615] sm:$0xff] %v464
        %617 = vst [vmem:[%s615 + $0x8] sm:$0xff] %v505
        %618 = vst [vmem:[%s615 + $0x10] sm:$0xff] %v546
        %619 = vst [vmem:[%s615 + $0x18] sm:$0xff] %v587
        %s620 = scalar_lea.vmem [#allocation2], 128
        %621 = vst [vmem:[%s620] sm:$0xff] %v467
        %622 = vst [vmem:[%s620 + $0x8] sm:$0xff] %v508
        %623 = vst [vmem:[%s620 + $0x10] sm:$0xff] %v549
        %624 = vst [vmem:[%s620 + $0x18] sm:$0xff] %v590
        %s625 = scalar_lea.vmem [#allocation2], 160
        %626 = vst [vmem:[%s625] sm:$0xff] %v470
        %627 = vst [vmem:[%s625 + $0x8] sm:$0xff] %v511
        %628 = vst [vmem:[%s625 + $0x10] sm:$0xff] %v552
        %629 = vst [vmem:[%s625 + $0x18] sm:$0xff] %v593
        %s630 = scalar_lea.vmem [#allocation2], 192
        %631 = vst [vmem:[%s630] sm:$0xff] %v473
        %632 = vst [vmem:[%s630 + $0x8] sm:$0xff] %v514
        %633 = vst [vmem:[%s630 + $0x10] sm:$0xff] %v555
        %634 = vst [vmem:[%s630 + $0x18] sm:$0xff] %v596
        %s635 = scalar_lea.vmem [#allocation2], 224
        %636 = vst [vmem:[%s635] sm:$0xff] %v476
        %637 = vst [vmem:[%s635 + $0x8] sm:$0xff] %v517
        %638 = vst [vmem:[%s635 + $0x10] sm:$0xff] %v558
        %639 = vst [vmem:[%s635 + $0x18] sm:$0xff] %v599
        %s640 = scalar_select %p354, 7, 0
        %s641 = smul.u32 %s640, 4
        %s642 = smul.addr %s641, 8
        %s643 = scalar_lea.vmem [#allocation2], %s642
        %v644 = vld [vmem:[%s643] sm:$0xff]
        %v645 = vld [vmem:[%s643 + $0x8] sm:$0xff]
        %v646 = vld [vmem:[%s643 + $0x10] sm:$0xff]
        %v647 = vld [vmem:[%s643 + $0x18] sm:$0xff]
        %v648 = vld [vmem:[%s290] sm:$0xff]
        %v649 = vld [vmem:[%s290 + $0x8] sm:$0xff]
        %v650 = vld [vmem:[%s290 + $0x10] sm:$0xff]
        %v651 = vld [vmem:[%s290 + $0x18] sm:$0xff]
        %v652 = vld [vmem:[%s290 + $0x20] sm:$0xff]
        %v653 = vld [vmem:[%s290 + $0x28] sm:$0xff]
        %v654 = vld [vmem:[%s290 + $0x30] sm:$0xff]
        %v655 = vld [vmem:[%s290 + $0x38] sm:$0xff]
        %v656 = vld [vmem:[%s290 + $0x40] sm:$0xff]
        %v657 = vld [vmem:[%s290 + $0x48] sm:$0xff]
        %v658 = vld [vmem:[%s290 + $0x50] sm:$0xff]
        %v659 = vld [vmem:[%s290 + $0x58] sm:$0xff]
        %v660 = vld [vmem:[%s290 + $0x60] sm:$0xff]
        %v661 = vld [vmem:[%s290 + $0x68] sm:$0xff]
        %v662 = vld [vmem:[%s290 + $0x70] sm:$0xff]
        %v663 = vld [vmem:[%s290 + $0x78] sm:$0xff]
        %v664 = vld [vmem:[%s290 + $0x80] sm:$0xff]
        %v665 = vld [vmem:[%s290 + $0x88] sm:$0xff]
        %v666 = vld [vmem:[%s290 + $0x90] sm:$0xff]
        %v667 = vld [vmem:[%s290 + $0x98] sm:$0xff]
        %v668 = vld [vmem:[%s290 + $0xa0] sm:$0xff]
        %v669 = vld [vmem:[%s290 + $0xa8] sm:$0xff]
        %v670 = vld [vmem:[%s290 + $0xb0] sm:$0xff]
        %v671 = vld [vmem:[%s290 + $0xb8] sm:$0xff]
        %v672 = vld [vmem:[%s290 + $0xc0] sm:$0xff]
        %v673 = vld [vmem:[%s290 + $0xc8] sm:$0xff]
        %v674 = vld [vmem:[%s290 + $0xd0] sm:$0xff]
        %v675 = vld [vmem:[%s290 + $0xd8] sm:$0xff]
        %v676 = vld [vmem:[%s290 + $0xe0] sm:$0xff]
        %v677 = vld [vmem:[%s290 + $0xe8] sm:$0xff]
        %v678 = vld [vmem:[%s290 + $0xf0] sm:$0xff]
        %v679 = vld [vmem:[%s290 + $0xf8] sm:$0xff]
        %v680 = vld [vmem:[%s290 + $0x100] sm:$0xff]
        %v681 = vld [vmem:[%s290 + $0x108] sm:$0xff]
        %v682 = vld [vmem:[%s290 + $0x110] sm:$0xff]
        %v683 = vld [vmem:[%s290 + $0x118] sm:$0xff]
        %v684 = vld [vmem:[%s290 + $0x120] sm:$0xff]
        %v685 = vld [vmem:[%s290 + $0x128] sm:$0xff]
        %v686 = vld [vmem:[%s290 + $0x130] sm:$0xff]
        %v687 = vld [vmem:[%s290 + $0x138] sm:$0xff]
        %v688 = vld [vmem:[%s290 + $0x140] sm:$0xff]
        %v689 = vld [vmem:[%s290 + $0x148] sm:$0xff]
        %v690 = vld [vmem:[%s290 + $0x150] sm:$0xff]
        %v691 = vld [vmem:[%s290 + $0x158] sm:$0xff]
        %v692 = vld [vmem:[%s290 + $0x160] sm:$0xff]
        %v693 = vld [vmem:[%s290 + $0x168] sm:$0xff]
        %v694 = vld [vmem:[%s290 + $0x170] sm:$0xff]
        %v695 = vld [vmem:[%s290 + $0x178] sm:$0xff]
        %v696 = vld [vmem:[%s290 + $0x180] sm:$0xff]
        %v697 = vld [vmem:[%s290 + $0x188] sm:$0xff]
        %v698 = vld [vmem:[%s290 + $0x190] sm:$0xff]
        %v699 = vld [vmem:[%s290 + $0x198] sm:$0xff]
        %v700 = vld [vmem:[%s290 + $0x1a0] sm:$0xff]
        %v701 = vld [vmem:[%s290 + $0x1a8] sm:$0xff]
        %v702 = vld [vmem:[%s290 + $0x1b0] sm:$0xff]
        %v703 = vld [vmem:[%s290 + $0x1b8] sm:$0xff]
        %v704 = vld [vmem:[%s290 + $0x1c0] sm:$0xff]
        %v705 = vld [vmem:[%s290 + $0x1c8] sm:$0xff]
        %v706 = vld [vmem:[%s290 + $0x1d0] sm:$0xff]
        %v707 = vld [vmem:[%s290 + $0x1d8] sm:$0xff]
        %v708 = vld [vmem:[%s290 + $0x1e0] sm:$0xff]
        %v709 = vld [vmem:[%s290 + $0x1e8] sm:$0xff]
        %v710 = vld [vmem:[%s290 + $0x1f0] sm:$0xff]
        %v711 = vld [vmem:[%s290 + $0x1f8] sm:$0xff]
        %712 = vmatpush.msra.mxu0 %v708
        %713 = vmatpush.msra.mxu0 %v704
        %714 = vmatpush.msra.mxu0 %v700
        %715 = vmatpush.msra.mxu0 %v696
        %716 = vmatpush.msra.mxu0 %v692
        %717 = vmatpush.msra.mxu0 %v688
        %718 = vmatpush.msra.mxu0 %v684
        %719 = vmatpush.msra.mxu0 %v680
        %720 = vmatpush.msra.mxu0 %v676
        %721 = vmatpush.msra.mxu0 %v672
        %722 = vmatpush.msra.mxu0 %v668
        %723 = vmatpush.msra.mxu0 %v664
        %724 = vmatpush.msra.mxu0 %v660
        %725 = vmatpush.msra.mxu0 %v656
        %726 = vmatpush.msra.mxu0 %v652
        %727 = vmatpush.msra.mxu0 %v648
        %728 = vmatmul.f32.gmra.mxu0 0.0
        %v729 = vpop.f32.mrf.mxu0
        %v730 = vadd.f32 0.0, %v729
        %731 = vdwg.mxu0
        %732 = vmatpush.msra.mxu0 %v709
        %733 = vmatpush.msra.mxu0 %v705
        %734 = vmatpush.msra.mxu0 %v701
        %735 = vmatpush.msra.mxu0 %v697
        %736 = vmatpush.msra.mxu0 %v693
        %737 = vmatpush.msra.mxu0 %v689
        %738 = vmatpush.msra.mxu0 %v685
        %739 = vmatpush.msra.mxu0 %v681
        %740 = vmatpush.msra.mxu0 %v677
        %741 = vmatpush.msra.mxu0 %v673
        %742 = vmatpush.msra.mxu0 %v669
        %743 = vmatpush.msra.mxu0 %v665
        %744 = vmatpush.msra.mxu0 %v661
        %745 = vmatpush.msra.mxu0 %v657
        %746 = vmatpush.msra.mxu0 %v653
        %747 = vmatpush.msra.mxu0 %v649
        %748 = vmatmul.f32.gmra.mxu0 0.0
        %v749 = vpop.f32.mrf.mxu0
        %v750 = vadd.f32 0.0, %v749
        %751 = vdwg.mxu0
        %752 = vmatpush.msra.mxu0 %v710
        %753 = vmatpush.msra.mxu0 %v706
        %754 = vmatpush.msra.mxu0 %v702
        %755 = vmatpush.msra.mxu0 %v698
        %756 = vmatpush.msra.mxu0 %v694
        %757 = vmatpush.msra.mxu0 %v690
        %758 = vmatpush.msra.mxu0 %v686
        %759 = vmatpush.msra.mxu0 %v682
        %760 = vmatpush.msra.mxu0 %v678
        %761 = vmatpush.msra.mxu0 %v674
        %762 = vmatpush.msra.mxu0 %v670
        %763 = vmatpush.msra.mxu0 %v666
        %764 = vmatpush.msra.mxu0 %v662
        %765 = vmatpush.msra.mxu0 %v658
        %766 = vmatpush.msra.mxu0 %v654
        %767 = vmatpush.msra.mxu0 %v650
        %768 = vmatmul.f32.gmra.mxu0 0.0
        %v769 = vpop.f32.mrf.mxu0
        %v770 = vadd.f32 0.0, %v769
        %771 = vdwg.mxu0
        %772 = vmatpush.msra.mxu0 %v711
        %773 = vmatpush.msra.mxu0 %v707
        %774 = vmatpush.msra.mxu0 %v703
        %775 = vmatpush.msra.mxu0 %v699
        %776 = vmatpush.msra.mxu0 %v695
        %777 = vmatpush.msra.mxu0 %v691
        %778 = vmatpush.msra.mxu0 %v687
        %779 = vmatpush.msra.mxu0 %v683
        %780 = vmatpush.msra.mxu0 %v679
        %781 = vmatpush.msra.mxu0 %v675
        %782 = vmatpush.msra.mxu0 %v671
        %783 = vmatpush.msra.mxu0 %v667
        %784 = vmatpush.msra.mxu0 %v663
        %785 = vmatpush.msra.mxu0 %v659
        %786 = vmatpush.msra.mxu0 %v655
        %787 = vmatpush.msra.mxu0 %v651
        %788 = vmatmul.f32.gmra.mxu0 0.0
        %v789 = vpop.f32.mrf.mxu0
        %v790 = vadd.f32 0.0, %v789
        %791 = vdwg.mxu0
        %v792 = vadd.f32 %v644, %v730
        %v793 = vadd.f32 %v645, %v750
        %v794 = vadd.f32 %v646, %v770
        %v795 = vadd.f32 %v647, %v790
        %v796 = vxor.u32 %v792, 2147483648
        %v797 = vmul.f32 %v796, 1.442695
        %v798 = vpow.pop %v797
        %v799 = vadd.f32 %v798, 1.0
        %v800 = vrcp.pop %v799
        %v801 = vmul.f32 %v799, %v800
        %v802 = vsub.f32 1.0, %v801
        %v803 = vmul.f32 %v800, %v802
        %v804 = vadd.f32 %v800, %v803
        %vm805 = vweird.f32 %v799
        %vm806 = vweird.f32 %v800
        %vm807 = vmor %vm805, %vm806
        %v808 = vsel %vm807, %v800, %v804
        %v809 = vand.u32 2147483647, %v799
        %vm810 = vcmp.eq.f32.partialorder %v809, 8.507059e+37
        %v811 = vand.u32 %v799, 2147483648
        %v812 = vor.u32 1.1754944e-38, %v811
        %v813 = vsel %vm810, %v812, %v808
        %v814 = vmul.f32 1.0, %v813
        %v815 = vxor.u32 %v793, 2147483648
        %v816 = vmul.f32 %v815, 1.442695
        %v817 = vpow.pop %v816
        %v818 = vadd.f32 %v817, 1.0
        %v819 = vrcp.pop %v818
        %v820 = vmul.f32 %v818, %v819
        %v821 = vsub.f32 1.0, %v820
        %v822 = vmul.f32 %v819, %v821
        %v823 = vadd.f32 %v819, %v822
        %vm824 = vweird.f32 %v818
        %vm825 = vweird.f32 %v819
        %vm826 = vmor %vm824, %vm825
        %v827 = vsel %vm826, %v819, %v823
        %v828 = vand.u32 2147483647, %v818
        %vm829 = vcmp.eq.f32.partialorder %v828, 8.507059e+37
        %v830 = vand.u32 %v818, 2147483648
        %v831 = vor.u32 1.1754944e-38, %v830
        %v832 = vsel %vm829, %v831, %v827
        %v833 = vmul.f32 1.0, %v832
        %v834 = vtanh.pop %v794
        %v835 = vxor.u32 %v795, 2147483648
        %v836 = vmul.f32 %v835, 1.442695
        %v837 = vpow.pop %v836
        %v838 = vadd.f32 %v837, 1.0
        %v839 = vrcp.pop %v838
        %v840 = vmul.f32 %v838, %v839
        %v841 = vsub.f32 1.0, %v840
        %v842 = vmul.f32 %v839, %v841
        %v843 = vadd.f32 %v839, %v842
        %vm844 = vweird.f32 %v838
        %vm845 = vweird.f32 %v839
        %vm846 = vmor %vm844, %vm845
        %v847 = vsel %vm846, %v839, %v843
        %v848 = vand.u32 2147483647, %v838
        %vm849 = vcmp.eq.f32.partialorder %v848, 8.507059e+37
        %v850 = vand.u32 %v838, 2147483648
        %v851 = vor.u32 1.1754944e-38, %v850
        %v852 = vsel %vm849, %v851, %v847
        %v853 = vmul.f32 1.0, %v852
        %v854 = vmul.f32 %v833, 0.0
        %v855 = vmul.f32 %v814, %v834
        %v856 = vadd.f32 %v854, %v855
        %v857 = vtanh.pop %v856
        %v858 = vmul.f32 %v853, %v857
        %s859 = smul.u32 %s640, 8
        %s860 = scalar_lea.vmem %s345, %s859
        %861 = vst [vmem:[%s860] sm:$0xff] %v858
        %s862 = scalar_select %p354, 6, 1
        %s863 = smul.u32 %s862, 4
        %s864 = smul.addr %s863, 8
        %s865 = scalar_lea.vmem [#allocation2], %s864
        %v866 = vld [vmem:[%s865] sm:$0xff]
        %v867 = vld [vmem:[%s865 + $0x8] sm:$0xff]
        %v868 = vld [vmem:[%s865 + $0x10] sm:$0xff]
        %v869 = vld [vmem:[%s865 + $0x18] sm:$0xff]
        %v870 = vld [vmem:[%s290] sm:$0xff]
        %v871 = vld [vmem:[%s290 + $0x8] sm:$0xff]
        %v872 = vld [vmem:[%s290 + $0x10] sm:$0xff]
        %v873 = vld [vmem:[%s290 + $0x18] sm:$0xff]
        %v874 = vld [vmem:[%s290 + $0x20] sm:$0xff]
        %v875 = vld [vmem:[%s290 + $0x28] sm:$0xff]
        %v876 = vld [vmem:[%s290 + $0x30] sm:$0xff]
        %v877 = vld [vmem:[%s290 + $0x38] sm:$0xff]
        %v878 = vld [vmem:[%s290 + $0x40] sm:$0xff]
        %v879 = vld [vmem:[%s290 + $0x48] sm:$0xff]
        %v880 = vld [vmem:[%s290 + $0x50] sm:$0xff]
        %v881 = vld [vmem:[%s290 + $0x58] sm:$0xff]
        %v882 = vld [vmem:[%s290 + $0x60] sm:$0xff]
        %v883 = vld [vmem:[%s290 + $0x68] sm:$0xff]
        %v884 = vld [vmem:[%s290 + $0x70] sm:$0xff]
        %v885 = vld [vmem:[%s290 + $0x78] sm:$0xff]
        %v886 = vld [vmem:[%s290 + $0x80] sm:$0xff]
        %v887 = vld [vmem:[%s290 + $0x88] sm:$0xff]
        %v888 = vld [vmem:[%s290 + $0x90] sm:$0xff]
        %v889 = vld [vmem:[%s290 + $0x98] sm:$0xff]
        %v890 = vld [vmem:[%s290 + $0xa0] sm:$0xff]
        %v891 = vld [vmem:[%s290 + $0xa8] sm:$0xff]
        %v892 = vld [vmem:[%s290 + $0xb0] sm:$0xff]
        %v893 = vld [vmem:[%s290 + $0xb8] sm:$0xff]
        %v894 = vld [vmem:[%s290 + $0xc0] sm:$0xff]
        %v895 = vld [vmem:[%s290 + $0xc8] sm:$0xff]
        %v896 = vld [vmem:[%s290 + $0xd0] sm:$0xff]
        %v897 = vld [vmem:[%s290 + $0xd8] sm:$0xff]
        %v898 = vld [vmem:[%s290 + $0xe0] sm:$0xff]
        %v899 = vld [vmem:[%s290 + $0xe8] sm:$0xff]
        %v900 = vld [vmem:[%s290 + $0xf0] sm:$0xff]
        %v901 = vld [vmem:[%s290 + $0xf8] sm:$0xff]
        %v902 = vld [vmem:[%s290 + $0x100] sm:$0xff]
        %v903 = vld [vmem:[%s290 + $0x108] sm:$0xff]
        %v904 = vld [vmem:[%s290 + $0x110] sm:$0xff]
        %v905 = vld [vmem:[%s290 + $0x118] sm:$0xff]
        %v906 = vld [vmem:[%s290 + $0x120] sm:$0xff]
        %v907 = vld [vmem:[%s290 + $0x128] sm:$0xff]
        %v908 = vld [vmem:[%s290 + $0x130] sm:$0xff]
        %v909 = vld [vmem:[%s290 + $0x138] sm:$0xff]
        %v910 = vld [vmem:[%s290 + $0x140] sm:$0xff]
        %v911 = vld [vmem:[%s290 + $0x148] sm:$0xff]
        %v912 = vld [vmem:[%s290 + $0x150] sm:$0xff]
        %v913 = vld [vmem:[%s290 + $0x158] sm:$0xff]
        %v914 = vld [vmem:[%s290 + $0x160] sm:$0xff]
        %v915 = vld [vmem:[%s290 + $0x168] sm:$0xff]
        %v916 = vld [vmem:[%s290 + $0x170] sm:$0xff]
        %v917 = vld [vmem:[%s290 + $0x178] sm:$0xff]
        %v918 = vld [vmem:[%s290 + $0x180] sm:$0xff]
        %v919 = vld [vmem:[%s290 + $0x188] sm:$0xff]
        %v920 = vld [vmem:[%s290 + $0x190] sm:$0xff]
        %v921 = vld [vmem:[%s290 + $0x198] sm:$0xff]
        %v922 = vld [vmem:[%s290 + $0x1a0] sm:$0xff]
        %v923 = vld [vmem:[%s290 + $0x1a8] sm:$0xff]
        %v924 = vld [vmem:[%s290 + $0x1b0] sm:$0xff]
        %v925 = vld [vmem:[%s290 + $0x1b8] sm:$0xff]
        %v926 = vld [vmem:[%s290 + $0x1c0] sm:$0xff]
        %v927 = vld [vmem:[%s290 + $0x1c8] sm:$0xff]
        %v928 = vld [vmem:[%s290 + $0x1d0] sm:$0xff]
        %v929 = vld [vmem:[%s290 + $0x1d8] sm:$0xff]
        %v930 = vld [vmem:[%s290 + $0x1e0] sm:$0xff]
        %v931 = vld [vmem:[%s290 + $0x1e8] sm:$0xff]
        %v932 = vld [vmem:[%s290 + $0x1f0] sm:$0xff]
        %v933 = vld [vmem:[%s290 + $0x1f8] sm:$0xff]
        %934 = vmatpush.msra.mxu0 %v930
        %935 = vmatpush.msra.mxu0 %v926
        %936 = vmatpush.msra.mxu0 %v922
        %937 = vmatpush.msra.mxu0 %v918
        %938 = vmatpush.msra.mxu0 %v914
        %939 = vmatpush.msra.mxu0 %v910
        %940 = vmatpush.msra.mxu0 %v906
        %941 = vmatpush.msra.mxu0 %v902
        %942 = vmatpush.msra.mxu0 %v898
        %943 = vmatpush.msra.mxu0 %v894
        %944 = vmatpush.msra.mxu0 %v890
        %945 = vmatpush.msra.mxu0 %v886
        %946 = vmatpush.msra.mxu0 %v882
        %947 = vmatpush.msra.mxu0 %v878
        %948 = vmatpush.msra.mxu0 %v874
        %949 = vmatpush.msra.mxu0 %v870
        %950 = vmatmul.f32.gmra.mxu0 %v858
        %v951 = vpop.f32.mrf.mxu0
        %v952 = vadd.f32 0.0, %v951
        %953 = vdwg.mxu0
        %954 = vmatpush.msra.mxu0 %v931
        %955 = vmatpush.msra.mxu0 %v927
        %956 = vmatpush.msra.mxu0 %v923
        %957 = vmatpush.msra.mxu0 %v919
        %958 = vmatpush.msra.mxu0 %v915
        %959 = vmatpush.msra.mxu0 %v911
        %960 = vmatpush.msra.mxu0 %v907
        %961 = vmatpush.msra.mxu0 %v903
        %962 = vmatpush.msra.mxu0 %v899
        %963 = vmatpush.msra.mxu0 %v895
        %964 = vmatpush.msra.mxu0 %v891
        %965 = vmatpush.msra.mxu0 %v887
        %966 = vmatpush.msra.mxu0 %v883
        %967 = vmatpush.msra.mxu0 %v879
        %968 = vmatpush.msra.mxu0 %v875
        %969 = vmatpush.msra.mxu0 %v871
        %970 = vmatmul.f32.gmra.mxu0 %v858
        %v971 = vpop.f32.mrf.mxu0
        %v972 = vadd.f32 0.0, %v971
        %973 = vdwg.mxu0
        %974 = vmatpush.msra.mxu0 %v932
        %975 = vmatpush.msra.mxu0 %v928
        %976 = vmatpush.msra.mxu0 %v924
        %977 = vmatpush.msra.mxu0 %v920
        %978 = vmatpush.msra.mxu0 %v916
        %979 = vmatpush.msra.mxu0 %v912
        %980 = vmatpush.msra.mxu0 %v908
        %981 = vmatpush.msra.mxu0 %v904
        %982 = vmatpush.msra.mxu0 %v900
        %983 = vmatpush.msra.mxu0 %v896
        %984 = vmatpush.msra.mxu0 %v892
        %985 = vmatpush.msra.mxu0 %v888
        %986 = vmatpush.msra.mxu0 %v884
        %987 = vmatpush.msra.mxu0 %v880
        %988 = vmatpush.msra.mxu0 %v876
        %989 = vmatpush.msra.mxu0 %v872
        %990 = vmatmul.f32.gmra.mxu0 %v858
        %v991 = vpop.f32.mrf.mxu0
        %v992 = vadd.f32 0.0, %v991
        %993 = vdwg.mxu0
        %994 = vmatpush.msra.mxu0 %v933
        %995 = vmatpush.msra.mxu0 %v929
        %996 = vmatpush.msra.mxu0 %v925
        %997 = vmatpush.msra.mxu0 %v921
        %998 = vmatpush.msra.mxu0 %v917
        %999 = vmatpush.msra.mxu0 %v913
        %1000 = vmatpush.msra.mxu0 %v909
        %1001 = vmatpush.msra.mxu0 %v905
        %1002 = vmatpush.msra.mxu0 %v901
        %1003 = vmatpush.msra.mxu0 %v897
        %1004 = vmatpush.msra.mxu0 %v893
        %1005 = vmatpush.msra.mxu0 %v889
        %1006 = vmatpush.msra.mxu0 %v885
        %1007 = vmatpush.msra.mxu0 %v881
        %1008 = vmatpush.msra.mxu0 %v877
        %1009 = vmatpush.msra.mxu0 %v873
        %1010 = vmatmul.f32.gmra.mxu0 %v858
        %v1011 = vpop.f32.mrf.mxu0
        %v1012 = vadd.f32 0.0, %v1011
        %1013 = vdwg.mxu0
        %v1014 = vadd.f32 %v866, %v952
        %v1015 = vadd.f32 %v867, %v972
        %v1016 = vadd.f32 %v868, %v992
        %v1017 = vadd.f32 %v869, %v1012
        %v1018 = vxor.u32 %v1014, 2147483648
        %v1019 = vmul.f32 %v1018, 1.442695
        %v1020 = vpow.pop %v1019
        %v1021 = vadd.f32 %v1020, 1.0
        %v1022 = vrcp.pop %v1021
        %v1023 = vmul.f32 %v1021, %v1022
        %v1024 = vsub.f32 1.0, %v1023
        %v1025 = vmul.f32 %v1022, %v1024
        %v1026 = vadd.f32 %v1022, %v1025
        %vm1027 = vweird.f32 %v1021
        %vm1028 = vweird.f32 %v1022
        %vm1029 = vmor %vm1027, %vm1028
        %v1030 = vsel %vm1029, %v1022, %v1026
        %v1031 = vand.u32 2147483647, %v1021
        %vm1032 = vcmp.eq.f32.partialorder %v1031, 8.507059e+37
        %v1033 = vand.u32 %v1021, 2147483648
        %v1034 = vor.u32 1.1754944e-38, %v1033
        %v1035 = vsel %vm1032, %v1034, %v1030
        %v1036 = vmul.f32 1.0, %v1035
        %v1037 = vxor.u32 %v1015, 2147483648
        %v1038 = vmul.f32 %v1037, 1.442695
        %v1039 = vpow.pop %v1038
        %v1040 = vadd.f32 %v1039, 1.0
        %v1041 = vrcp.pop %v1040
        %v1042 = vmul.f32 %v1040, %v1041
        %v1043 = vsub.f32 1.0, %v1042
        %v1044 = vmul.f32 %v1041, %v1043
        %v1045 = vadd.f32 %v1041, %v1044
        %vm1046 = vweird.f32 %v1040
        %vm1047 = vweird.f32 %v1041
        %vm1048 = vmor %vm1046, %vm1047
        %v1049 = vsel %vm1048, %v1041, %v1045
        %v1050 = vand.u32 2147483647, %v1040
        %vm1051 = vcmp.eq.f32.partialorder %v1050, 8.507059e+37
        %v1052 = vand.u32 %v1040, 2147483648
        %v1053 = vor.u32 1.1754944e-38, %v1052
        %v1054 = vsel %vm1051, %v1053, %v1049
        %v1055 = vmul.f32 1.0, %v1054
        %v1056 = vtanh.pop %v1016
        %v1057 = vxor.u32 %v1017, 2147483648
        %v1058 = vmul.f32 %v1057, 1.442695
        %v1059 = vpow.pop %v1058
        %v1060 = vadd.f32 %v1059, 1.0
        %v1061 = vrcp.pop %v1060
        %v1062 = vmul.f32 %v1060, %v1061
        %v1063 = vsub.f32 1.0, %v1062
        %v1064 = vmul.f32 %v1061, %v1063
        %v1065 = vadd.f32 %v1061, %v1064
        %vm1066 = vweird.f32 %v1060
        %vm1067 = vweird.f32 %v1061
        %vm1068 = vmor %vm1066, %vm1067
        %v1069 = vsel %vm1068, %v1061, %v1065
        %v1070 = vand.u32 2147483647, %v1060
        %vm1071 = vcmp.eq.f32.partialorder %v1070, 8.507059e+37
        %v1072 = vand.u32 %v1060, 2147483648
        %v1073 = vor.u32 1.1754944e-38, %v1072
        %v1074 = vsel %vm1071, %v1073, %v1069
        %v1075 = vmul.f32 1.0, %v1074
        %v1076 = vmul.f32 %v1055, %v856
        %v1077 = vmul.f32 %v1036, %v1056
        %v1078 = vadd.f32 %v1076, %v1077
        %v1079 = vtanh.pop %v1078
        %v1080 = vmul.f32 %v1075, %v1079
        %s1081 = smul.u32 %s862, 8
        %s1082 = scalar_lea.vmem %s345, %s1081
        %1083 = vst [vmem:[%s1082] sm:$0xff] %v1080
        %s1084 = scalar_select %p354, 5, 2
        %s1085 = smul.u32 %s1084, 4
        %s1086 = smul.addr %s1085, 8
        %s1087 = scalar_lea.vmem [#allocation2], %s1086
        %v1088 = vld [vmem:[%s1087] sm:$0xff]
        %v1089 = vld [vmem:[%s1087 + $0x8] sm:$0xff]
        %v1090 = vld [vmem:[%s1087 + $0x10] sm:$0xff]
        %v1091 = vld [vmem:[%s1087 + $0x18] sm:$0xff]
        %v1092 = vld [vmem:[%s290] sm:$0xff]
        %v1093 = vld [vmem:[%s290 + $0x8] sm:$0xff]
        %v1094 = vld [vmem:[%s290 + $0x10] sm:$0xff]
        %v1095 = vld [vmem:[%s290 + $0x18] sm:$0xff]
        %v1096 = vld [vmem:[%s290 + $0x20] sm:$0xff]
        %v1097 = vld [vmem:[%s290 + $0x28] sm:$0xff]
        %v1098 = vld [vmem:[%s290 + $0x30] sm:$0xff]
        %v1099 = vld [vmem:[%s290 + $0x38] sm:$0xff]
        %v1100 = vld [vmem:[%s290 + $0x40] sm:$0xff]
        %v1101 = vld [vmem:[%s290 + $0x48] sm:$0xff]
        %v1102 = vld [vmem:[%s290 + $0x50] sm:$0xff]
        %v1103 = vld [vmem:[%s290 + $0x58] sm:$0xff]
        %v1104 = vld [vmem:[%s290 + $0x60] sm:$0xff]
        %v1105 = vld [vmem:[%s290 + $0x68] sm:$0xff]
        %v1106 = vld [vmem:[%s290 + $0x70] sm:$0xff]
        %v1107 = vld [vmem:[%s290 + $0x78] sm:$0xff]
        %v1108 = vld [vmem:[%s290 + $0x80] sm:$0xff]
        %v1109 = vld [vmem:[%s290 + $0x88] sm:$0xff]
        %v1110 = vld [vmem:[%s290 + $0x90] sm:$0xff]
        %v1111 = vld [vmem:[%s290 + $0x98] sm:$0xff]
        %v1112 = vld [vmem:[%s290 + $0xa0] sm:$0xff]
        %v1113 = vld [vmem:[%s290 + $0xa8] sm:$0xff]
        %v1114 = vld [vmem:[%s290 + $0xb0] sm:$0xff]
        %v1115 = vld [vmem:[%s290 + $0xb8] sm:$0xff]
        %v1116 = vld [vmem:[%s290 + $0xc0] sm:$0xff]
        %v1117 = vld [vmem:[%s290 + $0xc8] sm:$0xff]
        %v1118 = vld [vmem:[%s290 + $0xd0] sm:$0xff]
        %v1119 = vld [vmem:[%s290 + $0xd8] sm:$0xff]
        %v1120 = vld [vmem:[%s290 + $0xe0] sm:$0xff]
        %v1121 = vld [vmem:[%s290 + $0xe8] sm:$0xff]
        %v1122 = vld [vmem:[%s290 + $0xf0] sm:$0xff]
        %v1123 = vld [vmem:[%s290 + $0xf8] sm:$0xff]
        %v1124 = vld [vmem:[%s290 + $0x100] sm:$0xff]
        %v1125 = vld [vmem:[%s290 + $0x108] sm:$0xff]
        %v1126 = vld [vmem:[%s290 + $0x110] sm:$0xff]
        %v1127 = vld [vmem:[%s290 + $0x118] sm:$0xff]
        %v1128 = vld [vmem:[%s290 + $0x120] sm:$0xff]
        %v1129 = vld [vmem:[%s290 + $0x128] sm:$0xff]
        %v1130 = vld [vmem:[%s290 + $0x130] sm:$0xff]
        %v1131 = vld [vmem:[%s290 + $0x138] sm:$0xff]
        %v1132 = vld [vmem:[%s290 + $0x140] sm:$0xff]
        %v1133 = vld [vmem:[%s290 + $0x148] sm:$0xff]
        %v1134 = vld [vmem:[%s290 + $0x150] sm:$0xff]
        %v1135 = vld [vmem:[%s290 + $0x158] sm:$0xff]
        %v1136 = vld [vmem:[%s290 + $0x160] sm:$0xff]
        %v1137 = vld [vmem:[%s290 + $0x168] sm:$0xff]
        %v1138 = vld [vmem:[%s290 + $0x170] sm:$0xff]
        %v1139 = vld [vmem:[%s290 + $0x178] sm:$0xff]
        %v1140 = vld [vmem:[%s290 + $0x180] sm:$0xff]
        %v1141 = vld [vmem:[%s290 + $0x188] sm:$0xff]
        %v1142 = vld [vmem:[%s290 + $0x190] sm:$0xff]
        %v1143 = vld [vmem:[%s290 + $0x198] sm:$0xff]
        %v1144 = vld [vmem:[%s290 + $0x1a0] sm:$0xff]
        %v1145 = vld [vmem:[%s290 + $0x1a8] sm:$0xff]
        %v1146 = vld [vmem:[%s290 + $0x1b0] sm:$0xff]
        %v1147 = vld [vmem:[%s290 + $0x1b8] sm:$0xff]
        %v1148 = vld [vmem:[%s290 + $0x1c0] sm:$0xff]
        %v1149 = vld [vmem:[%s290 + $0x1c8] sm:$0xff]
        %v1150 = vld [vmem:[%s290 + $0x1d0] sm:$0xff]
        %v1151 = vld [vmem:[%s290 + $0x1d8] sm:$0xff]
        %v1152 = vld [vmem:[%s290 + $0x1e0] sm:$0xff]
        %v1153 = vld [vmem:[%s290 + $0x1e8] sm:$0xff]
        %v1154 = vld [vmem:[%s290 + $0x1f0] sm:$0xff]
        %v1155 = vld [vmem:[%s290 + $0x1f8] sm:$0xff]
        %1156 = vmatpush.msra.mxu0 %v1152
        %1157 = vmatpush.msra.mxu0 %v1148
        %1158 = vmatpush.msra.mxu0 %v1144
        %1159 = vmatpush.msra.mxu0 %v1140
        %1160 = vmatpush.msra.mxu0 %v1136
        %1161 = vmatpush.msra.mxu0 %v1132
        %1162 = vmatpush.msra.mxu0 %v1128
        %1163 = vmatpush.msra.mxu0 %v1124
        %1164 = vmatpush.msra.mxu0 %v1120
        %1165 = vmatpush.msra.mxu0 %v1116
        %1166 = vmatpush.msra.mxu0 %v1112
        %1167 = vmatpush.msra.mxu0 %v1108
        %1168 = vmatpush.msra.mxu0 %v1104
        %1169 = vmatpush.msra.mxu0 %v1100
        %1170 = vmatpush.msra.mxu0 %v1096
        %1171 = vmatpush.msra.mxu0 %v1092
        %1172 = vmatmul.f32.gmra.mxu0 %v1080
        %v1173 = vpop.f32.mrf.mxu0
        %v1174 = vadd.f32 0.0, %v1173
        %1175 = vdwg.mxu0
        %1176 = vmatpush.msra.mxu0 %v1153
        %1177 = vmatpush.msra.mxu0 %v1149
        %1178 = vmatpush.msra.mxu0 %v1145
        %1179 = vmatpush.msra.mxu0 %v1141
        %1180 = vmatpush.msra.mxu0 %v1137
        %1181 = vmatpush.msra.mxu0 %v1133
        %1182 = vmatpush.msra.mxu0 %v1129
        %1183 = vmatpush.msra.mxu0 %v1125
        %1184 = vmatpush.msra.mxu0 %v1121
        %1185 = vmatpush.msra.mxu0 %v1117
        %1186 = vmatpush.msra.mxu0 %v1113
        %1187 = vmatpush.msra.mxu0 %v1109
        %1188 = vmatpush.msra.mxu0 %v1105
        %1189 = vmatpush.msra.mxu0 %v1101
        %1190 = vmatpush.msra.mxu0 %v1097
        %1191 = vmatpush.msra.mxu0 %v1093
        %1192 = vmatmul.f32.gmra.mxu0 %v1080
        %v1193 = vpop.f32.mrf.mxu0
        %v1194 = vadd.f32 0.0, %v1193
        %1195 = vdwg.mxu0
        %1196 = vmatpush.msra.mxu0 %v1154
        %1197 = vmatpush.msra.mxu0 %v1150
        %1198 = vmatpush.msra.mxu0 %v1146
        %1199 = vmatpush.msra.mxu0 %v1142
        %1200 = vmatpush.msra.mxu0 %v1138
        %1201 = vmatpush.msra.mxu0 %v1134
        %1202 = vmatpush.msra.mxu0 %v1130
        %1203 = vmatpush.msra.mxu0 %v1126
        %1204 = vmatpush.msra.mxu0 %v1122
        %1205 = vmatpush.msra.mxu0 %v1118
        %1206 = vmatpush.msra.mxu0 %v1114
        %1207 = vmatpush.msra.mxu0 %v1110
        %1208 = vmatpush.msra.mxu0 %v1106
        %1209 = vmatpush.msra.mxu0 %v1102
        %1210 = vmatpush.msra.mxu0 %v1098
        %1211 = vmatpush.msra.mxu0 %v1094
        %1212 = vmatmul.f32.gmra.mxu0 %v1080
        %v1213 = vpop.f32.mrf.mxu0
        %v1214 = vadd.f32 0.0, %v1213
        %1215 = vdwg.mxu0
        %1216 = vmatpush.msra.mxu0 %v1155
        %1217 = vmatpush.msra.mxu0 %v1151
        %1218 = vmatpush.msra.mxu0 %v1147
        %1219 = vmatpush.msra.mxu0 %v1143
        %1220 = vmatpush.msra.mxu0 %v1139
        %1221 = vmatpush.msra.mxu0 %v1135
        %1222 = vmatpush.msra.mxu0 %v1131
        %1223 = vmatpush.msra.mxu0 %v1127
        %1224 = vmatpush.msra.mxu0 %v1123
        %1225 = vmatpush.msra.mxu0 %v1119
        %1226 = vmatpush.msra.mxu0 %v1115
        %1227 = vmatpush.msra.mxu0 %v1111
        %1228 = vmatpush.msra.mxu0 %v1107
        %1229 = vmatpush.msra.mxu0 %v1103
        %1230 = vmatpush.msra.mxu0 %v1099
        %1231 = vmatpush.msra.mxu0 %v1095
        %1232 = vmatmul.f32.gmra.mxu0 %v1080
        %v1233 = vpop.f32.mrf.mxu0
        %v1234 = vadd.f32 0.0, %v1233
        %1235 = vdwg.mxu0
        %v1236 = vadd.f32 %v1088, %v1174
        %v1237 = vadd.f32 %v1089, %v1194
        %v1238 = vadd.f32 %v1090, %v1214
        %v1239 = vadd.f32 %v1091, %v1234
        %v1240 = vxor.u32 %v1236, 2147483648
        %v1241 = vmul.f32 %v1240, 1.442695
        %v1242 = vpow.pop %v1241
        %v1243 = vadd.f32 %v1242, 1.0
        %v1244 = vrcp.pop %v1243
        %v1245 = vmul.f32 %v1243, %v1244
        %v1246 = vsub.f32 1.0, %v1245
        %v1247 = vmul.f32 %v1244, %v1246
        %v1248 = vadd.f32 %v1244, %v1247
        %vm1249 = vweird.f32 %v1243
        %vm1250 = vweird.f32 %v1244
        %vm1251 = vmor %vm1249, %vm1250
        %v1252 = vsel %vm1251, %v1244, %v1248
        %v1253 = vand.u32 2147483647, %v1243
        %vm1254 = vcmp.eq.f32.partialorder %v1253, 8.507059e+37
        %v1255 = vand.u32 %v1243, 2147483648
        %v1256 = vor.u32 1.1754944e-38, %v1255
        %v1257 = vsel %vm1254, %v1256, %v1252
        %v1258 = vmul.f32 1.0, %v1257
        %v1259 = vxor.u32 %v1237, 2147483648
        %v1260 = vmul.f32 %v1259, 1.442695
        %v1261 = vpow.pop %v1260
        %v1262 = vadd.f32 %v1261, 1.0
        %v1263 = vrcp.pop %v1262
        %v1264 = vmul.f32 %v1262, %v1263
        %v1265 = vsub.f32 1.0, %v1264
        %v1266 = vmul.f32 %v1263, %v1265
        %v1267 = vadd.f32 %v1263, %v1266
        %vm1268 = vweird.f32 %v1262
        %vm1269 = vweird.f32 %v1263
        %vm1270 = vmor %vm1268, %vm1269
        %v1271 = vsel %vm1270, %v1263, %v1267
        %v1272 = vand.u32 2147483647, %v1262
        %vm1273 = vcmp.eq.f32.partialorder %v1272, 8.507059e+37
        %v1274 = vand.u32 %v1262, 2147483648
        %v1275 = vor.u32 1.1754944e-38, %v1274
        %v1276 = vsel %vm1273, %v1275, %v1271
        %v1277 = vmul.f32 1.0, %v1276
        %v1278 = vtanh.pop %v1238
        %v1279 = vxor.u32 %v1239, 2147483648
        %v1280 = vmul.f32 %v1279, 1.442695
        %v1281 = vpow.pop %v1280
        %v1282 = vadd.f32 %v1281, 1.0
        %v1283 = vrcp.pop %v1282
        %v1284 = vmul.f32 %v1282, %v1283
        %v1285 = vsub.f32 1.0, %v1284
        %v1286 = vmul.f32 %v1283, %v1285
        %v1287 = vadd.f32 %v1283, %v1286
        %vm1288 = vweird.f32 %v1282
        %vm1289 = vweird.f32 %v1283
        %vm1290 = vmor %vm1288, %vm1289
        %v1291 = vsel %vm1290, %v1283, %v1287
        %v1292 = vand.u32 2147483647, %v1282
        %vm1293 = vcmp.eq.f32.partialorder %v1292, 8.507059e+37
        %v1294 = vand.u32 %v1282, 2147483648
        %v1295 = vor.u32 1.1754944e-38, %v1294
        %v1296 = vsel %vm1293, %v1295, %v1291
        %v1297 = vmul.f32 1.0, %v1296
        %v1298 = vmul.f32 %v1277, %v1078
        %v1299 = vmul.f32 %v1258, %v1278
        %v1300 = vadd.f32 %v1298, %v1299
        %v1301 = vtanh.pop %v1300
        %v1302 = vmul.f32 %v1297, %v1301
        %s1303 = smul.u32 %s1084, 8
        %s1304 = scalar_lea.vmem %s345, %s1303
        %1305 = vst [vmem:[%s1304] sm:$0xff] %v1302
        %s1306 = scalar_select %p354, 4, 3
        %s1307 = smul.u32 %s1306, 4
        %s1308 = smul.addr %s1307, 8
        %s1309 = scalar_lea.vmem [#allocation2], %s1308
        %v1310 = vld [vmem:[%s1309] sm:$0xff]
        %v1311 = vld [vmem:[%s1309 + $0x8] sm:$0xff]
        %v1312 = vld [vmem:[%s1309 + $0x10] sm:$0xff]
        %v1313 = vld [vmem:[%s1309 + $0x18] sm:$0xff]
        %v1314 = vld [vmem:[%s290] sm:$0xff]
        %v1315 = vld [vmem:[%s290 + $0x8] sm:$0xff]
        %v1316 = vld [vmem:[%s290 + $0x10] sm:$0xff]
        %v1317 = vld [vmem:[%s290 + $0x18] sm:$0xff]
        %v1318 = vld [vmem:[%s290 + $0x20] sm:$0xff]
        %v1319 = vld [vmem:[%s290 + $0x28] sm:$0xff]
        %v1320 = vld [vmem:[%s290 + $0x30] sm:$0xff]
        %v1321 = vld [vmem:[%s290 + $0x38] sm:$0xff]
        %v1322 = vld [vmem:[%s290 + $0x40] sm:$0xff]
        %v1323 = vld [vmem:[%s290 + $0x48] sm:$0xff]
        %v1324 = vld [vmem:[%s290 + $0x50] sm:$0xff]
        %v1325 = vld [vmem:[%s290 + $0x58] sm:$0xff]
        %v1326 = vld [vmem:[%s290 + $0x60] sm:$0xff]
        %v1327 = vld [vmem:[%s290 + $0x68] sm:$0xff]
        %v1328 = vld [vmem:[%s290 + $0x70] sm:$0xff]
        %v1329 = vld [vmem:[%s290 + $0x78] sm:$0xff]
        %v1330 = vld [vmem:[%s290 + $0x80] sm:$0xff]
        %v1331 = vld [vmem:[%s290 + $0x88] sm:$0xff]
        %v1332 = vld [vmem:[%s290 + $0x90] sm:$0xff]
        %v1333 = vld [vmem:[%s290 + $0x98] sm:$0xff]
        %v1334 = vld [vmem:[%s290 + $0xa0] sm:$0xff]
        %v1335 = vld [vmem:[%s290 + $0xa8] sm:$0xff]
        %v1336 = vld [vmem:[%s290 + $0xb0] sm:$0xff]
        %v1337 = vld [vmem:[%s290 + $0xb8] sm:$0xff]
        %v1338 = vld [vmem:[%s290 + $0xc0] sm:$0xff]
        %v1339 = vld [vmem:[%s290 + $0xc8] sm:$0xff]
        %v1340 = vld [vmem:[%s290 + $0xd0] sm:$0xff]
        %v1341 = vld [vmem:[%s290 + $0xd8] sm:$0xff]
        %v1342 = vld [vmem:[%s290 + $0xe0] sm:$0xff]
        %v1343 = vld [vmem:[%s290 + $0xe8] sm:$0xff]
        %v1344 = vld [vmem:[%s290 + $0xf0] sm:$0xff]
        %v1345 = vld [vmem:[%s290 + $0xf8] sm:$0xff]
        %v1346 = vld [vmem:[%s290 + $0x100] sm:$0xff]
        %v1347 = vld [vmem:[%s290 + $0x108] sm:$0xff]
        %v1348 = vld [vmem:[%s290 + $0x110] sm:$0xff]
        %v1349 = vld [vmem:[%s290 + $0x118] sm:$0xff]
        %v1350 = vld [vmem:[%s290 + $0x120] sm:$0xff]
        %v1351 = vld [vmem:[%s290 + $0x128] sm:$0xff]
        %v1352 = vld [vmem:[%s290 + $0x130] sm:$0xff]
        %v1353 = vld [vmem:[%s290 + $0x138] sm:$0xff]
        %v1354 = vld [vmem:[%s290 + $0x140] sm:$0xff]
        %v1355 = vld [vmem:[%s290 + $0x148] sm:$0xff]
        %v1356 = vld [vmem:[%s290 + $0x150] sm:$0xff]
        %v1357 = vld [vmem:[%s290 + $0x158] sm:$0xff]
        %v1358 = vld [vmem:[%s290 + $0x160] sm:$0xff]
        %v1359 = vld [vmem:[%s290 + $0x168] sm:$0xff]
        %v1360 = vld [vmem:[%s290 + $0x170] sm:$0xff]
        %v1361 = vld [vmem:[%s290 + $0x178] sm:$0xff]
        %v1362 = vld [vmem:[%s290 + $0x180] sm:$0xff]
        %v1363 = vld [vmem:[%s290 + $0x188] sm:$0xff]
        %v1364 = vld [vmem:[%s290 + $0x190] sm:$0xff]
        %v1365 = vld [vmem:[%s290 + $0x198] sm:$0xff]
        %v1366 = vld [vmem:[%s290 + $0x1a0] sm:$0xff]
        %v1367 = vld [vmem:[%s290 + $0x1a8] sm:$0xff]
        %v1368 = vld [vmem:[%s290 + $0x1b0] sm:$0xff]
        %v1369 = vld [vmem:[%s290 + $0x1b8] sm:$0xff]
        %v1370 = vld [vmem:[%s290 + $0x1c0] sm:$0xff]
        %v1371 = vld [vmem:[%s290 + $0x1c8] sm:$0xff]
        %v1372 = vld [vmem:[%s290 + $0x1d0] sm:$0xff]
        %v1373 = vld [vmem:[%s290 + $0x1d8] sm:$0xff]
        %v1374 = vld [vmem:[%s290 + $0x1e0] sm:$0xff]
        %v1375 = vld [vmem:[%s290 + $0x1e8] sm:$0xff]
        %v1376 = vld [vmem:[%s290 + $0x1f0] sm:$0xff]
        %v1377 = vld [vmem:[%s290 + $0x1f8] sm:$0xff]
        %1378 = vmatpush.msra.mxu0 %v1374
        %1379 = vmatpush.msra.mxu0 %v1370
        %1380 = vmatpush.msra.mxu0 %v1366
        %1381 = vmatpush.msra.mxu0 %v1362
        %1382 = vmatpush.msra.mxu0 %v1358
        %1383 = vmatpush.msra.mxu0 %v1354
        %1384 = vmatpush.msra.mxu0 %v1350
        %1385 = vmatpush.msra.mxu0 %v1346
        %1386 = vmatpush.msra.mxu0 %v1342
        %1387 = vmatpush.msra.mxu0 %v1338
        %1388 = vmatpush.msra.mxu0 %v1334
        %1389 = vmatpush.msra.mxu0 %v1330
        %1390 = vmatpush.msra.mxu0 %v1326
        %1391 = vmatpush.msra.mxu0 %v1322
        %1392 = vmatpush.msra.mxu0 %v1318
        %1393 = vmatpush.msra.mxu0 %v1314
        %1394 = vmatmul.f32.gmra.mxu0 %v1302
        %v1395 = vpop.f32.mrf.mxu0
        %v1396 = vadd.f32 0.0, %v1395
        %1397 = vdwg.mxu0
        %1398 = vmatpush.msra.mxu0 %v1375
        %1399 = vmatpush.msra.mxu0 %v1371
        %1400 = vmatpush.msra.mxu0 %v1367
        %1401 = vmatpush.msra.mxu0 %v1363
        %1402 = vmatpush.msra.mxu0 %v1359
        %1403 = vmatpush.msra.mxu0 %v1355
        %1404 = vmatpush.msra.mxu0 %v1351
        %1405 = vmatpush.msra.mxu0 %v1347
        %1406 = vmatpush.msra.mxu0 %v1343
        %1407 = vmatpush.msra.mxu0 %v1339
        %1408 = vmatpush.msra.mxu0 %v1335
        %1409 = vmatpush.msra.mxu0 %v1331
        %1410 = vmatpush.msra.mxu0 %v1327
        %1411 = vmatpush.msra.mxu0 %v1323
        %1412 = vmatpush.msra.mxu0 %v1319
        %1413 = vmatpush.msra.mxu0 %v1315
        %1414 = vmatmul.f32.gmra.mxu0 %v1302
        %v1415 = vpop.f32.mrf.mxu0
        %v1416 = vadd.f32 0.0, %v1415
        %1417 = vdwg.mxu0
        %1418 = vmatpush.msra.mxu0 %v1376
        %1419 = vmatpush.msra.mxu0 %v1372
        %1420 = vmatpush.msra.mxu0 %v1368
        %1421 = vmatpush.msra.mxu0 %v1364
        %1422 = vmatpush.msra.mxu0 %v1360
        %1423 = vmatpush.msra.mxu0 %v1356
        %1424 = vmatpush.msra.mxu0 %v1352
        %1425 = vmatpush.msra.mxu0 %v1348
        %1426 = vmatpush.msra.mxu0 %v1344
        %1427 = vmatpush.msra.mxu0 %v1340
        %1428 = vmatpush.msra.mxu0 %v1336
        %1429 = vmatpush.msra.mxu0 %v1332
        %1430 = vmatpush.msra.mxu0 %v1328
        %1431 = vmatpush.msra.mxu0 %v1324
        %1432 = vmatpush.msra.mxu0 %v1320
        %1433 = vmatpush.msra.mxu0 %v1316
        %1434 = vmatmul.f32.gmra.mxu0 %v1302
        %v1435 = vpop.f32.mrf.mxu0
        %v1436 = vadd.f32 0.0, %v1435
        %1437 = vdwg.mxu0
        %1438 = vmatpush.msra.mxu0 %v1377
        %1439 = vmatpush.msra.mxu0 %v1373
        %1440 = vmatpush.msra.mxu0 %v1369
        %1441 = vmatpush.msra.mxu0 %v1365
        %1442 = vmatpush.msra.mxu0 %v1361
        %1443 = vmatpush.msra.mxu0 %v1357
        %1444 = vmatpush.msra.mxu0 %v1353
        %1445 = vmatpush.msra.mxu0 %v1349
        %1446 = vmatpush.msra.mxu0 %v1345
        %1447 = vmatpush.msra.mxu0 %v1341
        %1448 = vmatpush.msra.mxu0 %v1337
        %1449 = vmatpush.msra.mxu0 %v1333
        %1450 = vmatpush.msra.mxu0 %v1329
        %1451 = vmatpush.msra.mxu0 %v1325
        %1452 = vmatpush.msra.mxu0 %v1321
        %1453 = vmatpush.msra.mxu0 %v1317
        %1454 = vmatmul.f32.gmra.mxu0 %v1302
        %v1455 = vpop.f32.mrf.mxu0
        %v1456 = vadd.f32 0.0, %v1455
        %1457 = vdwg.mxu0
        %v1458 = vadd.f32 %v1310, %v1396
        %v1459 = vadd.f32 %v1311, %v1416
        %v1460 = vadd.f32 %v1312, %v1436
        %v1461 = vadd.f32 %v1313, %v1456
        %v1462 = vxor.u32 %v1458, 2147483648
        %v1463 = vmul.f32 %v1462, 1.442695
        %v1464 = vpow.pop %v1463
        %v1465 = vadd.f32 %v1464, 1.0
        %v1466 = vrcp.pop %v1465
        %v1467 = vmul.f32 %v1465, %v1466
        %v1468 = vsub.f32 1.0, %v1467
        %v1469 = vmul.f32 %v1466, %v1468
        %v1470 = vadd.f32 %v1466, %v1469
        %vm1471 = vweird.f32 %v1465
        %vm1472 = vweird.f32 %v1466
        %vm1473 = vmor %vm1471, %vm1472
        %v1474 = vsel %vm1473, %v1466, %v1470
        %v1475 = vand.u32 2147483647, %v1465
        %vm1476 = vcmp.eq.f32.partialorder %v1475, 8.507059e+37
        %v1477 = vand.u32 %v1465, 2147483648
        %v1478 = vor.u32 1.1754944e-38, %v1477
        %v1479 = vsel %vm1476, %v1478, %v1474
        %v1480 = vmul.f32 1.0, %v1479
        %v1481 = vxor.u32 %v1459, 2147483648
        %v1482 = vmul.f32 %v1481, 1.442695
        %v1483 = vpow.pop %v1482
        %v1484 = vadd.f32 %v1483, 1.0
        %v1485 = vrcp.pop %v1484
        %v1486 = vmul.f32 %v1484, %v1485
        %v1487 = vsub.f32 1.0, %v1486
        %v1488 = vmul.f32 %v1485, %v1487
        %v1489 = vadd.f32 %v1485, %v1488
        %vm1490 = vweird.f32 %v1484
        %vm1491 = vweird.f32 %v1485
        %vm1492 = vmor %vm1490, %vm1491
        %v1493 = vsel %vm1492, %v1485, %v1489
        %v1494 = vand.u32 2147483647, %v1484
        %vm1495 = vcmp.eq.f32.partialorder %v1494, 8.507059e+37
        %v1496 = vand.u32 %v1484, 2147483648
        %v1497 = vor.u32 1.1754944e-38, %v1496
        %v1498 = vsel %vm1495, %v1497, %v1493
        %v1499 = vmul.f32 1.0, %v1498
        %v1500 = vtanh.pop %v1460
        %v1501 = vxor.u32 %v1461, 2147483648
        %v1502 = vmul.f32 %v1501, 1.442695
        %v1503 = vpow.pop %v1502
        %v1504 = vadd.f32 %v1503, 1.0
        %v1505 = vrcp.pop %v1504
        %v1506 = vmul.f32 %v1504, %v1505
        %v1507 = vsub.f32 1.0, %v1506
        %v1508 = vmul.f32 %v1505, %v1507
        %v1509 = vadd.f32 %v1505, %v1508
        %vm1510 = vweird.f32 %v1504
        %vm1511 = vweird.f32 %v1505
        %vm1512 = vmor %vm1510, %vm1511
        %v1513 = vsel %vm1512, %v1505, %v1509
        %v1514 = vand.u32 2147483647, %v1504
        %vm1515 = vcmp.eq.f32.partialorder %v1514, 8.507059e+37
        %v1516 = vand.u32 %v1504, 2147483648
        %v1517 = vor.u32 1.1754944e-38, %v1516
        %v1518 = vsel %vm1515, %v1517, %v1513
        %v1519 = vmul.f32 1.0, %v1518
        %v1520 = vmul.f32 %v1499, %v1300
        %v1521 = vmul.f32 %v1480, %v1500
        %v1522 = vadd.f32 %v1520, %v1521
        %v1523 = vtanh.pop %v1522
        %v1524 = vmul.f32 %v1519, %v1523
        %s1525 = smul.u32 %s1306, 8
        %s1526 = scalar_lea.vmem %s345, %s1525
        %1527 = vst [vmem:[%s1526] sm:$0xff] %v1524
        %s1528 = scalar_select %p354, 3, 4
        %s1529 = smul.u32 %s1528, 4
        %s1530 = smul.addr %s1529, 8
        %s1531 = scalar_lea.vmem [#allocation2], %s1530
        %v1532 = vld [vmem:[%s1531] sm:$0xff]
        %v1533 = vld [vmem:[%s1531 + $0x8] sm:$0xff]
        %v1534 = vld [vmem:[%s1531 + $0x10] sm:$0xff]
        %v1535 = vld [vmem:[%s1531 + $0x18] sm:$0xff]
        %v1536 = vld [vmem:[%s290] sm:$0xff]
        %v1537 = vld [vmem:[%s290 + $0x8] sm:$0xff]
        %v1538 = vld [vmem:[%s290 + $0x10] sm:$0xff]
        %v1539 = vld [vmem:[%s290 + $0x18] sm:$0xff]
        %v1540 = vld [vmem:[%s290 + $0x20] sm:$0xff]
        %v1541 = vld [vmem:[%s290 + $0x28] sm:$0xff]
        %v1542 = vld [vmem:[%s290 + $0x30] sm:$0xff]
        %v1543 = vld [vmem:[%s290 + $0x38] sm:$0xff]
        %v1544 = vld [vmem:[%s290 + $0x40] sm:$0xff]
        %v1545 = vld [vmem:[%s290 + $0x48] sm:$0xff]
        %v1546 = vld [vmem:[%s290 + $0x50] sm:$0xff]
        %v1547 = vld [vmem:[%s290 + $0x58] sm:$0xff]
        %v1548 = vld [vmem:[%s290 + $0x60] sm:$0xff]
        %v1549 = vld [vmem:[%s290 + $0x68] sm:$0xff]
        %v1550 = vld [vmem:[%s290 + $0x70] sm:$0xff]
        %v1551 = vld [vmem:[%s290 + $0x78] sm:$0xff]
        %v1552 = vld [vmem:[%s290 + $0x80] sm:$0xff]
        %v1553 = vld [vmem:[%s290 + $0x88] sm:$0xff]
        %v1554 = vld [vmem:[%s290 + $0x90] sm:$0xff]
        %v1555 = vld [vmem:[%s290 + $0x98] sm:$0xff]
        %v1556 = vld [vmem:[%s290 + $0xa0] sm:$0xff]
        %v1557 = vld [vmem:[%s290 + $0xa8] sm:$0xff]
        %v1558 = vld [vmem:[%s290 + $0xb0] sm:$0xff]
        %v1559 = vld [vmem:[%s290 + $0xb8] sm:$0xff]
        %v1560 = vld [vmem:[%s290 + $0xc0] sm:$0xff]
        %v1561 = vld [vmem:[%s290 + $0xc8] sm:$0xff]
        %v1562 = vld [vmem:[%s290 + $0xd0] sm:$0xff]
        %v1563 = vld [vmem:[%s290 + $0xd8] sm:$0xff]
        %v1564 = vld [vmem:[%s290 + $0xe0] sm:$0xff]
        %v1565 = vld [vmem:[%s290 + $0xe8] sm:$0xff]
        %v1566 = vld [vmem:[%s290 + $0xf0] sm:$0xff]
        %v1567 = vld [vmem:[%s290 + $0xf8] sm:$0xff]
        %v1568 = vld [vmem:[%s290 + $0x100] sm:$0xff]
        %v1569 = vld [vmem:[%s290 + $0x108] sm:$0xff]
        %v1570 = vld [vmem:[%s290 + $0x110] sm:$0xff]
        %v1571 = vld [vmem:[%s290 + $0x118] sm:$0xff]
        %v1572 = vld [vmem:[%s290 + $0x120] sm:$0xff]
        %v1573 = vld [vmem:[%s290 + $0x128] sm:$0xff]
        %v1574 = vld [vmem:[%s290 + $0x130] sm:$0xff]
        %v1575 = vld [vmem:[%s290 + $0x138] sm:$0xff]
        %v1576 = vld [vmem:[%s290 + $0x140] sm:$0xff]
        %v1577 = vld [vmem:[%s290 + $0x148] sm:$0xff]
        %v1578 = vld [vmem:[%s290 + $0x150] sm:$0xff]
        %v1579 = vld [vmem:[%s290 + $0x158] sm:$0xff]
        %v1580 = vld [vmem:[%s290 + $0x160] sm:$0xff]
        %v1581 = vld [vmem:[%s290 + $0x168] sm:$0xff]
        %v1582 = vld [vmem:[%s290 + $0x170] sm:$0xff]
        %v1583 = vld [vmem:[%s290 + $0x178] sm:$0xff]
        %v1584 = vld [vmem:[%s290 + $0x180] sm:$0xff]
        %v1585 = vld [vmem:[%s290 + $0x188] sm:$0xff]
        %v1586 = vld [vmem:[%s290 + $0x190] sm:$0xff]
        %v1587 = vld [vmem:[%s290 + $0x198] sm:$0xff]
        %v1588 = vld [vmem:[%s290 + $0x1a0] sm:$0xff]
        %v1589 = vld [vmem:[%s290 + $0x1a8] sm:$0xff]
        %v1590 = vld [vmem:[%s290 + $0x1b0] sm:$0xff]
        %v1591 = vld [vmem:[%s290 + $0x1b8] sm:$0xff]
        %v1592 = vld [vmem:[%s290 + $0x1c0] sm:$0xff]
        %v1593 = vld [vmem:[%s290 + $0x1c8] sm:$0xff]
        %v1594 = vld [vmem:[%s290 + $0x1d0] sm:$0xff]
        %v1595 = vld [vmem:[%s290 + $0x1d8] sm:$0xff]
        %v1596 = vld [vmem:[%s290 + $0x1e0] sm:$0xff]
        %v1597 = vld [vmem:[%s290 + $0x1e8] sm:$0xff]
        %v1598 = vld [vmem:[%s290 + $0x1f0] sm:$0xff]
        %v1599 = vld [vmem:[%s290 + $0x1f8] sm:$0xff]
        %1600 = vmatpush.msra.mxu0 %v1596
        %1601 = vmatpush.msra.mxu0 %v1592
        %1602 = vmatpush.msra.mxu0 %v1588
        %1603 = vmatpush.msra.mxu0 %v1584
        %1604 = vmatpush.msra.mxu0 %v1580
        %1605 = vmatpush.msra.mxu0 %v1576
        %1606 = vmatpush.msra.mxu0 %v1572
        %1607 = vmatpush.msra.mxu0 %v1568
        %1608 = vmatpush.msra.mxu0 %v1564
        %1609 = vmatpush.msra.mxu0 %v1560
        %1610 = vmatpush.msra.mxu0 %v1556
        %1611 = vmatpush.msra.mxu0 %v1552
        %1612 = vmatpush.msra.mxu0 %v1548
        %1613 = vmatpush.msra.mxu0 %v1544
        %1614 = vmatpush.msra.mxu0 %v1540
        %1615 = vmatpush.msra.mxu0 %v1536
        %1616 = vmatmul.f32.gmra.mxu0 %v1524
        %v1617 = vpop.f32.mrf.mxu0
        %v1618 = vadd.f32 0.0, %v1617
        %1619 = vdwg.mxu0
        %1620 = vmatpush.msra.mxu0 %v1597
        %1621 = vmatpush.msra.mxu0 %v1593
        %1622 = vmatpush.msra.mxu0 %v1589
        %1623 = vmatpush.msra.mxu0 %v1585
        %1624 = vmatpush.msra.mxu0 %v1581
        %1625 = vmatpush.msra.mxu0 %v1577
        %1626 = vmatpush.msra.mxu0 %v1573
        %1627 = vmatpush.msra.mxu0 %v1569
        %1628 = vmatpush.msra.mxu0 %v1565
        %1629 = vmatpush.msra.mxu0 %v1561
        %1630 = vmatpush.msra.mxu0 %v1557
        %1631 = vmatpush.msra.mxu0 %v1553
        %1632 = vmatpush.msra.mxu0 %v1549
        %1633 = vmatpush.msra.mxu0 %v1545
        %1634 = vmatpush.msra.mxu0 %v1541
        %1635 = vmatpush.msra.mxu0 %v1537
        %1636 = vmatmul.f32.gmra.mxu0 %v1524
        %v1637 = vpop.f32.mrf.mxu0
        %v1638 = vadd.f32 0.0, %v1637
        %1639 = vdwg.mxu0
        %1640 = vmatpush.msra.mxu0 %v1598
        %1641 = vmatpush.msra.mxu0 %v1594
        %1642 = vmatpush.msra.mxu0 %v1590
        %1643 = vmatpush.msra.mxu0 %v1586
        %1644 = vmatpush.msra.mxu0 %v1582
        %1645 = vmatpush.msra.mxu0 %v1578
        %1646 = vmatpush.msra.mxu0 %v1574
        %1647 = vmatpush.msra.mxu0 %v1570
        %1648 = vmatpush.msra.mxu0 %v1566
        %1649 = vmatpush.msra.mxu0 %v1562
        %1650 = vmatpush.msra.mxu0 %v1558
        %1651 = vmatpush.msra.mxu0 %v1554
        %1652 = vmatpush.msra.mxu0 %v1550
        %1653 = vmatpush.msra.mxu0 %v1546
        %1654 = vmatpush.msra.mxu0 %v1542
        %1655 = vmatpush.msra.mxu0 %v1538
        %1656 = vmatmul.f32.gmra.mxu0 %v1524
        %v1657 = vpop.f32.mrf.mxu0
        %v1658 = vadd.f32 0.0, %v1657
        %1659 = vdwg.mxu0
        %1660 = vmatpush.msra.mxu0 %v1599
        %1661 = vmatpush.msra.mxu0 %v1595
        %1662 = vmatpush.msra.mxu0 %v1591
        %1663 = vmatpush.msra.mxu0 %v1587
        %1664 = vmatpush.msra.mxu0 %v1583
        %1665 = vmatpush.msra.mxu0 %v1579
        %1666 = vmatpush.msra.mxu0 %v1575
        %1667 = vmatpush.msra.mxu0 %v1571
        %1668 = vmatpush.msra.mxu0 %v1567
        %1669 = vmatpush.msra.mxu0 %v1563
        %1670 = vmatpush.msra.mxu0 %v1559
        %1671 = vmatpush.msra.mxu0 %v1555
        %1672 = vmatpush.msra.mxu0 %v1551
        %1673 = vmatpush.msra.mxu0 %v1547
        %1674 = vmatpush.msra.mxu0 %v1543
        %1675 = vmatpush.msra.mxu0 %v1539
        %1676 = vmatmul.f32.gmra.mxu0 %v1524
        %v1677 = vpop.f32.mrf.mxu0
        %v1678 = vadd.f32 0.0, %v1677
        %1679 = vdwg.mxu0
        %v1680 = vadd.f32 %v1532, %v1618
        %v1681 = vadd.f32 %v1533, %v1638
        %v1682 = vadd.f32 %v1534, %v1658
        %v1683 = vadd.f32 %v1535, %v1678
        %v1684 = vxor.u32 %v1680, 2147483648
        %v1685 = vmul.f32 %v1684, 1.442695
        %v1686 = vpow.pop %v1685
        %v1687 = vadd.f32 %v1686, 1.0
        %v1688 = vrcp.pop %v1687
        %v1689 = vmul.f32 %v1687, %v1688
        %v1690 = vsub.f32 1.0, %v1689
        %v1691 = vmul.f32 %v1688, %v1690
        %v1692 = vadd.f32 %v1688, %v1691
        %vm1693 = vweird.f32 %v1687
        %vm1694 = vweird.f32 %v1688
        %vm1695 = vmor %vm1693, %vm1694
        %v1696 = vsel %vm1695, %v1688, %v1692
        %v1697 = vand.u32 2147483647, %v1687
        %vm1698 = vcmp.eq.f32.partialorder %v1697, 8.507059e+37
        %v1699 = vand.u32 %v1687, 2147483648
        %v1700 = vor.u32 1.1754944e-38, %v1699
        %v1701 = vsel %vm1698, %v1700, %v1696
        %v1702 = vmul.f32 1.0, %v1701
        %v1703 = vxor.u32 %v1681, 2147483648
        %v1704 = vmul.f32 %v1703, 1.442695
        %v1705 = vpow.pop %v1704
        %v1706 = vadd.f32 %v1705, 1.0
        %v1707 = vrcp.pop %v1706
        %v1708 = vmul.f32 %v1706, %v1707
        %v1709 = vsub.f32 1.0, %v1708
        %v1710 = vmul.f32 %v1707, %v1709
        %v1711 = vadd.f32 %v1707, %v1710
        %vm1712 = vweird.f32 %v1706
        %vm1713 = vweird.f32 %v1707
        %vm1714 = vmor %vm1712, %vm1713
        %v1715 = vsel %vm1714, %v1707, %v1711
        %v1716 = vand.u32 2147483647, %v1706
        %vm1717 = vcmp.eq.f32.partialorder %v1716, 8.507059e+37
        %v1718 = vand.u32 %v1706, 2147483648
        %v1719 = vor.u32 1.1754944e-38, %v1718
        %v1720 = vsel %vm1717, %v1719, %v1715
        %v1721 = vmul.f32 1.0, %v1720
        %v1722 = vtanh.pop %v1682
        %v1723 = vxor.u32 %v1683, 2147483648
        %v1724 = vmul.f32 %v1723, 1.442695
        %v1725 = vpow.pop %v1724
        %v1726 = vadd.f32 %v1725, 1.0
        %v1727 = vrcp.pop %v1726
        %v1728 = vmul.f32 %v1726, %v1727
        %v1729 = vsub.f32 1.0, %v1728
        %v1730 = vmul.f32 %v1727, %v1729
        %v1731 = vadd.f32 %v1727, %v1730
        %vm1732 = vweird.f32 %v1726
        %vm1733 = vweird.f32 %v1727
        %vm1734 = vmor %vm1732, %vm1733
        %v1735 = vsel %vm1734, %v1727, %v1731
        %v1736 = vand.u32 2147483647, %v1726
        %vm1737 = vcmp.eq.f32.partialorder %v1736, 8.507059e+37
        %v1738 = vand.u32 %v1726, 2147483648
        %v1739 = vor.u32 1.1754944e-38, %v1738
        %v1740 = vsel %vm1737, %v1739, %v1735
        %v1741 = vmul.f32 1.0, %v1740
        %v1742 = vmul.f32 %v1721, %v1522
        %v1743 = vmul.f32 %v1702, %v1722
        %v1744 = vadd.f32 %v1742, %v1743
        %v1745 = vtanh.pop %v1744
        %v1746 = vmul.f32 %v1741, %v1745
        %s1747 = smul.u32 %s1528, 8
        %s1748 = scalar_lea.vmem %s345, %s1747
        %1749 = vst [vmem:[%s1748] sm:$0xff] %v1746
        %s1750 = scalar_select %p354, 2, 5
        %s1751 = smul.u32 %s1750, 4
        %s1752 = smul.addr %s1751, 8
        %s1753 = scalar_lea.vmem [#allocation2], %s1752
        %v1754 = vld [vmem:[%s1753] sm:$0xff]
        %v1755 = vld [vmem:[%s1753 + $0x8] sm:$0xff]
        %v1756 = vld [vmem:[%s1753 + $0x10] sm:$0xff]
        %v1757 = vld [vmem:[%s1753 + $0x18] sm:$0xff]
        %v1758 = vld [vmem:[%s290] sm:$0xff]
        %v1759 = vld [vmem:[%s290 + $0x8] sm:$0xff]
        %v1760 = vld [vmem:[%s290 + $0x10] sm:$0xff]
        %v1761 = vld [vmem:[%s290 + $0x18] sm:$0xff]
        %v1762 = vld [vmem:[%s290 + $0x20] sm:$0xff]
        %v1763 = vld [vmem:[%s290 + $0x28] sm:$0xff]
        %v1764 = vld [vmem:[%s290 + $0x30] sm:$0xff]
        %v1765 = vld [vmem:[%s290 + $0x38] sm:$0xff]
        %v1766 = vld [vmem:[%s290 + $0x40] sm:$0xff]
        %v1767 = vld [vmem:[%s290 + $0x48] sm:$0xff]
        %v1768 = vld [vmem:[%s290 + $0x50] sm:$0xff]
        %v1769 = vld [vmem:[%s290 + $0x58] sm:$0xff]
        %v1770 = vld [vmem:[%s290 + $0x60] sm:$0xff]
        %v1771 = vld [vmem:[%s290 + $0x68] sm:$0xff]
        %v1772 = vld [vmem:[%s290 + $0x70] sm:$0xff]
        %v1773 = vld [vmem:[%s290 + $0x78] sm:$0xff]
        %v1774 = vld [vmem:[%s290 + $0x80] sm:$0xff]
        %v1775 = vld [vmem:[%s290 + $0x88] sm:$0xff]
        %v1776 = vld [vmem:[%s290 + $0x90] sm:$0xff]
        %v1777 = vld [vmem:[%s290 + $0x98] sm:$0xff]
        %v1778 = vld [vmem:[%s290 + $0xa0] sm:$0xff]
        %v1779 = vld [vmem:[%s290 + $0xa8] sm:$0xff]
        %v1780 = vld [vmem:[%s290 + $0xb0] sm:$0xff]
        %v1781 = vld [vmem:[%s290 + $0xb8] sm:$0xff]
        %v1782 = vld [vmem:[%s290 + $0xc0] sm:$0xff]
        %v1783 = vld [vmem:[%s290 + $0xc8] sm:$0xff]
        %v1784 = vld [vmem:[%s290 + $0xd0] sm:$0xff]
        %v1785 = vld [vmem:[%s290 + $0xd8] sm:$0xff]
        %v1786 = vld [vmem:[%s290 + $0xe0] sm:$0xff]
        %v1787 = vld [vmem:[%s290 + $0xe8] sm:$0xff]
        %v1788 = vld [vmem:[%s290 + $0xf0] sm:$0xff]
        %v1789 = vld [vmem:[%s290 + $0xf8] sm:$0xff]
        %v1790 = vld [vmem:[%s290 + $0x100] sm:$0xff]
        %v1791 = vld [vmem:[%s290 + $0x108] sm:$0xff]
        %v1792 = vld [vmem:[%s290 + $0x110] sm:$0xff]
        %v1793 = vld [vmem:[%s290 + $0x118] sm:$0xff]
        %v1794 = vld [vmem:[%s290 + $0x120] sm:$0xff]
        %v1795 = vld [vmem:[%s290 + $0x128] sm:$0xff]
        %v1796 = vld [vmem:[%s290 + $0x130] sm:$0xff]
        %v1797 = vld [vmem:[%s290 + $0x138] sm:$0xff]
        %v1798 = vld [vmem:[%s290 + $0x140] sm:$0xff]
        %v1799 = vld [vmem:[%s290 + $0x148] sm:$0xff]
        %v1800 = vld [vmem:[%s290 + $0x150] sm:$0xff]
        %v1801 = vld [vmem:[%s290 + $0x158] sm:$0xff]
        %v1802 = vld [vmem:[%s290 + $0x160] sm:$0xff]
        %v1803 = vld [vmem:[%s290 + $0x168] sm:$0xff]
        %v1804 = vld [vmem:[%s290 + $0x170] sm:$0xff]
        %v1805 = vld [vmem:[%s290 + $0x178] sm:$0xff]
        %v1806 = vld [vmem:[%s290 + $0x180] sm:$0xff]
        %v1807 = vld [vmem:[%s290 + $0x188] sm:$0xff]
        %v1808 = vld [vmem:[%s290 + $0x190] sm:$0xff]
        %v1809 = vld [vmem:[%s290 + $0x198] sm:$0xff]
        %v1810 = vld [vmem:[%s290 + $0x1a0] sm:$0xff]
        %v1811 = vld [vmem:[%s290 + $0x1a8] sm:$0xff]
        %v1812 = vld [vmem:[%s290 + $0x1b0] sm:$0xff]
        %v1813 = vld [vmem:[%s290 + $0x1b8] sm:$0xff]
        %v1814 = vld [vmem:[%s290 + $0x1c0] sm:$0xff]
        %v1815 = vld [vmem:[%s290 + $0x1c8] sm:$0xff]
        %v1816 = vld [vmem:[%s290 + $0x1d0] sm:$0xff]
        %v1817 = vld [vmem:[%s290 + $0x1d8] sm:$0xff]
        %v1818 = vld [vmem:[%s290 + $0x1e0] sm:$0xff]
        %v1819 = vld [vmem:[%s290 + $0x1e8] sm:$0xff]
        %v1820 = vld [vmem:[%s290 + $0x1f0] sm:$0xff]
        %v1821 = vld [vmem:[%s290 + $0x1f8] sm:$0xff]
        %1822 = vmatpush.msra.mxu0 %v1818
        %1823 = vmatpush.msra.mxu0 %v1814
        %1824 = vmatpush.msra.mxu0 %v1810
        %1825 = vmatpush.msra.mxu0 %v1806
        %1826 = vmatpush.msra.mxu0 %v1802
        %1827 = vmatpush.msra.mxu0 %v1798
        %1828 = vmatpush.msra.mxu0 %v1794
        %1829 = vmatpush.msra.mxu0 %v1790
        %1830 = vmatpush.msra.mxu0 %v1786
        %1831 = vmatpush.msra.mxu0 %v1782
        %1832 = vmatpush.msra.mxu0 %v1778
        %1833 = vmatpush.msra.mxu0 %v1774
        %1834 = vmatpush.msra.mxu0 %v1770
        %1835 = vmatpush.msra.mxu0 %v1766
        %1836 = vmatpush.msra.mxu0 %v1762
        %1837 = vmatpush.msra.mxu0 %v1758
        %1838 = vmatmul.f32.gmra.mxu0 %v1746
        %v1839 = vpop.f32.mrf.mxu0
        %v1840 = vadd.f32 0.0, %v1839
        %1841 = vdwg.mxu0
        %1842 = vmatpush.msra.mxu0 %v1819
        %1843 = vmatpush.msra.mxu0 %v1815
        %1844 = vmatpush.msra.mxu0 %v1811
        %1845 = vmatpush.msra.mxu0 %v1807
        %1846 = vmatpush.msra.mxu0 %v1803
        %1847 = vmatpush.msra.mxu0 %v1799
        %1848 = vmatpush.msra.mxu0 %v1795
        %1849 = vmatpush.msra.mxu0 %v1791
        %1850 = vmatpush.msra.mxu0 %v1787
        %1851 = vmatpush.msra.mxu0 %v1783
        %1852 = vmatpush.msra.mxu0 %v1779
        %1853 = vmatpush.msra.mxu0 %v1775
        %1854 = vmatpush.msra.mxu0 %v1771
        %1855 = vmatpush.msra.mxu0 %v1767
        %1856 = vmatpush.msra.mxu0 %v1763
        %1857 = vmatpush.msra.mxu0 %v1759
        %1858 = vmatmul.f32.gmra.mxu0 %v1746
        %v1859 = vpop.f32.mrf.mxu0
        %v1860 = vadd.f32 0.0, %v1859
        %1861 = vdwg.mxu0
        %1862 = vmatpush.msra.mxu0 %v1820
        %1863 = vmatpush.msra.mxu0 %v1816
        %1864 = vmatpush.msra.mxu0 %v1812
        %1865 = vmatpush.msra.mxu0 %v1808
        %1866 = vmatpush.msra.mxu0 %v1804
        %1867 = vmatpush.msra.mxu0 %v1800
        %1868 = vmatpush.msra.mxu0 %v1796
        %1869 = vmatpush.msra.mxu0 %v1792
        %1870 = vmatpush.msra.mxu0 %v1788
        %1871 = vmatpush.msra.mxu0 %v1784
        %1872 = vmatpush.msra.mxu0 %v1780
        %1873 = vmatpush.msra.mxu0 %v1776
        %1874 = vmatpush.msra.mxu0 %v1772
        %1875 = vmatpush.msra.mxu0 %v1768
        %1876 = vmatpush.msra.mxu0 %v1764
        %1877 = vmatpush.msra.mxu0 %v1760
        %1878 = vmatmul.f32.gmra.mxu0 %v1746
        %v1879 = vpop.f32.mrf.mxu0
        %v1880 = vadd.f32 0.0, %v1879
        %1881 = vdwg.mxu0
        %1882 = vmatpush.msra.mxu0 %v1821
        %1883 = vmatpush.msra.mxu0 %v1817
        %1884 = vmatpush.msra.mxu0 %v1813
        %1885 = vmatpush.msra.mxu0 %v1809
        %1886 = vmatpush.msra.mxu0 %v1805
        %1887 = vmatpush.msra.mxu0 %v1801
        %1888 = vmatpush.msra.mxu0 %v1797
        %1889 = vmatpush.msra.mxu0 %v1793
        %1890 = vmatpush.msra.mxu0 %v1789
        %1891 = vmatpush.msra.mxu0 %v1785
        %1892 = vmatpush.msra.mxu0 %v1781
        %1893 = vmatpush.msra.mxu0 %v1777
        %1894 = vmatpush.msra.mxu0 %v1773
        %1895 = vmatpush.msra.mxu0 %v1769
        %1896 = vmatpush.msra.mxu0 %v1765
        %1897 = vmatpush.msra.mxu0 %v1761
        %1898 = vmatmul.f32.gmra.mxu0 %v1746
        %v1899 = vpop.f32.mrf.mxu0
        %v1900 = vadd.f32 0.0, %v1899
        %1901 = vdwg.mxu0
        %v1902 = vadd.f32 %v1754, %v1840
        %v1903 = vadd.f32 %v1755, %v1860
        %v1904 = vadd.f32 %v1756, %v1880
        %v1905 = vadd.f32 %v1757, %v1900
        %v1906 = vxor.u32 %v1902, 2147483648
        %v1907 = vmul.f32 %v1906, 1.442695
        %v1908 = vpow.pop %v1907
        %v1909 = vadd.f32 %v1908, 1.0
        %v1910 = vrcp.pop %v1909
        %v1911 = vmul.f32 %v1909, %v1910
        %v1912 = vsub.f32 1.0, %v1911
        %v1913 = vmul.f32 %v1910, %v1912
        %v1914 = vadd.f32 %v1910, %v1913
        %vm1915 = vweird.f32 %v1909
        %vm1916 = vweird.f32 %v1910
        %vm1917 = vmor %vm1915, %vm1916
        %v1918 = vsel %vm1917, %v1910, %v1914
        %v1919 = vand.u32 2147483647, %v1909
        %vm1920 = vcmp.eq.f32.partialorder %v1919, 8.507059e+37
        %v1921 = vand.u32 %v1909, 2147483648
        %v1922 = vor.u32 1.1754944e-38, %v1921
        %v1923 = vsel %vm1920, %v1922, %v1918
        %v1924 = vmul.f32 1.0, %v1923
        %v1925 = vxor.u32 %v1903, 2147483648
        %v1926 = vmul.f32 %v1925, 1.442695
        %v1927 = vpow.pop %v1926
        %v1928 = vadd.f32 %v1927, 1.0
        %v1929 = vrcp.pop %v1928
        %v1930 = vmul.f32 %v1928, %v1929
        %v1931 = vsub.f32 1.0, %v1930
        %v1932 = vmul.f32 %v1929, %v1931
        %v1933 = vadd.f32 %v1929, %v1932
        %vm1934 = vweird.f32 %v1928
        %vm1935 = vweird.f32 %v1929
        %vm1936 = vmor %vm1934, %vm1935
        %v1937 = vsel %vm1936, %v1929, %v1933
        %v1938 = vand.u32 2147483647, %v1928
        %vm1939 = vcmp.eq.f32.partialorder %v1938, 8.507059e+37
        %v1940 = vand.u32 %v1928, 2147483648
        %v1941 = vor.u32 1.1754944e-38, %v1940
        %v1942 = vsel %vm1939, %v1941, %v1937
        %v1943 = vmul.f32 1.0, %v1942
        %v1944 = vtanh.pop %v1904
        %v1945 = vxor.u32 %v1905, 2147483648
        %v1946 = vmul.f32 %v1945, 1.442695
        %v1947 = vpow.pop %v1946
        %v1948 = vadd.f32 %v1947, 1.0
        %v1949 = vrcp.pop %v1948
        %v1950 = vmul.f32 %v1948, %v1949
        %v1951 = vsub.f32 1.0, %v1950
        %v1952 = vmul.f32 %v1949, %v1951
        %v1953 = vadd.f32 %v1949, %v1952
        %vm1954 = vweird.f32 %v1948
        %vm1955 = vweird.f32 %v1949
        %vm1956 = vmor %vm1954, %vm1955
        %v1957 = vsel %vm1956, %v1949, %v1953
        %v1958 = vand.u32 2147483647, %v1948
        %vm1959 = vcmp.eq.f32.partialorder %v1958, 8.507059e+37
        %v1960 = vand.u32 %v1948, 2147483648
        %v1961 = vor.u32 1.1754944e-38, %v1960
        %v1962 = vsel %vm1959, %v1961, %v1957
        %v1963 = vmul.f32 1.0, %v1962
        %v1964 = vmul.f32 %v1943, %v1744
        %v1965 = vmul.f32 %v1924, %v1944
        %v1966 = vadd.f32 %v1964, %v1965
        %v1967 = vtanh.pop %v1966
        %v1968 = vmul.f32 %v1963, %v1967
        %s1969 = smul.u32 %s1750, 8
        %s1970 = scalar_lea.vmem %s345, %s1969
        %1971 = vst [vmem:[%s1970] sm:$0xff] %v1968
        %s1972 = scalar_select %p354, 1, 6
        %s1973 = smul.u32 %s1972, 4
        %s1974 = smul.addr %s1973, 8
        %s1975 = scalar_lea.vmem [#allocation2], %s1974
        %v1976 = vld [vmem:[%s1975] sm:$0xff]
        %v1977 = vld [vmem:[%s1975 + $0x8] sm:$0xff]
        %v1978 = vld [vmem:[%s1975 + $0x10] sm:$0xff]
        %v1979 = vld [vmem:[%s1975 + $0x18] sm:$0xff]
        %v1980 = vld [vmem:[%s290] sm:$0xff]
        %v1981 = vld [vmem:[%s290 + $0x8] sm:$0xff]
        %v1982 = vld [vmem:[%s290 + $0x10] sm:$0xff]
        %v1983 = vld [vmem:[%s290 + $0x18] sm:$0xff]
        %v1984 = vld [vmem:[%s290 + $0x20] sm:$0xff]
        %v1985 = vld [vmem:[%s290 + $0x28] sm:$0xff]
        %v1986 = vld [vmem:[%s290 + $0x30] sm:$0xff]
        %v1987 = vld [vmem:[%s290 + $0x38] sm:$0xff]
        %v1988 = vld [vmem:[%s290 + $0x40] sm:$0xff]
        %v1989 = vld [vmem:[%s290 + $0x48] sm:$0xff]
        %v1990 = vld [vmem:[%s290 + $0x50] sm:$0xff]
        %v1991 = vld [vmem:[%s290 + $0x58] sm:$0xff]
        %v1992 = vld [vmem:[%s290 + $0x60] sm:$0xff]
        %v1993 = vld [vmem:[%s290 + $0x68] sm:$0xff]
        %v1994 = vld [vmem:[%s290 + $0x70] sm:$0xff]
        %v1995 = vld [vmem:[%s290 + $0x78] sm:$0xff]
        %v1996 = vld [vmem:[%s290 + $0x80] sm:$0xff]
        %v1997 = vld [vmem:[%s290 + $0x88] sm:$0xff]
        %v1998 = vld [vmem:[%s290 + $0x90] sm:$0xff]
        %v1999 = vld [vmem:[%s290 + $0x98] sm:$0xff]
        %v2000 = vld [vmem:[%s290 + $0xa0] sm:$0xff]
        %v2001 = vld [vmem:[%s290 + $0xa8] sm:$0xff]
        %v2002 = vld [vmem:[%s290 + $0xb0] sm:$0xff]
        %v2003 = vld [vmem:[%s290 + $0xb8] sm:$0xff]
        %v2004 = vld [vmem:[%s290 + $0xc0] sm:$0xff]
        %v2005 = vld [vmem:[%s290 + $0xc8] sm:$0xff]
        %v2006 = vld [vmem:[%s290 + $0xd0] sm:$0xff]
        %v2007 = vld [vmem:[%s290 + $0xd8] sm:$0xff]
        %v2008 = vld [vmem:[%s290 + $0xe0] sm:$0xff]
        %v2009 = vld [vmem:[%s290 + $0xe8] sm:$0xff]
        %v2010 = vld [vmem:[%s290 + $0xf0] sm:$0xff]
        %v2011 = vld [vmem:[%s290 + $0xf8] sm:$0xff]
        %v2012 = vld [vmem:[%s290 + $0x100] sm:$0xff]
        %v2013 = vld [vmem:[%s290 + $0x108] sm:$0xff]
        %v2014 = vld [vmem:[%s290 + $0x110] sm:$0xff]
        %v2015 = vld [vmem:[%s290 + $0x118] sm:$0xff]
        %v2016 = vld [vmem:[%s290 + $0x120] sm:$0xff]
        %v2017 = vld [vmem:[%s290 + $0x128] sm:$0xff]
        %v2018 = vld [vmem:[%s290 + $0x130] sm:$0xff]
        %v2019 = vld [vmem:[%s290 + $0x138] sm:$0xff]
        %v2020 = vld [vmem:[%s290 + $0x140] sm:$0xff]
        %v2021 = vld [vmem:[%s290 + $0x148] sm:$0xff]
        %v2022 = vld [vmem:[%s290 + $0x150] sm:$0xff]
        %v2023 = vld [vmem:[%s290 + $0x158] sm:$0xff]
        %v2024 = vld [vmem:[%s290 + $0x160] sm:$0xff]
        %v2025 = vld [vmem:[%s290 + $0x168] sm:$0xff]
        %v2026 = vld [vmem:[%s290 + $0x170] sm:$0xff]
        %v2027 = vld [vmem:[%s290 + $0x178] sm:$0xff]
        %v2028 = vld [vmem:[%s290 + $0x180] sm:$0xff]
        %v2029 = vld [vmem:[%s290 + $0x188] sm:$0xff]
        %v2030 = vld [vmem:[%s290 + $0x190] sm:$0xff]
        %v2031 = vld [vmem:[%s290 + $0x198] sm:$0xff]
        %v2032 = vld [vmem:[%s290 + $0x1a0] sm:$0xff]
        %v2033 = vld [vmem:[%s290 + $0x1a8] sm:$0xff]
        %v2034 = vld [vmem:[%s290 + $0x1b0] sm:$0xff]
        %v2035 = vld [vmem:[%s290 + $0x1b8] sm:$0xff]
        %v2036 = vld [vmem:[%s290 + $0x1c0] sm:$0xff]
        %v2037 = vld [vmem:[%s290 + $0x1c8] sm:$0xff]
        %v2038 = vld [vmem:[%s290 + $0x1d0] sm:$0xff]
        %v2039 = vld [vmem:[%s290 + $0x1d8] sm:$0xff]
        %v2040 = vld [vmem:[%s290 + $0x1e0] sm:$0xff]
        %v2041 = vld [vmem:[%s290 + $0x1e8] sm:$0xff]
        %v2042 = vld [vmem:[%s290 + $0x1f0] sm:$0xff]
        %v2043 = vld [vmem:[%s290 + $0x1f8] sm:$0xff]
        %2044 = vmatpush.msra.mxu0 %v2040
        %2045 = vmatpush.msra.mxu0 %v2036
        %2046 = vmatpush.msra.mxu0 %v2032
        %2047 = vmatpush.msra.mxu0 %v2028
        %2048 = vmatpush.msra.mxu0 %v2024
        %2049 = vmatpush.msra.mxu0 %v2020
        %2050 = vmatpush.msra.mxu0 %v2016
        %2051 = vmatpush.msra.mxu0 %v2012
        %2052 = vmatpush.msra.mxu0 %v2008
        %2053 = vmatpush.msra.mxu0 %v2004
        %2054 = vmatpush.msra.mxu0 %v2000
        %2055 = vmatpush.msra.mxu0 %v1996
        %2056 = vmatpush.msra.mxu0 %v1992
        %2057 = vmatpush.msra.mxu0 %v1988
        %2058 = vmatpush.msra.mxu0 %v1984
        %2059 = vmatpush.msra.mxu0 %v1980
        %2060 = vmatmul.f32.gmra.mxu0 %v1968
        %v2061 = vpop.f32.mrf.mxu0
        %v2062 = vadd.f32 0.0, %v2061
        %2063 = vdwg.mxu0
        %2064 = vmatpush.msra.mxu0 %v2041
        %2065 = vmatpush.msra.mxu0 %v2037
        %2066 = vmatpush.msra.mxu0 %v2033
        %2067 = vmatpush.msra.mxu0 %v2029
        %2068 = vmatpush.msra.mxu0 %v2025
        %2069 = vmatpush.msra.mxu0 %v2021
        %2070 = vmatpush.msra.mxu0 %v2017
        %2071 = vmatpush.msra.mxu0 %v2013
        %2072 = vmatpush.msra.mxu0 %v2009
        %2073 = vmatpush.msra.mxu0 %v2005
        %2074 = vmatpush.msra.mxu0 %v2001
        %2075 = vmatpush.msra.mxu0 %v1997
        %2076 = vmatpush.msra.mxu0 %v1993
        %2077 = vmatpush.msra.mxu0 %v1989
        %2078 = vmatpush.msra.mxu0 %v1985
        %2079 = vmatpush.msra.mxu0 %v1981
        %2080 = vmatmul.f32.gmra.mxu0 %v1968
        %v2081 = vpop.f32.mrf.mxu0
        %v2082 = vadd.f32 0.0, %v2081
        %2083 = vdwg.mxu0
        %2084 = vmatpush.msra.mxu0 %v2042
        %2085 = vmatpush.msra.mxu0 %v2038
        %2086 = vmatpush.msra.mxu0 %v2034
        %2087 = vmatpush.msra.mxu0 %v2030
        %2088 = vmatpush.msra.mxu0 %v2026
        %2089 = vmatpush.msra.mxu0 %v2022
        %2090 = vmatpush.msra.mxu0 %v2018
        %2091 = vmatpush.msra.mxu0 %v2014
        %2092 = vmatpush.msra.mxu0 %v2010
        %2093 = vmatpush.msra.mxu0 %v2006
        %2094 = vmatpush.msra.mxu0 %v2002
        %2095 = vmatpush.msra.mxu0 %v1998
        %2096 = vmatpush.msra.mxu0 %v1994
        %2097 = vmatpush.msra.mxu0 %v1990
        %2098 = vmatpush.msra.mxu0 %v1986
        %2099 = vmatpush.msra.mxu0 %v1982
        %2100 = vmatmul.f32.gmra.mxu0 %v1968
        %v2101 = vpop.f32.mrf.mxu0
        %v2102 = vadd.f32 0.0, %v2101
        %2103 = vdwg.mxu0
        %2104 = vmatpush.msra.mxu0 %v2043
        %2105 = vmatpush.msra.mxu0 %v2039
        %2106 = vmatpush.msra.mxu0 %v2035
        %2107 = vmatpush.msra.mxu0 %v2031
        %2108 = vmatpush.msra.mxu0 %v2027
        %2109 = vmatpush.msra.mxu0 %v2023
        %2110 = vmatpush.msra.mxu0 %v2019
        %2111 = vmatpush.msra.mxu0 %v2015
        %2112 = vmatpush.msra.mxu0 %v2011
        %2113 = vmatpush.msra.mxu0 %v2007
        %2114 = vmatpush.msra.mxu0 %v2003
        %2115 = vmatpush.msra.mxu0 %v1999
        %2116 = vmatpush.msra.mxu0 %v1995
        %2117 = vmatpush.msra.mxu0 %v1991
        %2118 = vmatpush.msra.mxu0 %v1987
        %2119 = vmatpush.msra.mxu0 %v1983
        %2120 = vmatmul.f32.gmra.mxu0 %v1968
        %v2121 = vpop.f32.mrf.mxu0
        %v2122 = vadd.f32 0.0, %v2121
        %2123 = vdwg.mxu0
        %v2124 = vadd.f32 %v1976, %v2062
        %v2125 = vadd.f32 %v1977, %v2082
        %v2126 = vadd.f32 %v1978, %v2102
        %v2127 = vadd.f32 %v1979, %v2122
        %v2128 = vxor.u32 %v2124, 2147483648
        %v2129 = vmul.f32 %v2128, 1.442695
        %v2130 = vpow.pop %v2129
        %v2131 = vadd.f32 %v2130, 1.0
        %v2132 = vrcp.pop %v2131
        %v2133 = vmul.f32 %v2131, %v2132
        %v2134 = vsub.f32 1.0, %v2133
        %v2135 = vmul.f32 %v2132, %v2134
        %v2136 = vadd.f32 %v2132, %v2135
        %vm2137 = vweird.f32 %v2131
        %vm2138 = vweird.f32 %v2132
        %vm2139 = vmor %vm2137, %vm2138
        %v2140 = vsel %vm2139, %v2132, %v2136
        %v2141 = vand.u32 2147483647, %v2131
        %vm2142 = vcmp.eq.f32.partialorder %v2141, 8.507059e+37
        %v2143 = vand.u32 %v2131, 2147483648
        %v2144 = vor.u32 1.1754944e-38, %v2143
        %v2145 = vsel %vm2142, %v2144, %v2140
        %v2146 = vmul.f32 1.0, %v2145
        %v2147 = vxor.u32 %v2125, 2147483648
        %v2148 = vmul.f32 %v2147, 1.442695
        %v2149 = vpow.pop %v2148
        %v2150 = vadd.f32 %v2149, 1.0
        %v2151 = vrcp.pop %v2150
        %v2152 = vmul.f32 %v2150, %v2151
        %v2153 = vsub.f32 1.0, %v2152
        %v2154 = vmul.f32 %v2151, %v2153
        %v2155 = vadd.f32 %v2151, %v2154
        %vm2156 = vweird.f32 %v2150
        %vm2157 = vweird.f32 %v2151
        %vm2158 = vmor %vm2156, %vm2157
        %v2159 = vsel %vm2158, %v2151, %v2155
        %v2160 = vand.u32 2147483647, %v2150
        %vm2161 = vcmp.eq.f32.partialorder %v2160, 8.507059e+37
        %v2162 = vand.u32 %v2150, 2147483648
        %v2163 = vor.u32 1.1754944e-38, %v2162
        %v2164 = vsel %vm2161, %v2163, %v2159
        %v2165 = vmul.f32 1.0, %v2164
        %v2166 = vtanh.pop %v2126
        %v2167 = vxor.u32 %v2127, 2147483648
        %v2168 = vmul.f32 %v2167, 1.442695
        %v2169 = vpow.pop %v2168
        %v2170 = vadd.f32 %v2169, 1.0
        %v2171 = vrcp.pop %v2170
        %v2172 = vmul.f32 %v2170, %v2171
        %v2173 = vsub.f32 1.0, %v2172
        %v2174 = vmul.f32 %v2171, %v2173
        %v2175 = vadd.f32 %v2171, %v2174
        %vm2176 = vweird.f32 %v2170
        %vm2177 = vweird.f32 %v2171
        %vm2178 = vmor %vm2176, %vm2177
        %v2179 = vsel %vm2178, %v2171, %v2175
        %v2180 = vand.u32 2147483647, %v2170
        %vm2181 = vcmp.eq.f32.partialorder %v2180, 8.507059e+37
        %v2182 = vand.u32 %v2170, 2147483648
        %v2183 = vor.u32 1.1754944e-38, %v2182
        %v2184 = vsel %vm2181, %v2183, %v2179
        %v2185 = vmul.f32 1.0, %v2184
        %v2186 = vmul.f32 %v2165, %v1966
        %v2187 = vmul.f32 %v2146, %v2166
        %v2188 = vadd.f32 %v2186, %v2187
        %v2189 = vtanh.pop %v2188
        %v2190 = vmul.f32 %v2185, %v2189
        %s2191 = smul.u32 %s1972, 8
        %s2192 = scalar_lea.vmem %s345, %s2191
        %2193 = vst [vmem:[%s2192] sm:$0xff] %v2190
        %s2194 = scalar_select %p354, 0, 7
        %s2195 = smul.u32 %s2194, 4
        %s2196 = smul.addr %s2195, 8
        %s2197 = scalar_lea.vmem [#allocation2], %s2196
        %v2198 = vld [vmem:[%s2197] sm:$0xff]
        %v2199 = vld [vmem:[%s2197 + $0x8] sm:$0xff]
        %v2200 = vld [vmem:[%s2197 + $0x10] sm:$0xff]
        %v2201 = vld [vmem:[%s2197 + $0x18] sm:$0xff]
        %v2202 = vld [vmem:[%s290] sm:$0xff]
        %v2203 = vld [vmem:[%s290 + $0x8] sm:$0xff]
        %v2204 = vld [vmem:[%s290 + $0x10] sm:$0xff]
        %v2205 = vld [vmem:[%s290 + $0x18] sm:$0xff]
        %v2206 = vld [vmem:[%s290 + $0x20] sm:$0xff]
        %v2207 = vld [vmem:[%s290 + $0x28] sm:$0xff]
        %v2208 = vld [vmem:[%s290 + $0x30] sm:$0xff]
        %v2209 = vld [vmem:[%s290 + $0x38] sm:$0xff]
        %v2210 = vld [vmem:[%s290 + $0x40] sm:$0xff]
        %v2211 = vld [vmem:[%s290 + $0x48] sm:$0xff]
        %v2212 = vld [vmem:[%s290 + $0x50] sm:$0xff]
        %v2213 = vld [vmem:[%s290 + $0x58] sm:$0xff]
        %v2214 = vld [vmem:[%s290 + $0x60] sm:$0xff]
        %v2215 = vld [vmem:[%s290 + $0x68] sm:$0xff]
        %v2216 = vld [vmem:[%s290 + $0x70] sm:$0xff]
        %v2217 = vld [vmem:[%s290 + $0x78] sm:$0xff]
        %v2218 = vld [vmem:[%s290 + $0x80] sm:$0xff]
        %v2219 = vld [vmem:[%s290 + $0x88] sm:$0xff]
        %v2220 = vld [vmem:[%s290 + $0x90] sm:$0xff]
        %v2221 = vld [vmem:[%s290 + $0x98] sm:$0xff]
        %v2222 = vld [vmem:[%s290 + $0xa0] sm:$0xff]
        %v2223 = vld [vmem:[%s290 + $0xa8] sm:$0xff]
        %v2224 = vld [vmem:[%s290 + $0xb0] sm:$0xff]
        %v2225 = vld [vmem:[%s290 + $0xb8] sm:$0xff]
        %v2226 = vld [vmem:[%s290 + $0xc0] sm:$0xff]
        %v2227 = vld [vmem:[%s290 + $0xc8] sm:$0xff]
        %v2228 = vld [vmem:[%s290 + $0xd0] sm:$0xff]
        %v2229 = vld [vmem:[%s290 + $0xd8] sm:$0xff]
        %v2230 = vld [vmem:[%s290 + $0xe0] sm:$0xff]
        %v2231 = vld [vmem:[%s290 + $0xe8] sm:$0xff]
        %v2232 = vld [vmem:[%s290 + $0xf0] sm:$0xff]
        %v2233 = vld [vmem:[%s290 + $0xf8] sm:$0xff]
        %v2234 = vld [vmem:[%s290 + $0x100] sm:$0xff]
        %v2235 = vld [vmem:[%s290 + $0x108] sm:$0xff]
        %v2236 = vld [vmem:[%s290 + $0x110] sm:$0xff]
        %v2237 = vld [vmem:[%s290 + $0x118] sm:$0xff]
        %v2238 = vld [vmem:[%s290 + $0x120] sm:$0xff]
        %v2239 = vld [vmem:[%s290 + $0x128] sm:$0xff]
        %v2240 = vld [vmem:[%s290 + $0x130] sm:$0xff]
        %v2241 = vld [vmem:[%s290 + $0x138] sm:$0xff]
        %v2242 = vld [vmem:[%s290 + $0x140] sm:$0xff]
        %v2243 = vld [vmem:[%s290 + $0x148] sm:$0xff]
        %v2244 = vld [vmem:[%s290 + $0x150] sm:$0xff]
        %v2245 = vld [vmem:[%s290 + $0x158] sm:$0xff]
        %v2246 = vld [vmem:[%s290 + $0x160] sm:$0xff]
        %v2247 = vld [vmem:[%s290 + $0x168] sm:$0xff]
        %v2248 = vld [vmem:[%s290 + $0x170] sm:$0xff]
        %v2249 = vld [vmem:[%s290 + $0x178] sm:$0xff]
        %v2250 = vld [vmem:[%s290 + $0x180] sm:$0xff]
        %v2251 = vld [vmem:[%s290 + $0x188] sm:$0xff]
        %v2252 = vld [vmem:[%s290 + $0x190] sm:$0xff]
        %v2253 = vld [vmem:[%s290 + $0x198] sm:$0xff]
        %v2254 = vld [vmem:[%s290 + $0x1a0] sm:$0xff]
        %v2255 = vld [vmem:[%s290 + $0x1a8] sm:$0xff]
        %v2256 = vld [vmem:[%s290 + $0x1b0] sm:$0xff]
        %v2257 = vld [vmem:[%s290 + $0x1b8] sm:$0xff]
        %v2258 = vld [vmem:[%s290 + $0x1c0] sm:$0xff]
        %v2259 = vld [vmem:[%s290 + $0x1c8] sm:$0xff]
        %v2260 = vld [vmem:[%s290 + $0x1d0] sm:$0xff]
        %v2261 = vld [vmem:[%s290 + $0x1d8] sm:$0xff]
        %v2262 = vld [vmem:[%s290 + $0x1e0] sm:$0xff]
        %v2263 = vld [vmem:[%s290 + $0x1e8] sm:$0xff]
        %v2264 = vld [vmem:[%s290 + $0x1f0] sm:$0xff]
        %v2265 = vld [vmem:[%s290 + $0x1f8] sm:$0xff]
        %2266 = vmatpush.msra.mxu0 %v2262
        %2267 = vmatpush.msra.mxu0 %v2258
        %2268 = vmatpush.msra.mxu0 %v2254
        %2269 = vmatpush.msra.mxu0 %v2250
        %2270 = vmatpush.msra.mxu0 %v2246
        %2271 = vmatpush.msra.mxu0 %v2242
        %2272 = vmatpush.msra.mxu0 %v2238
        %2273 = vmatpush.msra.mxu0 %v2234
        %2274 = vmatpush.msra.mxu0 %v2230
        %2275 = vmatpush.msra.mxu0 %v2226
        %2276 = vmatpush.msra.mxu0 %v2222
        %2277 = vmatpush.msra.mxu0 %v2218
        %2278 = vmatpush.msra.mxu0 %v2214
        %2279 = vmatpush.msra.mxu0 %v2210
        %2280 = vmatpush.msra.mxu0 %v2206
        %2281 = vmatpush.msra.mxu0 %v2202
        %2282 = vmatmul.f32.gmra.mxu0 %v2190
        %v2283 = vpop.f32.mrf.mxu0
        %v2284 = vadd.f32 0.0, %v2283
        %2285 = vdwg.mxu0
        %2286 = vmatpush.msra.mxu0 %v2263
        %2287 = vmatpush.msra.mxu0 %v2259
        %2288 = vmatpush.msra.mxu0 %v2255
        %2289 = vmatpush.msra.mxu0 %v2251
        %2290 = vmatpush.msra.mxu0 %v2247
        %2291 = vmatpush.msra.mxu0 %v2243
        %2292 = vmatpush.msra.mxu0 %v2239
        %2293 = vmatpush.msra.mxu0 %v2235
        %2294 = vmatpush.msra.mxu0 %v2231
        %2295 = vmatpush.msra.mxu0 %v2227
        %2296 = vmatpush.msra.mxu0 %v2223
        %2297 = vmatpush.msra.mxu0 %v2219
        %2298 = vmatpush.msra.mxu0 %v2215
        %2299 = vmatpush.msra.mxu0 %v2211
        %2300 = vmatpush.msra.mxu0 %v2207
        %2301 = vmatpush.msra.mxu0 %v2203
        %2302 = vmatmul.f32.gmra.mxu0 %v2190
        %v2303 = vpop.f32.mrf.mxu0
        %v2304 = vadd.f32 0.0, %v2303
        %2305 = vdwg.mxu0
        %2306 = vmatpush.msra.mxu0 %v2264
        %2307 = vmatpush.msra.mxu0 %v2260
        %2308 = vmatpush.msra.mxu0 %v2256
        %2309 = vmatpush.msra.mxu0 %v2252
        %2310 = vmatpush.msra.mxu0 %v2248
        %2311 = vmatpush.msra.mxu0 %v2244
        %2312 = vmatpush.msra.mxu0 %v2240
        %2313 = vmatpush.msra.mxu0 %v2236
        %2314 = vmatpush.msra.mxu0 %v2232
        %2315 = vmatpush.msra.mxu0 %v2228
        %2316 = vmatpush.msra.mxu0 %v2224
        %2317 = vmatpush.msra.mxu0 %v2220
        %2318 = vmatpush.msra.mxu0 %v2216
        %2319 = vmatpush.msra.mxu0 %v2212
        %2320 = vmatpush.msra.mxu0 %v2208
        %2321 = vmatpush.msra.mxu0 %v2204
        %2322 = vmatmul.f32.gmra.mxu0 %v2190
        %v2323 = vpop.f32.mrf.mxu0
        %v2324 = vadd.f32 0.0, %v2323
        %2325 = vdwg.mxu0
        %2326 = vmatpush.msra.mxu0 %v2265
        %2327 = vmatpush.msra.mxu0 %v2261
        %2328 = vmatpush.msra.mxu0 %v2257
        %2329 = vmatpush.msra.mxu0 %v2253
        %2330 = vmatpush.msra.mxu0 %v2249
        %2331 = vmatpush.msra.mxu0 %v2245
        %2332 = vmatpush.msra.mxu0 %v2241
        %2333 = vmatpush.msra.mxu0 %v2237
        %2334 = vmatpush.msra.mxu0 %v2233
        %2335 = vmatpush.msra.mxu0 %v2229
        %2336 = vmatpush.msra.mxu0 %v2225
        %2337 = vmatpush.msra.mxu0 %v2221
        %2338 = vmatpush.msra.mxu0 %v2217
        %2339 = vmatpush.msra.mxu0 %v2213
        %2340 = vmatpush.msra.mxu0 %v2209
        %2341 = vmatpush.msra.mxu0 %v2205
        %2342 = vmatmul.f32.gmra.mxu0 %v2190
        %v2343 = vpop.f32.mrf.mxu0
        %v2344 = vadd.f32 0.0, %v2343
        %2345 = vdwg.mxu0
        %v2346 = vadd.f32 %v2198, %v2284
        %v2347 = vadd.f32 %v2199, %v2304
        %v2348 = vadd.f32 %v2200, %v2324
        %v2349 = vadd.f32 %v2201, %v2344
        %v2350 = vxor.u32 %v2346, 2147483648
        %v2351 = vmul.f32 %v2350, 1.442695
        %v2352 = vpow.pop %v2351
        %v2353 = vadd.f32 %v2352, 1.0
        %v2354 = vrcp.pop %v2353
        %v2355 = vmul.f32 %v2353, %v2354
        %v2356 = vsub.f32 1.0, %v2355
        %v2357 = vmul.f32 %v2354, %v2356
        %v2358 = vadd.f32 %v2354, %v2357
        %vm2359 = vweird.f32 %v2353
        %vm2360 = vweird.f32 %v2354
        %vm2361 = vmor %vm2359, %vm2360
        %v2362 = vsel %vm2361, %v2354, %v2358
        %v2363 = vand.u32 2147483647, %v2353
        %vm2364 = vcmp.eq.f32.partialorder %v2363, 8.507059e+37
        %v2365 = vand.u32 %v2353, 2147483648
        %v2366 = vor.u32 1.1754944e-38, %v2365
        %v2367 = vsel %vm2364, %v2366, %v2362
        %v2368 = vmul.f32 1.0, %v2367
        %v2369 = vxor.u32 %v2347, 2147483648
        %v2370 = vmul.f32 %v2369, 1.442695
        %v2371 = vpow.pop %v2370
        %v2372 = vadd.f32 %v2371, 1.0
        %v2373 = vrcp.pop %v2372
        %v2374 = vmul.f32 %v2372, %v2373
        %v2375 = vsub.f32 1.0, %v2374
        %v2376 = vmul.f32 %v2373, %v2375
        %v2377 = vadd.f32 %v2373, %v2376
        %vm2378 = vweird.f32 %v2372
        %vm2379 = vweird.f32 %v2373
        %vm2380 = vmor %vm2378, %vm2379
        %v2381 = vsel %vm2380, %v2373, %v2377
        %v2382 = vand.u32 2147483647, %v2372
        %vm2383 = vcmp.eq.f32.partialorder %v2382, 8.507059e+37
        %v2384 = vand.u32 %v2372, 2147483648
        %v2385 = vor.u32 1.1754944e-38, %v2384
        %v2386 = vsel %vm2383, %v2385, %v2381
        %v2387 = vmul.f32 1.0, %v2386
        %v2388 = vtanh.pop %v2348
        %v2389 = vxor.u32 %v2349, 2147483648
        %v2390 = vmul.f32 %v2389, 1.442695
        %v2391 = vpow.pop %v2390
        %v2392 = vadd.f32 %v2391, 1.0
        %v2393 = vrcp.pop %v2392
        %v2394 = vmul.f32 %v2392, %v2393
        %v2395 = vsub.f32 1.0, %v2394
        %v2396 = vmul.f32 %v2393, %v2395
        %v2397 = vadd.f32 %v2393, %v2396
        %vm2398 = vweird.f32 %v2392
        %vm2399 = vweird.f32 %v2393
        %vm2400 = vmor %vm2398, %vm2399
        %v2401 = vsel %vm2400, %v2393, %v2397
        %v2402 = vand.u32 2147483647, %v2392
        %vm2403 = vcmp.eq.f32.partialorder %v2402, 8.507059e+37
        %v2404 = vand.u32 %v2392, 2147483648
        %v2405 = vor.u32 1.1754944e-38, %v2404
        %v2406 = vsel %vm2403, %v2405, %v2401
        %v2407 = vmul.f32 1.0, %v2406
        %v2408 = vmul.f32 %v2387, %v2188
        %v2409 = vmul.f32 %v2368, %v2388
        %v2410 = vadd.f32 %v2408, %v2409
        %v2411 = vtanh.pop %v2410
        %v2412 = vmul.f32 %v2407, %v2411
        %s2413 = smul.u32 %s2194, 8
        %s2414 = scalar_lea.vmem %s345, %s2413
        %2415 = vst [vmem:[%s2414] sm:$0xff] %v2412
        %2416 = vst [vmem:[%s349] sm:$0xff] %v2412
        %2417 = vst [vmem:[%s353] sm:$0xff] %v2410
        %p2418 = scmp.lt.s32.totalorder %s24, 1
        %s2419 = scalar_select %p2418, %s24, 1
        %s2420 = smul.addr %s2419, 8
        %s2421 = smul.addr %s2420, 8
        %s2422 = scalar_lea.vmem %s4, %s2421
        %p2423 = scmp.lt.s32.totalorder %s24, 1
        %s2424 = scalar_select %p2423, %s24, 1
        %s2425 = smul.addr %s2424, 8
        %s2426 = scalar_lea.vmem %s5, %s2425
        %p2427 = scmp.lt.s32.totalorder %s24, 1
        %s2428 = scalar_select %p2427, %s24, 1
        %s2429 = smul.addr %s2428, 8
        %s2430 = scalar_lea.vmem %s6, %s2429
        // Predicated region
        $region45: #{_seq2seq_forward_jit.2} parent=35 // pred_check
          %p2431 = pneg %p141
        $region46: #{_seq2seq_forward_jit.2} parent=35 // pred_check_branch
          %2433 = sbr.rel (%p2431) target = $region48
        $region47: #{_seq2seq_forward_jit.2} parent=35 // pred_region
          _
        $region48: #{_seq2seq_forward_jit.2} parent=35 // pred_fallthru
          _
        // Predicated region
        $region49: #{_seq2seq_forward_jit.2} parent=35 // pred_check
          %p2434 = pneg %p167
        $region50: #{_seq2seq_forward_jit.2} parent=35 // pred_check_branch
          %2436 = sbr.rel (%p2434) target = $region52
        $region51: #{_seq2seq_forward_jit.2} parent=35 // pred_region
          _
        $region52: #{_seq2seq_forward_jit.2} parent=35 // pred_fallthru
          _
        // Predicated region
        $region53: #{_seq2seq_forward_jit.2} parent=35 // pred_check
          %p2437 = pneg %p193
        $region54: #{_seq2seq_forward_jit.2} parent=35 // pred_check_branch
          %2439 = sbr.rel (%p2437) target = $region56
        $region55: #{_seq2seq_forward_jit.2} parent=35 // pred_region
          _
        $region56: #{_seq2seq_forward_jit.2} parent=35 // pred_fallthru
          _
      $region36: #{_seq2seq_forward_jit.2} parent=5 // pred_fallthru
        _
      %p2440 = scmp.le.s32.totalorder 2, %s19
      // Predicated region
      $region57: #{_seq2seq_forward_jit.2} parent=5 // pred_check
        %p2441 = pneg %p2440
      $region58: #{_seq2seq_forward_jit.2} parent=5 // pred_check_branch
        %2443 = sbr.rel (%p2441) target = $region60
      $region59: #{_seq2seq_forward_jit.2} parent=5 // pred_region
        %s2444 = ssub.s32 %s19, 2
        // Predicated region
        $region61: #{_seq2seq_forward_jit.2} parent=59 // pred_check
          %p2445 = pneg %p147
        $region62: #{_seq2seq_forward_jit.2} parent=59 // pred_check_branch
          %2447 = sbr.rel (%p2445) target = $region64
        $region63: #{_seq2seq_forward_jit.2} parent=59 // pred_region
          %p2448 = scmp.lt.s32.totalorder %s25, 1
          %s2449 = scalar_select %p2448, %s25, 1
          %s2450 = smul.addr %s2449, 8
          %s2451 = smul.addr %s2450, 8
          %s2452 = scalar_lea.vmem %s4, %s2451
        $region64: #{_seq2seq_forward_jit.2} parent=59 // pred_fallthru
          _
        // Predicated region
        $region65: #{_seq2seq_forward_jit.2} parent=59 // pred_check
          %p2453 = pneg %p173
        $region66: #{_seq2seq_forward_jit.2} parent=59 // pred_check_branch
          %2455 = sbr.rel (%p2453) target = $region68
        $region67: #{_seq2seq_forward_jit.2} parent=59 // pred_region
          %p2456 = scmp.lt.s32.totalorder %s25, 1
          %s2457 = scalar_select %p2456, %s25, 1
          %s2458 = smul.addr %s2457, 8
          %s2459 = scalar_lea.vmem %s5, %s2458
        $region68: #{_seq2seq_forward_jit.2} parent=59 // pred_fallthru
          _
        // Predicated region
        $region69: #{_seq2seq_forward_jit.2} parent=59 // pred_check
          %p2460 = pneg %p199
        $region70: #{_seq2seq_forward_jit.2} parent=59 // pred_check_branch
          %2462 = sbr.rel (%p2460) target = $region72
        $region71: #{_seq2seq_forward_jit.2} parent=59 // pred_region
          %p2463 = scmp.lt.s32.totalorder %s25, 1
          %s2464 = scalar_select %p2463, %s25, 1
          %s2465 = smul.addr %s2464, 8
          %s2466 = scalar_lea.vmem %s6, %s2465
        $region72: #{_seq2seq_forward_jit.2} parent=59 // pred_fallthru
          _
      $region60: #{_seq2seq_forward_jit.2} parent=5 // pred_fallthru
        _
    $region6: #{_seq2seq_forward_jit.2} parent=1 // loop_footer
      %s23 = sadd.s32 1, %s19
    $region7: #{_seq2seq_forward_jit.2} parent=1 // loop_footer_branch
      %18 = sbr.rel target = $region3
    $region8: #{_seq2seq_forward_jit.2} parent=1 // loop_exit
      _
    %2467 = vsyncpa [#allocation4], 1
    %s2468 = scalar_lea.sflag [#allocation4], 1
    %2469 = vsyncpa %s2468, 1
    %2470 = vsyncpa [#allocation6], 1
    %s2471 = scalar_lea.sflag [#allocation6], 1
    %2472 = vsyncpa %s2471, 1

// kernel: _seq2seq_forward_jit.3
$region0: #{_seq2seq_forward_jit.3}
  #allocation0 [shape = 'u32[]', space=smem, size = 0x4, offset = 0x4, fixed_abs, tag = 'smem constant byte address 0x4 - core index']
  #allocation1 [shape = 'u32[72,128]{1,0:T(1,128)}', space=vmem, size = 0x9000, scoped, tag = 'internal scratch']
  %s0 = inlined_call_operand.vmem [shape: s32[8], index: 0, kind: input, shape index: {}]
  %s1 = inlined_call_operand.vmem [shape: s32[8,8,1], index: 1, kind: input, shape index: {}]
  %s2 = inlined_call_operand.vmem [shape: f32[2,8,8,128], index: 2, kind: input, shape index: {}]
  %s3 = inlined_call_operand.vmem [shape: f32[2,8,128], index: 3, kind: input, shape index: {}]
  %s4 = inlined_call_operand.vmem [shape: f32[2,8,128], index: 4, kind: input, shape index: {}]
  %s5 = inlined_call_operand.vmem [shape: f32[256,512], index: 5, kind: input, shape index: {}]
  %s6 = inlined_call_operand.vmem [shape: f32[128,512], index: 6, kind: input, shape index: {}]
  %s7 = inlined_call_operand.vmem [shape: f32[1,512], index: 7, kind: input, shape index: {}]
  %s8 = inlined_call_operand.vmem [shape: f32[128,128], index: 8, kind: input, shape index: {}]
  %s9 = inlined_call_operand.vmem [shape: f32[1,128], index: 9, kind: input, shape index: {}]
  %s10 = inlined_call_operand.vmem [shape: f32[8,8,128], index: 10, kind: output, shape index: {}]
  %s11 = sld [smem:[#allocation0]]
  $region54: #{_seq2seq_forward_jit.3} parent=0
    _
  %s13 = ssub.s32 1, %s11
  %s14 = scalar_select 0, %s13, %s11
  $region1: #{_seq2seq_forward_jit.3} parent=0
    #allocation2 [shape = 'u8[512]{0}', space=smem, size = 0x200, scoped, tag = 'input window, operand 0, single buffered']
    #allocation3 [shape = 's32[1]{0}', space=sflag, size = 0x4, scoped, tag = 'scoped memory for _seq2seq_forward_jit.3']
    %15 = vsyncpa [#allocation3], 0
    // Predicated region
    $region2: #{_seq2seq_forward_jit.3} parent=1 // pred_check
      _
    $region3: #{_seq2seq_forward_jit.3} parent=1 // pred_check_branch
      %17 = sbr.rel (0) target = $region5
    $region4: #{_seq2seq_forward_jit.3} parent=1 // pred_region
      %19 = vsyncadd [#allocation3], 0
      %s21 = sshll.u32 %s0, 4
      %s22 = int_to_ptr.vmem [resolvable:$true] %s21
      %24 = dma.vmem_to_smem %s22, 16, [#allocation2], [#allocation3]
    $region5: #{_seq2seq_forward_jit.3} parent=1 // pred_fallthru
      _
    // Predicated region
    $region6: #{_seq2seq_forward_jit.3} parent=1 // pred_check
      _
    $region7: #{_seq2seq_forward_jit.3} parent=1 // pred_check_branch
      %26 = sbr.rel (0) target = $region9
    $region8: #{_seq2seq_forward_jit.3} parent=1 // pred_region
      _
    $region9: #{_seq2seq_forward_jit.3} parent=1 // pred_fallthru
      _
    // Predicated region
    $region10: #{_seq2seq_forward_jit.3} parent=1 // pred_check
      _
    $region11: #{_seq2seq_forward_jit.3} parent=1 // pred_check_branch
      %28 = sbr.rel (0) target = $region13
    $region12: #{_seq2seq_forward_jit.3} parent=1 // pred_region
      _
    $region13: #{_seq2seq_forward_jit.3} parent=1 // pred_fallthru
      _
    // Predicated region
    $region14: #{_seq2seq_forward_jit.3} parent=1 // pred_check
      _
    $region15: #{_seq2seq_forward_jit.3} parent=1 // pred_check_branch
      %30 = sbr.rel (0) target = $region17
    $region16: #{_seq2seq_forward_jit.3} parent=1 // pred_region
      _
    $region17: #{_seq2seq_forward_jit.3} parent=1 // pred_fallthru
      _
    // Predicated region
    $region18: #{_seq2seq_forward_jit.3} parent=1 // pred_check
      _
    $region19: #{_seq2seq_forward_jit.3} parent=1 // pred_check_branch
      %32 = sbr.rel (0) target = $region21
    $region20: #{_seq2seq_forward_jit.3} parent=1 // pred_region
      _
    $region21: #{_seq2seq_forward_jit.3} parent=1 // pred_fallthru
      _
    // Predicated region
    $region22: #{_seq2seq_forward_jit.3} parent=1 // pred_check
      _
    $region23: #{_seq2seq_forward_jit.3} parent=1 // pred_check_branch
      %34 = sbr.rel (0) target = $region25
    $region24: #{_seq2seq_forward_jit.3} parent=1 // pred_region
      _
    $region25: #{_seq2seq_forward_jit.3} parent=1 // pred_fallthru
      _
    // Predicated region
    $region26: #{_seq2seq_forward_jit.3} parent=1 // pred_check
      _
    $region27: #{_seq2seq_forward_jit.3} parent=1 // pred_check_branch
      %36 = sbr.rel (0) target = $region29
    $region28: #{_seq2seq_forward_jit.3} parent=1 // pred_region
      _
    $region29: #{_seq2seq_forward_jit.3} parent=1 // pred_fallthru
      _
    // Predicated region
    $region30: #{_seq2seq_forward_jit.3} parent=1 // pred_check
      _
    $region31: #{_seq2seq_forward_jit.3} parent=1 // pred_check_branch
      %38 = sbr.rel (0) target = $region33
    $region32: #{_seq2seq_forward_jit.3} parent=1 // pred_region
      _
    $region33: #{_seq2seq_forward_jit.3} parent=1 // pred_fallthru
      _
    // Predicated region
    $region34: #{_seq2seq_forward_jit.3} parent=1 // pred_check
      _
    $region35: #{_seq2seq_forward_jit.3} parent=1 // pred_check_branch
      %40 = sbr.rel (0) target = $region37
    $region36: #{_seq2seq_forward_jit.3} parent=1 // pred_region
      _
    $region37: #{_seq2seq_forward_jit.3} parent=1 // pred_fallthru
      _
    // Predicated region
    $region38: #{_seq2seq_forward_jit.3} parent=1 // pred_check
      _
    $region39: #{_seq2seq_forward_jit.3} parent=1 // pred_check_branch
      %42 = sbr.rel (0) target = $region41
    $region40: #{_seq2seq_forward_jit.3} parent=1 // pred_region
      _
    $region41: #{_seq2seq_forward_jit.3} parent=1 // pred_fallthru
      _
    // Predicated region
    $region42: #{_seq2seq_forward_jit.3} parent=1 // pred_check
      _
    $region43: #{_seq2seq_forward_jit.3} parent=1 // pred_check_branch
      %44 = sbr.rel (0) target = $region45
    $region44: #{_seq2seq_forward_jit.3} parent=1 // pred_region
      %46 = dma.done [#allocation3], 16
    $region45: #{_seq2seq_forward_jit.3} parent=1 // pred_fallthru
      _
    %47 = sfence
    %v48 = vld [vmem:[%s2] sm:$0xff]
    %v49 = vld [vmem:[%s2 + $0x8] sm:$0xff]
    %v50 = vld [vmem:[%s2 + $0x10] sm:$0xff]
    %v51 = vld [vmem:[%s2 + $0x18] sm:$0xff]
    %v52 = vld [vmem:[%s2 + $0x20] sm:$0xff]
    %v53 = vld [vmem:[%s2 + $0x28] sm:$0xff]
    %v54 = vld [vmem:[%s2 + $0x30] sm:$0xff]
    %v55 = vld [vmem:[%s2 + $0x38] sm:$0xff]
    %s56 = scalar_lea.vmem %s2, 64
    %v57 = vld [vmem:[%s56] sm:$0xff]
    %v58 = vld [vmem:[%s56 + $0x8] sm:$0xff]
    %v59 = vld [vmem:[%s56 + $0x10] sm:$0xff]
    %v60 = vld [vmem:[%s56 + $0x18] sm:$0xff]
    %v61 = vld [vmem:[%s56 + $0x20] sm:$0xff]
    %v62 = vld [vmem:[%s56 + $0x28] sm:$0xff]
    %v63 = vld [vmem:[%s56 + $0x30] sm:$0xff]
    %v64 = vld [vmem:[%s56 + $0x38] sm:$0xff]
    %v65 = vadd.f32 %v48, %v57
    %v66 = vadd.f32 %v49, %v58
    %v67 = vadd.f32 %v50, %v59
    %v68 = vadd.f32 %v51, %v60
    %v69 = vadd.f32 %v52, %v61
    %v70 = vadd.f32 %v53, %v62
    %v71 = vadd.f32 %v54, %v63
    %v72 = vadd.f32 %v55, %v64
    %v73 = vld [vmem:[%s3] sm:$0xff]
    %s74 = scalar_lea.vmem %s3, 8
    %v75 = vld [vmem:[%s74] sm:$0xff]
    %v76 = vadd.f32 %v73, %v75
    %v77 = vld [vmem:[%s4] sm:$0xff]
    %s78 = scalar_lea.vmem %s4, 8
    %v79 = vld [vmem:[%s78] sm:$0xff]
    %v80 = vadd.f32 %v77, %v79
    %81 = vst [vmem:[%s10] sm:$0xff] 0.0
    %v82 = vlaneseq
    %v83 = vand.u32 %v82, 127
    %v84 = vld [vmem:[%s1] sm:$0xff]
    %85 = vset.pattern.permute.xlu0 0
    %86 = vperm.xlu0 %85, %v84
    %v87 = vpop.permute.xlu0 %86
    %vm88 = vcmp.eq.s32.totalorder %v83, %v87
    %v89 = vsel %vm88, 1, 0
    %v90 = vcvt.s32.f32 %v89
    %v91 = vmul.f32 %v65, %v76
    %v92 = vmul.f32 %v66, %v76
    %v93 = vmul.f32 %v67, %v76
    %v94 = vmul.f32 %v68, %v76
    %v95 = vmul.f32 %v69, %v76
    %v96 = vmul.f32 %v70, %v76
    %v97 = vmul.f32 %v71, %v76
    %v98 = vmul.f32 %v72, %v76
    %99 = vadd.xlane.f32.xlu0 %v91
    %v100 = vpop.xlane.xlu0 %99
    %101 = vadd.xlane.f32.xlu0 %v92
    %v102 = vpop.xlane.xlu0 %101
    %103 = vadd.xlane.f32.xlu0 %v93
    %v104 = vpop.xlane.xlu0 %103
    %105 = vadd.xlane.f32.xlu0 %v94
    %v106 = vpop.xlane.xlu0 %105
    %107 = vadd.xlane.f32.xlu0 %v95
    %v108 = vpop.xlane.xlu0 %107
    %109 = vadd.xlane.f32.xlu0 %v96
    %v110 = vpop.xlane.xlu0 %109
    %111 = vadd.xlane.f32.xlu0 %v97
    %v112 = vpop.xlane.xlu0 %111
    %113 = vadd.xlane.f32.xlu0 %v98
    %v114 = vpop.xlane.xlu0 %113
    %v115 = vmax.f32 %v100, %v108
    %v116 = vmax.f32 %v102, %v110
    %v117 = vmax.f32 %v104, %v112
    %v118 = vmax.f32 %v106, %v114
    %v119 = vmax.f32 %v115, %v116
    %v120 = vmax.f32 %v117, %v118
    %v121 = vmax.f32 %v119, %v120
    %v122 = vsub.f32 %v100, %v121
    %v123 = vsub.f32 %v102, %v121
    %v124 = vsub.f32 %v104, %v121
    %v125 = vsub.f32 %v106, %v121
    %v126 = vsub.f32 %v108, %v121
    %v127 = vsub.f32 %v110, %v121
    %v128 = vsub.f32 %v112, %v121
    %v129 = vsub.f32 %v114, %v121
    %v130 = vmul.f32 %v122, 1.442695
    %v131 = vpow.pop %v130
    %v132 = vmul.f32 %v123, 1.442695
    %v133 = vpow.pop %v132
    %v134 = vmul.f32 %v124, 1.442695
    %v135 = vpow.pop %v134
    %v136 = vmul.f32 %v125, 1.442695
    %v137 = vpow.pop %v136
    %v138 = vmul.f32 %v126, 1.442695
    %v139 = vpow.pop %v138
    %v140 = vmul.f32 %v127, 1.442695
    %v141 = vpow.pop %v140
    %v142 = vmul.f32 %v128, 1.442695
    %v143 = vpow.pop %v142
    %v144 = vmul.f32 %v129, 1.442695
    %v145 = vpow.pop %v144
    %v146 = vadd.f32 %v131, %v133
    %v147 = vadd.f32 %v146, %v135
    %v148 = vadd.f32 %v147, %v137
    %v149 = vadd.f32 %v148, %v139
    %v150 = vadd.f32 %v149, %v141
    %v151 = vadd.f32 %v150, %v143
    %v152 = vadd.f32 %v151, %v145
    %v153 = vrcp.pop %v152
    %v154 = vmul.f32 %v131, %v153
    %v155 = vmul.f32 %v133, %v153
    %v156 = vmul.f32 %v135, %v153
    %v157 = vmul.f32 %v137, %v153
    %v158 = vmul.f32 %v139, %v153
    %v159 = vmul.f32 %v141, %v153
    %v160 = vmul.f32 %v143, %v153
    %v161 = vmul.f32 %v145, %v153
    %v162 = vmul.f32 %v154, %v65
    %v163 = vmul.f32 %v155, %v66
    %v164 = vmul.f32 %v156, %v67
    %v165 = vmul.f32 %v157, %v68
    %v166 = vmul.f32 %v158, %v69
    %v167 = vmul.f32 %v159, %v70
    %v168 = vmul.f32 %v160, %v71
    %v169 = vmul.f32 %v161, %v72
    %v170 = vadd.f32 %v162, %v163
    %v171 = vadd.f32 %v170, %v164
    %v172 = vadd.f32 %v171, %v165
    %v173 = vadd.f32 %v172, %v166
    %v174 = vadd.f32 %v173, %v167
    %v175 = vadd.f32 %v174, %v168
    %v176 = vadd.f32 %v175, %v169
    %v177 = vld [vmem:[%s5] sm:$0xff]
    %v178 = vld [vmem:[%s5 + $0x8] sm:$0xff]
    %v179 = vld [vmem:[%s5 + $0x10] sm:$0xff]
    %v180 = vld [vmem:[%s5 + $0x18] sm:$0xff]
    %v181 = vld [vmem:[%s5 + $0x20] sm:$0xff]
    %v182 = vld [vmem:[%s5 + $0x28] sm:$0xff]
    %v183 = vld [vmem:[%s5 + $0x30] sm:$0xff]
    %v184 = vld [vmem:[%s5 + $0x38] sm:$0xff]
    %v185 = vld [vmem:[%s5 + $0x40] sm:$0xff]
    %v186 = vld [vmem:[%s5 + $0x48] sm:$0xff]
    %v187 = vld [vmem:[%s5 + $0x50] sm:$0xff]
    %v188 = vld [vmem:[%s5 + $0x58] sm:$0xff]
    %v189 = vld [vmem:[%s5 + $0x60] sm:$0xff]
    %v190 = vld [vmem:[%s5 + $0x68] sm:$0xff]
    %v191 = vld [vmem:[%s5 + $0x70] sm:$0xff]
    %v192 = vld [vmem:[%s5 + $0x78] sm:$0xff]
    %v193 = vld [vmem:[%s5 + $0x80] sm:$0xff]
    %v194 = vld [vmem:[%s5 + $0x88] sm:$0xff]
    %v195 = vld [vmem:[%s5 + $0x90] sm:$0xff]
    %v196 = vld [vmem:[%s5 + $0x98] sm:$0xff]
    %v197 = vld [vmem:[%s5 + $0xa0] sm:$0xff]
    %v198 = vld [vmem:[%s5 + $0xa8] sm:$0xff]
    %v199 = vld [vmem:[%s5 + $0xb0] sm:$0xff]
    %v200 = vld [vmem:[%s5 + $0xb8] sm:$0xff]
    %v201 = vld [vmem:[%s5 + $0xc0] sm:$0xff]
    %v202 = vld [vmem:[%s5 + $0xc8] sm:$0xff]
    %v203 = vld [vmem:[%s5 + $0xd0] sm:$0xff]
    %v204 = vld [vmem:[%s5 + $0xd8] sm:$0xff]
    %v205 = vld [vmem:[%s5 + $0xe0] sm:$0xff]
    %v206 = vld [vmem:[%s5 + $0xe8] sm:$0xff]
    %v207 = vld [vmem:[%s5 + $0xf0] sm:$0xff]
    %v208 = vld [vmem:[%s5 + $0xf8] sm:$0xff]
    %v209 = vld [vmem:[%s5 + $0x100] sm:$0xff]
    %v210 = vld [vmem:[%s5 + $0x108] sm:$0xff]
    %v211 = vld [vmem:[%s5 + $0x110] sm:$0xff]
    %v212 = vld [vmem:[%s5 + $0x118] sm:$0xff]
    %v213 = vld [vmem:[%s5 + $0x120] sm:$0xff]
    %v214 = vld [vmem:[%s5 + $0x128] sm:$0xff]
    %v215 = vld [vmem:[%s5 + $0x130] sm:$0xff]
    %v216 = vld [vmem:[%s5 + $0x138] sm:$0xff]
    %v217 = vld [vmem:[%s5 + $0x140] sm:$0xff]
    %v218 = vld [vmem:[%s5 + $0x148] sm:$0xff]
    %v219 = vld [vmem:[%s5 + $0x150] sm:$0xff]
    %v220 = vld [vmem:[%s5 + $0x158] sm:$0xff]
    %v221 = vld [vmem:[%s5 + $0x160] sm:$0xff]
    %v222 = vld [vmem:[%s5 + $0x168] sm:$0xff]
    %v223 = vld [vmem:[%s5 + $0x170] sm:$0xff]
    %v224 = vld [vmem:[%s5 + $0x178] sm:$0xff]
    %v225 = vld [vmem:[%s5 + $0x180] sm:$0xff]
    %v226 = vld [vmem:[%s5 + $0x188] sm:$0xff]
    %v227 = vld [vmem:[%s5 + $0x190] sm:$0xff]
    %v228 = vld [vmem:[%s5 + $0x198] sm:$0xff]
    %v229 = vld [vmem:[%s5 + $0x1a0] sm:$0xff]
    %v230 = vld [vmem:[%s5 + $0x1a8] sm:$0xff]
    %v231 = vld [vmem:[%s5 + $0x1b0] sm:$0xff]
    %v232 = vld [vmem:[%s5 + $0x1b8] sm:$0xff]
    %v233 = vld [vmem:[%s5 + $0x1c0] sm:$0xff]
    %v234 = vld [vmem:[%s5 + $0x1c8] sm:$0xff]
    %v235 = vld [vmem:[%s5 + $0x1d0] sm:$0xff]
    %v236 = vld [vmem:[%s5 + $0x1d8] sm:$0xff]
    %v237 = vld [vmem:[%s5 + $0x1e0] sm:$0xff]
    %v238 = vld [vmem:[%s5 + $0x1e8] sm:$0xff]
    %v239 = vld [vmem:[%s5 + $0x1f0] sm:$0xff]
    %v240 = vld [vmem:[%s5 + $0x1f8] sm:$0xff]
    %v241 = vld [vmem:[%s5 + $0x200] sm:$0xff]
    %v242 = vld [vmem:[%s5 + $0x208] sm:$0xff]
    %v243 = vld [vmem:[%s5 + $0x210] sm:$0xff]
    %v244 = vld [vmem:[%s5 + $0x218] sm:$0xff]
    %v245 = vld [vmem:[%s5 + $0x220] sm:$0xff]
    %v246 = vld [vmem:[%s5 + $0x228] sm:$0xff]
    %v247 = vld [vmem:[%s5 + $0x230] sm:$0xff]
    %v248 = vld [vmem:[%s5 + $0x238] sm:$0xff]
    %v249 = vld [vmem:[%s5 + $0x240] sm:$0xff]
    %v250 = vld [vmem:[%s5 + $0x248] sm:$0xff]
    %v251 = vld [vmem:[%s5 + $0x250] sm:$0xff]
    %v252 = vld [vmem:[%s5 + $0x258] sm:$0xff]
    %v253 = vld [vmem:[%s5 + $0x260] sm:$0xff]
    %v254 = vld [vmem:[%s5 + $0x268] sm:$0xff]
    %v255 = vld [vmem:[%s5 + $0x270] sm:$0xff]
    %v256 = vld [vmem:[%s5 + $0x278] sm:$0xff]
    %v257 = vld [vmem:[%s5 + $0x280] sm:$0xff]
    %v258 = vld [vmem:[%s5 + $0x288] sm:$0xff]
    %v259 = vld [vmem:[%s5 + $0x290] sm:$0xff]
    %v260 = vld [vmem:[%s5 + $0x298] sm:$0xff]
    %v261 = vld [vmem:[%s5 + $0x2a0] sm:$0xff]
    %v262 = vld [vmem:[%s5 + $0x2a8] sm:$0xff]
    %v263 = vld [vmem:[%s5 + $0x2b0] sm:$0xff]
    %v264 = vld [vmem:[%s5 + $0x2b8] sm:$0xff]
    %v265 = vld [vmem:[%s5 + $0x2c0] sm:$0xff]
    %v266 = vld [vmem:[%s5 + $0x2c8] sm:$0xff]
    %v267 = vld [vmem:[%s5 + $0x2d0] sm:$0xff]
    %v268 = vld [vmem:[%s5 + $0x2d8] sm:$0xff]
    %v269 = vld [vmem:[%s5 + $0x2e0] sm:$0xff]
    %v270 = vld [vmem:[%s5 + $0x2e8] sm:$0xff]
    %v271 = vld [vmem:[%s5 + $0x2f0] sm:$0xff]
    %v272 = vld [vmem:[%s5 + $0x2f8] sm:$0xff]
    %v273 = vld [vmem:[%s5 + $0x300] sm:$0xff]
    %v274 = vld [vmem:[%s5 + $0x308] sm:$0xff]
    %v275 = vld [vmem:[%s5 + $0x310] sm:$0xff]
    %v276 = vld [vmem:[%s5 + $0x318] sm:$0xff]
    %v277 = vld [vmem:[%s5 + $0x320] sm:$0xff]
    %v278 = vld [vmem:[%s5 + $0x328] sm:$0xff]
    %v279 = vld [vmem:[%s5 + $0x330] sm:$0xff]
    %v280 = vld [vmem:[%s5 + $0x338] sm:$0xff]
    %v281 = vld [vmem:[%s5 + $0x340] sm:$0xff]
    %v282 = vld [vmem:[%s5 + $0x348] sm:$0xff]
    %v283 = vld [vmem:[%s5 + $0x350] sm:$0xff]
    %v284 = vld [vmem:[%s5 + $0x358] sm:$0xff]
    %v285 = vld [vmem:[%s5 + $0x360] sm:$0xff]
    %v286 = vld [vmem:[%s5 + $0x368] sm:$0xff]
    %v287 = vld [vmem:[%s5 + $0x370] sm:$0xff]
    %v288 = vld [vmem:[%s5 + $0x378] sm:$0xff]
    %v289 = vld [vmem:[%s5 + $0x380] sm:$0xff]
    %v290 = vld [vmem:[%s5 + $0x388] sm:$0xff]
    %v291 = vld [vmem:[%s5 + $0x390] sm:$0xff]
    %v292 = vld [vmem:[%s5 + $0x398] sm:$0xff]
    %v293 = vld [vmem:[%s5 + $0x3a0] sm:$0xff]
    %v294 = vld [vmem:[%s5 + $0x3a8] sm:$0xff]
    %v295 = vld [vmem:[%s5 + $0x3b0] sm:$0xff]
    %v296 = vld [vmem:[%s5 + $0x3b8] sm:$0xff]
    %v297 = vld [vmem:[%s5 + $0x3c0] sm:$0xff]
    %v298 = vld [vmem:[%s5 + $0x3c8] sm:$0xff]
    %v299 = vld [vmem:[%s5 + $0x3d0] sm:$0xff]
    %v300 = vld [vmem:[%s5 + $0x3d8] sm:$0xff]
    %v301 = vld [vmem:[%s5 + $0x3e0] sm:$0xff]
    %v302 = vld [vmem:[%s5 + $0x3e8] sm:$0xff]
    %v303 = vld [vmem:[%s5 + $0x3f0] sm:$0xff]
    %v304 = vld [vmem:[%s5 + $0x3f8] sm:$0xff]
    %v305 = vld [vmem:[%s6] sm:$0xff]
    %v306 = vld [vmem:[%s6 + $0x8] sm:$0xff]
    %v307 = vld [vmem:[%s6 + $0x10] sm:$0xff]
    %v308 = vld [vmem:[%s6 + $0x18] sm:$0xff]
    %v309 = vld [vmem:[%s6 + $0x20] sm:$0xff]
    %v310 = vld [vmem:[%s6 + $0x28] sm:$0xff]
    %v311 = vld [vmem:[%s6 + $0x30] sm:$0xff]
    %v312 = vld [vmem:[%s6 + $0x38] sm:$0xff]
    %v313 = vld [vmem:[%s6 + $0x40] sm:$0xff]
    %v314 = vld [vmem:[%s6 + $0x48] sm:$0xff]
    %v315 = vld [vmem:[%s6 + $0x50] sm:$0xff]
    %v316 = vld [vmem:[%s6 + $0x58] sm:$0xff]
    %v317 = vld [vmem:[%s6 + $0x60] sm:$0xff]
    %v318 = vld [vmem:[%s6 + $0x68] sm:$0xff]
    %v319 = vld [vmem:[%s6 + $0x70] sm:$0xff]
    %v320 = vld [vmem:[%s6 + $0x78] sm:$0xff]
    %v321 = vld [vmem:[%s6 + $0x80] sm:$0xff]
    %v322 = vld [vmem:[%s6 + $0x88] sm:$0xff]
    %v323 = vld [vmem:[%s6 + $0x90] sm:$0xff]
    %v324 = vld [vmem:[%s6 + $0x98] sm:$0xff]
    %v325 = vld [vmem:[%s6 + $0xa0] sm:$0xff]
    %v326 = vld [vmem:[%s6 + $0xa8] sm:$0xff]
    %v327 = vld [vmem:[%s6 + $0xb0] sm:$0xff]
    %v328 = vld [vmem:[%s6 + $0xb8] sm:$0xff]
    %v329 = vld [vmem:[%s6 + $0xc0] sm:$0xff]
    %v330 = vld [vmem:[%s6 + $0xc8] sm:$0xff]
    %v331 = vld [vmem:[%s6 + $0xd0] sm:$0xff]
    %v332 = vld [vmem:[%s6 + $0xd8] sm:$0xff]
    %v333 = vld [vmem:[%s6 + $0xe0] sm:$0xff]
    %v334 = vld [vmem:[%s6 + $0xe8] sm:$0xff]
    %v335 = vld [vmem:[%s6 + $0xf0] sm:$0xff]
    %v336 = vld [vmem:[%s6 + $0xf8] sm:$0xff]
    %v337 = vld [vmem:[%s6 + $0x100] sm:$0xff]
    %v338 = vld [vmem:[%s6 + $0x108] sm:$0xff]
    %v339 = vld [vmem:[%s6 + $0x110] sm:$0xff]
    %v340 = vld [vmem:[%s6 + $0x118] sm:$0xff]
    %v341 = vld [vmem:[%s6 + $0x120] sm:$0xff]
    %v342 = vld [vmem:[%s6 + $0x128] sm:$0xff]
    %v343 = vld [vmem:[%s6 + $0x130] sm:$0xff]
    %v344 = vld [vmem:[%s6 + $0x138] sm:$0xff]
    %v345 = vld [vmem:[%s6 + $0x140] sm:$0xff]
    %v346 = vld [vmem:[%s6 + $0x148] sm:$0xff]
    %v347 = vld [vmem:[%s6 + $0x150] sm:$0xff]
    %v348 = vld [vmem:[%s6 + $0x158] sm:$0xff]
    %v349 = vld [vmem:[%s6 + $0x160] sm:$0xff]
    %v350 = vld [vmem:[%s6 + $0x168] sm:$0xff]
    %v351 = vld [vmem:[%s6 + $0x170] sm:$0xff]
    %v352 = vld [vmem:[%s6 + $0x178] sm:$0xff]
    %v353 = vld [vmem:[%s6 + $0x180] sm:$0xff]
    %v354 = vld [vmem:[%s6 + $0x188] sm:$0xff]
    %v355 = vld [vmem:[%s6 + $0x190] sm:$0xff]
    %v356 = vld [vmem:[%s6 + $0x198] sm:$0xff]
    %v357 = vld [vmem:[%s6 + $0x1a0] sm:$0xff]
    %v358 = vld [vmem:[%s6 + $0x1a8] sm:$0xff]
    %v359 = vld [vmem:[%s6 + $0x1b0] sm:$0xff]
    %v360 = vld [vmem:[%s6 + $0x1b8] sm:$0xff]
    %v361 = vld [vmem:[%s6 + $0x1c0] sm:$0xff]
    %v362 = vld [vmem:[%s6 + $0x1c8] sm:$0xff]
    %v363 = vld [vmem:[%s6 + $0x1d0] sm:$0xff]
    %v364 = vld [vmem:[%s6 + $0x1d8] sm:$0xff]
    %v365 = vld [vmem:[%s6 + $0x1e0] sm:$0xff]
    %v366 = vld [vmem:[%s6 + $0x1e8] sm:$0xff]
    %v367 = vld [vmem:[%s6 + $0x1f0] sm:$0xff]
    %v368 = vld [vmem:[%s6 + $0x1f8] sm:$0xff]
    %369 = vmatpush.msra.mxu0 %v365
    %370 = vmatpush.msra.mxu0 %v361
    %371 = vmatpush.msra.mxu0 %v357
    %372 = vmatpush.msra.mxu0 %v353
    %373 = vmatpush.msra.mxu0 %v349
    %374 = vmatpush.msra.mxu0 %v345
    %375 = vmatpush.msra.mxu0 %v341
    %376 = vmatpush.msra.mxu0 %v337
    %377 = vmatpush.msra.mxu0 %v333
    %378 = vmatpush.msra.mxu0 %v329
    %379 = vmatpush.msra.mxu0 %v325
    %380 = vmatpush.msra.mxu0 %v321
    %381 = vmatpush.msra.mxu0 %v317
    %382 = vmatpush.msra.mxu0 %v313
    %383 = vmatpush.msra.mxu0 %v309
    %384 = vmatpush.msra.mxu0 %v305
    %385 = vmatmul.f32.gmra.mxu0 %v176
    %v386 = vpop.f32.mrf.mxu0
    %v387 = vadd.f32 0.0, %v386
    %388 = vdwg.mxu0
    %389 = vmatpush.msra.mxu0 %v366
    %390 = vmatpush.msra.mxu0 %v362
    %391 = vmatpush.msra.mxu0 %v358
    %392 = vmatpush.msra.mxu0 %v354
    %393 = vmatpush.msra.mxu0 %v350
    %394 = vmatpush.msra.mxu0 %v346
    %395 = vmatpush.msra.mxu0 %v342
    %396 = vmatpush.msra.mxu0 %v338
    %397 = vmatpush.msra.mxu0 %v334
    %398 = vmatpush.msra.mxu0 %v330
    %399 = vmatpush.msra.mxu0 %v326
    %400 = vmatpush.msra.mxu0 %v322
    %401 = vmatpush.msra.mxu0 %v318
    %402 = vmatpush.msra.mxu0 %v314
    %403 = vmatpush.msra.mxu0 %v310
    %404 = vmatpush.msra.mxu0 %v306
    %405 = vmatmul.f32.gmra.mxu0 %v176
    %v406 = vpop.f32.mrf.mxu0
    %v407 = vadd.f32 0.0, %v406
    %408 = vdwg.mxu0
    %409 = vmatpush.msra.mxu0 %v367
    %410 = vmatpush.msra.mxu0 %v363
    %411 = vmatpush.msra.mxu0 %v359
    %412 = vmatpush.msra.mxu0 %v355
    %413 = vmatpush.msra.mxu0 %v351
    %414 = vmatpush.msra.mxu0 %v347
    %415 = vmatpush.msra.mxu0 %v343
    %416 = vmatpush.msra.mxu0 %v339
    %417 = vmatpush.msra.mxu0 %v335
    %418 = vmatpush.msra.mxu0 %v331
    %419 = vmatpush.msra.mxu0 %v327
    %420 = vmatpush.msra.mxu0 %v323
    %421 = vmatpush.msra.mxu0 %v319
    %422 = vmatpush.msra.mxu0 %v315
    %423 = vmatpush.msra.mxu0 %v311
    %424 = vmatpush.msra.mxu0 %v307
    %425 = vmatmul.f32.gmra.mxu0 %v176
    %v426 = vpop.f32.mrf.mxu0
    %v427 = vadd.f32 0.0, %v426
    %428 = vdwg.mxu0
    %429 = vmatpush.msra.mxu0 %v368
    %430 = vmatpush.msra.mxu0 %v364
    %431 = vmatpush.msra.mxu0 %v360
    %432 = vmatpush.msra.mxu0 %v356
    %433 = vmatpush.msra.mxu0 %v352
    %434 = vmatpush.msra.mxu0 %v348
    %435 = vmatpush.msra.mxu0 %v344
    %436 = vmatpush.msra.mxu0 %v340
    %437 = vmatpush.msra.mxu0 %v336
    %438 = vmatpush.msra.mxu0 %v332
    %439 = vmatpush.msra.mxu0 %v328
    %440 = vmatpush.msra.mxu0 %v324
    %441 = vmatpush.msra.mxu0 %v320
    %442 = vmatpush.msra.mxu0 %v316
    %443 = vmatpush.msra.mxu0 %v312
    %444 = vmatpush.msra.mxu0 %v308
    %445 = vmatmul.f32.gmra.mxu0 %v176
    %v446 = vpop.f32.mrf.mxu0
    %v447 = vadd.f32 0.0, %v446
    %448 = vdwg.mxu0
    %449 = vmatpush.msra.mxu0 %v237
    %450 = vmatpush.msra.mxu0 %v233
    %451 = vmatpush.msra.mxu0 %v229
    %452 = vmatpush.msra.mxu0 %v225
    %453 = vmatpush.msra.mxu0 %v221
    %454 = vmatpush.msra.mxu0 %v217
    %455 = vmatpush.msra.mxu0 %v213
    %456 = vmatpush.msra.mxu0 %v209
    %457 = vmatpush.msra.mxu0 %v205
    %458 = vmatpush.msra.mxu0 %v201
    %459 = vmatpush.msra.mxu0 %v197
    %460 = vmatpush.msra.mxu0 %v193
    %461 = vmatpush.msra.mxu0 %v189
    %462 = vmatpush.msra.mxu0 %v185
    %463 = vmatpush.msra.mxu0 %v181
    %464 = vmatpush.msra.mxu0 %v177
    %465 = vmatmul.f32.gmra.mxu0 %v90
    %v466 = vpop.f32.mrf.mxu0
    %v467 = vadd.f32 %v387, %v466
    %468 = vdwg.mxu0
    %469 = vmatpush.msra.mxu0 %v301
    %470 = vmatpush.msra.mxu0 %v297
    %471 = vmatpush.msra.mxu0 %v293
    %472 = vmatpush.msra.mxu0 %v289
    %473 = vmatpush.msra.mxu0 %v285
    %474 = vmatpush.msra.mxu0 %v281
    %475 = vmatpush.msra.mxu0 %v277
    %476 = vmatpush.msra.mxu0 %v273
    %477 = vmatpush.msra.mxu0 %v269
    %478 = vmatpush.msra.mxu0 %v265
    %479 = vmatpush.msra.mxu0 %v261
    %480 = vmatpush.msra.mxu0 %v257
    %481 = vmatpush.msra.mxu0 %v253
    %482 = vmatpush.msra.mxu0 %v249
    %483 = vmatpush.msra.mxu0 %v245
    %484 = vmatpush.msra.mxu0 %v241
    %485 = vmatmul.f32.gmra.mxu0 %v76
    %v486 = vpop.f32.mrf.mxu0
    %v487 = vadd.f32 %v467, %v486
    %488 = vdwg.mxu0
    %489 = vmatpush.msra.mxu0 %v238
    %490 = vmatpush.msra.mxu0 %v234
    %491 = vmatpush.msra.mxu0 %v230
    %492 = vmatpush.msra.mxu0 %v226
    %493 = vmatpush.msra.mxu0 %v222
    %494 = vmatpush.msra.mxu0 %v218
    %495 = vmatpush.msra.mxu0 %v214
    %496 = vmatpush.msra.mxu0 %v210
    %497 = vmatpush.msra.mxu0 %v206
    %498 = vmatpush.msra.mxu0 %v202
    %499 = vmatpush.msra.mxu0 %v198
    %500 = vmatpush.msra.mxu0 %v194
    %501 = vmatpush.msra.mxu0 %v190
    %502 = vmatpush.msra.mxu0 %v186
    %503 = vmatpush.msra.mxu0 %v182
    %504 = vmatpush.msra.mxu0 %v178
    %505 = vmatmul.f32.gmra.mxu0 %v90
    %v506 = vpop.f32.mrf.mxu0
    %v507 = vadd.f32 %v407, %v506
    %508 = vdwg.mxu0
    %509 = vmatpush.msra.mxu0 %v302
    %510 = vmatpush.msra.mxu0 %v298
    %511 = vmatpush.msra.mxu0 %v294
    %512 = vmatpush.msra.mxu0 %v290
    %513 = vmatpush.msra.mxu0 %v286
    %514 = vmatpush.msra.mxu0 %v282
    %515 = vmatpush.msra.mxu0 %v278
    %516 = vmatpush.msra.mxu0 %v274
    %517 = vmatpush.msra.mxu0 %v270
    %518 = vmatpush.msra.mxu0 %v266
    %519 = vmatpush.msra.mxu0 %v262
    %520 = vmatpush.msra.mxu0 %v258
    %521 = vmatpush.msra.mxu0 %v254
    %522 = vmatpush.msra.mxu0 %v250
    %523 = vmatpush.msra.mxu0 %v246
    %524 = vmatpush.msra.mxu0 %v242
    %525 = vmatmul.f32.gmra.mxu0 %v76
    %v526 = vpop.f32.mrf.mxu0
    %v527 = vadd.f32 %v507, %v526
    %528 = vdwg.mxu0
    %529 = vmatpush.msra.mxu0 %v239
    %530 = vmatpush.msra.mxu0 %v235
    %531 = vmatpush.msra.mxu0 %v231
    %532 = vmatpush.msra.mxu0 %v227
    %533 = vmatpush.msra.mxu0 %v223
    %534 = vmatpush.msra.mxu0 %v219
    %535 = vmatpush.msra.mxu0 %v215
    %536 = vmatpush.msra.mxu0 %v211
    %537 = vmatpush.msra.mxu0 %v207
    %538 = vmatpush.msra.mxu0 %v203
    %539 = vmatpush.msra.mxu0 %v199
    %540 = vmatpush.msra.mxu0 %v195
    %541 = vmatpush.msra.mxu0 %v191
    %542 = vmatpush.msra.mxu0 %v187
    %543 = vmatpush.msra.mxu0 %v183
    %544 = vmatpush.msra.mxu0 %v179
    %545 = vmatmul.f32.gmra.mxu0 %v90
    %v546 = vpop.f32.mrf.mxu0
    %v547 = vadd.f32 %v427, %v546
    %548 = vdwg.mxu0
    %549 = vmatpush.msra.mxu0 %v303
    %550 = vmatpush.msra.mxu0 %v299
    %551 = vmatpush.msra.mxu0 %v295
    %552 = vmatpush.msra.mxu0 %v291
    %553 = vmatpush.msra.mxu0 %v287
    %554 = vmatpush.msra.mxu0 %v283
    %555 = vmatpush.msra.mxu0 %v279
    %556 = vmatpush.msra.mxu0 %v275
    %557 = vmatpush.msra.mxu0 %v271
    %558 = vmatpush.msra.mxu0 %v267
    %559 = vmatpush.msra.mxu0 %v263
    %560 = vmatpush.msra.mxu0 %v259
    %561 = vmatpush.msra.mxu0 %v255
    %562 = vmatpush.msra.mxu0 %v251
    %563 = vmatpush.msra.mxu0 %v247
    %564 = vmatpush.msra.mxu0 %v243
    %565 = vmatmul.f32.gmra.mxu0 %v76
    %v566 = vpop.f32.mrf.mxu0
    %v567 = vadd.f32 %v547, %v566
    %568 = vdwg.mxu0
    %569 = vmatpush.msra.mxu0 %v240
    %570 = vmatpush.msra.mxu0 %v236
    %571 = vmatpush.msra.mxu0 %v232
    %572 = vmatpush.msra.mxu0 %v228
    %573 = vmatpush.msra.mxu0 %v224
    %574 = vmatpush.msra.mxu0 %v220
    %575 = vmatpush.msra.mxu0 %v216
    %576 = vmatpush.msra.mxu0 %v212
    %577 = vmatpush.msra.mxu0 %v208
    %578 = vmatpush.msra.mxu0 %v204
    %579 = vmatpush.msra.mxu0 %v200
    %580 = vmatpush.msra.mxu0 %v196
    %581 = vmatpush.msra.mxu0 %v192
    %582 = vmatpush.msra.mxu0 %v188
    %583 = vmatpush.msra.mxu0 %v184
    %584 = vmatpush.msra.mxu0 %v180
    %585 = vmatmul.f32.gmra.mxu0 %v90
    %v586 = vpop.f32.mrf.mxu0
    %v587 = vadd.f32 %v447, %v586
    %588 = vdwg.mxu0
    %589 = vmatpush.msra.mxu0 %v304
    %590 = vmatpush.msra.mxu0 %v300
    %591 = vmatpush.msra.mxu0 %v296
    %592 = vmatpush.msra.mxu0 %v292
    %593 = vmatpush.msra.mxu0 %v288
    %594 = vmatpush.msra.mxu0 %v284
    %595 = vmatpush.msra.mxu0 %v280
    %596 = vmatpush.msra.mxu0 %v276
    %597 = vmatpush.msra.mxu0 %v272
    %598 = vmatpush.msra.mxu0 %v268
    %599 = vmatpush.msra.mxu0 %v264
    %600 = vmatpush.msra.mxu0 %v260
    %601 = vmatpush.msra.mxu0 %v256
    %602 = vmatpush.msra.mxu0 %v252
    %603 = vmatpush.msra.mxu0 %v248
    %604 = vmatpush.msra.mxu0 %v244
    %605 = vmatmul.f32.gmra.mxu0 %v76
    %v606 = vpop.f32.mrf.mxu0
    %v607 = vadd.f32 %v587, %v606
    %608 = vdwg.mxu0
    %v609 = vld [vmem:[%s7] sm:$0xf]
    %v611 = vperm.slane %v609, 0
    %v612 = vperm.slane %v609, 1
    %v613 = vperm.slane %v609, 2
    %v614 = vperm.slane %v609, 3
    %v619 = vadd.f32 %v487, %v611
    %v620 = vadd.f32 %v527, %v612
    %v621 = vadd.f32 %v567, %v613
    %v622 = vadd.f32 %v607, %v614
    %v623 = vxor.u32 %v619, 2147483648
    %v624 = vmul.f32 %v623, 1.442695
    %v625 = vpow.pop %v624
    %v626 = vadd.f32 %v625, 1.0
    %v627 = vrcp.pop %v626
    %v628 = vmul.f32 %v626, %v627
    %v629 = vsub.f32 1.0, %v628
    %v630 = vmul.f32 %v627, %v629
    %v631 = vadd.f32 %v627, %v630
    %vm632 = vweird.f32 %v626
    %vm633 = vweird.f32 %v627
    %vm634 = vmor %vm632, %vm633
    %v635 = vsel %vm634, %v627, %v631
    %v636 = vand.u32 2147483647, %v626
    %vm637 = vcmp.eq.f32.partialorder %v636, 8.507059e+37
    %v638 = vand.u32 %v626, 2147483648
    %v639 = vor.u32 1.1754944e-38, %v638
    %v640 = vsel %vm637, %v639, %v635
    %v641 = vmul.f32 1.0, %v640
    %v642 = vxor.u32 %v620, 2147483648
    %v643 = vmul.f32 %v642, 1.442695
    %v644 = vpow.pop %v643
    %v645 = vadd.f32 %v644, 1.0
    %v646 = vrcp.pop %v645
    %v647 = vmul.f32 %v645, %v646
    %v648 = vsub.f32 1.0, %v647
    %v649 = vmul.f32 %v646, %v648
    %v650 = vadd.f32 %v646, %v649
    %vm651 = vweird.f32 %v645
    %vm652 = vweird.f32 %v646
    %vm653 = vmor %vm651, %vm652
    %v654 = vsel %vm653, %v646, %v650
    %v655 = vand.u32 2147483647, %v645
    %vm656 = vcmp.eq.f32.partialorder %v655, 8.507059e+37
    %v657 = vand.u32 %v645, 2147483648
    %v658 = vor.u32 1.1754944e-38, %v657
    %v659 = vsel %vm656, %v658, %v654
    %v660 = vmul.f32 1.0, %v659
    %v661 = vtanh.pop %v621
    %v662 = vxor.u32 %v622, 2147483648
    %v663 = vmul.f32 %v662, 1.442695
    %v664 = vpow.pop %v663
    %v665 = vadd.f32 %v664, 1.0
    %v666 = vrcp.pop %v665
    %v667 = vmul.f32 %v665, %v666
    %v668 = vsub.f32 1.0, %v667
    %v669 = vmul.f32 %v666, %v668
    %v670 = vadd.f32 %v666, %v669
    %vm671 = vweird.f32 %v665
    %vm672 = vweird.f32 %v666
    %vm673 = vmor %vm671, %vm672
    %v674 = vsel %vm673, %v666, %v670
    %v675 = vand.u32 2147483647, %v665
    %vm676 = vcmp.eq.f32.partialorder %v675, 8.507059e+37
    %v677 = vand.u32 %v665, 2147483648
    %v678 = vor.u32 1.1754944e-38, %v677
    %v679 = vsel %vm676, %v678, %v674
    %v680 = vmul.f32 1.0, %v679
    %v681 = vmul.f32 %v660, %v80
    %v682 = vmul.f32 %v641, %v661
    %v683 = vadd.f32 %v681, %v682
    %v684 = vtanh.pop %v683
    %v685 = vmul.f32 %v680, %v684
    %v686 = vld [vmem:[%s8] sm:$0xff]
    %v687 = vld [vmem:[%s8 + $0x8] sm:$0xff]
    %v688 = vld [vmem:[%s8 + $0x10] sm:$0xff]
    %v689 = vld [vmem:[%s8 + $0x18] sm:$0xff]
    %v690 = vld [vmem:[%s8 + $0x20] sm:$0xff]
    %v691 = vld [vmem:[%s8 + $0x28] sm:$0xff]
    %v692 = vld [vmem:[%s8 + $0x30] sm:$0xff]
    %v693 = vld [vmem:[%s8 + $0x38] sm:$0xff]
    %v694 = vld [vmem:[%s8 + $0x40] sm:$0xff]
    %v695 = vld [vmem:[%s8 + $0x48] sm:$0xff]
    %v696 = vld [vmem:[%s8 + $0x50] sm:$0xff]
    %v697 = vld [vmem:[%s8 + $0x58] sm:$0xff]
    %v698 = vld [vmem:[%s8 + $0x60] sm:$0xff]
    %v699 = vld [vmem:[%s8 + $0x68] sm:$0xff]
    %v700 = vld [vmem:[%s8 + $0x70] sm:$0xff]
    %v701 = vld [vmem:[%s8 + $0x78] sm:$0xff]
    %v702 = vld [vmem:[%s9] sm:$0x1]
    %v704 = vperm.slane %v702, 0
    %706 = vmatpush.msra.mxu0 %v701
    %707 = vmatpush.msra.mxu0 %v700
    %708 = vmatpush.msra.mxu0 %v699
    %709 = vmatpush.msra.mxu0 %v698
    %710 = vmatpush.msra.mxu0 %v697
    %711 = vmatpush.msra.mxu0 %v696
    %712 = vmatpush.msra.mxu0 %v695
    %713 = vmatpush.msra.mxu0 %v694
    %714 = vmatpush.msra.mxu0 %v693
    %715 = vmatpush.msra.mxu0 %v692
    %716 = vmatpush.msra.mxu0 %v691
    %717 = vmatpush.msra.mxu0 %v690
    %718 = vmatpush.msra.mxu0 %v689
    %719 = vmatpush.msra.mxu0 %v688
    %720 = vmatpush.msra.mxu0 %v687
    %721 = vmatpush.msra.mxu0 %v686
    %722 = vmatmul.f32.gmra.mxu0 %v685
    %v723 = vpop.f32.mrf.mxu0
    %v724 = vadd.f32 %v704, %v723
    %725 = vdwg.mxu0
    %s726 = scalar_lea.vmem %s10, 8
    %727 = vst [vmem:[%s726] sm:$0xff] %v724
    %728 = vmax.xlane.f32.xlu0 %v724
    %v729 = vpop.xlane.xlu0 %728
    %vm730 = vcmp.eq.f32.partialorder %v724, %v729
    %v731 = vsel %vm730, %v83, 128
    %v732 = vand.u32 %v731, 65535
    %v733 = vshra.s32 %v731, 16
    %v734 = vcvt.s32.f32 %v732
    %v735 = vcvt.s32.f32 %v733
    %736 = vmin.xlane.f32.xlu0 %v735
    %v737 = vpop.xlane.xlu0 %736
    %vm738 = vcmp.eq.f32.partialorder %v735, %v737
    %v739 = vsel %vm738, %v734, inf
    %740 = vmin.xlane.f32.xlu0 %v739
    %v741 = vpop.xlane.xlu0 %740
    %v742 = vcvt.f32.s32 %v741
    %v743 = vcvt.f32.s32 %v737
    %v744 = vshll.u32 %v743, 16
    %v745 = vadd.s32 %v744, %v742
    %vm746 = vcmp.eq.s32.totalorder %v83, %v745
    %v747 = vsel %vm746, 1, 0
    %v748 = vcvt.s32.f32 %v747
    %s749 = sld [smem:[#allocation2 + $0x1]]
    %s750 = scvt.s32.f32 %s749
    %s751 = scalar_lea.vmem %s1, 8
    %v752 = vld [vmem:[%s751] sm:$0xff]
    %753 = vset.pattern.permute.xlu0 0
    %754 = vperm.xlu0 %753, %v752
    %v755 = vpop.permute.xlu0 %754
    %vm756 = vcmp.eq.s32.totalorder %v83, %v755
    %v757 = vsel %vm756, 1, 0
    %v758 = vcvt.s32.f32 %v757
    %v759 = vstv %s750
    %v760 = vmul.f32 %v759, %v758
    %s761 = ssub.f32 1.0, %s750
    %v762 = vstv %s761
    %v763 = vmul.f32 %v762, %v748
    %v764 = vadd.f32 %v760, %v763
    %v765 = vmul.f32 %v65, %v685
    %v766 = vmul.f32 %v66, %v685
    %v767 = vmul.f32 %v67, %v685
    %v768 = vmul.f32 %v68, %v685
    %v769 = vmul.f32 %v69, %v685
    %v770 = vmul.f32 %v70, %v685
    %v771 = vmul.f32 %v71, %v685
    %v772 = vmul.f32 %v72, %v685
    %773 = vadd.xlane.f32.xlu0 %v765
    %v774 = vpop.xlane.xlu0 %773
    %775 = vadd.xlane.f32.xlu0 %v766
    %v776 = vpop.xlane.xlu0 %775
    %777 = vadd.xlane.f32.xlu0 %v767
    %v778 = vpop.xlane.xlu0 %777
    %779 = vadd.xlane.f32.xlu0 %v768
    %v780 = vpop.xlane.xlu0 %779
    %781 = vadd.xlane.f32.xlu0 %v769
    %v782 = vpop.xlane.xlu0 %781
    %783 = vadd.xlane.f32.xlu0 %v770
    %v784 = vpop.xlane.xlu0 %783
    %785 = vadd.xlane.f32.xlu0 %v771
    %v786 = vpop.xlane.xlu0 %785
    %787 = vadd.xlane.f32.xlu0 %v772
    %v788 = vpop.xlane.xlu0 %787
    %v789 = vmax.f32 %v774, %v782
    %v790 = vmax.f32 %v776, %v784
    %v791 = vmax.f32 %v778, %v786
    %v792 = vmax.f32 %v780, %v788
    %v793 = vmax.f32 %v789, %v790
    %v794 = vmax.f32 %v791, %v792
    %v795 = vmax.f32 %v793, %v794
    %v796 = vsub.f32 %v774, %v795
    %v797 = vsub.f32 %v776, %v795
    %v798 = vsub.f32 %v778, %v795
    %v799 = vsub.f32 %v780, %v795
    %v800 = vsub.f32 %v782, %v795
    %v801 = vsub.f32 %v784, %v795
    %v802 = vsub.f32 %v786, %v795
    %v803 = vsub.f32 %v788, %v795
    %v804 = vmul.f32 %v796, 1.442695
    %v805 = vpow.pop %v804
    %v806 = vmul.f32 %v797, 1.442695
    %v807 = vpow.pop %v806
    %v808 = vmul.f32 %v798, 1.442695
    %v809 = vpow.pop %v808
    %v810 = vmul.f32 %v799, 1.442695
    %v811 = vpow.pop %v810
    %v812 = vmul.f32 %v800, 1.442695
    %v813 = vpow.pop %v812
    %v814 = vmul.f32 %v801, 1.442695
    %v815 = vpow.pop %v814
    %v816 = vmul.f32 %v802, 1.442695
    %v817 = vpow.pop %v816
    %v818 = vmul.f32 %v803, 1.442695
    %v819 = vpow.pop %v818
    %v820 = vadd.f32 %v805, %v807
    %v821 = vadd.f32 %v820, %v809
    %v822 = vadd.f32 %v821, %v811
    %v823 = vadd.f32 %v822, %v813
    %v824 = vadd.f32 %v823, %v815
    %v825 = vadd.f32 %v824, %v817
    %v826 = vadd.f32 %v825, %v819
    %v827 = vrcp.pop %v826
    %v828 = vmul.f32 %v805, %v827
    %v829 = vmul.f32 %v807, %v827
    %v830 = vmul.f32 %v809, %v827
    %v831 = vmul.f32 %v811, %v827
    %v832 = vmul.f32 %v813, %v827
    %v833 = vmul.f32 %v815, %v827
    %v834 = vmul.f32 %v817, %v827
    %v835 = vmul.f32 %v819, %v827
    %v836 = vmul.f32 %v828, %v65
    %v837 = vmul.f32 %v829, %v66
    %v838 = vmul.f32 %v830, %v67
    %v839 = vmul.f32 %v831, %v68
    %v840 = vmul.f32 %v832, %v69
    %v841 = vmul.f32 %v833, %v70
    %v842 = vmul.f32 %v834, %v71
    %v843 = vmul.f32 %v835, %v72
    %v844 = vadd.f32 %v836, %v837
    %v845 = vadd.f32 %v844, %v838
    %v846 = vadd.f32 %v845, %v839
    %v847 = vadd.f32 %v846, %v840
    %v848 = vadd.f32 %v847, %v841
    %v849 = vadd.f32 %v848, %v842
    %v850 = vadd.f32 %v849, %v843
    %v851 = vld [vmem:[%s5] sm:$0xff]
    %v852 = vld [vmem:[%s5 + $0x8] sm:$0xff]
    %v853 = vld [vmem:[%s5 + $0x10] sm:$0xff]
    %v854 = vld [vmem:[%s5 + $0x18] sm:$0xff]
    %v855 = vld [vmem:[%s5 + $0x20] sm:$0xff]
    %v856 = vld [vmem:[%s5 + $0x28] sm:$0xff]
    %v857 = vld [vmem:[%s5 + $0x30] sm:$0xff]
    %v858 = vld [vmem:[%s5 + $0x38] sm:$0xff]
    %v859 = vld [vmem:[%s5 + $0x40] sm:$0xff]
    %v860 = vld [vmem:[%s5 + $0x48] sm:$0xff]
    %v861 = vld [vmem:[%s5 + $0x50] sm:$0xff]
    %v862 = vld [vmem:[%s5 + $0x58] sm:$0xff]
    %v863 = vld [vmem:[%s5 + $0x60] sm:$0xff]
    %v864 = vld [vmem:[%s5 + $0x68] sm:$0xff]
    %v865 = vld [vmem:[%s5 + $0x70] sm:$0xff]
    %v866 = vld [vmem:[%s5 + $0x78] sm:$0xff]
    %v867 = vld [vmem:[%s5 + $0x80] sm:$0xff]
    %v868 = vld [vmem:[%s5 + $0x88] sm:$0xff]
    %v869 = vld [vmem:[%s5 + $0x90] sm:$0xff]
    %v870 = vld [vmem:[%s5 + $0x98] sm:$0xff]
    %v871 = vld [vmem:[%s5 + $0xa0] sm:$0xff]
    %v872 = vld [vmem:[%s5 + $0xa8] sm:$0xff]
    %v873 = vld [vmem:[%s5 + $0xb0] sm:$0xff]
    %v874 = vld [vmem:[%s5 + $0xb8] sm:$0xff]
    %v875 = vld [vmem:[%s5 + $0xc0] sm:$0xff]
    %v876 = vld [vmem:[%s5 + $0xc8] sm:$0xff]
    %v877 = vld [vmem:[%s5 + $0xd0] sm:$0xff]
    %v878 = vld [vmem:[%s5 + $0xd8] sm:$0xff]
    %v879 = vld [vmem:[%s5 + $0xe0] sm:$0xff]
    %v880 = vld [vmem:[%s5 + $0xe8] sm:$0xff]
    %v881 = vld [vmem:[%s5 + $0xf0] sm:$0xff]
    %v882 = vld [vmem:[%s5 + $0xf8] sm:$0xff]
    %v883 = vld [vmem:[%s5 + $0x100] sm:$0xff]
    %v884 = vld [vmem:[%s5 + $0x108] sm:$0xff]
    %v885 = vld [vmem:[%s5 + $0x110] sm:$0xff]
    %v886 = vld [vmem:[%s5 + $0x118] sm:$0xff]
    %v887 = vld [vmem:[%s5 + $0x120] sm:$0xff]
    %v888 = vld [vmem:[%s5 + $0x128] sm:$0xff]
    %v889 = vld [vmem:[%s5 + $0x130] sm:$0xff]
    %v890 = vld [vmem:[%s5 + $0x138] sm:$0xff]
    %v891 = vld [vmem:[%s5 + $0x140] sm:$0xff]
    %v892 = vld [vmem:[%s5 + $0x148] sm:$0xff]
    %v893 = vld [vmem:[%s5 + $0x150] sm:$0xff]
    %v894 = vld [vmem:[%s5 + $0x158] sm:$0xff]
    %v895 = vld [vmem:[%s5 + $0x160] sm:$0xff]
    %v896 = vld [vmem:[%s5 + $0x168] sm:$0xff]
    %v897 = vld [vmem:[%s5 + $0x170] sm:$0xff]
    %v898 = vld [vmem:[%s5 + $0x178] sm:$0xff]
    %v899 = vld [vmem:[%s5 + $0x180] sm:$0xff]
    %v900 = vld [vmem:[%s5 + $0x188] sm:$0xff]
    %v901 = vld [vmem:[%s5 + $0x190] sm:$0xff]
    %v902 = vld [vmem:[%s5 + $0x198] sm:$0xff]
    %v903 = vld [vmem:[%s5 + $0x1a0] sm:$0xff]
    %v904 = vld [vmem:[%s5 + $0x1a8] sm:$0xff]
    %v905 = vld [vmem:[%s5 + $0x1b0] sm:$0xff]
    %v906 = vld [vmem:[%s5 + $0x1b8] sm:$0xff]
    %v907 = vld [vmem:[%s5 + $0x1c0] sm:$0xff]
    %v908 = vld [vmem:[%s5 + $0x1c8] sm:$0xff]
    %v909 = vld [vmem:[%s5 + $0x1d0] sm:$0xff]
    %v910 = vld [vmem:[%s5 + $0x1d8] sm:$0xff]
    %v911 = vld [vmem:[%s5 + $0x1e0] sm:$0xff]
    %v912 = vld [vmem:[%s5 + $0x1e8] sm:$0xff]
    %v913 = vld [vmem:[%s5 + $0x1f0] sm:$0xff]
    %v914 = vld [vmem:[%s5 + $0x1f8] sm:$0xff]
    %v915 = vld [vmem:[%s5 + $0x200] sm:$0xff]
    %v916 = vld [vmem:[%s5 + $0x208] sm:$0xff]
    %v917 = vld [vmem:[%s5 + $0x210] sm:$0xff]
    %v918 = vld [vmem:[%s5 + $0x218] sm:$0xff]
    %v919 = vld [vmem:[%s5 + $0x220] sm:$0xff]
    %v920 = vld [vmem:[%s5 + $0x228] sm:$0xff]
    %v921 = vld [vmem:[%s5 + $0x230] sm:$0xff]
    %v922 = vld [vmem:[%s5 + $0x238] sm:$0xff]
    %v923 = vld [vmem:[%s5 + $0x240] sm:$0xff]
    %v924 = vld [vmem:[%s5 + $0x248] sm:$0xff]
    %v925 = vld [vmem:[%s5 + $0x250] sm:$0xff]
    %v926 = vld [vmem:[%s5 + $0x258] sm:$0xff]
    %v927 = vld [vmem:[%s5 + $0x260] sm:$0xff]
    %v928 = vld [vmem:[%s5 + $0x268] sm:$0xff]
    %v929 = vld [vmem:[%s5 + $0x270] sm:$0xff]
    %v930 = vld [vmem:[%s5 + $0x278] sm:$0xff]
    %v931 = vld [vmem:[%s5 + $0x280] sm:$0xff]
    %v932 = vld [vmem:[%s5 + $0x288] sm:$0xff]
    %v933 = vld [vmem:[%s5 + $0x290] sm:$0xff]
    %v934 = vld [vmem:[%s5 + $0x298] sm:$0xff]
    %v935 = vld [vmem:[%s5 + $0x2a0] sm:$0xff]
    %v936 = vld [vmem:[%s5 + $0x2a8] sm:$0xff]
    %v937 = vld [vmem:[%s5 + $0x2b0] sm:$0xff]
    %v938 = vld [vmem:[%s5 + $0x2b8] sm:$0xff]
    %v939 = vld [vmem:[%s5 + $0x2c0] sm:$0xff]
    %v940 = vld [vmem:[%s5 + $0x2c8] sm:$0xff]
    %v941 = vld [vmem:[%s5 + $0x2d0] sm:$0xff]
    %v942 = vld [vmem:[%s5 + $0x2d8] sm:$0xff]
    %v943 = vld [vmem:[%s5 + $0x2e0] sm:$0xff]
    %v944 = vld [vmem:[%s5 + $0x2e8] sm:$0xff]
    %v945 = vld [vmem:[%s5 + $0x2f0] sm:$0xff]
    %v946 = vld [vmem:[%s5 + $0x2f8] sm:$0xff]
    %v947 = vld [vmem:[%s5 + $0x300] sm:$0xff]
    %v948 = vld [vmem:[%s5 + $0x308] sm:$0xff]
    %v949 = vld [vmem:[%s5 + $0x310] sm:$0xff]
    %v950 = vld [vmem:[%s5 + $0x318] sm:$0xff]
    %v951 = vld [vmem:[%s5 + $0x320] sm:$0xff]
    %v952 = vld [vmem:[%s5 + $0x328] sm:$0xff]
    %v953 = vld [vmem:[%s5 + $0x330] sm:$0xff]
    %v954 = vld [vmem:[%s5 + $0x338] sm:$0xff]
    %v955 = vld [vmem:[%s5 + $0x340] sm:$0xff]
    %v956 = vld [vmem:[%s5 + $0x348] sm:$0xff]
    %v957 = vld [vmem:[%s5 + $0x350] sm:$0xff]
    %v958 = vld [vmem:[%s5 + $0x358] sm:$0xff]
    %v959 = vld [vmem:[%s5 + $0x360] sm:$0xff]
    %v960 = vld [vmem:[%s5 + $0x368] sm:$0xff]
    %v961 = vld [vmem:[%s5 + $0x370] sm:$0xff]
    %v962 = vld [vmem:[%s5 + $0x378] sm:$0xff]
    %v963 = vld [vmem:[%s5 + $0x380] sm:$0xff]
    %v964 = vld [vmem:[%s5 + $0x388] sm:$0xff]
    %v965 = vld [vmem:[%s5 + $0x390] sm:$0xff]
    %v966 = vld [vmem:[%s5 + $0x398] sm:$0xff]
    %v967 = vld [vmem:[%s5 + $0x3a0] sm:$0xff]
    %v968 = vld [vmem:[%s5 + $0x3a8] sm:$0xff]
    %v969 = vld [vmem:[%s5 + $0x3b0] sm:$0xff]
    %v970 = vld [vmem:[%s5 + $0x3b8] sm:$0xff]
    %v971 = vld [vmem:[%s5 + $0x3c0] sm:$0xff]
    %v972 = vld [vmem:[%s5 + $0x3c8] sm:$0xff]
    %v973 = vld [vmem:[%s5 + $0x3d0] sm:$0xff]
    %v974 = vld [vmem:[%s5 + $0x3d8] sm:$0xff]
    %v975 = vld [vmem:[%s5 + $0x3e0] sm:$0xff]
    %v976 = vld [vmem:[%s5 + $0x3e8] sm:$0xff]
    %v977 = vld [vmem:[%s5 + $0x3f0] sm:$0xff]
    %v978 = vld [vmem:[%s5 + $0x3f8] sm:$0xff]
    %v979 = vld [vmem:[%s6] sm:$0xff]
    %v980 = vld [vmem:[%s6 + $0x8] sm:$0xff]
    %v981 = vld [vmem:[%s6 + $0x10] sm:$0xff]
    %v982 = vld [vmem:[%s6 + $0x18] sm:$0xff]
    %v983 = vld [vmem:[%s6 + $0x20] sm:$0xff]
    %v984 = vld [vmem:[%s6 + $0x28] sm:$0xff]
    %v985 = vld [vmem:[%s6 + $0x30] sm:$0xff]
    %v986 = vld [vmem:[%s6 + $0x38] sm:$0xff]
    %v987 = vld [vmem:[%s6 + $0x40] sm:$0xff]
    %v988 = vld [vmem:[%s6 + $0x48] sm:$0xff]
    %v989 = vld [vmem:[%s6 + $0x50] sm:$0xff]
    %v990 = vld [vmem:[%s6 + $0x58] sm:$0xff]
    %v991 = vld [vmem:[%s6 + $0x60] sm:$0xff]
    %v992 = vld [vmem:[%s6 + $0x68] sm:$0xff]
    %v993 = vld [vmem:[%s6 + $0x70] sm:$0xff]
    %v994 = vld [vmem:[%s6 + $0x78] sm:$0xff]
    %v995 = vld [vmem:[%s6 + $0x80] sm:$0xff]
    %v996 = vld [vmem:[%s6 + $0x88] sm:$0xff]
    %v997 = vld [vmem:[%s6 + $0x90] sm:$0xff]
    %v998 = vld [vmem:[%s6 + $0x98] sm:$0xff]
    %v999 = vld [vmem:[%s6 + $0xa0] sm:$0xff]
    %v1000 = vld [vmem:[%s6 + $0xa8] sm:$0xff]
    %v1001 = vld [vmem:[%s6 + $0xb0] sm:$0xff]
    %v1002 = vld [vmem:[%s6 + $0xb8] sm:$0xff]
    %v1003 = vld [vmem:[%s6 + $0xc0] sm:$0xff]
    %v1004 = vld [vmem:[%s6 + $0xc8] sm:$0xff]
    %v1005 = vld [vmem:[%s6 + $0xd0] sm:$0xff]
    %v1006 = vld [vmem:[%s6 + $0xd8] sm:$0xff]
    %v1007 = vld [vmem:[%s6 + $0xe0] sm:$0xff]
    %v1008 = vld [vmem:[%s6 + $0xe8] sm:$0xff]
    %v1009 = vld [vmem:[%s6 + $0xf0] sm:$0xff]
    %v1010 = vld [vmem:[%s6 + $0xf8] sm:$0xff]
    %v1011 = vld [vmem:[%s6 + $0x100] sm:$0xff]
    %v1012 = vld [vmem:[%s6 + $0x108] sm:$0xff]
    %v1013 = vld [vmem:[%s6 + $0x110] sm:$0xff]
    %v1014 = vld [vmem:[%s6 + $0x118] sm:$0xff]
    %v1015 = vld [vmem:[%s6 + $0x120] sm:$0xff]
    %v1016 = vld [vmem:[%s6 + $0x128] sm:$0xff]
    %v1017 = vld [vmem:[%s6 + $0x130] sm:$0xff]
    %v1018 = vld [vmem:[%s6 + $0x138] sm:$0xff]
    %v1019 = vld [vmem:[%s6 + $0x140] sm:$0xff]
    %v1020 = vld [vmem:[%s6 + $0x148] sm:$0xff]
    %v1021 = vld [vmem:[%s6 + $0x150] sm:$0xff]
    %v1022 = vld [vmem:[%s6 + $0x158] sm:$0xff]
    %v1023 = vld [vmem:[%s6 + $0x160] sm:$0xff]
    %v1024 = vld [vmem:[%s6 + $0x168] sm:$0xff]
    %v1025 = vld [vmem:[%s6 + $0x170] sm:$0xff]
    %v1026 = vld [vmem:[%s6 + $0x178] sm:$0xff]
    %v1027 = vld [vmem:[%s6 + $0x180] sm:$0xff]
    %v1028 = vld [vmem:[%s6 + $0x188] sm:$0xff]
    %v1029 = vld [vmem:[%s6 + $0x190] sm:$0xff]
    %v1030 = vld [vmem:[%s6 + $0x198] sm:$0xff]
    %v1031 = vld [vmem:[%s6 + $0x1a0] sm:$0xff]
    %v1032 = vld [vmem:[%s6 + $0x1a8] sm:$0xff]
    %v1033 = vld [vmem:[%s6 + $0x1b0] sm:$0xff]
    %v1034 = vld [vmem:[%s6 + $0x1b8] sm:$0xff]
    %v1035 = vld [vmem:[%s6 + $0x1c0] sm:$0xff]
    %v1036 = vld [vmem:[%s6 + $0x1c8] sm:$0xff]
    %v1037 = vld [vmem:[%s6 + $0x1d0] sm:$0xff]
    %v1038 = vld [vmem:[%s6 + $0x1d8] sm:$0xff]
    %v1039 = vld [vmem:[%s6 + $0x1e0] sm:$0xff]
    %v1040 = vld [vmem:[%s6 + $0x1e8] sm:$0xff]
    %v1041 = vld [vmem:[%s6 + $0x1f0] sm:$0xff]
    %v1042 = vld [vmem:[%s6 + $0x1f8] sm:$0xff]
    %1043 = vmatpush.msra.mxu0 %v1039
    %1044 = vmatpush.msra.mxu0 %v1035
    %1045 = vmatpush.msra.mxu0 %v1031
    %1046 = vmatpush.msra.mxu0 %v1027
    %1047 = vmatpush.msra.mxu0 %v1023
    %1048 = vmatpush.msra.mxu0 %v1019
    %1049 = vmatpush.msra.mxu0 %v1015
    %1050 = vmatpush.msra.mxu0 %v1011
    %1051 = vmatpush.msra.mxu0 %v1007
    %1052 = vmatpush.msra.mxu0 %v1003
    %1053 = vmatpush.msra.mxu0 %v999
    %1054 = vmatpush.msra.mxu0 %v995
    %1055 = vmatpush.msra.mxu0 %v991
    %1056 = vmatpush.msra.mxu0 %v987
    %1057 = vmatpush.msra.mxu0 %v983
    %1058 = vmatpush.msra.mxu0 %v979
    %1059 = vmatmul.f32.gmra.mxu0 %v850
    %v1060 = vpop.f32.mrf.mxu0
    %v1061 = vadd.f32 0.0, %v1060
    %1062 = vdwg.mxu0
    %1063 = vmatpush.msra.mxu0 %v1040
    %1064 = vmatpush.msra.mxu0 %v1036
    %1065 = vmatpush.msra.mxu0 %v1032
    %1066 = vmatpush.msra.mxu0 %v1028
    %1067 = vmatpush.msra.mxu0 %v1024
    %1068 = vmatpush.msra.mxu0 %v1020
    %1069 = vmatpush.msra.mxu0 %v1016
    %1070 = vmatpush.msra.mxu0 %v1012
    %1071 = vmatpush.msra.mxu0 %v1008
    %1072 = vmatpush.msra.mxu0 %v1004
    %1073 = vmatpush.msra.mxu0 %v1000
    %1074 = vmatpush.msra.mxu0 %v996
    %1075 = vmatpush.msra.mxu0 %v992
    %1076 = vmatpush.msra.mxu0 %v988
    %1077 = vmatpush.msra.mxu0 %v984
    %1078 = vmatpush.msra.mxu0 %v980
    %1079 = vmatmul.f32.gmra.mxu0 %v850
    %v1080 = vpop.f32.mrf.mxu0
    %v1081 = vadd.f32 0.0, %v1080
    %1082 = vdwg.mxu0
    %1083 = vmatpush.msra.mxu0 %v1041
    %1084 = vmatpush.msra.mxu0 %v1037
    %1085 = vmatpush.msra.mxu0 %v1033
    %1086 = vmatpush.msra.mxu0 %v1029
    %1087 = vmatpush.msra.mxu0 %v1025
    %1088 = vmatpush.msra.mxu0 %v1021
    %1089 = vmatpush.msra.mxu0 %v1017
    %1090 = vmatpush.msra.mxu0 %v1013
    %1091 = vmatpush.msra.mxu0 %v1009
    %1092 = vmatpush.msra.mxu0 %v1005
    %1093 = vmatpush.msra.mxu0 %v1001
    %1094 = vmatpush.msra.mxu0 %v997
    %1095 = vmatpush.msra.mxu0 %v993
    %1096 = vmatpush.msra.mxu0 %v989
    %1097 = vmatpush.msra.mxu0 %v985
    %1098 = vmatpush.msra.mxu0 %v981
    %1099 = vmatmul.f32.gmra.mxu0 %v850
    %v1100 = vpop.f32.mrf.mxu0
    %v1101 = vadd.f32 0.0, %v1100
    %1102 = vdwg.mxu0
    %1103 = vmatpush.msra.mxu0 %v1042
    %1104 = vmatpush.msra.mxu0 %v1038
    %1105 = vmatpush.msra.mxu0 %v1034
    %1106 = vmatpush.msra.mxu0 %v1030
    %1107 = vmatpush.msra.mxu0 %v1026
    %1108 = vmatpush.msra.mxu0 %v1022
    %1109 = vmatpush.msra.mxu0 %v1018
    %1110 = vmatpush.msra.mxu0 %v1014
    %1111 = vmatpush.msra.mxu0 %v1010
    %1112 = vmatpush.msra.mxu0 %v1006
    %1113 = vmatpush.msra.mxu0 %v1002
    %1114 = vmatpush.msra.mxu0 %v998
    %1115 = vmatpush.msra.mxu0 %v994
    %1116 = vmatpush.msra.mxu0 %v990
    %1117 = vmatpush.msra.mxu0 %v986
    %1118 = vmatpush.msra.mxu0 %v982
    %1119 = vmatmul.f32.gmra.mxu0 %v850
    %v1120 = vpop.f32.mrf.mxu0
    %v1121 = vadd.f32 0.0, %v1120
    %1122 = vdwg.mxu0
    %1123 = vmatpush.msra.mxu0 %v911
    %1124 = vmatpush.msra.mxu0 %v907
    %1125 = vmatpush.msra.mxu0 %v903
    %1126 = vmatpush.msra.mxu0 %v899
    %1127 = vmatpush.msra.mxu0 %v895
    %1128 = vmatpush.msra.mxu0 %v891
    %1129 = vmatpush.msra.mxu0 %v887
    %1130 = vmatpush.msra.mxu0 %v883
    %1131 = vmatpush.msra.mxu0 %v879
    %1132 = vmatpush.msra.mxu0 %v875
    %1133 = vmatpush.msra.mxu0 %v871
    %1134 = vmatpush.msra.mxu0 %v867
    %1135 = vmatpush.msra.mxu0 %v863
    %1136 = vmatpush.msra.mxu0 %v859
    %1137 = vmatpush.msra.mxu0 %v855
    %1138 = vmatpush.msra.mxu0 %v851
    %1139 = vmatmul.f32.gmra.mxu0 %v764
    %v1140 = vpop.f32.mrf.mxu0
    %v1141 = vadd.f32 %v1061, %v1140
    %1142 = vdwg.mxu0
    %1143 = vmatpush.msra.mxu0 %v975
    %1144 = vmatpush.msra.mxu0 %v971
    %1145 = vmatpush.msra.mxu0 %v967
    %1146 = vmatpush.msra.mxu0 %v963
    %1147 = vmatpush.msra.mxu0 %v959
    %1148 = vmatpush.msra.mxu0 %v955
    %1149 = vmatpush.msra.mxu0 %v951
    %1150 = vmatpush.msra.mxu0 %v947
    %1151 = vmatpush.msra.mxu0 %v943
    %1152 = vmatpush.msra.mxu0 %v939
    %1153 = vmatpush.msra.mxu0 %v935
    %1154 = vmatpush.msra.mxu0 %v931
    %1155 = vmatpush.msra.mxu0 %v927
    %1156 = vmatpush.msra.mxu0 %v923
    %1157 = vmatpush.msra.mxu0 %v919
    %1158 = vmatpush.msra.mxu0 %v915
    %1159 = vmatmul.f32.gmra.mxu0 %v685
    %v1160 = vpop.f32.mrf.mxu0
    %v1161 = vadd.f32 %v1141, %v1160
    %1162 = vdwg.mxu0
    %1163 = vmatpush.msra.mxu0 %v912
    %1164 = vmatpush.msra.mxu0 %v908
    %1165 = vmatpush.msra.mxu0 %v904
    %1166 = vmatpush.msra.mxu0 %v900
    %1167 = vmatpush.msra.mxu0 %v896
    %1168 = vmatpush.msra.mxu0 %v892
    %1169 = vmatpush.msra.mxu0 %v888
    %1170 = vmatpush.msra.mxu0 %v884
    %1171 = vmatpush.msra.mxu0 %v880
    %1172 = vmatpush.msra.mxu0 %v876
    %1173 = vmatpush.msra.mxu0 %v872
    %1174 = vmatpush.msra.mxu0 %v868
    %1175 = vmatpush.msra.mxu0 %v864
    %1176 = vmatpush.msra.mxu0 %v860
    %1177 = vmatpush.msra.mxu0 %v856
    %1178 = vmatpush.msra.mxu0 %v852
    %1179 = vmatmul.f32.gmra.mxu0 %v764
    %v1180 = vpop.f32.mrf.mxu0
    %v1181 = vadd.f32 %v1081, %v1180
    %1182 = vdwg.mxu0
    %1183 = vmatpush.msra.mxu0 %v976
    %1184 = vmatpush.msra.mxu0 %v972
    %1185 = vmatpush.msra.mxu0 %v968
    %1186 = vmatpush.msra.mxu0 %v964
    %1187 = vmatpush.msra.mxu0 %v960
    %1188 = vmatpush.msra.mxu0 %v956
    %1189 = vmatpush.msra.mxu0 %v952
    %1190 = vmatpush.msra.mxu0 %v948
    %1191 = vmatpush.msra.mxu0 %v944
    %1192 = vmatpush.msra.mxu0 %v940
    %1193 = vmatpush.msra.mxu0 %v936
    %1194 = vmatpush.msra.mxu0 %v932
    %1195 = vmatpush.msra.mxu0 %v928
    %1196 = vmatpush.msra.mxu0 %v924
    %1197 = vmatpush.msra.mxu0 %v920
    %1198 = vmatpush.msra.mxu0 %v916
    %1199 = vmatmul.f32.gmra.mxu0 %v685
    %v1200 = vpop.f32.mrf.mxu0
    %v1201 = vadd.f32 %v1181, %v1200
    %1202 = vdwg.mxu0
    %1203 = vmatpush.msra.mxu0 %v913
    %1204 = vmatpush.msra.mxu0 %v909
    %1205 = vmatpush.msra.mxu0 %v905
    %1206 = vmatpush.msra.mxu0 %v901
    %1207 = vmatpush.msra.mxu0 %v897
    %1208 = vmatpush.msra.mxu0 %v893
    %1209 = vmatpush.msra.mxu0 %v889
    %1210 = vmatpush.msra.mxu0 %v885
    %1211 = vmatpush.msra.mxu0 %v881
    %1212 = vmatpush.msra.mxu0 %v877
    %1213 = vmatpush.msra.mxu0 %v873
    %1214 = vmatpush.msra.mxu0 %v869
    %1215 = vmatpush.msra.mxu0 %v865
    %1216 = vmatpush.msra.mxu0 %v861
    %1217 = vmatpush.msra.mxu0 %v857
    %1218 = vmatpush.msra.mxu0 %v853
    %1219 = vmatmul.f32.gmra.mxu0 %v764
    %v1220 = vpop.f32.mrf.mxu0
    %v1221 = vadd.f32 %v1101, %v1220
    %1222 = vdwg.mxu0
    %1223 = vmatpush.msra.mxu0 %v977
    %1224 = vmatpush.msra.mxu0 %v973
    %1225 = vmatpush.msra.mxu0 %v969
    %1226 = vmatpush.msra.mxu0 %v965
    %1227 = vmatpush.msra.mxu0 %v961
    %1228 = vmatpush.msra.mxu0 %v957
    %1229 = vmatpush.msra.mxu0 %v953
    %1230 = vmatpush.msra.mxu0 %v949
    %1231 = vmatpush.msra.mxu0 %v945
    %1232 = vmatpush.msra.mxu0 %v941
    %1233 = vmatpush.msra.mxu0 %v937
    %1234 = vmatpush.msra.mxu0 %v933
    %1235 = vmatpush.msra.mxu0 %v929
    %1236 = vmatpush.msra.mxu0 %v925
    %1237 = vmatpush.msra.mxu0 %v921
    %1238 = vmatpush.msra.mxu0 %v917
    %1239 = vmatmul.f32.gmra.mxu0 %v685
    %v1240 = vpop.f32.mrf.mxu0
    %v1241 = vadd.f32 %v1221, %v1240
    %1242 = vdwg.mxu0
    %1243 = vmatpush.msra.mxu0 %v914
    %1244 = vmatpush.msra.mxu0 %v910
    %1245 = vmatpush.msra.mxu0 %v906
    %1246 = vmatpush.msra.mxu0 %v902
    %1247 = vmatpush.msra.mxu0 %v898
    %1248 = vmatpush.msra.mxu0 %v894
    %1249 = vmatpush.msra.mxu0 %v890
    %1250 = vmatpush.msra.mxu0 %v886
    %1251 = vmatpush.msra.mxu0 %v882
    %1252 = vmatpush.msra.mxu0 %v878
    %1253 = vmatpush.msra.mxu0 %v874
    %1254 = vmatpush.msra.mxu0 %v870
    %1255 = vmatpush.msra.mxu0 %v866
    %1256 = vmatpush.msra.mxu0 %v862
    %1257 = vmatpush.msra.mxu0 %v858
    %1258 = vmatpush.msra.mxu0 %v854
    %1259 = vmatmul.f32.gmra.mxu0 %v764
    %v1260 = vpop.f32.mrf.mxu0
    %v1261 = vadd.f32 %v1121, %v1260
    %1262 = vdwg.mxu0
    %1263 = vmatpush.msra.mxu0 %v978
    %1264 = vmatpush.msra.mxu0 %v974
    %1265 = vmatpush.msra.mxu0 %v970
    %1266 = vmatpush.msra.mxu0 %v966
    %1267 = vmatpush.msra.mxu0 %v962
    %1268 = vmatpush.msra.mxu0 %v958
    %1269 = vmatpush.msra.mxu0 %v954
    %1270 = vmatpush.msra.mxu0 %v950
    %1271 = vmatpush.msra.mxu0 %v946
    %1272 = vmatpush.msra.mxu0 %v942
    %1273 = vmatpush.msra.mxu0 %v938
    %1274 = vmatpush.msra.mxu0 %v934
    %1275 = vmatpush.msra.mxu0 %v930
    %1276 = vmatpush.msra.mxu0 %v926
    %1277 = vmatpush.msra.mxu0 %v922
    %1278 = vmatpush.msra.mxu0 %v918
    %1279 = vmatmul.f32.gmra.mxu0 %v685
    %v1280 = vpop.f32.mrf.mxu0
    %v1281 = vadd.f32 %v1261, %v1280
    %1282 = vdwg.mxu0
    %v1283 = vld [vmem:[%s7] sm:$0xf]
    %v1285 = vperm.slane %v1283, 0
    %v1286 = vperm.slane %v1283, 1
    %v1287 = vperm.slane %v1283, 2
    %v1288 = vperm.slane %v1283, 3
    %v1293 = vadd.f32 %v1161, %v1285
    %v1294 = vadd.f32 %v1201, %v1286
    %v1295 = vadd.f32 %v1241, %v1287
    %v1296 = vadd.f32 %v1281, %v1288
    %v1297 = vxor.u32 %v1293, 2147483648
    %v1298 = vmul.f32 %v1297, 1.442695
    %v1299 = vpow.pop %v1298
    %v1300 = vadd.f32 %v1299, 1.0
    %v1301 = vrcp.pop %v1300
    %v1302 = vmul.f32 %v1300, %v1301
    %v1303 = vsub.f32 1.0, %v1302
    %v1304 = vmul.f32 %v1301, %v1303
    %v1305 = vadd.f32 %v1301, %v1304
    %vm1306 = vweird.f32 %v1300
    %vm1307 = vweird.f32 %v1301
    %vm1308 = vmor %vm1306, %vm1307
    %v1309 = vsel %vm1308, %v1301, %v1305
    %v1310 = vand.u32 2147483647, %v1300
    %vm1311 = vcmp.eq.f32.partialorder %v1310, 8.507059e+37
    %v1312 = vand.u32 %v1300, 2147483648
    %v1313 = vor.u32 1.1754944e-38, %v1312
    %v1314 = vsel %vm1311, %v1313, %v1309
    %v1315 = vmul.f32 1.0, %v1314
    %v1316 = vxor.u32 %v1294, 2147483648
    %v1317 = vmul.f32 %v1316, 1.442695
    %v1318 = vpow.pop %v1317
    %v1319 = vadd.f32 %v1318, 1.0
    %v1320 = vrcp.pop %v1319
    %v1321 = vmul.f32 %v1319, %v1320
    %v1322 = vsub.f32 1.0, %v1321
    %v1323 = vmul.f32 %v1320, %v1322
    %v1324 = vadd.f32 %v1320, %v1323
    %vm1325 = vweird.f32 %v1319
    %vm1326 = vweird.f32 %v1320
    %vm1327 = vmor %vm1325, %vm1326
    %v1328 = vsel %vm1327, %v1320, %v1324
    %v1329 = vand.u32 2147483647, %v1319
    %vm1330 = vcmp.eq.f32.partialorder %v1329, 8.507059e+37
    %v1331 = vand.u32 %v1319, 2147483648
    %v1332 = vor.u32 1.1754944e-38, %v1331
    %v1333 = vsel %vm1330, %v1332, %v1328
    %v1334 = vmul.f32 1.0, %v1333
    %v1335 = vtanh.pop %v1295
    %v1336 = vxor.u32 %v1296, 2147483648
    %v1337 = vmul.f32 %v1336, 1.442695
    %v1338 = vpow.pop %v1337
    %v1339 = vadd.f32 %v1338, 1.0
    %v1340 = vrcp.pop %v1339
    %v1341 = vmul.f32 %v1339, %v1340
    %v1342 = vsub.f32 1.0, %v1341
    %v1343 = vmul.f32 %v1340, %v1342
    %v1344 = vadd.f32 %v1340, %v1343
    %vm1345 = vweird.f32 %v1339
    %vm1346 = vweird.f32 %v1340
    %vm1347 = vmor %vm1345, %vm1346
    %v1348 = vsel %vm1347, %v1340, %v1344
    %v1349 = vand.u32 2147483647, %v1339
    %vm1350 = vcmp.eq.f32.partialorder %v1349, 8.507059e+37
    %v1351 = vand.u32 %v1339, 2147483648
    %v1352 = vor.u32 1.1754944e-38, %v1351
    %v1353 = vsel %vm1350, %v1352, %v1348
    %v1354 = vmul.f32 1.0, %v1353
    %v1355 = vmul.f32 %v1334, %v683
    %v1356 = vmul.f32 %v1315, %v1335
    %v1357 = vadd.f32 %v1355, %v1356
    %v1358 = vtanh.pop %v1357
    %v1359 = vmul.f32 %v1354, %v1358
    %v1360 = vld [vmem:[%s8] sm:$0xff]
    %v1361 = vld [vmem:[%s8 + $0x8] sm:$0xff]
    %v1362 = vld [vmem:[%s8 + $0x10] sm:$0xff]
    %v1363 = vld [vmem:[%s8 + $0x18] sm:$0xff]
    %v1364 = vld [vmem:[%s8 + $0x20] sm:$0xff]
    %v1365 = vld [vmem:[%s8 + $0x28] sm:$0xff]
    %v1366 = vld [vmem:[%s8 + $0x30] sm:$0xff]
    %v1367 = vld [vmem:[%s8 + $0x38] sm:$0xff]
    %v1368 = vld [vmem:[%s8 + $0x40] sm:$0xff]
    %v1369 = vld [vmem:[%s8 + $0x48] sm:$0xff]
    %v1370 = vld [vmem:[%s8 + $0x50] sm:$0xff]
    %v1371 = vld [vmem:[%s8 + $0x58] sm:$0xff]
    %v1372 = vld [vmem:[%s8 + $0x60] sm:$0xff]
    %v1373 = vld [vmem:[%s8 + $0x68] sm:$0xff]
    %v1374 = vld [vmem:[%s8 + $0x70] sm:$0xff]
    %v1375 = vld [vmem:[%s8 + $0x78] sm:$0xff]
    %v1376 = vld [vmem:[%s9] sm:$0x1]
    %v1378 = vperm.slane %v1376, 0
    %1380 = vmatpush.msra.mxu0 %v1375
    %1381 = vmatpush.msra.mxu0 %v1374
    %1382 = vmatpush.msra.mxu0 %v1373
    %1383 = vmatpush.msra.mxu0 %v1372
    %1384 = vmatpush.msra.mxu0 %v1371
    %1385 = vmatpush.msra.mxu0 %v1370
    %1386 = vmatpush.msra.mxu0 %v1369
    %1387 = vmatpush.msra.mxu0 %v1368
    %1388 = vmatpush.msra.mxu0 %v1367
    %1389 = vmatpush.msra.mxu0 %v1366
    %1390 = vmatpush.msra.mxu0 %v1365
    %1391 = vmatpush.msra.mxu0 %v1364
    %1392 = vmatpush.msra.mxu0 %v1363
    %1393 = vmatpush.msra.mxu0 %v1362
    %1394 = vmatpush.msra.mxu0 %v1361
    %1395 = vmatpush.msra.mxu0 %v1360
    %1396 = vmatmul.f32.gmra.mxu0 %v1359
    %v1397 = vpop.f32.mrf.mxu0
    %v1398 = vadd.f32 %v1378, %v1397
    %1399 = vdwg.mxu0
    %s1400 = scalar_lea.vmem %s10, 16
    %1401 = vst [vmem:[%s1400] sm:$0xff] %v1398
    %1402 = vmax.xlane.f32.xlu0 %v1398
    %v1403 = vpop.xlane.xlu0 %1402
    %vm1404 = vcmp.eq.f32.partialorder %v1398, %v1403
    %v1405 = vsel %vm1404, %v83, 128
    %v1406 = vand.u32 %v1405, 65535
    %v1407 = vshra.s32 %v1405, 16
    %v1408 = vcvt.s32.f32 %v1406
    %v1409 = vcvt.s32.f32 %v1407
    %1410 = vmin.xlane.f32.xlu0 %v1409
    %v1411 = vpop.xlane.xlu0 %1410
    %vm1412 = vcmp.eq.f32.partialorder %v1409, %v1411
    %v1413 = vsel %vm1412, %v1408, inf
    %1414 = vmin.xlane.f32.xlu0 %v1413
    %v1415 = vpop.xlane.xlu0 %1414
    %v1416 = vcvt.f32.s32 %v1415
    %v1417 = vcvt.f32.s32 %v1411
    %v1418 = vshll.u32 %v1417, 16
    %v1419 = vadd.s32 %v1418, %v1416
    %vm1420 = vcmp.eq.s32.totalorder %v83, %v1419
    %v1421 = vsel %vm1420, 1, 0
    %v1422 = vcvt.s32.f32 %v1421
    %s1423 = sld [smem:[#allocation2 + $0x2]]
    %s1424 = scvt.s32.f32 %s1423
    %s1425 = scalar_lea.vmem %s1, 16
    %v1426 = vld [vmem:[%s1425] sm:$0xff]
    %1427 = vset.pattern.permute.xlu0 0
    %1428 = vperm.xlu0 %1427, %v1426
    %v1429 = vpop.permute.xlu0 %1428
    %vm1430 = vcmp.eq.s32.totalorder %v83, %v1429
    %v1431 = vsel %vm1430, 1, 0
    %v1432 = vcvt.s32.f32 %v1431
    %v1433 = vstv %s1424
    %v1434 = vmul.f32 %v1433, %v1432
    %s1435 = ssub.f32 1.0, %s1424
    %v1436 = vstv %s1435
    %v1437 = vmul.f32 %v1436, %v1422
    %v1438 = vadd.f32 %v1434, %v1437
    %v1439 = vmul.f32 %v65, %v1359
    %v1440 = vmul.f32 %v66, %v1359
    %v1441 = vmul.f32 %v67, %v1359
    %v1442 = vmul.f32 %v68, %v1359
    %v1443 = vmul.f32 %v69, %v1359
    %v1444 = vmul.f32 %v70, %v1359
    %v1445 = vmul.f32 %v71, %v1359
    %v1446 = vmul.f32 %v72, %v1359
    %1447 = vadd.xlane.f32.xlu0 %v1439
    %v1448 = vpop.xlane.xlu0 %1447
    %1449 = vadd.xlane.f32.xlu0 %v1440
    %v1450 = vpop.xlane.xlu0 %1449
    %1451 = vadd.xlane.f32.xlu0 %v1441
    %v1452 = vpop.xlane.xlu0 %1451
    %1453 = vadd.xlane.f32.xlu0 %v1442
    %v1454 = vpop.xlane.xlu0 %1453
    %1455 = vadd.xlane.f32.xlu0 %v1443
    %v1456 = vpop.xlane.xlu0 %1455
    %1457 = vadd.xlane.f32.xlu0 %v1444
    %v1458 = vpop.xlane.xlu0 %1457
    %1459 = vadd.xlane.f32.xlu0 %v1445
    %v1460 = vpop.xlane.xlu0 %1459
    %1461 = vadd.xlane.f32.xlu0 %v1446
    %v1462 = vpop.xlane.xlu0 %1461
    %v1463 = vmax.f32 %v1448, %v1456
    %v1464 = vmax.f32 %v1450, %v1458
    %v1465 = vmax.f32 %v1452, %v1460
    %v1466 = vmax.f32 %v1454, %v1462
    %v1467 = vmax.f32 %v1463, %v1464
    %v1468 = vmax.f32 %v1465, %v1466
    %v1469 = vmax.f32 %v1467, %v1468
    %v1470 = vsub.f32 %v1448, %v1469
    %v1471 = vsub.f32 %v1450, %v1469
    %v1472 = vsub.f32 %v1452, %v1469
    %v1473 = vsub.f32 %v1454, %v1469
    %v1474 = vsub.f32 %v1456, %v1469
    %v1475 = vsub.f32 %v1458, %v1469
    %v1476 = vsub.f32 %v1460, %v1469
    %v1477 = vsub.f32 %v1462, %v1469
    %v1478 = vmul.f32 %v1470, 1.442695
    %v1479 = vpow.pop %v1478
    %v1480 = vmul.f32 %v1471, 1.442695
    %v1481 = vpow.pop %v1480
    %v1482 = vmul.f32 %v1472, 1.442695
    %v1483 = vpow.pop %v1482
    %v1484 = vmul.f32 %v1473, 1.442695
    %v1485 = vpow.pop %v1484
    %v1486 = vmul.f32 %v1474, 1.442695
    %v1487 = vpow.pop %v1486
    %v1488 = vmul.f32 %v1475, 1.442695
    %v1489 = vpow.pop %v1488
    %v1490 = vmul.f32 %v1476, 1.442695
    %v1491 = vpow.pop %v1490
    %v1492 = vmul.f32 %v1477, 1.442695
    %v1493 = vpow.pop %v1492
    %v1494 = vadd.f32 %v1479, %v1481
    %v1495 = vadd.f32 %v1494, %v1483
    %v1496 = vadd.f32 %v1495, %v1485
    %v1497 = vadd.f32 %v1496, %v1487
    %v1498 = vadd.f32 %v1497, %v1489
    %v1499 = vadd.f32 %v1498, %v1491
    %v1500 = vadd.f32 %v1499, %v1493
    %v1501 = vrcp.pop %v1500
    %v1502 = vmul.f32 %v1479, %v1501
    %v1503 = vmul.f32 %v1481, %v1501
    %v1504 = vmul.f32 %v1483, %v1501
    %v1505 = vmul.f32 %v1485, %v1501
    %v1506 = vmul.f32 %v1487, %v1501
    %v1507 = vmul.f32 %v1489, %v1501
    %v1508 = vmul.f32 %v1491, %v1501
    %v1509 = vmul.f32 %v1493, %v1501
    %v1510 = vmul.f32 %v1502, %v65
    %v1511 = vmul.f32 %v1503, %v66
    %v1512 = vmul.f32 %v1504, %v67
    %v1513 = vmul.f32 %v1505, %v68
    %v1514 = vmul.f32 %v1506, %v69
    %v1515 = vmul.f32 %v1507, %v70
    %v1516 = vmul.f32 %v1508, %v71
    %v1517 = vmul.f32 %v1509, %v72
    %v1518 = vadd.f32 %v1510, %v1511
    %v1519 = vadd.f32 %v1518, %v1512
    %v1520 = vadd.f32 %v1519, %v1513
    %v1521 = vadd.f32 %v1520, %v1514
    %v1522 = vadd.f32 %v1521, %v1515
    %v1523 = vadd.f32 %v1522, %v1516
    %v1524 = vadd.f32 %v1523, %v1517
    %v1525 = vld [vmem:[%s5] sm:$0xff]
    %v1526 = vld [vmem:[%s5 + $0x8] sm:$0xff]
    %v1527 = vld [vmem:[%s5 + $0x10] sm:$0xff]
    %v1528 = vld [vmem:[%s5 + $0x18] sm:$0xff]
    %v1529 = vld [vmem:[%s5 + $0x20] sm:$0xff]
    %v1530 = vld [vmem:[%s5 + $0x28] sm:$0xff]
    %v1531 = vld [vmem:[%s5 + $0x30] sm:$0xff]
    %v1532 = vld [vmem:[%s5 + $0x38] sm:$0xff]
    %v1533 = vld [vmem:[%s5 + $0x40] sm:$0xff]
    %v1534 = vld [vmem:[%s5 + $0x48] sm:$0xff]
    %v1535 = vld [vmem:[%s5 + $0x50] sm:$0xff]
    %v1536 = vld [vmem:[%s5 + $0x58] sm:$0xff]
    %v1537 = vld [vmem:[%s5 + $0x60] sm:$0xff]
    %v1538 = vld [vmem:[%s5 + $0x68] sm:$0xff]
    %v1539 = vld [vmem:[%s5 + $0x70] sm:$0xff]
    %v1540 = vld [vmem:[%s5 + $0x78] sm:$0xff]
    %v1541 = vld [vmem:[%s5 + $0x80] sm:$0xff]
    %v1542 = vld [vmem:[%s5 + $0x88] sm:$0xff]
    %v1543 = vld [vmem:[%s5 + $0x90] sm:$0xff]
    %v1544 = vld [vmem:[%s5 + $0x98] sm:$0xff]
    %v1545 = vld [vmem:[%s5 + $0xa0] sm:$0xff]
    %v1546 = vld [vmem:[%s5 + $0xa8] sm:$0xff]
    %v1547 = vld [vmem:[%s5 + $0xb0] sm:$0xff]
    %v1548 = vld [vmem:[%s5 + $0xb8] sm:$0xff]
    %v1549 = vld [vmem:[%s5 + $0xc0] sm:$0xff]
    %v1550 = vld [vmem:[%s5 + $0xc8] sm:$0xff]
    %v1551 = vld [vmem:[%s5 + $0xd0] sm:$0xff]
    %v1552 = vld [vmem:[%s5 + $0xd8] sm:$0xff]
    %v1553 = vld [vmem:[%s5 + $0xe0] sm:$0xff]
    %v1554 = vld [vmem:[%s5 + $0xe8] sm:$0xff]
    %v1555 = vld [vmem:[%s5 + $0xf0] sm:$0xff]
    %v1556 = vld [vmem:[%s5 + $0xf8] sm:$0xff]
    %v1557 = vld [vmem:[%s5 + $0x100] sm:$0xff]
    %v1558 = vld [vmem:[%s5 + $0x108] sm:$0xff]
    %v1559 = vld [vmem:[%s5 + $0x110] sm:$0xff]
    %v1560 = vld [vmem:[%s5 + $0x118] sm:$0xff]
    %v1561 = vld [vmem:[%s5 + $0x120] sm:$0xff]
    %v1562 = vld [vmem:[%s5 + $0x128] sm:$0xff]
    %v1563 = vld [vmem:[%s5 + $0x130] sm:$0xff]
    %v1564 = vld [vmem:[%s5 + $0x138] sm:$0xff]
    %v1565 = vld [vmem:[%s5 + $0x140] sm:$0xff]
    %v1566 = vld [vmem:[%s5 + $0x148] sm:$0xff]
    %v1567 = vld [vmem:[%s5 + $0x150] sm:$0xff]
    %v1568 = vld [vmem:[%s5 + $0x158] sm:$0xff]
    %v1569 = vld [vmem:[%s5 + $0x160] sm:$0xff]
    %v1570 = vld [vmem:[%s5 + $0x168] sm:$0xff]
    %v1571 = vld [vmem:[%s5 + $0x170] sm:$0xff]
    %v1572 = vld [vmem:[%s5 + $0x178] sm:$0xff]
    %v1573 = vld [vmem:[%s5 + $0x180] sm:$0xff]
    %v1574 = vld [vmem:[%s5 + $0x188] sm:$0xff]
    %v1575 = vld [vmem:[%s5 + $0x190] sm:$0xff]
    %v1576 = vld [vmem:[%s5 + $0x198] sm:$0xff]
    %v1577 = vld [vmem:[%s5 + $0x1a0] sm:$0xff]
    %v1578 = vld [vmem:[%s5 + $0x1a8] sm:$0xff]
    %v1579 = vld [vmem:[%s5 + $0x1b0] sm:$0xff]
    %v1580 = vld [vmem:[%s5 + $0x1b8] sm:$0xff]
    %v1581 = vld [vmem:[%s5 + $0x1c0] sm:$0xff]
    %v1582 = vld [vmem:[%s5 + $0x1c8] sm:$0xff]
    %v1583 = vld [vmem:[%s5 + $0x1d0] sm:$0xff]
    %v1584 = vld [vmem:[%s5 + $0x1d8] sm:$0xff]
    %v1585 = vld [vmem:[%s5 + $0x1e0] sm:$0xff]
    %v1586 = vld [vmem:[%s5 + $0x1e8] sm:$0xff]
    %v1587 = vld [vmem:[%s5 + $0x1f0] sm:$0xff]
    %v1588 = vld [vmem:[%s5 + $0x1f8] sm:$0xff]
    %v1589 = vld [vmem:[%s5 + $0x200] sm:$0xff]
    %v1590 = vld [vmem:[%s5 + $0x208] sm:$0xff]
    %v1591 = vld [vmem:[%s5 + $0x210] sm:$0xff]
    %v1592 = vld [vmem:[%s5 + $0x218] sm:$0xff]
    %v1593 = vld [vmem:[%s5 + $0x220] sm:$0xff]
    %v1594 = vld [vmem:[%s5 + $0x228] sm:$0xff]
    %v1595 = vld [vmem:[%s5 + $0x230] sm:$0xff]
    %v1596 = vld [vmem:[%s5 + $0x238] sm:$0xff]
    %v1597 = vld [vmem:[%s5 + $0x240] sm:$0xff]
    %v1598 = vld [vmem:[%s5 + $0x248] sm:$0xff]
    %v1599 = vld [vmem:[%s5 + $0x250] sm:$0xff]
    %v1600 = vld [vmem:[%s5 + $0x258] sm:$0xff]
    %v1601 = vld [vmem:[%s5 + $0x260] sm:$0xff]
    %v1602 = vld [vmem:[%s5 + $0x268] sm:$0xff]
    %v1603 = vld [vmem:[%s5 + $0x270] sm:$0xff]
    %v1604 = vld [vmem:[%s5 + $0x278] sm:$0xff]
    %v1605 = vld [vmem:[%s5 + $0x280] sm:$0xff]
    %v1606 = vld [vmem:[%s5 + $0x288] sm:$0xff]
    %v1607 = vld [vmem:[%s5 + $0x290] sm:$0xff]
    %v1608 = vld [vmem:[%s5 + $0x298] sm:$0xff]
    %v1609 = vld [vmem:[%s5 + $0x2a0] sm:$0xff]
    %v1610 = vld [vmem:[%s5 + $0x2a8] sm:$0xff]
    %v1611 = vld [vmem:[%s5 + $0x2b0] sm:$0xff]
    %v1612 = vld [vmem:[%s5 + $0x2b8] sm:$0xff]
    %v1613 = vld [vmem:[%s5 + $0x2c0] sm:$0xff]
    %v1614 = vld [vmem:[%s5 + $0x2c8] sm:$0xff]
    %v1615 = vld [vmem:[%s5 + $0x2d0] sm:$0xff]
    %v1616 = vld [vmem:[%s5 + $0x2d8] sm:$0xff]
    %v1617 = vld [vmem:[%s5 + $0x2e0] sm:$0xff]
    %v1618 = vld [vmem:[%s5 + $0x2e8] sm:$0xff]
    %v1619 = vld [vmem:[%s5 + $0x2f0] sm:$0xff]
    %v1620 = vld [vmem:[%s5 + $0x2f8] sm:$0xff]
    %v1621 = vld [vmem:[%s5 + $0x300] sm:$0xff]
    %v1622 = vld [vmem:[%s5 + $0x308] sm:$0xff]
    %v1623 = vld [vmem:[%s5 + $0x310] sm:$0xff]
    %v1624 = vld [vmem:[%s5 + $0x318] sm:$0xff]
    %v1625 = vld [vmem:[%s5 + $0x320] sm:$0xff]
    %v1626 = vld [vmem:[%s5 + $0x328] sm:$0xff]
    %v1627 = vld [vmem:[%s5 + $0x330] sm:$0xff]
    %v1628 = vld [vmem:[%s5 + $0x338] sm:$0xff]
    %v1629 = vld [vmem:[%s5 + $0x340] sm:$0xff]
    %v1630 = vld [vmem:[%s5 + $0x348] sm:$0xff]
    %v1631 = vld [vmem:[%s5 + $0x350] sm:$0xff]
    %v1632 = vld [vmem:[%s5 + $0x358] sm:$0xff]
    %v1633 = vld [vmem:[%s5 + $0x360] sm:$0xff]
    %v1634 = vld [vmem:[%s5 + $0x368] sm:$0xff]
    %v1635 = vld [vmem:[%s5 + $0x370] sm:$0xff]
    %v1636 = vld [vmem:[%s5 + $0x378] sm:$0xff]
    %v1637 = vld [vmem:[%s5 + $0x380] sm:$0xff]
    %v1638 = vld [vmem:[%s5 + $0x388] sm:$0xff]
    %v1639 = vld [vmem:[%s5 + $0x390] sm:$0xff]
    %v1640 = vld [vmem:[%s5 + $0x398] sm:$0xff]
    %v1641 = vld [vmem:[%s5 + $0x3a0] sm:$0xff]
    %v1642 = vld [vmem:[%s5 + $0x3a8] sm:$0xff]
    %v1643 = vld [vmem:[%s5 + $0x3b0] sm:$0xff]
    %v1644 = vld [vmem:[%s5 + $0x3b8] sm:$0xff]
    %v1645 = vld [vmem:[%s5 + $0x3c0] sm:$0xff]
    %v1646 = vld [vmem:[%s5 + $0x3c8] sm:$0xff]
    %v1647 = vld [vmem:[%s5 + $0x3d0] sm:$0xff]
    %v1648 = vld [vmem:[%s5 + $0x3d8] sm:$0xff]
    %v1649 = vld [vmem:[%s5 + $0x3e0] sm:$0xff]
    %v1650 = vld [vmem:[%s5 + $0x3e8] sm:$0xff]
    %v1651 = vld [vmem:[%s5 + $0x3f0] sm:$0xff]
    %v1652 = vld [vmem:[%s5 + $0x3f8] sm:$0xff]
    %v1653 = vld [vmem:[%s6] sm:$0xff]
    %v1654 = vld [vmem:[%s6 + $0x8] sm:$0xff]
    %v1655 = vld [vmem:[%s6 + $0x10] sm:$0xff]
    %v1656 = vld [vmem:[%s6 + $0x18] sm:$0xff]
    %v1657 = vld [vmem:[%s6 + $0x20] sm:$0xff]
    %v1658 = vld [vmem:[%s6 + $0x28] sm:$0xff]
    %v1659 = vld [vmem:[%s6 + $0x30] sm:$0xff]
    %v1660 = vld [vmem:[%s6 + $0x38] sm:$0xff]
    %v1661 = vld [vmem:[%s6 + $0x40] sm:$0xff]
    %v1662 = vld [vmem:[%s6 + $0x48] sm:$0xff]
    %v1663 = vld [vmem:[%s6 + $0x50] sm:$0xff]
    %v1664 = vld [vmem:[%s6 + $0x58] sm:$0xff]
    %v1665 = vld [vmem:[%s6 + $0x60] sm:$0xff]
    %v1666 = vld [vmem:[%s6 + $0x68] sm:$0xff]
    %v1667 = vld [vmem:[%s6 + $0x70] sm:$0xff]
    %v1668 = vld [vmem:[%s6 + $0x78] sm:$0xff]
    %v1669 = vld [vmem:[%s6 + $0x80] sm:$0xff]
    %v1670 = vld [vmem:[%s6 + $0x88] sm:$0xff]
    %v1671 = vld [vmem:[%s6 + $0x90] sm:$0xff]
    %v1672 = vld [vmem:[%s6 + $0x98] sm:$0xff]
    %v1673 = vld [vmem:[%s6 + $0xa0] sm:$0xff]
    %v1674 = vld [vmem:[%s6 + $0xa8] sm:$0xff]
    %v1675 = vld [vmem:[%s6 + $0xb0] sm:$0xff]
    %v1676 = vld [vmem:[%s6 + $0xb8] sm:$0xff]
    %v1677 = vld [vmem:[%s6 + $0xc0] sm:$0xff]
    %v1678 = vld [vmem:[%s6 + $0xc8] sm:$0xff]
    %v1679 = vld [vmem:[%s6 + $0xd0] sm:$0xff]
    %v1680 = vld [vmem:[%s6 + $0xd8] sm:$0xff]
    %v1681 = vld [vmem:[%s6 + $0xe0] sm:$0xff]
    %v1682 = vld [vmem:[%s6 + $0xe8] sm:$0xff]
    %v1683 = vld [vmem:[%s6 + $0xf0] sm:$0xff]
    %v1684 = vld [vmem:[%s6 + $0xf8] sm:$0xff]
    %v1685 = vld [vmem:[%s6 + $0x100] sm:$0xff]
    %v1686 = vld [vmem:[%s6 + $0x108] sm:$0xff]
    %v1687 = vld [vmem:[%s6 + $0x110] sm:$0xff]
    %v1688 = vld [vmem:[%s6 + $0x118] sm:$0xff]
    %v1689 = vld [vmem:[%s6 + $0x120] sm:$0xff]
    %v1690 = vld [vmem:[%s6 + $0x128] sm:$0xff]
    %v1691 = vld [vmem:[%s6 + $0x130] sm:$0xff]
    %v1692 = vld [vmem:[%s6 + $0x138] sm:$0xff]
    %v1693 = vld [vmem:[%s6 + $0x140] sm:$0xff]
    %v1694 = vld [vmem:[%s6 + $0x148] sm:$0xff]
    %v1695 = vld [vmem:[%s6 + $0x150] sm:$0xff]
    %v1696 = vld [vmem:[%s6 + $0x158] sm:$0xff]
    %v1697 = vld [vmem:[%s6 + $0x160] sm:$0xff]
    %v1698 = vld [vmem:[%s6 + $0x168] sm:$0xff]
    %v1699 = vld [vmem:[%s6 + $0x170] sm:$0xff]
    %v1700 = vld [vmem:[%s6 + $0x178] sm:$0xff]
    %v1701 = vld [vmem:[%s6 + $0x180] sm:$0xff]
    %v1702 = vld [vmem:[%s6 + $0x188] sm:$0xff]
    %v1703 = vld [vmem:[%s6 + $0x190] sm:$0xff]
    %v1704 = vld [vmem:[%s6 + $0x198] sm:$0xff]
    %v1705 = vld [vmem:[%s6 + $0x1a0] sm:$0xff]
    %v1706 = vld [vmem:[%s6 + $0x1a8] sm:$0xff]
    %v1707 = vld [vmem:[%s6 + $0x1b0] sm:$0xff]
    %v1708 = vld [vmem:[%s6 + $0x1b8] sm:$0xff]
    %v1709 = vld [vmem:[%s6 + $0x1c0] sm:$0xff]
    %v1710 = vld [vmem:[%s6 + $0x1c8] sm:$0xff]
    %v1711 = vld [vmem:[%s6 + $0x1d0] sm:$0xff]
    %v1712 = vld [vmem:[%s6 + $0x1d8] sm:$0xff]
    %v1713 = vld [vmem:[%s6 + $0x1e0] sm:$0xff]
    %v1714 = vld [vmem:[%s6 + $0x1e8] sm:$0xff]
    %v1715 = vld [vmem:[%s6 + $0x1f0] sm:$0xff]
    %v1716 = vld [vmem:[%s6 + $0x1f8] sm:$0xff]
    %1717 = vmatpush.msra.mxu0 %v1713
    %1718 = vmatpush.msra.mxu0 %v1709
    %1719 = vmatpush.msra.mxu0 %v1705
    %1720 = vmatpush.msra.mxu0 %v1701
    %1721 = vmatpush.msra.mxu0 %v1697
    %1722 = vmatpush.msra.mxu0 %v1693
    %1723 = vmatpush.msra.mxu0 %v1689
    %1724 = vmatpush.msra.mxu0 %v1685
    %1725 = vmatpush.msra.mxu0 %v1681
    %1726 = vmatpush.msra.mxu0 %v1677
    %1727 = vmatpush.msra.mxu0 %v1673
    %1728 = vmatpush.msra.mxu0 %v1669
    %1729 = vmatpush.msra.mxu0 %v1665
    %1730 = vmatpush.msra.mxu0 %v1661
    %1731 = vmatpush.msra.mxu0 %v1657
    %1732 = vmatpush.msra.mxu0 %v1653
    %1733 = vmatmul.f32.gmra.mxu0 %v1524
    %v1734 = vpop.f32.mrf.mxu0
    %v1735 = vadd.f32 0.0, %v1734
    %1736 = vdwg.mxu0
    %1737 = vmatpush.msra.mxu0 %v1714
    %1738 = vmatpush.msra.mxu0 %v1710
    %1739 = vmatpush.msra.mxu0 %v1706
    %1740 = vmatpush.msra.mxu0 %v1702
    %1741 = vmatpush.msra.mxu0 %v1698
    %1742 = vmatpush.msra.mxu0 %v1694
    %1743 = vmatpush.msra.mxu0 %v1690
    %1744 = vmatpush.msra.mxu0 %v1686
    %1745 = vmatpush.msra.mxu0 %v1682
    %1746 = vmatpush.msra.mxu0 %v1678
    %1747 = vmatpush.msra.mxu0 %v1674
    %1748 = vmatpush.msra.mxu0 %v1670
    %1749 = vmatpush.msra.mxu0 %v1666
    %1750 = vmatpush.msra.mxu0 %v1662
    %1751 = vmatpush.msra.mxu0 %v1658
    %1752 = vmatpush.msra.mxu0 %v1654
    %1753 = vmatmul.f32.gmra.mxu0 %v1524
    %v1754 = vpop.f32.mrf.mxu0
    %v1755 = vadd.f32 0.0, %v1754
    %1756 = vdwg.mxu0
    %1757 = vmatpush.msra.mxu0 %v1715
    %1758 = vmatpush.msra.mxu0 %v1711
    %1759 = vmatpush.msra.mxu0 %v1707
    %1760 = vmatpush.msra.mxu0 %v1703
    %1761 = vmatpush.msra.mxu0 %v1699
    %1762 = vmatpush.msra.mxu0 %v1695
    %1763 = vmatpush.msra.mxu0 %v1691
    %1764 = vmatpush.msra.mxu0 %v1687
    %1765 = vmatpush.msra.mxu0 %v1683
    %1766 = vmatpush.msra.mxu0 %v1679
    %1767 = vmatpush.msra.mxu0 %v1675
    %1768 = vmatpush.msra.mxu0 %v1671
    %1769 = vmatpush.msra.mxu0 %v1667
    %1770 = vmatpush.msra.mxu0 %v1663
    %1771 = vmatpush.msra.mxu0 %v1659
    %1772 = vmatpush.msra.mxu0 %v1655
    %1773 = vmatmul.f32.gmra.mxu0 %v1524
    %v1774 = vpop.f32.mrf.mxu0
    %v1775 = vadd.f32 0.0, %v1774
    %1776 = vdwg.mxu0
    %1777 = vmatpush.msra.mxu0 %v1716
    %1778 = vmatpush.msra.mxu0 %v1712
    %1779 = vmatpush.msra.mxu0 %v1708
    %1780 = vmatpush.msra.mxu0 %v1704
    %1781 = vmatpush.msra.mxu0 %v1700
    %1782 = vmatpush.msra.mxu0 %v1696
    %1783 = vmatpush.msra.mxu0 %v1692
    %1784 = vmatpush.msra.mxu0 %v1688
    %1785 = vmatpush.msra.mxu0 %v1684
    %1786 = vmatpush.msra.mxu0 %v1680
    %1787 = vmatpush.msra.mxu0 %v1676
    %1788 = vmatpush.msra.mxu0 %v1672
    %1789 = vmatpush.msra.mxu0 %v1668
    %1790 = vmatpush.msra.mxu0 %v1664
    %1791 = vmatpush.msra.mxu0 %v1660
    %1792 = vmatpush.msra.mxu0 %v1656
    %1793 = vmatmul.f32.gmra.mxu0 %v1524
    %v1794 = vpop.f32.mrf.mxu0
    %v1795 = vadd.f32 0.0, %v1794
    %1796 = vdwg.mxu0
    %1797 = vmatpush.msra.mxu0 %v1585
    %1798 = vmatpush.msra.mxu0 %v1581
    %1799 = vmatpush.msra.mxu0 %v1577
    %1800 = vmatpush.msra.mxu0 %v1573
    %1801 = vmatpush.msra.mxu0 %v1569
    %1802 = vmatpush.msra.mxu0 %v1565
    %1803 = vmatpush.msra.mxu0 %v1561
    %1804 = vmatpush.msra.mxu0 %v1557
    %1805 = vmatpush.msra.mxu0 %v1553
    %1806 = vmatpush.msra.mxu0 %v1549
    %1807 = vmatpush.msra.mxu0 %v1545
    %1808 = vmatpush.msra.mxu0 %v1541
    %1809 = vmatpush.msra.mxu0 %v1537
    %1810 = vmatpush.msra.mxu0 %v1533
    %1811 = vmatpush.msra.mxu0 %v1529
    %1812 = vmatpush.msra.mxu0 %v1525
    %1813 = vmatmul.f32.gmra.mxu0 %v1438
    %v1814 = vpop.f32.mrf.mxu0
    %v1815 = vadd.f32 %v1735, %v1814
    %1816 = vdwg.mxu0
    %1817 = vmatpush.msra.mxu0 %v1649
    %1818 = vmatpush.msra.mxu0 %v1645
    %1819 = vmatpush.msra.mxu0 %v1641
    %1820 = vmatpush.msra.mxu0 %v1637
    %1821 = vmatpush.msra.mxu0 %v1633
    %1822 = vmatpush.msra.mxu0 %v1629
    %1823 = vmatpush.msra.mxu0 %v1625
    %1824 = vmatpush.msra.mxu0 %v1621
    %1825 = vmatpush.msra.mxu0 %v1617
    %1826 = vmatpush.msra.mxu0 %v1613
    %1827 = vmatpush.msra.mxu0 %v1609
    %1828 = vmatpush.msra.mxu0 %v1605
    %1829 = vmatpush.msra.mxu0 %v1601
    %1830 = vmatpush.msra.mxu0 %v1597
    %1831 = vmatpush.msra.mxu0 %v1593
    %1832 = vmatpush.msra.mxu0 %v1589
    %1833 = vmatmul.f32.gmra.mxu0 %v1359
    %v1834 = vpop.f32.mrf.mxu0
    %v1835 = vadd.f32 %v1815, %v1834
    %1836 = vdwg.mxu0
    %1837 = vmatpush.msra.mxu0 %v1586
    %1838 = vmatpush.msra.mxu0 %v1582
    %1839 = vmatpush.msra.mxu0 %v1578
    %1840 = vmatpush.msra.mxu0 %v1574
    %1841 = vmatpush.msra.mxu0 %v1570
    %1842 = vmatpush.msra.mxu0 %v1566
    %1843 = vmatpush.msra.mxu0 %v1562
    %1844 = vmatpush.msra.mxu0 %v1558
    %1845 = vmatpush.msra.mxu0 %v1554
    %1846 = vmatpush.msra.mxu0 %v1550
    %1847 = vmatpush.msra.mxu0 %v1546
    %1848 = vmatpush.msra.mxu0 %v1542
    %1849 = vmatpush.msra.mxu0 %v1538
    %1850 = vmatpush.msra.mxu0 %v1534
    %1851 = vmatpush.msra.mxu0 %v1530
    %1852 = vmatpush.msra.mxu0 %v1526
    %1853 = vmatmul.f32.gmra.mxu0 %v1438
    %v1854 = vpop.f32.mrf.mxu0
    %v1855 = vadd.f32 %v1755, %v1854
    %1856 = vdwg.mxu0
    %1857 = vmatpush.msra.mxu0 %v1650
    %1858 = vmatpush.msra.mxu0 %v1646
    %1859 = vmatpush.msra.mxu0 %v1642
    %1860 = vmatpush.msra.mxu0 %v1638
    %1861 = vmatpush.msra.mxu0 %v1634
    %1862 = vmatpush.msra.mxu0 %v1630
    %1863 = vmatpush.msra.mxu0 %v1626
    %1864 = vmatpush.msra.mxu0 %v1622
    %1865 = vmatpush.msra.mxu0 %v1618
    %1866 = vmatpush.msra.mxu0 %v1614
    %1867 = vmatpush.msra.mxu0 %v1610
    %1868 = vmatpush.msra.mxu0 %v1606
    %1869 = vmatpush.msra.mxu0 %v1602
    %1870 = vmatpush.msra.mxu0 %v1598
    %1871 = vmatpush.msra.mxu0 %v1594
    %1872 = vmatpush.msra.mxu0 %v1590
    %1873 = vmatmul.f32.gmra.mxu0 %v1359
    %v1874 = vpop.f32.mrf.mxu0
    %v1875 = vadd.f32 %v1855, %v1874
    %1876 = vdwg.mxu0
    %1877 = vmatpush.msra.mxu0 %v1587
    %1878 = vmatpush.msra.mxu0 %v1583
    %1879 = vmatpush.msra.mxu0 %v1579
    %1880 = vmatpush.msra.mxu0 %v1575
    %1881 = vmatpush.msra.mxu0 %v1571
    %1882 = vmatpush.msra.mxu0 %v1567
    %1883 = vmatpush.msra.mxu0 %v1563
    %1884 = vmatpush.msra.mxu0 %v1559
    %1885 = vmatpush.msra.mxu0 %v1555
    %1886 = vmatpush.msra.mxu0 %v1551
    %1887 = vmatpush.msra.mxu0 %v1547
    %1888 = vmatpush.msra.mxu0 %v1543
    %1889 = vmatpush.msra.mxu0 %v1539
    %1890 = vmatpush.msra.mxu0 %v1535
    %1891 = vmatpush.msra.mxu0 %v1531
    %1892 = vmatpush.msra.mxu0 %v1527
    %1893 = vmatmul.f32.gmra.mxu0 %v1438
    %v1894 = vpop.f32.mrf.mxu0
    %v1895 = vadd.f32 %v1775, %v1894
    %1896 = vdwg.mxu0
    %1897 = vmatpush.msra.mxu0 %v1651
    %1898 = vmatpush.msra.mxu0 %v1647
    %1899 = vmatpush.msra.mxu0 %v1643
    %1900 = vmatpush.msra.mxu0 %v1639
    %1901 = vmatpush.msra.mxu0 %v1635
    %1902 = vmatpush.msra.mxu0 %v1631
    %1903 = vmatpush.msra.mxu0 %v1627
    %1904 = vmatpush.msra.mxu0 %v1623
    %1905 = vmatpush.msra.mxu0 %v1619
    %1906 = vmatpush.msra.mxu0 %v1615
    %1907 = vmatpush.msra.mxu0 %v1611
    %1908 = vmatpush.msra.mxu0 %v1607
    %1909 = vmatpush.msra.mxu0 %v1603
    %1910 = vmatpush.msra.mxu0 %v1599
    %1911 = vmatpush.msra.mxu0 %v1595
    %1912 = vmatpush.msra.mxu0 %v1591
    %1913 = vmatmul.f32.gmra.mxu0 %v1359
    %v1914 = vpop.f32.mrf.mxu0
    %v1915 = vadd.f32 %v1895, %v1914
    %1916 = vdwg.mxu0
    %1917 = vmatpush.msra.mxu0 %v1588
    %1918 = vmatpush.msra.mxu0 %v1584
    %1919 = vmatpush.msra.mxu0 %v1580
    %1920 = vmatpush.msra.mxu0 %v1576
    %1921 = vmatpush.msra.mxu0 %v1572
    %1922 = vmatpush.msra.mxu0 %v1568
    %1923 = vmatpush.msra.mxu0 %v1564
    %1924 = vmatpush.msra.mxu0 %v1560
    %1925 = vmatpush.msra.mxu0 %v1556
    %1926 = vmatpush.msra.mxu0 %v1552
    %1927 = vmatpush.msra.mxu0 %v1548
    %1928 = vmatpush.msra.mxu0 %v1544
    %1929 = vmatpush.msra.mxu0 %v1540
    %1930 = vmatpush.msra.mxu0 %v1536
    %1931 = vmatpush.msra.mxu0 %v1532
    %1932 = vmatpush.msra.mxu0 %v1528
    %1933 = vmatmul.f32.gmra.mxu0 %v1438
    %v1934 = vpop.f32.mrf.mxu0
    %v1935 = vadd.f32 %v1795, %v1934
    %1936 = vdwg.mxu0
    %1937 = vmatpush.msra.mxu0 %v1652
    %1938 = vmatpush.msra.mxu0 %v1648
    %1939 = vmatpush.msra.mxu0 %v1644
    %1940 = vmatpush.msra.mxu0 %v1640
    %1941 = vmatpush.msra.mxu0 %v1636
    %1942 = vmatpush.msra.mxu0 %v1632
    %1943 = vmatpush.msra.mxu0 %v1628
    %1944 = vmatpush.msra.mxu0 %v1624
    %1945 = vmatpush.msra.mxu0 %v1620
    %1946 = vmatpush.msra.mxu0 %v1616
    %1947 = vmatpush.msra.mxu0 %v1612
    %1948 = vmatpush.msra.mxu0 %v1608
    %1949 = vmatpush.msra.mxu0 %v1604
    %1950 = vmatpush.msra.mxu0 %v1600
    %1951 = vmatpush.msra.mxu0 %v1596
    %1952 = vmatpush.msra.mxu0 %v1592
    %1953 = vmatmul.f32.gmra.mxu0 %v1359
    %v1954 = vpop.f32.mrf.mxu0
    %v1955 = vadd.f32 %v1935, %v1954
    %1956 = vdwg.mxu0
    %v1957 = vld [vmem:[%s7] sm:$0xf]
    %v1959 = vperm.slane %v1957, 0
    %v1960 = vperm.slane %v1957, 1
    %v1961 = vperm.slane %v1957, 2
    %v1962 = vperm.slane %v1957, 3
    %v1967 = vadd.f32 %v1835, %v1959
    %v1968 = vadd.f32 %v1875, %v1960
    %v1969 = vadd.f32 %v1915, %v1961
    %v1970 = vadd.f32 %v1955, %v1962
    %v1971 = vxor.u32 %v1967, 2147483648
    %v1972 = vmul.f32 %v1971, 1.442695
    %v1973 = vpow.pop %v1972
    %v1974 = vadd.f32 %v1973, 1.0
    %v1975 = vrcp.pop %v1974
    %v1976 = vmul.f32 %v1974, %v1975
    %v1977 = vsub.f32 1.0, %v1976
    %v1978 = vmul.f32 %v1975, %v1977
    %v1979 = vadd.f32 %v1975, %v1978
    %vm1980 = vweird.f32 %v1974
    %vm1981 = vweird.f32 %v1975
    %vm1982 = vmor %vm1980, %vm1981
    %v1983 = vsel %vm1982, %v1975, %v1979
    %v1984 = vand.u32 2147483647, %v1974
    %vm1985 = vcmp.eq.f32.partialorder %v1984, 8.507059e+37
    %v1986 = vand.u32 %v1974, 2147483648
    %v1987 = vor.u32 1.1754944e-38, %v1986
    %v1988 = vsel %vm1985, %v1987, %v1983
    %v1989 = vmul.f32 1.0, %v1988
    %v1990 = vxor.u32 %v1968, 2147483648
    %v1991 = vmul.f32 %v1990, 1.442695
    %v1992 = vpow.pop %v1991
    %v1993 = vadd.f32 %v1992, 1.0
    %v1994 = vrcp.pop %v1993
    %v1995 = vmul.f32 %v1993, %v1994
    %v1996 = vsub.f32 1.0, %v1995
    %v1997 = vmul.f32 %v1994, %v1996
    %v1998 = vadd.f32 %v1994, %v1997
    %vm1999 = vweird.f32 %v1993
    %vm2000 = vweird.f32 %v1994
    %vm2001 = vmor %vm1999, %vm2000
    %v2002 = vsel %vm2001, %v1994, %v1998
    %v2003 = vand.u32 2147483647, %v1993
    %vm2004 = vcmp.eq.f32.partialorder %v2003, 8.507059e+37
    %v2005 = vand.u32 %v1993, 2147483648
    %v2006 = vor.u32 1.1754944e-38, %v2005
    %v2007 = vsel %vm2004, %v2006, %v2002
    %v2008 = vmul.f32 1.0, %v2007
    %v2009 = vtanh.pop %v1969
    %v2010 = vxor.u32 %v1970, 2147483648
    %v2011 = vmul.f32 %v2010, 1.442695
    %v2012 = vpow.pop %v2011
    %v2013 = vadd.f32 %v2012, 1.0
    %v2014 = vrcp.pop %v2013
    %v2015 = vmul.f32 %v2013, %v2014
    %v2016 = vsub.f32 1.0, %v2015
    %v2017 = vmul.f32 %v2014, %v2016
    %v2018 = vadd.f32 %v2014, %v2017
    %vm2019 = vweird.f32 %v2013
    %vm2020 = vweird.f32 %v2014
    %vm2021 = vmor %vm2019, %vm2020
    %v2022 = vsel %vm2021, %v2014, %v2018
    %v2023 = vand.u32 2147483647, %v2013
    %vm2024 = vcmp.eq.f32.partialorder %v2023, 8.507059e+37
    %v2025 = vand.u32 %v2013, 2147483648
    %v2026 = vor.u32 1.1754944e-38, %v2025
    %v2027 = vsel %vm2024, %v2026, %v2022
    %v2028 = vmul.f32 1.0, %v2027
    %v2029 = vmul.f32 %v2008, %v1357
    %v2030 = vmul.f32 %v1989, %v2009
    %v2031 = vadd.f32 %v2029, %v2030
    %v2032 = vtanh.pop %v2031
    %v2033 = vmul.f32 %v2028, %v2032
    %v2034 = vld [vmem:[%s8] sm:$0xff]
    %v2035 = vld [vmem:[%s8 + $0x8] sm:$0xff]
    %v2036 = vld [vmem:[%s8 + $0x10] sm:$0xff]
    %v2037 = vld [vmem:[%s8 + $0x18] sm:$0xff]
    %v2038 = vld [vmem:[%s8 + $0x20] sm:$0xff]
    %v2039 = vld [vmem:[%s8 + $0x28] sm:$0xff]
    %v2040 = vld [vmem:[%s8 + $0x30] sm:$0xff]
    %v2041 = vld [vmem:[%s8 + $0x38] sm:$0xff]
    %v2042 = vld [vmem:[%s8 + $0x40] sm:$0xff]
    %v2043 = vld [vmem:[%s8 + $0x48] sm:$0xff]
    %v2044 = vld [vmem:[%s8 + $0x50] sm:$0xff]
    %v2045 = vld [vmem:[%s8 + $0x58] sm:$0xff]
    %v2046 = vld [vmem:[%s8 + $0x60] sm:$0xff]
    %v2047 = vld [vmem:[%s8 + $0x68] sm:$0xff]
    %v2048 = vld [vmem:[%s8 + $0x70] sm:$0xff]
    %v2049 = vld [vmem:[%s8 + $0x78] sm:$0xff]
    %v2050 = vld [vmem:[%s9] sm:$0x1]
    %v2052 = vperm.slane %v2050, 0
    %2054 = vmatpush.msra.mxu0 %v2049
    %2055 = vmatpush.msra.mxu0 %v2048
    %2056 = vmatpush.msra.mxu0 %v2047
    %2057 = vmatpush.msra.mxu0 %v2046
    %2058 = vmatpush.msra.mxu0 %v2045
    %2059 = vmatpush.msra.mxu0 %v2044
    %2060 = vmatpush.msra.mxu0 %v2043
    %2061 = vmatpush.msra.mxu0 %v2042
    %2062 = vmatpush.msra.mxu0 %v2041
    %2063 = vmatpush.msra.mxu0 %v2040
    %2064 = vmatpush.msra.mxu0 %v2039
    %2065 = vmatpush.msra.mxu0 %v2038
    %2066 = vmatpush.msra.mxu0 %v2037
    %2067 = vmatpush.msra.mxu0 %v2036
    %2068 = vmatpush.msra.mxu0 %v2035
    %2069 = vmatpush.msra.mxu0 %v2034
    %2070 = vmatmul.f32.gmra.mxu0 %v2033
    %v2071 = vpop.f32.mrf.mxu0
    %v2072 = vadd.f32 %v2052, %v2071
    %2073 = vdwg.mxu0
    %s2074 = scalar_lea.vmem %s10, 24
    %2075 = vst [vmem:[%s2074] sm:$0xff] %v2072
    %2076 = vmax.xlane.f32.xlu0 %v2072
    %v2077 = vpop.xlane.xlu0 %2076
    %vm2078 = vcmp.eq.f32.partialorder %v2072, %v2077
    %v2079 = vsel %vm2078, %v83, 128
    %v2080 = vand.u32 %v2079, 65535
    %v2081 = vshra.s32 %v2079, 16
    %v2082 = vcvt.s32.f32 %v2080
    %v2083 = vcvt.s32.f32 %v2081
    %2084 = vmin.xlane.f32.xlu0 %v2083
    %v2085 = vpop.xlane.xlu0 %2084
    %vm2086 = vcmp.eq.f32.partialorder %v2083, %v2085
    %v2087 = vsel %vm2086, %v2082, inf
    %2088 = vmin.xlane.f32.xlu0 %v2087
    %v2089 = vpop.xlane.xlu0 %2088
    %v2090 = vcvt.f32.s32 %v2089
    %v2091 = vcvt.f32.s32 %v2085
    %v2092 = vshll.u32 %v2091, 16
    %v2093 = vadd.s32 %v2092, %v2090
    %vm2094 = vcmp.eq.s32.totalorder %v83, %v2093
    %v2095 = vsel %vm2094, 1, 0
    %v2096 = vcvt.s32.f32 %v2095
    %s2097 = sld [smem:[#allocation2 + $0x3]]
    %s2098 = scvt.s32.f32 %s2097
    %s2099 = scalar_lea.vmem %s1, 24
    %v2100 = vld [vmem:[%s2099] sm:$0xff]
    %2101 = vset.pattern.permute.xlu0 0
    %2102 = vperm.xlu0 %2101, %v2100
    %v2103 = vpop.permute.xlu0 %2102
    %vm2104 = vcmp.eq.s32.totalorder %v83, %v2103
    %v2105 = vsel %vm2104, 1, 0
    %v2106 = vcvt.s32.f32 %v2105
    %v2107 = vstv %s2098
    %v2108 = vmul.f32 %v2107, %v2106
    %s2109 = ssub.f32 1.0, %s2098
    %v2110 = vstv %s2109
    %v2111 = vmul.f32 %v2110, %v2096
    %v2112 = vadd.f32 %v2108, %v2111
    %v2113 = vmul.f32 %v65, %v2033
    %v2114 = vmul.f32 %v66, %v2033
    %v2115 = vmul.f32 %v67, %v2033
    %v2116 = vmul.f32 %v68, %v2033
    %v2117 = vmul.f32 %v69, %v2033
    %v2118 = vmul.f32 %v70, %v2033
    %v2119 = vmul.f32 %v71, %v2033
    %v2120 = vmul.f32 %v72, %v2033
    %2121 = vadd.xlane.f32.xlu0 %v2113
    %v2122 = vpop.xlane.xlu0 %2121
    %2123 = vadd.xlane.f32.xlu0 %v2114
    %v2124 = vpop.xlane.xlu0 %2123
    %2125 = vadd.xlane.f32.xlu0 %v2115
    %v2126 = vpop.xlane.xlu0 %2125
    %2127 = vadd.xlane.f32.xlu0 %v2116
    %v2128 = vpop.xlane.xlu0 %2127
    %2129 = vadd.xlane.f32.xlu0 %v2117
    %v2130 = vpop.xlane.xlu0 %2129
    %2131 = vadd.xlane.f32.xlu0 %v2118
    %v2132 = vpop.xlane.xlu0 %2131
    %2133 = vadd.xlane.f32.xlu0 %v2119
    %v2134 = vpop.xlane.xlu0 %2133
    %2135 = vadd.xlane.f32.xlu0 %v2120
    %v2136 = vpop.xlane.xlu0 %2135
    %v2137 = vmax.f32 %v2122, %v2130
    %v2138 = vmax.f32 %v2124, %v2132
    %v2139 = vmax.f32 %v2126, %v2134
    %v2140 = vmax.f32 %v2128, %v2136
    %v2141 = vmax.f32 %v2137, %v2138
    %v2142 = vmax.f32 %v2139, %v2140
    %v2143 = vmax.f32 %v2141, %v2142
    %v2144 = vsub.f32 %v2122, %v2143
    %v2145 = vsub.f32 %v2124, %v2143
    %v2146 = vsub.f32 %v2126, %v2143
    %v2147 = vsub.f32 %v2128, %v2143
    %v2148 = vsub.f32 %v2130, %v2143
    %v2149 = vsub.f32 %v2132, %v2143
    %v2150 = vsub.f32 %v2134, %v2143
    %v2151 = vsub.f32 %v2136, %v2143
    %v2152 = vmul.f32 %v2144, 1.442695
    %v2153 = vpow.pop %v2152
    %v2154 = vmul.f32 %v2145, 1.442695
    %v2155 = vpow.pop %v2154
    %v2156 = vmul.f32 %v2146, 1.442695
    %v2157 = vpow.pop %v2156
    %v2158 = vmul.f32 %v2147, 1.442695
    %v2159 = vpow.pop %v2158
    %v2160 = vmul.f32 %v2148, 1.442695
    %v2161 = vpow.pop %v2160
    %v2162 = vmul.f32 %v2149, 1.442695
    %v2163 = vpow.pop %v2162
    %v2164 = vmul.f32 %v2150, 1.442695
    %v2165 = vpow.pop %v2164
    %v2166 = vmul.f32 %v2151, 1.442695
    %v2167 = vpow.pop %v2166
    %v2168 = vadd.f32 %v2153, %v2155
    %v2169 = vadd.f32 %v2168, %v2157
    %v2170 = vadd.f32 %v2169, %v2159
    %v2171 = vadd.f32 %v2170, %v2161
    %v2172 = vadd.f32 %v2171, %v2163
    %v2173 = vadd.f32 %v2172, %v2165
    %v2174 = vadd.f32 %v2173, %v2167
    %v2175 = vrcp.pop %v2174
    %v2176 = vmul.f32 %v2153, %v2175
    %v2177 = vmul.f32 %v2155, %v2175
    %v2178 = vmul.f32 %v2157, %v2175
    %v2179 = vmul.f32 %v2159, %v2175
    %v2180 = vmul.f32 %v2161, %v2175
    %v2181 = vmul.f32 %v2163, %v2175
    %v2182 = vmul.f32 %v2165, %v2175
    %v2183 = vmul.f32 %v2167, %v2175
    %v2184 = vmul.f32 %v2176, %v65
    %v2185 = vmul.f32 %v2177, %v66
    %v2186 = vmul.f32 %v2178, %v67
    %v2187 = vmul.f32 %v2179, %v68
    %v2188 = vmul.f32 %v2180, %v69
    %v2189 = vmul.f32 %v2181, %v70
    %v2190 = vmul.f32 %v2182, %v71
    %v2191 = vmul.f32 %v2183, %v72
    %v2192 = vadd.f32 %v2184, %v2185
    %v2193 = vadd.f32 %v2192, %v2186
    %v2194 = vadd.f32 %v2193, %v2187
    %v2195 = vadd.f32 %v2194, %v2188
    %v2196 = vadd.f32 %v2195, %v2189
    %v2197 = vadd.f32 %v2196, %v2190
    %v2198 = vadd.f32 %v2197, %v2191
    %v2199 = vld [vmem:[%s5] sm:$0xff]
    %v2200 = vld [vmem:[%s5 + $0x8] sm:$0xff]
    %v2201 = vld [vmem:[%s5 + $0x10] sm:$0xff]
    %v2202 = vld [vmem:[%s5 + $0x18] sm:$0xff]
    %v2203 = vld [vmem:[%s5 + $0x20] sm:$0xff]
    %v2204 = vld [vmem:[%s5 + $0x28] sm:$0xff]
    %v2205 = vld [vmem:[%s5 + $0x30] sm:$0xff]
    %v2206 = vld [vmem:[%s5 + $0x38] sm:$0xff]
    %v2207 = vld [vmem:[%s5 + $0x40] sm:$0xff]
    %v2208 = vld [vmem:[%s5 + $0x48] sm:$0xff]
    %v2209 = vld [vmem:[%s5 + $0x50] sm:$0xff]
    %v2210 = vld [vmem:[%s5 + $0x58] sm:$0xff]
    %v2211 = vld [vmem:[%s5 + $0x60] sm:$0xff]
    %v2212 = vld [vmem:[%s5 + $0x68] sm:$0xff]
    %v2213 = vld [vmem:[%s5 + $0x70] sm:$0xff]
    %v2214 = vld [vmem:[%s5 + $0x78] sm:$0xff]
    %v2215 = vld [vmem:[%s5 + $0x80] sm:$0xff]
    %v2216 = vld [vmem:[%s5 + $0x88] sm:$0xff]
    %v2217 = vld [vmem:[%s5 + $0x90] sm:$0xff]
    %v2218 = vld [vmem:[%s5 + $0x98] sm:$0xff]
    %v2219 = vld [vmem:[%s5 + $0xa0] sm:$0xff]
    %v2220 = vld [vmem:[%s5 + $0xa8] sm:$0xff]
    %v2221 = vld [vmem:[%s5 + $0xb0] sm:$0xff]
    %v2222 = vld [vmem:[%s5 + $0xb8] sm:$0xff]
    %v2223 = vld [vmem:[%s5 + $0xc0] sm:$0xff]
    %v2224 = vld [vmem:[%s5 + $0xc8] sm:$0xff]
    %v2225 = vld [vmem:[%s5 + $0xd0] sm:$0xff]
    %v2226 = vld [vmem:[%s5 + $0xd8] sm:$0xff]
    %v2227 = vld [vmem:[%s5 + $0xe0] sm:$0xff]
    %v2228 = vld [vmem:[%s5 + $0xe8] sm:$0xff]
    %v2229 = vld [vmem:[%s5 + $0xf0] sm:$0xff]
    %v2230 = vld [vmem:[%s5 + $0xf8] sm:$0xff]
    %v2231 = vld [vmem:[%s5 + $0x100] sm:$0xff]
    %v2232 = vld [vmem:[%s5 + $0x108] sm:$0xff]
    %v2233 = vld [vmem:[%s5 + $0x110] sm:$0xff]
    %v2234 = vld [vmem:[%s5 + $0x118] sm:$0xff]
    %v2235 = vld [vmem:[%s5 + $0x120] sm:$0xff]
    %v2236 = vld [vmem:[%s5 + $0x128] sm:$0xff]
    %v2237 = vld [vmem:[%s5 + $0x130] sm:$0xff]
    %v2238 = vld [vmem:[%s5 + $0x138] sm:$0xff]
    %v2239 = vld [vmem:[%s5 + $0x140] sm:$0xff]
    %v2240 = vld [vmem:[%s5 + $0x148] sm:$0xff]
    %v2241 = vld [vmem:[%s5 + $0x150] sm:$0xff]
    %v2242 = vld [vmem:[%s5 + $0x158] sm:$0xff]
    %v2243 = vld [vmem:[%s5 + $0x160] sm:$0xff]
    %v2244 = vld [vmem:[%s5 + $0x168] sm:$0xff]
    %v2245 = vld [vmem:[%s5 + $0x170] sm:$0xff]
    %v2246 = vld [vmem:[%s5 + $0x178] sm:$0xff]
    %v2247 = vld [vmem:[%s5 + $0x180] sm:$0xff]
    %v2248 = vld [vmem:[%s5 + $0x188] sm:$0xff]
    %v2249 = vld [vmem:[%s5 + $0x190] sm:$0xff]
    %v2250 = vld [vmem:[%s5 + $0x198] sm:$0xff]
    %v2251 = vld [vmem:[%s5 + $0x1a0] sm:$0xff]
    %v2252 = vld [vmem:[%s5 + $0x1a8] sm:$0xff]
    %v2253 = vld [vmem:[%s5 + $0x1b0] sm:$0xff]
    %v2254 = vld [vmem:[%s5 + $0x1b8] sm:$0xff]
    %v2255 = vld [vmem:[%s5 + $0x1c0] sm:$0xff]
    %v2256 = vld [vmem:[%s5 + $0x1c8] sm:$0xff]
    %v2257 = vld [vmem:[%s5 + $0x1d0] sm:$0xff]
    %v2258 = vld [vmem:[%s5 + $0x1d8] sm:$0xff]
    %v2259 = vld [vmem:[%s5 + $0x1e0] sm:$0xff]
    %v2260 = vld [vmem:[%s5 + $0x1e8] sm:$0xff]
    %v2261 = vld [vmem:[%s5 + $0x1f0] sm:$0xff]
    %v2262 = vld [vmem:[%s5 + $0x1f8] sm:$0xff]
    %v2263 = vld [vmem:[%s5 + $0x200] sm:$0xff]
    %v2264 = vld [vmem:[%s5 + $0x208] sm:$0xff]
    %v2265 = vld [vmem:[%s5 + $0x210] sm:$0xff]
    %v2266 = vld [vmem:[%s5 + $0x218] sm:$0xff]
    %v2267 = vld [vmem:[%s5 + $0x220] sm:$0xff]
    %v2268 = vld [vmem:[%s5 + $0x228] sm:$0xff]
    %v2269 = vld [vmem:[%s5 + $0x230] sm:$0xff]
    %v2270 = vld [vmem:[%s5 + $0x238] sm:$0xff]
    %v2271 = vld [vmem:[%s5 + $0x240] sm:$0xff]
    %v2272 = vld [vmem:[%s5 + $0x248] sm:$0xff]
    %v2273 = vld [vmem:[%s5 + $0x250] sm:$0xff]
    %v2274 = vld [vmem:[%s5 + $0x258] sm:$0xff]
    %v2275 = vld [vmem:[%s5 + $0x260] sm:$0xff]
    %v2276 = vld [vmem:[%s5 + $0x268] sm:$0xff]
    %v2277 = vld [vmem:[%s5 + $0x270] sm:$0xff]
    %v2278 = vld [vmem:[%s5 + $0x278] sm:$0xff]
    %v2279 = vld [vmem:[%s5 + $0x280] sm:$0xff]
    %v2280 = vld [vmem:[%s5 + $0x288] sm:$0xff]
    %v2281 = vld [vmem:[%s5 + $0x290] sm:$0xff]
    %v2282 = vld [vmem:[%s5 + $0x298] sm:$0xff]
    %v2283 = vld [vmem:[%s5 + $0x2a0] sm:$0xff]
    %v2284 = vld [vmem:[%s5 + $0x2a8] sm:$0xff]
    %v2285 = vld [vmem:[%s5 + $0x2b0] sm:$0xff]
    %v2286 = vld [vmem:[%s5 + $0x2b8] sm:$0xff]
    %v2287 = vld [vmem:[%s5 + $0x2c0] sm:$0xff]
    %v2288 = vld [vmem:[%s5 + $0x2c8] sm:$0xff]
    %v2289 = vld [vmem:[%s5 + $0x2d0] sm:$0xff]
    %v2290 = vld [vmem:[%s5 + $0x2d8] sm:$0xff]
    %v2291 = vld [vmem:[%s5 + $0x2e0] sm:$0xff]
    %v2292 = vld [vmem:[%s5 + $0x2e8] sm:$0xff]
    %v2293 = vld [vmem:[%s5 + $0x2f0] sm:$0xff]
    %v2294 = vld [vmem:[%s5 + $0x2f8] sm:$0xff]
    %v2295 = vld [vmem:[%s5 + $0x300] sm:$0xff]
    %v2296 = vld [vmem:[%s5 + $0x308] sm:$0xff]
    %v2297 = vld [vmem:[%s5 + $0x310] sm:$0xff]
    %v2298 = vld [vmem:[%s5 + $0x318] sm:$0xff]
    %v2299 = vld [vmem:[%s5 + $0x320] sm:$0xff]
    %v2300 = vld [vmem:[%s5 + $0x328] sm:$0xff]
    %v2301 = vld [vmem:[%s5 + $0x330] sm:$0xff]
    %v2302 = vld [vmem:[%s5 + $0x338] sm:$0xff]
    %v2303 = vld [vmem:[%s5 + $0x340] sm:$0xff]
    %v2304 = vld [vmem:[%s5 + $0x348] sm:$0xff]
    %v2305 = vld [vmem:[%s5 + $0x350] sm:$0xff]
    %v2306 = vld [vmem:[%s5 + $0x358] sm:$0xff]
    %v2307 = vld [vmem:[%s5 + $0x360] sm:$0xff]
    %v2308 = vld [vmem:[%s5 + $0x368] sm:$0xff]
    %v2309 = vld [vmem:[%s5 + $0x370] sm:$0xff]
    %v2310 = vld [vmem:[%s5 + $0x378] sm:$0xff]
    %v2311 = vld [vmem:[%s5 + $0x380] sm:$0xff]
    %v2312 = vld [vmem:[%s5 + $0x388] sm:$0xff]
    %v2313 = vld [vmem:[%s5 + $0x390] sm:$0xff]
    %v2314 = vld [vmem:[%s5 + $0x398] sm:$0xff]
    %v2315 = vld [vmem:[%s5 + $0x3a0] sm:$0xff]
    %v2316 = vld [vmem:[%s5 + $0x3a8] sm:$0xff]
    %v2317 = vld [vmem:[%s5 + $0x3b0] sm:$0xff]
    %v2318 = vld [vmem:[%s5 + $0x3b8] sm:$0xff]
    %v2319 = vld [vmem:[%s5 + $0x3c0] sm:$0xff]
    %v2320 = vld [vmem:[%s5 + $0x3c8] sm:$0xff]
    %v2321 = vld [vmem:[%s5 + $0x3d0] sm:$0xff]
    %v2322 = vld [vmem:[%s5 + $0x3d8] sm:$0xff]
    %v2323 = vld [vmem:[%s5 + $0x3e0] sm:$0xff]
    %v2324 = vld [vmem:[%s5 + $0x3e8] sm:$0xff]
    %v2325 = vld [vmem:[%s5 + $0x3f0] sm:$0xff]
    %v2326 = vld [vmem:[%s5 + $0x3f8] sm:$0xff]
    %v2327 = vld [vmem:[%s6] sm:$0xff]
    %v2328 = vld [vmem:[%s6 + $0x8] sm:$0xff]
    %v2329 = vld [vmem:[%s6 + $0x10] sm:$0xff]
    %v2330 = vld [vmem:[%s6 + $0x18] sm:$0xff]
    %v2331 = vld [vmem:[%s6 + $0x20] sm:$0xff]
    %v2332 = vld [vmem:[%s6 + $0x28] sm:$0xff]
    %v2333 = vld [vmem:[%s6 + $0x30] sm:$0xff]
    %v2334 = vld [vmem:[%s6 + $0x38] sm:$0xff]
    %v2335 = vld [vmem:[%s6 + $0x40] sm:$0xff]
    %v2336 = vld [vmem:[%s6 + $0x48] sm:$0xff]
    %v2337 = vld [vmem:[%s6 + $0x50] sm:$0xff]
    %v2338 = vld [vmem:[%s6 + $0x58] sm:$0xff]
    %v2339 = vld [vmem:[%s6 + $0x60] sm:$0xff]
    %v2340 = vld [vmem:[%s6 + $0x68] sm:$0xff]
    %v2341 = vld [vmem:[%s6 + $0x70] sm:$0xff]
    %v2342 = vld [vmem:[%s6 + $0x78] sm:$0xff]
    %v2343 = vld [vmem:[%s6 + $0x80] sm:$0xff]
    %v2344 = vld [vmem:[%s6 + $0x88] sm:$0xff]
    %v2345 = vld [vmem:[%s6 + $0x90] sm:$0xff]
    %v2346 = vld [vmem:[%s6 + $0x98] sm:$0xff]
    %v2347 = vld [vmem:[%s6 + $0xa0] sm:$0xff]
    %v2348 = vld [vmem:[%s6 + $0xa8] sm:$0xff]
    %v2349 = vld [vmem:[%s6 + $0xb0] sm:$0xff]
    %v2350 = vld [vmem:[%s6 + $0xb8] sm:$0xff]
    %v2351 = vld [vmem:[%s6 + $0xc0] sm:$0xff]
    %v2352 = vld [vmem:[%s6 + $0xc8] sm:$0xff]
    %v2353 = vld [vmem:[%s6 + $0xd0] sm:$0xff]
    %v2354 = vld [vmem:[%s6 + $0xd8] sm:$0xff]
    %v2355 = vld [vmem:[%s6 + $0xe0] sm:$0xff]
    %v2356 = vld [vmem:[%s6 + $0xe8] sm:$0xff]
    %v2357 = vld [vmem:[%s6 + $0xf0] sm:$0xff]
    %v2358 = vld [vmem:[%s6 + $0xf8] sm:$0xff]
    %v2359 = vld [vmem:[%s6 + $0x100] sm:$0xff]
    %v2360 = vld [vmem:[%s6 + $0x108] sm:$0xff]
    %v2361 = vld [vmem:[%s6 + $0x110] sm:$0xff]
    %v2362 = vld [vmem:[%s6 + $0x118] sm:$0xff]
    %v2363 = vld [vmem:[%s6 + $0x120] sm:$0xff]
    %v2364 = vld [vmem:[%s6 + $0x128] sm:$0xff]
    %v2365 = vld [vmem:[%s6 + $0x130] sm:$0xff]
    %v2366 = vld [vmem:[%s6 + $0x138] sm:$0xff]
    %v2367 = vld [vmem:[%s6 + $0x140] sm:$0xff]
    %v2368 = vld [vmem:[%s6 + $0x148] sm:$0xff]
    %v2369 = vld [vmem:[%s6 + $0x150] sm:$0xff]
    %v2370 = vld [vmem:[%s6 + $0x158] sm:$0xff]
    %v2371 = vld [vmem:[%s6 + $0x160] sm:$0xff]
    %v2372 = vld [vmem:[%s6 + $0x168] sm:$0xff]
    %v2373 = vld [vmem:[%s6 + $0x170] sm:$0xff]
    %v2374 = vld [vmem:[%s6 + $0x178] sm:$0xff]
    %v2375 = vld [vmem:[%s6 + $0x180] sm:$0xff]
    %v2376 = vld [vmem:[%s6 + $0x188] sm:$0xff]
    %v2377 = vld [vmem:[%s6 + $0x190] sm:$0xff]
    %v2378 = vld [vmem:[%s6 + $0x198] sm:$0xff]
    %v2379 = vld [vmem:[%s6 + $0x1a0] sm:$0xff]
    %v2380 = vld [vmem:[%s6 + $0x1a8] sm:$0xff]
    %v2381 = vld [vmem:[%s6 + $0x1b0] sm:$0xff]
    %v2382 = vld [vmem:[%s6 + $0x1b8] sm:$0xff]
    %v2383 = vld [vmem:[%s6 + $0x1c0] sm:$0xff]
    %v2384 = vld [vmem:[%s6 + $0x1c8] sm:$0xff]
    %v2385 = vld [vmem:[%s6 + $0x1d0] sm:$0xff]
    %v2386 = vld [vmem:[%s6 + $0x1d8] sm:$0xff]
    %v2387 = vld [vmem:[%s6 + $0x1e0] sm:$0xff]
    %v2388 = vld [vmem:[%s6 + $0x1e8] sm:$0xff]
    %v2389 = vld [vmem:[%s6 + $0x1f0] sm:$0xff]
    %v2390 = vld [vmem:[%s6 + $0x1f8] sm:$0xff]
    %2391 = vmatpush.msra.mxu0 %v2387
    %2392 = vmatpush.msra.mxu0 %v2383
    %2393 = vmatpush.msra.mxu0 %v2379
    %2394 = vmatpush.msra.mxu0 %v2375
    %2395 = vmatpush.msra.mxu0 %v2371
    %2396 = vmatpush.msra.mxu0 %v2367
    %2397 = vmatpush.msra.mxu0 %v2363
    %2398 = vmatpush.msra.mxu0 %v2359
    %2399 = vmatpush.msra.mxu0 %v2355
    %2400 = vmatpush.msra.mxu0 %v2351
    %2401 = vmatpush.msra.mxu0 %v2347
    %2402 = vmatpush.msra.mxu0 %v2343
    %2403 = vmatpush.msra.mxu0 %v2339
    %2404 = vmatpush.msra.mxu0 %v2335
    %2405 = vmatpush.msra.mxu0 %v2331
    %2406 = vmatpush.msra.mxu0 %v2327
    %2407 = vmatmul.f32.gmra.mxu0 %v2198
    %v2408 = vpop.f32.mrf.mxu0
    %v2409 = vadd.f32 0.0, %v2408
    %2410 = vdwg.mxu0
    %2411 = vmatpush.msra.mxu0 %v2388
    %2412 = vmatpush.msra.mxu0 %v2384
    %2413 = vmatpush.msra.mxu0 %v2380
    %2414 = vmatpush.msra.mxu0 %v2376
    %2415 = vmatpush.msra.mxu0 %v2372
    %2416 = vmatpush.msra.mxu0 %v2368
    %2417 = vmatpush.msra.mxu0 %v2364
    %2418 = vmatpush.msra.mxu0 %v2360
    %2419 = vmatpush.msra.mxu0 %v2356
    %2420 = vmatpush.msra.mxu0 %v2352
    %2421 = vmatpush.msra.mxu0 %v2348
    %2422 = vmatpush.msra.mxu0 %v2344
    %2423 = vmatpush.msra.mxu0 %v2340
    %2424 = vmatpush.msra.mxu0 %v2336
    %2425 = vmatpush.msra.mxu0 %v2332
    %2426 = vmatpush.msra.mxu0 %v2328
    %2427 = vmatmul.f32.gmra.mxu0 %v2198
    %v2428 = vpop.f32.mrf.mxu0
    %v2429 = vadd.f32 0.0, %v2428
    %2430 = vdwg.mxu0
    %2431 = vmatpush.msra.mxu0 %v2389
    %2432 = vmatpush.msra.mxu0 %v2385
    %2433 = vmatpush.msra.mxu0 %v2381
    %2434 = vmatpush.msra.mxu0 %v2377
    %2435 = vmatpush.msra.mxu0 %v2373
    %2436 = vmatpush.msra.mxu0 %v2369
    %2437 = vmatpush.msra.mxu0 %v2365
    %2438 = vmatpush.msra.mxu0 %v2361
    %2439 = vmatpush.msra.mxu0 %v2357
    %2440 = vmatpush.msra.mxu0 %v2353
    %2441 = vmatpush.msra.mxu0 %v2349
    %2442 = vmatpush.msra.mxu0 %v2345
    %2443 = vmatpush.msra.mxu0 %v2341
    %2444 = vmatpush.msra.mxu0 %v2337
    %2445 = vmatpush.msra.mxu0 %v2333
    %2446 = vmatpush.msra.mxu0 %v2329
    %2447 = vmatmul.f32.gmra.mxu0 %v2198
    %v2448 = vpop.f32.mrf.mxu0
    %v2449 = vadd.f32 0.0, %v2448
    %2450 = vdwg.mxu0
    %2451 = vmatpush.msra.mxu0 %v2390
    %2452 = vmatpush.msra.mxu0 %v2386
    %2453 = vmatpush.msra.mxu0 %v2382
    %2454 = vmatpush.msra.mxu0 %v2378
    %2455 = vmatpush.msra.mxu0 %v2374
    %2456 = vmatpush.msra.mxu0 %v2370
    %2457 = vmatpush.msra.mxu0 %v2366
    %2458 = vmatpush.msra.mxu0 %v2362
    %2459 = vmatpush.msra.mxu0 %v2358
    %2460 = vmatpush.msra.mxu0 %v2354
    %2461 = vmatpush.msra.mxu0 %v2350
    %2462 = vmatpush.msra.mxu0 %v2346
    %2463 = vmatpush.msra.mxu0 %v2342
    %2464 = vmatpush.msra.mxu0 %v2338
    %2465 = vmatpush.msra.mxu0 %v2334
    %2466 = vmatpush.msra.mxu0 %v2330
    %2467 = vmatmul.f32.gmra.mxu0 %v2198
    %v2468 = vpop.f32.mrf.mxu0
    %v2469 = vadd.f32 0.0, %v2468
    %2470 = vdwg.mxu0
    %2471 = vmatpush.msra.mxu0 %v2259
    %2472 = vmatpush.msra.mxu0 %v2255
    %2473 = vmatpush.msra.mxu0 %v2251
    %2474 = vmatpush.msra.mxu0 %v2247
    %2475 = vmatpush.msra.mxu0 %v2243
    %2476 = vmatpush.msra.mxu0 %v2239
    %2477 = vmatpush.msra.mxu0 %v2235
    %2478 = vmatpush.msra.mxu0 %v2231
    %2479 = vmatpush.msra.mxu0 %v2227
    %2480 = vmatpush.msra.mxu0 %v2223
    %2481 = vmatpush.msra.mxu0 %v2219
    %2482 = vmatpush.msra.mxu0 %v2215
    %2483 = vmatpush.msra.mxu0 %v2211
    %2484 = vmatpush.msra.mxu0 %v2207
    %2485 = vmatpush.msra.mxu0 %v2203
    %2486 = vmatpush.msra.mxu0 %v2199
    %2487 = vmatmul.f32.gmra.mxu0 %v2112
    %v2488 = vpop.f32.mrf.mxu0
    %v2489 = vadd.f32 %v2409, %v2488
    %2490 = vdwg.mxu0
    %2491 = vmatpush.msra.mxu0 %v2323
    %2492 = vmatpush.msra.mxu0 %v2319
    %2493 = vmatpush.msra.mxu0 %v2315
    %2494 = vmatpush.msra.mxu0 %v2311
    %2495 = vmatpush.msra.mxu0 %v2307
    %2496 = vmatpush.msra.mxu0 %v2303
    %2497 = vmatpush.msra.mxu0 %v2299
    %2498 = vmatpush.msra.mxu0 %v2295
    %2499 = vmatpush.msra.mxu0 %v2291
    %2500 = vmatpush.msra.mxu0 %v2287
    %2501 = vmatpush.msra.mxu0 %v2283
    %2502 = vmatpush.msra.mxu0 %v2279
    %2503 = vmatpush.msra.mxu0 %v2275
    %2504 = vmatpush.msra.mxu0 %v2271
    %2505 = vmatpush.msra.mxu0 %v2267
    %2506 = vmatpush.msra.mxu0 %v2263
    %2507 = vmatmul.f32.gmra.mxu0 %v2033
    %v2508 = vpop.f32.mrf.mxu0
    %v2509 = vadd.f32 %v2489, %v2508
    %2510 = vdwg.mxu0
    %2511 = vmatpush.msra.mxu0 %v2260
    %2512 = vmatpush.msra.mxu0 %v2256
    %2513 = vmatpush.msra.mxu0 %v2252
    %2514 = vmatpush.msra.mxu0 %v2248
    %2515 = vmatpush.msra.mxu0 %v2244
    %2516 = vmatpush.msra.mxu0 %v2240
    %2517 = vmatpush.msra.mxu0 %v2236
    %2518 = vmatpush.msra.mxu0 %v2232
    %2519 = vmatpush.msra.mxu0 %v2228
    %2520 = vmatpush.msra.mxu0 %v2224
    %2521 = vmatpush.msra.mxu0 %v2220
    %2522 = vmatpush.msra.mxu0 %v2216
    %2523 = vmatpush.msra.mxu0 %v2212
    %2524 = vmatpush.msra.mxu0 %v2208
    %2525 = vmatpush.msra.mxu0 %v2204
    %2526 = vmatpush.msra.mxu0 %v2200
    %2527 = vmatmul.f32.gmra.mxu0 %v2112
    %v2528 = vpop.f32.mrf.mxu0
    %v2529 = vadd.f32 %v2429, %v2528
    %2530 = vdwg.mxu0
    %2531 = vmatpush.msra.mxu0 %v2324
    %2532 = vmatpush.msra.mxu0 %v2320
    %2533 = vmatpush.msra.mxu0 %v2316
    %2534 = vmatpush.msra.mxu0 %v2312
    %2535 = vmatpush.msra.mxu0 %v2308
    %2536 = vmatpush.msra.mxu0 %v2304
    %2537 = vmatpush.msra.mxu0 %v2300
    %2538 = vmatpush.msra.mxu0 %v2296
    %2539 = vmatpush.msra.mxu0 %v2292
    %2540 = vmatpush.msra.mxu0 %v2288
    %2541 = vmatpush.msra.mxu0 %v2284
    %2542 = vmatpush.msra.mxu0 %v2280
    %2543 = vmatpush.msra.mxu0 %v2276
    %2544 = vmatpush.msra.mxu0 %v2272
    %2545 = vmatpush.msra.mxu0 %v2268
    %2546 = vmatpush.msra.mxu0 %v2264
    %2547 = vmatmul.f32.gmra.mxu0 %v2033
    %v2548 = vpop.f32.mrf.mxu0
    %v2549 = vadd.f32 %v2529, %v2548
    %2550 = vdwg.mxu0
    %2551 = vmatpush.msra.mxu0 %v2261
    %2552 = vmatpush.msra.mxu0 %v2257
    %2553 = vmatpush.msra.mxu0 %v2253
    %2554 = vmatpush.msra.mxu0 %v2249
    %2555 = vmatpush.msra.mxu0 %v2245
    %2556 = vmatpush.msra.mxu0 %v2241
    %2557 = vmatpush.msra.mxu0 %v2237
    %2558 = vmatpush.msra.mxu0 %v2233
    %2559 = vmatpush.msra.mxu0 %v2229
    %2560 = vmatpush.msra.mxu0 %v2225
    %2561 = vmatpush.msra.mxu0 %v2221
    %2562 = vmatpush.msra.mxu0 %v2217
    %2563 = vmatpush.msra.mxu0 %v2213
    %2564 = vmatpush.msra.mxu0 %v2209
    %2565 = vmatpush.msra.mxu0 %v2205
    %2566 = vmatpush.msra.mxu0 %v2201
    %2567 = vmatmul.f32.gmra.mxu0 %v2112
    %v2568 = vpop.f32.mrf.mxu0
    %v2569 = vadd.f32 %v2449, %v2568
    %2570 = vdwg.mxu0
    %2571 = vmatpush.msra.mxu0 %v2325
    %2572 = vmatpush.msra.mxu0 %v2321
    %2573 = vmatpush.msra.mxu0 %v2317
    %2574 = vmatpush.msra.mxu0 %v2313
    %2575 = vmatpush.msra.mxu0 %v2309
    %2576 = vmatpush.msra.mxu0 %v2305
    %2577 = vmatpush.msra.mxu0 %v2301
    %2578 = vmatpush.msra.mxu0 %v2297
    %2579 = vmatpush.msra.mxu0 %v2293
    %2580 = vmatpush.msra.mxu0 %v2289
    %2581 = vmatpush.msra.mxu0 %v2285
    %2582 = vmatpush.msra.mxu0 %v2281
    %2583 = vmatpush.msra.mxu0 %v2277
    %2584 = vmatpush.msra.mxu0 %v2273
    %2585 = vmatpush.msra.mxu0 %v2269
    %2586 = vmatpush.msra.mxu0 %v2265
    %2587 = vmatmul.f32.gmra.mxu0 %v2033
    %v2588 = vpop.f32.mrf.mxu0
    %v2589 = vadd.f32 %v2569, %v2588
    %2590 = vdwg.mxu0
    %2591 = vmatpush.msra.mxu0 %v2262
    %2592 = vmatpush.msra.mxu0 %v2258
    %2593 = vmatpush.msra.mxu0 %v2254
    %2594 = vmatpush.msra.mxu0 %v2250
    %2595 = vmatpush.msra.mxu0 %v2246
    %2596 = vmatpush.msra.mxu0 %v2242
    %2597 = vmatpush.msra.mxu0 %v2238
    %2598 = vmatpush.msra.mxu0 %v2234
    %2599 = vmatpush.msra.mxu0 %v2230
    %2600 = vmatpush.msra.mxu0 %v2226
    %2601 = vmatpush.msra.mxu0 %v2222
    %2602 = vmatpush.msra.mxu0 %v2218
    %2603 = vmatpush.msra.mxu0 %v2214
    %2604 = vmatpush.msra.mxu0 %v2210
    %2605 = vmatpush.msra.mxu0 %v2206
    %2606 = vmatpush.msra.mxu0 %v2202
    %2607 = vmatmul.f32.gmra.mxu0 %v2112
    %v2608 = vpop.f32.mrf.mxu0
    %v2609 = vadd.f32 %v2469, %v2608
    %2610 = vdwg.mxu0
    %2611 = vmatpush.msra.mxu0 %v2326
    %2612 = vmatpush.msra.mxu0 %v2322
    %2613 = vmatpush.msra.mxu0 %v2318
    %2614 = vmatpush.msra.mxu0 %v2314
    %2615 = vmatpush.msra.mxu0 %v2310
    %2616 = vmatpush.msra.mxu0 %v2306
    %2617 = vmatpush.msra.mxu0 %v2302
    %2618 = vmatpush.msra.mxu0 %v2298
    %2619 = vmatpush.msra.mxu0 %v2294
    %2620 = vmatpush.msra.mxu0 %v2290
    %2621 = vmatpush.msra.mxu0 %v2286
    %2622 = vmatpush.msra.mxu0 %v2282
    %2623 = vmatpush.msra.mxu0 %v2278
    %2624 = vmatpush.msra.mxu0 %v2274
    %2625 = vmatpush.msra.mxu0 %v2270
    %2626 = vmatpush.msra.mxu0 %v2266
    %2627 = vmatmul.f32.gmra.mxu0 %v2033
    %v2628 = vpop.f32.mrf.mxu0
    %v2629 = vadd.f32 %v2609, %v2628
    %2630 = vdwg.mxu0
    %v2631 = vld [vmem:[%s7] sm:$0xf]
    %v2633 = vperm.slane %v2631, 0
    %v2634 = vperm.slane %v2631, 1
    %v2635 = vperm.slane %v2631, 2
    %v2636 = vperm.slane %v2631, 3
    %v2641 = vadd.f32 %v2509, %v2633
    %v2642 = vadd.f32 %v2549, %v2634
    %v2643 = vadd.f32 %v2589, %v2635
    %v2644 = vadd.f32 %v2629, %v2636
    %v2645 = vxor.u32 %v2641, 2147483648
    %v2646 = vmul.f32 %v2645, 1.442695
    %v2647 = vpow.pop %v2646
    %v2648 = vadd.f32 %v2647, 1.0
    %v2649 = vrcp.pop %v2648
    %v2650 = vmul.f32 %v2648, %v2649
    %v2651 = vsub.f32 1.0, %v2650
    %v2652 = vmul.f32 %v2649, %v2651
    %v2653 = vadd.f32 %v2649, %v2652
    %vm2654 = vweird.f32 %v2648
    %vm2655 = vweird.f32 %v2649
    %vm2656 = vmor %vm2654, %vm2655
    %v2657 = vsel %vm2656, %v2649, %v2653
    %v2658 = vand.u32 2147483647, %v2648
    %vm2659 = vcmp.eq.f32.partialorder %v2658, 8.507059e+37
    %v2660 = vand.u32 %v2648, 2147483648
    %v2661 = vor.u32 1.1754944e-38, %v2660
    %v2662 = vsel %vm2659, %v2661, %v2657
    %v2663 = vmul.f32 1.0, %v2662
    %v2664 = vxor.u32 %v2642, 2147483648
    %v2665 = vmul.f32 %v2664, 1.442695
    %v2666 = vpow.pop %v2665
    %v2667 = vadd.f32 %v2666, 1.0
    %v2668 = vrcp.pop %v2667
    %v2669 = vmul.f32 %v2667, %v2668
    %v2670 = vsub.f32 1.0, %v2669
    %v2671 = vmul.f32 %v2668, %v2670
    %v2672 = vadd.f32 %v2668, %v2671
    %vm2673 = vweird.f32 %v2667
    %vm2674 = vweird.f32 %v2668
    %vm2675 = vmor %vm2673, %vm2674
    %v2676 = vsel %vm2675, %v2668, %v2672
    %v2677 = vand.u32 2147483647, %v2667
    %vm2678 = vcmp.eq.f32.partialorder %v2677, 8.507059e+37
    %v2679 = vand.u32 %v2667, 2147483648
    %v2680 = vor.u32 1.1754944e-38, %v2679
    %v2681 = vsel %vm2678, %v2680, %v2676
    %v2682 = vmul.f32 1.0, %v2681
    %v2683 = vtanh.pop %v2643
    %v2684 = vxor.u32 %v2644, 2147483648
    %v2685 = vmul.f32 %v2684, 1.442695
    %v2686 = vpow.pop %v2685
    %v2687 = vadd.f32 %v2686, 1.0
    %v2688 = vrcp.pop %v2687
    %v2689 = vmul.f32 %v2687, %v2688
    %v2690 = vsub.f32 1.0, %v2689
    %v2691 = vmul.f32 %v2688, %v2690
    %v2692 = vadd.f32 %v2688, %v2691
    %vm2693 = vweird.f32 %v2687
    %vm2694 = vweird.f32 %v2688
    %vm2695 = vmor %vm2693, %vm2694
    %v2696 = vsel %vm2695, %v2688, %v2692
    %v2697 = vand.u32 2147483647, %v2687
    %vm2698 = vcmp.eq.f32.partialorder %v2697, 8.507059e+37
    %v2699 = vand.u32 %v2687, 2147483648
    %v2700 = vor.u32 1.1754944e-38, %v2699
    %v2701 = vsel %vm2698, %v2700, %v2696
    %v2702 = vmul.f32 1.0, %v2701
    %v2703 = vmul.f32 %v2682, %v2031
    %v2704 = vmul.f32 %v2663, %v2683
    %v2705 = vadd.f32 %v2703, %v2704
    %v2706 = vtanh.pop %v2705
    %v2707 = vmul.f32 %v2702, %v2706
    %v2708 = vld [vmem:[%s8] sm:$0xff]
    %v2709 = vld [vmem:[%s8 + $0x8] sm:$0xff]
    %v2710 = vld [vmem:[%s8 + $0x10] sm:$0xff]
    %v2711 = vld [vmem:[%s8 + $0x18] sm:$0xff]
    %v2712 = vld [vmem:[%s8 + $0x20] sm:$0xff]
    %v2713 = vld [vmem:[%s8 + $0x28] sm:$0xff]
    %v2714 = vld [vmem:[%s8 + $0x30] sm:$0xff]
    %v2715 = vld [vmem:[%s8 + $0x38] sm:$0xff]
    %v2716 = vld [vmem:[%s8 + $0x40] sm:$0xff]
    %v2717 = vld [vmem:[%s8 + $0x48] sm:$0xff]
    %v2718 = vld [vmem:[%s8 + $0x50] sm:$0xff]
    %v2719 = vld [vmem:[%s8 + $0x58] sm:$0xff]
    %v2720 = vld [vmem:[%s8 + $0x60] sm:$0xff]
    %v2721 = vld [vmem:[%s8 + $0x68] sm:$0xff]
    %v2722 = vld [vmem:[%s8 + $0x70] sm:$0xff]
    %v2723 = vld [vmem:[%s8 + $0x78] sm:$0xff]
    %v2724 = vld [vmem:[%s9] sm:$0x1]
    %v2726 = vperm.slane %v2724, 0
    %2728 = vmatpush.msra.mxu0 %v2723
    %2729 = vmatpush.msra.mxu0 %v2722
    %2730 = vmatpush.msra.mxu0 %v2721
    %2731 = vmatpush.msra.mxu0 %v2720
    %2732 = vmatpush.msra.mxu0 %v2719
    %2733 = vmatpush.msra.mxu0 %v2718
    %2734 = vmatpush.msra.mxu0 %v2717
    %2735 = vmatpush.msra.mxu0 %v2716
    %2736 = vmatpush.msra.mxu0 %v2715
    %2737 = vmatpush.msra.mxu0 %v2714
    %2738 = vmatpush.msra.mxu0 %v2713
    %2739 = vmatpush.msra.mxu0 %v2712
    %2740 = vmatpush.msra.mxu0 %v2711
    %2741 = vmatpush.msra.mxu0 %v2710
    %2742 = vmatpush.msra.mxu0 %v2709
    %2743 = vmatpush.msra.mxu0 %v2708
    %2744 = vmatmul.f32.gmra.mxu0 %v2707
    %v2745 = vpop.f32.mrf.mxu0
    %v2746 = vadd.f32 %v2726, %v2745
    %2747 = vdwg.mxu0
    %s2748 = scalar_lea.vmem %s10, 32
    %2749 = vst [vmem:[%s2748] sm:$0xff] %v2746
    %2750 = vmax.xlane.f32.xlu0 %v2746
    %v2751 = vpop.xlane.xlu0 %2750
    %vm2752 = vcmp.eq.f32.partialorder %v2746, %v2751
    %v2753 = vsel %vm2752, %v83, 128
    %v2754 = vand.u32 %v2753, 65535
    %v2755 = vshra.s32 %v2753, 16
    %v2756 = vcvt.s32.f32 %v2754
    %v2757 = vcvt.s32.f32 %v2755
    %2758 = vmin.xlane.f32.xlu0 %v2757
    %v2759 = vpop.xlane.xlu0 %2758
    %vm2760 = vcmp.eq.f32.partialorder %v2757, %v2759
    %v2761 = vsel %vm2760, %v2756, inf
    %2762 = vmin.xlane.f32.xlu0 %v2761
    %v2763 = vpop.xlane.xlu0 %2762
    %v2764 = vcvt.f32.s32 %v2763
    %v2765 = vcvt.f32.s32 %v2759
    %v2766 = vshll.u32 %v2765, 16
    %v2767 = vadd.s32 %v2766, %v2764
    %vm2768 = vcmp.eq.s32.totalorder %v83, %v2767
    %v2769 = vsel %vm2768, 1, 0
    %v2770 = vcvt.s32.f32 %v2769
    %s2771 = sld [smem:[#allocation2 + $0x4]]
    %s2772 = scvt.s32.f32 %s2771
    %s2773 = scalar_lea.vmem %s1, 32
    %v2774 = vld [vmem:[%s2773] sm:$0xff]
    %2775 = vset.pattern.permute.xlu0 0
    %2776 = vperm.xlu0 %2775, %v2774
    %v2777 = vpop.permute.xlu0 %2776
    %vm2778 = vcmp.eq.s32.totalorder %v83, %v2777
    %v2779 = vsel %vm2778, 1, 0
    %v2780 = vcvt.s32.f32 %v2779
    %v2781 = vstv %s2772
    %v2782 = vmul.f32 %v2781, %v2780
    %s2783 = ssub.f32 1.0, %s2772
    %v2784 = vstv %s2783
    %v2785 = vmul.f32 %v2784, %v2770
    %v2786 = vadd.f32 %v2782, %v2785
    %v2787 = vmul.f32 %v65, %v2707
    %v2788 = vmul.f32 %v66, %v2707
    %v2789 = vmul.f32 %v67, %v2707
    %v2790 = vmul.f32 %v68, %v2707
    %v2791 = vmul.f32 %v69, %v2707
    %v2792 = vmul.f32 %v70, %v2707
    %v2793 = vmul.f32 %v71, %v2707
    %v2794 = vmul.f32 %v72, %v2707
    %2795 = vadd.xlane.f32.xlu0 %v2787
    %v2796 = vpop.xlane.xlu0 %2795
    %2797 = vadd.xlane.f32.xlu0 %v2788
    %v2798 = vpop.xlane.xlu0 %2797
    %2799 = vadd.xlane.f32.xlu0 %v2789
    %v2800 = vpop.xlane.xlu0 %2799
    %2801 = vadd.xlane.f32.xlu0 %v2790
    %v2802 = vpop.xlane.xlu0 %2801
    %2803 = vadd.xlane.f32.xlu0 %v2791
    %v2804 = vpop.xlane.xlu0 %2803
    %2805 = vadd.xlane.f32.xlu0 %v2792
    %v2806 = vpop.xlane.xlu0 %2805
    %2807 = vadd.xlane.f32.xlu0 %v2793
    %v2808 = vpop.xlane.xlu0 %2807
    %2809 = vadd.xlane.f32.xlu0 %v2794
    %v2810 = vpop.xlane.xlu0 %2809
    %v2811 = vmax.f32 %v2796, %v2804
    %v2812 = vmax.f32 %v2798, %v2806
    %v2813 = vmax.f32 %v2800, %v2808
    %v2814 = vmax.f32 %v2802, %v2810
    %v2815 = vmax.f32 %v2811, %v2812
    %v2816 = vmax.f32 %v2813, %v2814
    %v2817 = vmax.f32 %v2815, %v2816
    %v2818 = vsub.f32 %v2796, %v2817
    %v2819 = vsub.f32 %v2798, %v2817
    %v2820 = vsub.f32 %v2800, %v2817
    %v2821 = vsub.f32 %v2802, %v2817
    %v2822 = vsub.f32 %v2804, %v2817
    %v2823 = vsub.f32 %v2806, %v2817
    %v2824 = vsub.f32 %v2808, %v2817
    %v2825 = vsub.f32 %v2810, %v2817
    %v2826 = vmul.f32 %v2818, 1.442695
    %v2827 = vpow.pop %v2826
    %v2828 = vmul.f32 %v2819, 1.442695
    %v2829 = vpow.pop %v2828
    %v2830 = vmul.f32 %v2820, 1.442695
    %v2831 = vpow.pop %v2830
    %v2832 = vmul.f32 %v2821, 1.442695
    %v2833 = vpow.pop %v2832
    %v2834 = vmul.f32 %v2822, 1.442695
    %v2835 = vpow.pop %v2834
    %v2836 = vmul.f32 %v2823, 1.442695
    %v2837 = vpow.pop %v2836
    %v2838 = vmul.f32 %v2824, 1.442695
    %v2839 = vpow.pop %v2838
    %v2840 = vmul.f32 %v2825, 1.442695
    %v2841 = vpow.pop %v2840
    %v2842 = vadd.f32 %v2827, %v2829
    %v2843 = vadd.f32 %v2842, %v2831
    %v2844 = vadd.f32 %v2843, %v2833
    %v2845 = vadd.f32 %v2844, %v2835
    %v2846 = vadd.f32 %v2845, %v2837
    %v2847 = vadd.f32 %v2846, %v2839
    %v2848 = vadd.f32 %v2847, %v2841
    %v2849 = vrcp.pop %v2848
    %v2850 = vmul.f32 %v2827, %v2849
    %v2851 = vmul.f32 %v2829, %v2849
    %v2852 = vmul.f32 %v2831, %v2849
    %v2853 = vmul.f32 %v2833, %v2849
    %v2854 = vmul.f32 %v2835, %v2849
    %v2855 = vmul.f32 %v2837, %v2849
    %v2856 = vmul.f32 %v2839, %v2849
    %v2857 = vmul.f32 %v2841, %v2849
    %v2858 = vmul.f32 %v2850, %v65
    %v2859 = vmul.f32 %v2851, %v66
    %v2860 = vmul.f32 %v2852, %v67
    %v2861 = vmul.f32 %v2853, %v68
    %v2862 = vmul.f32 %v2854, %v69
    %v2863 = vmul.f32 %v2855, %v70
    %v2864 = vmul.f32 %v2856, %v71
    %v2865 = vmul.f32 %v2857, %v72
    %v2866 = vadd.f32 %v2858, %v2859
    %v2867 = vadd.f32 %v2866, %v2860
    %v2868 = vadd.f32 %v2867, %v2861
    %v2869 = vadd.f32 %v2868, %v2862
    %v2870 = vadd.f32 %v2869, %v2863
    %v2871 = vadd.f32 %v2870, %v2864
    %v2872 = vadd.f32 %v2871, %v2865
    %v2873 = vld [vmem:[%s5] sm:$0xff]
    %v2874 = vld [vmem:[%s5 + $0x8] sm:$0xff]
    %v2875 = vld [vmem:[%s5 + $0x10] sm:$0xff]
    %v2876 = vld [vmem:[%s5 + $0x18] sm:$0xff]
    %v2877 = vld [vmem:[%s5 + $0x20] sm:$0xff]
    %v2878 = vld [vmem:[%s5 + $0x28] sm:$0xff]
    %v2879 = vld [vmem:[%s5 + $0x30] sm:$0xff]
    %v2880 = vld [vmem:[%s5 + $0x38] sm:$0xff]
    %v2881 = vld [vmem:[%s5 + $0x40] sm:$0xff]
    %v2882 = vld [vmem:[%s5 + $0x48] sm:$0xff]
    %v2883 = vld [vmem:[%s5 + $0x50] sm:$0xff]
    %v2884 = vld [vmem:[%s5 + $0x58] sm:$0xff]
    %v2885 = vld [vmem:[%s5 + $0x60] sm:$0xff]
    %v2886 = vld [vmem:[%s5 + $0x68] sm:$0xff]
    %v2887 = vld [vmem:[%s5 + $0x70] sm:$0xff]
    %v2888 = vld [vmem:[%s5 + $0x78] sm:$0xff]
    %v2889 = vld [vmem:[%s5 + $0x80] sm:$0xff]
    %v2890 = vld [vmem:[%s5 + $0x88] sm:$0xff]
    %v2891 = vld [vmem:[%s5 + $0x90] sm:$0xff]
    %v2892 = vld [vmem:[%s5 + $0x98] sm:$0xff]
    %v2893 = vld [vmem:[%s5 + $0xa0] sm:$0xff]
    %v2894 = vld [vmem:[%s5 + $0xa8] sm:$0xff]
    %v2895 = vld [vmem:[%s5 + $0xb0] sm:$0xff]
    %v2896 = vld [vmem:[%s5 + $0xb8] sm:$0xff]
    %v2897 = vld [vmem:[%s5 + $0xc0] sm:$0xff]
    %v2898 = vld [vmem:[%s5 + $0xc8] sm:$0xff]
    %v2899 = vld [vmem:[%s5 + $0xd0] sm:$0xff]
    %v2900 = vld [vmem:[%s5 + $0xd8] sm:$0xff]
    %v2901 = vld [vmem:[%s5 + $0xe0] sm:$0xff]
    %v2902 = vld [vmem:[%s5 + $0xe8] sm:$0xff]
    %v2903 = vld [vmem:[%s5 + $0xf0] sm:$0xff]
    %v2904 = vld [vmem:[%s5 + $0xf8] sm:$0xff]
    %v2905 = vld [vmem:[%s5 + $0x100] sm:$0xff]
    %v2906 = vld [vmem:[%s5 + $0x108] sm:$0xff]
    %v2907 = vld [vmem:[%s5 + $0x110] sm:$0xff]
    %v2908 = vld [vmem:[%s5 + $0x118] sm:$0xff]
    %v2909 = vld [vmem:[%s5 + $0x120] sm:$0xff]
    %v2910 = vld [vmem:[%s5 + $0x128] sm:$0xff]
    %v2911 = vld [vmem:[%s5 + $0x130] sm:$0xff]
    %v2912 = vld [vmem:[%s5 + $0x138] sm:$0xff]
    %v2913 = vld [vmem:[%s5 + $0x140] sm:$0xff]
    %v2914 = vld [vmem:[%s5 + $0x148] sm:$0xff]
    %v2915 = vld [vmem:[%s5 + $0x150] sm:$0xff]
    %v2916 = vld [vmem:[%s5 + $0x158] sm:$0xff]
    %v2917 = vld [vmem:[%s5 + $0x160] sm:$0xff]
    %v2918 = vld [vmem:[%s5 + $0x168] sm:$0xff]
    %v2919 = vld [vmem:[%s5 + $0x170] sm:$0xff]
    %v2920 = vld [vmem:[%s5 + $0x178] sm:$0xff]
    %v2921 = vld [vmem:[%s5 + $0x180] sm:$0xff]
    %v2922 = vld [vmem:[%s5 + $0x188] sm:$0xff]
    %v2923 = vld [vmem:[%s5 + $0x190] sm:$0xff]
    %v2924 = vld [vmem:[%s5 + $0x198] sm:$0xff]
    %v2925 = vld [vmem:[%s5 + $0x1a0] sm:$0xff]
    %v2926 = vld [vmem:[%s5 + $0x1a8] sm:$0xff]
    %v2927 = vld [vmem:[%s5 + $0x1b0] sm:$0xff]
    %v2928 = vld [vmem:[%s5 + $0x1b8] sm:$0xff]
    %v2929 = vld [vmem:[%s5 + $0x1c0] sm:$0xff]
    %v2930 = vld [vmem:[%s5 + $0x1c8] sm:$0xff]
    %v2931 = vld [vmem:[%s5 + $0x1d0] sm:$0xff]
    %v2932 = vld [vmem:[%s5 + $0x1d8] sm:$0xff]
    %v2933 = vld [vmem:[%s5 + $0x1e0] sm:$0xff]
    %v2934 = vld [vmem:[%s5 + $0x1e8] sm:$0xff]
    %v2935 = vld [vmem:[%s5 + $0x1f0] sm:$0xff]
    %v2936 = vld [vmem:[%s5 + $0x1f8] sm:$0xff]
    %v2937 = vld [vmem:[%s5 + $0x200] sm:$0xff]
    %v2938 = vld [vmem:[%s5 + $0x208] sm:$0xff]
    %v2939 = vld [vmem:[%s5 + $0x210] sm:$0xff]
    %v2940 = vld [vmem:[%s5 + $0x218] sm:$0xff]
    %v2941 = vld [vmem:[%s5 + $0x220] sm:$0xff]
    %v2942 = vld [vmem:[%s5 + $0x228] sm:$0xff]
    %v2943 = vld [vmem:[%s5 + $0x230] sm:$0xff]
    %v2944 = vld [vmem:[%s5 + $0x238] sm:$0xff]
    %v2945 = vld [vmem:[%s5 + $0x240] sm:$0xff]
    %v2946 = vld [vmem:[%s5 + $0x248] sm:$0xff]
    %v2947 = vld [vmem:[%s5 + $0x250] sm:$0xff]
    %v2948 = vld [vmem:[%s5 + $0x258] sm:$0xff]
    %v2949 = vld [vmem:[%s5 + $0x260] sm:$0xff]
    %v2950 = vld [vmem:[%s5 + $0x268] sm:$0xff]
    %v2951 = vld [vmem:[%s5 + $0x270] sm:$0xff]
    %v2952 = vld [vmem:[%s5 + $0x278] sm:$0xff]
    %v2953 = vld [vmem:[%s5 + $0x280] sm:$0xff]
    %v2954 = vld [vmem:[%s5 + $0x288] sm:$0xff]
    %v2955 = vld [vmem:[%s5 + $0x290] sm:$0xff]
    %v2956 = vld [vmem:[%s5 + $0x298] sm:$0xff]
    %v2957 = vld [vmem:[%s5 + $0x2a0] sm:$0xff]
    %v2958 = vld [vmem:[%s5 + $0x2a8] sm:$0xff]
    %v2959 = vld [vmem:[%s5 + $0x2b0] sm:$0xff]
    %v2960 = vld [vmem:[%s5 + $0x2b8] sm:$0xff]
    %v2961 = vld [vmem:[%s5 + $0x2c0] sm:$0xff]
    %v2962 = vld [vmem:[%s5 + $0x2c8] sm:$0xff]
    %v2963 = vld [vmem:[%s5 + $0x2d0] sm:$0xff]
    %v2964 = vld [vmem:[%s5 + $0x2d8] sm:$0xff]
    %v2965 = vld [vmem:[%s5 + $0x2e0] sm:$0xff]
    %v2966 = vld [vmem:[%s5 + $0x2e8] sm:$0xff]
    %v2967 = vld [vmem:[%s5 + $0x2f0] sm:$0xff]
    %v2968 = vld [vmem:[%s5 + $0x2f8] sm:$0xff]
    %v2969 = vld [vmem:[%s5 + $0x300] sm:$0xff]
    %v2970 = vld [vmem:[%s5 + $0x308] sm:$0xff]
    %v2971 = vld [vmem:[%s5 + $0x310] sm:$0xff]
    %v2972 = vld [vmem:[%s5 + $0x318] sm:$0xff]
    %v2973 = vld [vmem:[%s5 + $0x320] sm:$0xff]
    %v2974 = vld [vmem:[%s5 + $0x328] sm:$0xff]
    %v2975 = vld [vmem:[%s5 + $0x330] sm:$0xff]
    %v2976 = vld [vmem:[%s5 + $0x338] sm:$0xff]
    %v2977 = vld [vmem:[%s5 + $0x340] sm:$0xff]
    %v2978 = vld [vmem:[%s5 + $0x348] sm:$0xff]
    %v2979 = vld [vmem:[%s5 + $0x350] sm:$0xff]
    %v2980 = vld [vmem:[%s5 + $0x358] sm:$0xff]
    %v2981 = vld [vmem:[%s5 + $0x360] sm:$0xff]
    %v2982 = vld [vmem:[%s5 + $0x368] sm:$0xff]
    %v2983 = vld [vmem:[%s5 + $0x370] sm:$0xff]
    %v2984 = vld [vmem:[%s5 + $0x378] sm:$0xff]
    %v2985 = vld [vmem:[%s5 + $0x380] sm:$0xff]
    %v2986 = vld [vmem:[%s5 + $0x388] sm:$0xff]
    %v2987 = vld [vmem:[%s5 + $0x390] sm:$0xff]
    %v2988 = vld [vmem:[%s5 + $0x398] sm:$0xff]
    %v2989 = vld [vmem:[%s5 + $0x3a0] sm:$0xff]
    %v2990 = vld [vmem:[%s5 + $0x3a8] sm:$0xff]
    %v2991 = vld [vmem:[%s5 + $0x3b0] sm:$0xff]
    %v2992 = vld [vmem:[%s5 + $0x3b8] sm:$0xff]
    %v2993 = vld [vmem:[%s5 + $0x3c0] sm:$0xff]
    %v2994 = vld [vmem:[%s5 + $0x3c8] sm:$0xff]
    %v2995 = vld [vmem:[%s5 + $0x3d0] sm:$0xff]
    %v2996 = vld [vmem:[%s5 + $0x3d8] sm:$0xff]
    %v2997 = vld [vmem:[%s5 + $0x3e0] sm:$0xff]
    %v2998 = vld [vmem:[%s5 + $0x3e8] sm:$0xff]
    %v2999 = vld [vmem:[%s5 + $0x3f0] sm:$0xff]
    %v3000 = vld [vmem:[%s5 + $0x3f8] sm:$0xff]
    %v3001 = vld [vmem:[%s6] sm:$0xff]
    %v3002 = vld [vmem:[%s6 + $0x8] sm:$0xff]
    %v3003 = vld [vmem:[%s6 + $0x10] sm:$0xff]
    %v3004 = vld [vmem:[%s6 + $0x18] sm:$0xff]
    %v3005 = vld [vmem:[%s6 + $0x20] sm:$0xff]
    %v3006 = vld [vmem:[%s6 + $0x28] sm:$0xff]
    %v3007 = vld [vmem:[%s6 + $0x30] sm:$0xff]
    %v3008 = vld [vmem:[%s6 + $0x38] sm:$0xff]
    %v3009 = vld [vmem:[%s6 + $0x40] sm:$0xff]
    %v3010 = vld [vmem:[%s6 + $0x48] sm:$0xff]
    %v3011 = vld [vmem:[%s6 + $0x50] sm:$0xff]
    %v3012 = vld [vmem:[%s6 + $0x58] sm:$0xff]
    %v3013 = vld [vmem:[%s6 + $0x60] sm:$0xff]
    %v3014 = vld [vmem:[%s6 + $0x68] sm:$0xff]
    %v3015 = vld [vmem:[%s6 + $0x70] sm:$0xff]
    %v3016 = vld [vmem:[%s6 + $0x78] sm:$0xff]
    %v3017 = vld [vmem:[%s6 + $0x80] sm:$0xff]
    %v3018 = vld [vmem:[%s6 + $0x88] sm:$0xff]
    %v3019 = vld [vmem:[%s6 + $0x90] sm:$0xff]
    %v3020 = vld [vmem:[%s6 + $0x98] sm:$0xff]
    %v3021 = vld [vmem:[%s6 + $0xa0] sm:$0xff]
    %v3022 = vld [vmem:[%s6 + $0xa8] sm:$0xff]
    %v3023 = vld [vmem:[%s6 + $0xb0] sm:$0xff]
    %v3024 = vld [vmem:[%s6 + $0xb8] sm:$0xff]
    %v3025 = vld [vmem:[%s6 + $0xc0] sm:$0xff]
    %v3026 = vld [vmem:[%s6 + $0xc8] sm:$0xff]
    %v3027 = vld [vmem:[%s6 + $0xd0] sm:$0xff]
    %v3028 = vld [vmem:[%s6 + $0xd8] sm:$0xff]
    %v3029 = vld [vmem:[%s6 + $0xe0] sm:$0xff]
    %v3030 = vld [vmem:[%s6 + $0xe8] sm:$0xff]
    %v3031 = vld [vmem:[%s6 + $0xf0] sm:$0xff]
    %v3032 = vld [vmem:[%s6 + $0xf8] sm:$0xff]
    %v3033 = vld [vmem:[%s6 + $0x100] sm:$0xff]
    %v3034 = vld [vmem:[%s6 + $0x108] sm:$0xff]
    %v3035 = vld [vmem:[%s6 + $0x110] sm:$0xff]
    %v3036 = vld [vmem:[%s6 + $0x118] sm:$0xff]
    %v3037 = vld [vmem:[%s6 + $0x120] sm:$0xff]
    %v3038 = vld [vmem:[%s6 + $0x128] sm:$0xff]
    %v3039 = vld [vmem:[%s6 + $0x130] sm:$0xff]
    %v3040 = vld [vmem:[%s6 + $0x138] sm:$0xff]
    %v3041 = vld [vmem:[%s6 + $0x140] sm:$0xff]
    %v3042 = vld [vmem:[%s6 + $0x148] sm:$0xff]
    %v3043 = vld [vmem:[%s6 + $0x150] sm:$0xff]
    %v3044 = vld [vmem:[%s6 + $0x158] sm:$0xff]
    %v3045 = vld [vmem:[%s6 + $0x160] sm:$0xff]
    %v3046 = vld [vmem:[%s6 + $0x168] sm:$0xff]
    %v3047 = vld [vmem:[%s6 + $0x170] sm:$0xff]
    %v3048 = vld [vmem:[%s6 + $0x178] sm:$0xff]
    %v3049 = vld [vmem:[%s6 + $0x180] sm:$0xff]
    %v3050 = vld [vmem:[%s6 + $0x188] sm:$0xff]
    %v3051 = vld [vmem:[%s6 + $0x190] sm:$0xff]
    %v3052 = vld [vmem:[%s6 + $0x198] sm:$0xff]
    %v3053 = vld [vmem:[%s6 + $0x1a0] sm:$0xff]
    %v3054 = vld [vmem:[%s6 + $0x1a8] sm:$0xff]
    %v3055 = vld [vmem:[%s6 + $0x1b0] sm:$0xff]
    %v3056 = vld [vmem:[%s6 + $0x1b8] sm:$0xff]
    %v3057 = vld [vmem:[%s6 + $0x1c0] sm:$0xff]
    %v3058 = vld [vmem:[%s6 + $0x1c8] sm:$0xff]
    %v3059 = vld [vmem:[%s6 + $0x1d0] sm:$0xff]
    %v3060 = vld [vmem:[%s6 + $0x1d8] sm:$0xff]
    %v3061 = vld [vmem:[%s6 + $0x1e0] sm:$0xff]
    %v3062 = vld [vmem:[%s6 + $0x1e8] sm:$0xff]
    %v3063 = vld [vmem:[%s6 + $0x1f0] sm:$0xff]
    %v3064 = vld [vmem:[%s6 + $0x1f8] sm:$0xff]
    %3065 = vmatpush.msra.mxu0 %v3061
    %3066 = vmatpush.msra.mxu0 %v3057
    %3067 = vmatpush.msra.mxu0 %v3053
    %3068 = vmatpush.msra.mxu0 %v3049
    %3069 = vmatpush.msra.mxu0 %v3045
    %3070 = vmatpush.msra.mxu0 %v3041
    %3071 = vmatpush.msra.mxu0 %v3037
    %3072 = vmatpush.msra.mxu0 %v3033
    %3073 = vmatpush.msra.mxu0 %v3029
    %3074 = vmatpush.msra.mxu0 %v3025
    %3075 = vmatpush.msra.mxu0 %v3021
    %3076 = vmatpush.msra.mxu0 %v3017
    %3077 = vmatpush.msra.mxu0 %v3013
    %3078 = vmatpush.msra.mxu0 %v3009
    %3079 = vmatpush.msra.mxu0 %v3005
    %3080 = vmatpush.msra.mxu0 %v3001
    %3081 = vmatmul.f32.gmra.mxu0 %v2872
    %v3082 = vpop.f32.mrf.mxu0
    %v3083 = vadd.f32 0.0, %v3082
    %3084 = vdwg.mxu0
    %3085 = vmatpush.msra.mxu0 %v3062
    %3086 = vmatpush.msra.mxu0 %v3058
    %3087 = vmatpush.msra.mxu0 %v3054
    %3088 = vmatpush.msra.mxu0 %v3050
    %3089 = vmatpush.msra.mxu0 %v3046
    %3090 = vmatpush.msra.mxu0 %v3042
    %3091 = vmatpush.msra.mxu0 %v3038
    %3092 = vmatpush.msra.mxu0 %v3034
    %3093 = vmatpush.msra.mxu0 %v3030
    %3094 = vmatpush.msra.mxu0 %v3026
    %3095 = vmatpush.msra.mxu0 %v3022
    %3096 = vmatpush.msra.mxu0 %v3018
    %3097 = vmatpush.msra.mxu0 %v3014
    %3098 = vmatpush.msra.mxu0 %v3010
    %3099 = vmatpush.msra.mxu0 %v3006
    %3100 = vmatpush.msra.mxu0 %v3002
    %3101 = vmatmul.f32.gmra.mxu0 %v2872
    %v3102 = vpop.f32.mrf.mxu0
    %v3103 = vadd.f32 0.0, %v3102
    %3104 = vdwg.mxu0
    %3105 = vmatpush.msra.mxu0 %v3063
    %3106 = vmatpush.msra.mxu0 %v3059
    %3107 = vmatpush.msra.mxu0 %v3055
    %3108 = vmatpush.msra.mxu0 %v3051
    %3109 = vmatpush.msra.mxu0 %v3047
    %3110 = vmatpush.msra.mxu0 %v3043
    %3111 = vmatpush.msra.mxu0 %v3039
    %3112 = vmatpush.msra.mxu0 %v3035
    %3113 = vmatpush.msra.mxu0 %v3031
    %3114 = vmatpush.msra.mxu0 %v3027
    %3115 = vmatpush.msra.mxu0 %v3023
    %3116 = vmatpush.msra.mxu0 %v3019
    %3117 = vmatpush.msra.mxu0 %v3015
    %3118 = vmatpush.msra.mxu0 %v3011
    %3119 = vmatpush.msra.mxu0 %v3007
    %3120 = vmatpush.msra.mxu0 %v3003
    %3121 = vmatmul.f32.gmra.mxu0 %v2872
    %v3122 = vpop.f32.mrf.mxu0
    %v3123 = vadd.f32 0.0, %v3122
    %3124 = vdwg.mxu0
    %3125 = vmatpush.msra.mxu0 %v3064
    %3126 = vmatpush.msra.mxu0 %v3060
    %3127 = vmatpush.msra.mxu0 %v3056
    %3128 = vmatpush.msra.mxu0 %v3052
    %3129 = vmatpush.msra.mxu0 %v3048
    %3130 = vmatpush.msra.mxu0 %v3044
    %3131 = vmatpush.msra.mxu0 %v3040
    %3132 = vmatpush.msra.mxu0 %v3036
    %3133 = vmatpush.msra.mxu0 %v3032
    %3134 = vmatpush.msra.mxu0 %v3028
    %3135 = vmatpush.msra.mxu0 %v3024
    %3136 = vmatpush.msra.mxu0 %v3020
    %3137 = vmatpush.msra.mxu0 %v3016
    %3138 = vmatpush.msra.mxu0 %v3012
    %3139 = vmatpush.msra.mxu0 %v3008
    %3140 = vmatpush.msra.mxu0 %v3004
    %3141 = vmatmul.f32.gmra.mxu0 %v2872
    %v3142 = vpop.f32.mrf.mxu0
    %v3143 = vadd.f32 0.0, %v3142
    %3144 = vdwg.mxu0
    %3145 = vmatpush.msra.mxu0 %v2933
    %3146 = vmatpush.msra.mxu0 %v2929
    %3147 = vmatpush.msra.mxu0 %v2925
    %3148 = vmatpush.msra.mxu0 %v2921
    %3149 = vmatpush.msra.mxu0 %v2917
    %3150 = vmatpush.msra.mxu0 %v2913
    %3151 = vmatpush.msra.mxu0 %v2909
    %3152 = vmatpush.msra.mxu0 %v2905
    %3153 = vmatpush.msra.mxu0 %v2901
    %3154 = vmatpush.msra.mxu0 %v2897
    %3155 = vmatpush.msra.mxu0 %v2893
    %3156 = vmatpush.msra.mxu0 %v2889
    %3157 = vmatpush.msra.mxu0 %v2885
    %3158 = vmatpush.msra.mxu0 %v2881
    %3159 = vmatpush.msra.mxu0 %v2877
    %3160 = vmatpush.msra.mxu0 %v2873
    %3161 = vmatmul.f32.gmra.mxu0 %v2786
    %v3162 = vpop.f32.mrf.mxu0
    %v3163 = vadd.f32 %v3083, %v3162
    %3164 = vdwg.mxu0
    %3165 = vmatpush.msra.mxu0 %v2997
    %3166 = vmatpush.msra.mxu0 %v2993
    %3167 = vmatpush.msra.mxu0 %v2989
    %3168 = vmatpush.msra.mxu0 %v2985
    %3169 = vmatpush.msra.mxu0 %v2981
    %3170 = vmatpush.msra.mxu0 %v2977
    %3171 = vmatpush.msra.mxu0 %v2973
    %3172 = vmatpush.msra.mxu0 %v2969
    %3173 = vmatpush.msra.mxu0 %v2965
    %3174 = vmatpush.msra.mxu0 %v2961
    %3175 = vmatpush.msra.mxu0 %v2957
    %3176 = vmatpush.msra.mxu0 %v2953
    %3177 = vmatpush.msra.mxu0 %v2949
    %3178 = vmatpush.msra.mxu0 %v2945
    %3179 = vmatpush.msra.mxu0 %v2941
    %3180 = vmatpush.msra.mxu0 %v2937
    %3181 = vmatmul.f32.gmra.mxu0 %v2707
    %v3182 = vpop.f32.mrf.mxu0
    %v3183 = vadd.f32 %v3163, %v3182
    %3184 = vdwg.mxu0
    %3185 = vmatpush.msra.mxu0 %v2934
    %3186 = vmatpush.msra.mxu0 %v2930
    %3187 = vmatpush.msra.mxu0 %v2926
    %3188 = vmatpush.msra.mxu0 %v2922
    %3189 = vmatpush.msra.mxu0 %v2918
    %3190 = vmatpush.msra.mxu0 %v2914
    %3191 = vmatpush.msra.mxu0 %v2910
    %3192 = vmatpush.msra.mxu0 %v2906
    %3193 = vmatpush.msra.mxu0 %v2902
    %3194 = vmatpush.msra.mxu0 %v2898
    %3195 = vmatpush.msra.mxu0 %v2894
    %3196 = vmatpush.msra.mxu0 %v2890
    %3197 = vmatpush.msra.mxu0 %v2886
    %3198 = vmatpush.msra.mxu0 %v2882
    %3199 = vmatpush.msra.mxu0 %v2878
    %3200 = vmatpush.msra.mxu0 %v2874
    %3201 = vmatmul.f32.gmra.mxu0 %v2786
    %v3202 = vpop.f32.mrf.mxu0
    %v3203 = vadd.f32 %v3103, %v3202
    %3204 = vdwg.mxu0
    %3205 = vmatpush.msra.mxu0 %v2998
    %3206 = vmatpush.msra.mxu0 %v2994
    %3207 = vmatpush.msra.mxu0 %v2990
    %3208 = vmatpush.msra.mxu0 %v2986
    %3209 = vmatpush.msra.mxu0 %v2982
    %3210 = vmatpush.msra.mxu0 %v2978
    %3211 = vmatpush.msra.mxu0 %v2974
    %3212 = vmatpush.msra.mxu0 %v2970
    %3213 = vmatpush.msra.mxu0 %v2966
    %3214 = vmatpush.msra.mxu0 %v2962
    %3215 = vmatpush.msra.mxu0 %v2958
    %3216 = vmatpush.msra.mxu0 %v2954
    %3217 = vmatpush.msra.mxu0 %v2950
    %3218 = vmatpush.msra.mxu0 %v2946
    %3219 = vmatpush.msra.mxu0 %v2942
    %3220 = vmatpush.msra.mxu0 %v2938
    %3221 = vmatmul.f32.gmra.mxu0 %v2707
    %v3222 = vpop.f32.mrf.mxu0
    %v3223 = vadd.f32 %v3203, %v3222
    %3224 = vdwg.mxu0
    %3225 = vmatpush.msra.mxu0 %v2935
    %3226 = vmatpush.msra.mxu0 %v2931
    %3227 = vmatpush.msra.mxu0 %v2927
    %3228 = vmatpush.msra.mxu0 %v2923
    %3229 = vmatpush.msra.mxu0 %v2919
    %3230 = vmatpush.msra.mxu0 %v2915
    %3231 = vmatpush.msra.mxu0 %v2911
    %3232 = vmatpush.msra.mxu0 %v2907
    %3233 = vmatpush.msra.mxu0 %v2903
    %3234 = vmatpush.msra.mxu0 %v2899
    %3235 = vmatpush.msra.mxu0 %v2895
    %3236 = vmatpush.msra.mxu0 %v2891
    %3237 = vmatpush.msra.mxu0 %v2887
    %3238 = vmatpush.msra.mxu0 %v2883
    %3239 = vmatpush.msra.mxu0 %v2879
    %3240 = vmatpush.msra.mxu0 %v2875
    %3241 = vmatmul.f32.gmra.mxu0 %v2786
    %v3242 = vpop.f32.mrf.mxu0
    %v3243 = vadd.f32 %v3123, %v3242
    %3244 = vdwg.mxu0
    %3245 = vmatpush.msra.mxu0 %v2999
    %3246 = vmatpush.msra.mxu0 %v2995
    %3247 = vmatpush.msra.mxu0 %v2991
    %3248 = vmatpush.msra.mxu0 %v2987
    %3249 = vmatpush.msra.mxu0 %v2983
    %3250 = vmatpush.msra.mxu0 %v2979
    %3251 = vmatpush.msra.mxu0 %v2975
    %3252 = vmatpush.msra.mxu0 %v2971
    %3253 = vmatpush.msra.mxu0 %v2967
    %3254 = vmatpush.msra.mxu0 %v2963
    %3255 = vmatpush.msra.mxu0 %v2959
    %3256 = vmatpush.msra.mxu0 %v2955
    %3257 = vmatpush.msra.mxu0 %v2951
    %3258 = vmatpush.msra.mxu0 %v2947
    %3259 = vmatpush.msra.mxu0 %v2943
    %3260 = vmatpush.msra.mxu0 %v2939
    %3261 = vmatmul.f32.gmra.mxu0 %v2707
    %v3262 = vpop.f32.mrf.mxu0
    %v3263 = vadd.f32 %v3243, %v3262
    %3264 = vdwg.mxu0
    %3265 = vmatpush.msra.mxu0 %v2936
    %3266 = vmatpush.msra.mxu0 %v2932
    %3267 = vmatpush.msra.mxu0 %v2928
    %3268 = vmatpush.msra.mxu0 %v2924
    %3269 = vmatpush.msra.mxu0 %v2920
    %3270 = vmatpush.msra.mxu0 %v2916
    %3271 = vmatpush.msra.mxu0 %v2912
    %3272 = vmatpush.msra.mxu0 %v2908
    %3273 = vmatpush.msra.mxu0 %v2904
    %3274 = vmatpush.msra.mxu0 %v2900
    %3275 = vmatpush.msra.mxu0 %v2896
    %3276 = vmatpush.msra.mxu0 %v2892
    %3277 = vmatpush.msra.mxu0 %v2888
    %3278 = vmatpush.msra.mxu0 %v2884
    %3279 = vmatpush.msra.mxu0 %v2880
    %3280 = vmatpush.msra.mxu0 %v2876
    %3281 = vmatmul.f32.gmra.mxu0 %v2786
    %v3282 = vpop.f32.mrf.mxu0
    %v3283 = vadd.f32 %v3143, %v3282
    %3284 = vdwg.mxu0
    %3285 = vmatpush.msra.mxu0 %v3000
    %3286 = vmatpush.msra.mxu0 %v2996
    %3287 = vmatpush.msra.mxu0 %v2992
    %3288 = vmatpush.msra.mxu0 %v2988
    %3289 = vmatpush.msra.mxu0 %v2984
    %3290 = vmatpush.msra.mxu0 %v2980
    %3291 = vmatpush.msra.mxu0 %v2976
    %3292 = vmatpush.msra.mxu0 %v2972
    %3293 = vmatpush.msra.mxu0 %v2968
    %3294 = vmatpush.msra.mxu0 %v2964
    %3295 = vmatpush.msra.mxu0 %v2960
    %3296 = vmatpush.msra.mxu0 %v2956
    %3297 = vmatpush.msra.mxu0 %v2952
    %3298 = vmatpush.msra.mxu0 %v2948
    %3299 = vmatpush.msra.mxu0 %v2944
    %3300 = vmatpush.msra.mxu0 %v2940
    %3301 = vmatmul.f32.gmra.mxu0 %v2707
    %v3302 = vpop.f32.mrf.mxu0
    %v3303 = vadd.f32 %v3283, %v3302
    %3304 = vdwg.mxu0
    %v3305 = vld [vmem:[%s7] sm:$0xf]
    %v3307 = vperm.slane %v3305, 0
    %v3308 = vperm.slane %v3305, 1
    %v3309 = vperm.slane %v3305, 2
    %v3310 = vperm.slane %v3305, 3
    %v3315 = vadd.f32 %v3183, %v3307
    %v3316 = vadd.f32 %v3223, %v3308
    %v3317 = vadd.f32 %v3263, %v3309
    %v3318 = vadd.f32 %v3303, %v3310
    %v3319 = vxor.u32 %v3315, 2147483648
    %v3320 = vmul.f32 %v3319, 1.442695
    %v3321 = vpow.pop %v3320
    %v3322 = vadd.f32 %v3321, 1.0
    %v3323 = vrcp.pop %v3322
    %v3324 = vmul.f32 %v3322, %v3323
    %v3325 = vsub.f32 1.0, %v3324
    %v3326 = vmul.f32 %v3323, %v3325
    %v3327 = vadd.f32 %v3323, %v3326
    %vm3328 = vweird.f32 %v3322
    %vm3329 = vweird.f32 %v3323
    %vm3330 = vmor %vm3328, %vm3329
    %v3331 = vsel %vm3330, %v3323, %v3327
    %v3332 = vand.u32 2147483647, %v3322
    %vm3333 = vcmp.eq.f32.partialorder %v3332, 8.507059e+37
    %v3334 = vand.u32 %v3322, 2147483648
    %v3335 = vor.u32 1.1754944e-38, %v3334
    %v3336 = vsel %vm3333, %v3335, %v3331
    %v3337 = vmul.f32 1.0, %v3336
    %v3338 = vxor.u32 %v3316, 2147483648
    %v3339 = vmul.f32 %v3338, 1.442695
    %v3340 = vpow.pop %v3339
    %v3341 = vadd.f32 %v3340, 1.0
    %v3342 = vrcp.pop %v3341
    %v3343 = vmul.f32 %v3341, %v3342
    %v3344 = vsub.f32 1.0, %v3343
    %v3345 = vmul.f32 %v3342, %v3344
    %v3346 = vadd.f32 %v3342, %v3345
    %vm3347 = vweird.f32 %v3341
    %vm3348 = vweird.f32 %v3342
    %vm3349 = vmor %vm3347, %vm3348
    %v3350 = vsel %vm3349, %v3342, %v3346
    %v3351 = vand.u32 2147483647, %v3341
    %vm3352 = vcmp.eq.f32.partialorder %v3351, 8.507059e+37
    %v3353 = vand.u32 %v3341, 2147483648
    %v3354 = vor.u32 1.1754944e-38, %v3353
    %v3355 = vsel %vm3352, %v3354, %v3350
    %v3356 = vmul.f32 1.0, %v3355
    %v3357 = vtanh.pop %v3317
    %v3358 = vxor.u32 %v3318, 2147483648
    %v3359 = vmul.f32 %v3358, 1.442695
    %v3360 = vpow.pop %v3359
    %v3361 = vadd.f32 %v3360, 1.0
    %v3362 = vrcp.pop %v3361
    %v3363 = vmul.f32 %v3361, %v3362
    %v3364 = vsub.f32 1.0, %v3363
    %v3365 = vmul.f32 %v3362, %v3364
    %v3366 = vadd.f32 %v3362, %v3365
    %vm3367 = vweird.f32 %v3361
    %vm3368 = vweird.f32 %v3362
    %vm3369 = vmor %vm3367, %vm3368
    %v3370 = vsel %vm3369, %v3362, %v3366
    %v3371 = vand.u32 2147483647, %v3361
    %vm3372 = vcmp.eq.f32.partialorder %v3371, 8.507059e+37
    %v3373 = vand.u32 %v3361, 2147483648
    %v3374 = vor.u32 1.1754944e-38, %v3373
    %v3375 = vsel %vm3372, %v3374, %v3370
    %v3376 = vmul.f32 1.0, %v3375
    %v3377 = vmul.f32 %v3356, %v2705
    %v3378 = vmul.f32 %v3337, %v3357
    %v3379 = vadd.f32 %v3377, %v3378
    %v3380 = vtanh.pop %v3379
    %v3381 = vmul.f32 %v3376, %v3380
    %v3382 = vld [vmem:[%s8] sm:$0xff]
    %v3383 = vld [vmem:[%s8 + $0x8] sm:$0xff]
    %v3384 = vld [vmem:[%s8 + $0x10] sm:$0xff]
    %v3385 = vld [vmem:[%s8 + $0x18] sm:$0xff]
    %v3386 = vld [vmem:[%s8 + $0x20] sm:$0xff]
    %v3387 = vld [vmem:[%s8 + $0x28] sm:$0xff]
    %v3388 = vld [vmem:[%s8 + $0x30] sm:$0xff]
    %v3389 = vld [vmem:[%s8 + $0x38] sm:$0xff]
    %v3390 = vld [vmem:[%s8 + $0x40] sm:$0xff]
    %v3391 = vld [vmem:[%s8 + $0x48] sm:$0xff]
    %v3392 = vld [vmem:[%s8 + $0x50] sm:$0xff]
    %v3393 = vld [vmem:[%s8 + $0x58] sm:$0xff]
    %v3394 = vld [vmem:[%s8 + $0x60] sm:$0xff]
    %v3395 = vld [vmem:[%s8 + $0x68] sm:$0xff]
    %v3396 = vld [vmem:[%s8 + $0x70] sm:$0xff]
    %v3397 = vld [vmem:[%s8 + $0x78] sm:$0xff]
    %v3398 = vld [vmem:[%s9] sm:$0x1]
    %v3400 = vperm.slane %v3398, 0
    %3402 = vmatpush.msra.mxu0 %v3397
    %3403 = vmatpush.msra.mxu0 %v3396
    %3404 = vmatpush.msra.mxu0 %v3395
    %3405 = vmatpush.msra.mxu0 %v3394
    %3406 = vmatpush.msra.mxu0 %v3393
    %3407 = vmatpush.msra.mxu0 %v3392
    %3408 = vmatpush.msra.mxu0 %v3391
    %3409 = vmatpush.msra.mxu0 %v3390
    %3410 = vmatpush.msra.mxu0 %v3389
    %3411 = vmatpush.msra.mxu0 %v3388
    %3412 = vmatpush.msra.mxu0 %v3387
    %3413 = vmatpush.msra.mxu0 %v3386
    %3414 = vmatpush.msra.mxu0 %v3385
    %3415 = vmatpush.msra.mxu0 %v3384
    %3416 = vmatpush.msra.mxu0 %v3383
    %3417 = vmatpush.msra.mxu0 %v3382
    %3418 = vmatmul.f32.gmra.mxu0 %v3381
    %v3419 = vpop.f32.mrf.mxu0
    %v3420 = vadd.f32 %v3400, %v3419
    %3421 = vdwg.mxu0
    %s3422 = scalar_lea.vmem %s10, 40
    %3423 = vst [vmem:[%s3422] sm:$0xff] %v3420
    %3424 = vmax.xlane.f32.xlu0 %v3420
    %v3425 = vpop.xlane.xlu0 %3424
    %vm3426 = vcmp.eq.f32.partialorder %v3420, %v3425
    %v3427 = vsel %vm3426, %v83, 128
    %v3428 = vand.u32 %v3427, 65535
    %v3429 = vshra.s32 %v3427, 16
    %v3430 = vcvt.s32.f32 %v3428
    %v3431 = vcvt.s32.f32 %v3429
    %3432 = vmin.xlane.f32.xlu0 %v3431
    %v3433 = vpop.xlane.xlu0 %3432
    %vm3434 = vcmp.eq.f32.partialorder %v3431, %v3433
    %v3435 = vsel %vm3434, %v3430, inf
    %3436 = vmin.xlane.f32.xlu0 %v3435
    %v3437 = vpop.xlane.xlu0 %3436
    %v3438 = vcvt.f32.s32 %v3437
    %v3439 = vcvt.f32.s32 %v3433
    %v3440 = vshll.u32 %v3439, 16
    %v3441 = vadd.s32 %v3440, %v3438
    %vm3442 = vcmp.eq.s32.totalorder %v83, %v3441
    %v3443 = vsel %vm3442, 1, 0
    %v3444 = vcvt.s32.f32 %v3443
    %s3445 = sld [smem:[#allocation2 + $0x5]]
    %s3446 = scvt.s32.f32 %s3445
    %s3447 = scalar_lea.vmem %s1, 40
    %v3448 = vld [vmem:[%s3447] sm:$0xff]
    %3449 = vset.pattern.permute.xlu0 0
    %3450 = vperm.xlu0 %3449, %v3448
    %v3451 = vpop.permute.xlu0 %3450
    %vm3452 = vcmp.eq.s32.totalorder %v83, %v3451
    %v3453 = vsel %vm3452, 1, 0
    %v3454 = vcvt.s32.f32 %v3453
    %v3455 = vstv %s3446
    %v3456 = vmul.f32 %v3455, %v3454
    %s3457 = ssub.f32 1.0, %s3446
    %v3458 = vstv %s3457
    %v3459 = vmul.f32 %v3458, %v3444
    %v3460 = vadd.f32 %v3456, %v3459
    %v3461 = vmul.f32 %v65, %v3381
    %v3462 = vmul.f32 %v66, %v3381
    %v3463 = vmul.f32 %v67, %v3381
    %v3464 = vmul.f32 %v68, %v3381
    %v3465 = vmul.f32 %v69, %v3381
    %v3466 = vmul.f32 %v70, %v3381
    %v3467 = vmul.f32 %v71, %v3381
    %v3468 = vmul.f32 %v72, %v3381
    %3469 = vadd.xlane.f32.xlu0 %v3461
    %v3470 = vpop.xlane.xlu0 %3469
    %3471 = vadd.xlane.f32.xlu0 %v3462
    %v3472 = vpop.xlane.xlu0 %3471
    %3473 = vadd.xlane.f32.xlu0 %v3463
    %v3474 = vpop.xlane.xlu0 %3473
    %3475 = vadd.xlane.f32.xlu0 %v3464
    %v3476 = vpop.xlane.xlu0 %3475
    %3477 = vadd.xlane.f32.xlu0 %v3465
    %v3478 = vpop.xlane.xlu0 %3477
    %3479 = vadd.xlane.f32.xlu0 %v3466
    %v3480 = vpop.xlane.xlu0 %3479
    %3481 = vadd.xlane.f32.xlu0 %v3467
    %v3482 = vpop.xlane.xlu0 %3481
    %3483 = vadd.xlane.f32.xlu0 %v3468
    %v3484 = vpop.xlane.xlu0 %3483
    %v3485 = vmax.f32 %v3470, %v3478
    %v3486 = vmax.f32 %v3472, %v3480
    %v3487 = vmax.f32 %v3474, %v3482
    %v3488 = vmax.f32 %v3476, %v3484
    %v3489 = vmax.f32 %v3485, %v3486
    %v3490 = vmax.f32 %v3487, %v3488
    %v3491 = vmax.f32 %v3489, %v3490
    %v3492 = vsub.f32 %v3470, %v3491
    %v3493 = vsub.f32 %v3472, %v3491
    %v3494 = vsub.f32 %v3474, %v3491
    %v3495 = vsub.f32 %v3476, %v3491
    %v3496 = vsub.f32 %v3478, %v3491
    %v3497 = vsub.f32 %v3480, %v3491
    %v3498 = vsub.f32 %v3482, %v3491
    %v3499 = vsub.f32 %v3484, %v3491
    %v3500 = vmul.f32 %v3492, 1.442695
    %v3501 = vpow.pop %v3500
    %v3502 = vmul.f32 %v3493, 1.442695
    %v3503 = vpow.pop %v3502
    %v3504 = vmul.f32 %v3494, 1.442695
    %v3505 = vpow.pop %v3504
    %v3506 = vmul.f32 %v3495, 1.442695
    %v3507 = vpow.pop %v3506
    %v3508 = vmul.f32 %v3496, 1.442695
    %v3509 = vpow.pop %v3508
    %v3510 = vmul.f32 %v3497, 1.442695
    %v3511 = vpow.pop %v3510
    %v3512 = vmul.f32 %v3498, 1.442695
    %v3513 = vpow.pop %v3512
    %v3514 = vmul.f32 %v3499, 1.442695
    %v3515 = vpow.pop %v3514
    %v3516 = vadd.f32 %v3501, %v3503
    %v3517 = vadd.f32 %v3516, %v3505
    %v3518 = vadd.f32 %v3517, %v3507
    %v3519 = vadd.f32 %v3518, %v3509
    %v3520 = vadd.f32 %v3519, %v3511
    %v3521 = vadd.f32 %v3520, %v3513
    %v3522 = vadd.f32 %v3521, %v3515
    %v3523 = vrcp.pop %v3522
    %v3524 = vmul.f32 %v3501, %v3523
    %v3525 = vmul.f32 %v3503, %v3523
    %v3526 = vmul.f32 %v3505, %v3523
    %v3527 = vmul.f32 %v3507, %v3523
    %v3528 = vmul.f32 %v3509, %v3523
    %v3529 = vmul.f32 %v3511, %v3523
    %v3530 = vmul.f32 %v3513, %v3523
    %v3531 = vmul.f32 %v3515, %v3523
    %v3532 = vmul.f32 %v3524, %v65
    %v3533 = vmul.f32 %v3525, %v66
    %v3534 = vmul.f32 %v3526, %v67
    %v3535 = vmul.f32 %v3527, %v68
    %v3536 = vmul.f32 %v3528, %v69
    %v3537 = vmul.f32 %v3529, %v70
    %v3538 = vmul.f32 %v3530, %v71
    %v3539 = vmul.f32 %v3531, %v72
    %v3540 = vadd.f32 %v3532, %v3533
    %v3541 = vadd.f32 %v3540, %v3534
    %v3542 = vadd.f32 %v3541, %v3535
    %v3543 = vadd.f32 %v3542, %v3536
    %v3544 = vadd.f32 %v3543, %v3537
    %v3545 = vadd.f32 %v3544, %v3538
    %v3546 = vadd.f32 %v3545, %v3539
    %v3547 = vld [vmem:[%s5] sm:$0xff]
    %v3548 = vld [vmem:[%s5 + $0x8] sm:$0xff]
    %v3549 = vld [vmem:[%s5 + $0x10] sm:$0xff]
    %v3550 = vld [vmem:[%s5 + $0x18] sm:$0xff]
    %v3551 = vld [vmem:[%s5 + $0x20] sm:$0xff]
    %v3552 = vld [vmem:[%s5 + $0x28] sm:$0xff]
    %v3553 = vld [vmem:[%s5 + $0x30] sm:$0xff]
    %v3554 = vld [vmem:[%s5 + $0x38] sm:$0xff]
    %v3555 = vld [vmem:[%s5 + $0x40] sm:$0xff]
    %v3556 = vld [vmem:[%s5 + $0x48] sm:$0xff]
    %v3557 = vld [vmem:[%s5 + $0x50] sm:$0xff]
    %v3558 = vld [vmem:[%s5 + $0x58] sm:$0xff]
    %v3559 = vld [vmem:[%s5 + $0x60] sm:$0xff]
    %v3560 = vld [vmem:[%s5 + $0x68] sm:$0xff]
    %v3561 = vld [vmem:[%s5 + $0x70] sm:$0xff]
    %v3562 = vld [vmem:[%s5 + $0x78] sm:$0xff]
    %v3563 = vld [vmem:[%s5 + $0x80] sm:$0xff]
    %v3564 = vld [vmem:[%s5 + $0x88] sm:$0xff]
    %v3565 = vld [vmem:[%s5 + $0x90] sm:$0xff]
    %v3566 = vld [vmem:[%s5 + $0x98] sm:$0xff]
    %v3567 = vld [vmem:[%s5 + $0xa0] sm:$0xff]
    %v3568 = vld [vmem:[%s5 + $0xa8] sm:$0xff]
    %v3569 = vld [vmem:[%s5 + $0xb0] sm:$0xff]
    %v3570 = vld [vmem:[%s5 + $0xb8] sm:$0xff]
    %v3571 = vld [vmem:[%s5 + $0xc0] sm:$0xff]
    %v3572 = vld [vmem:[%s5 + $0xc8] sm:$0xff]
    %v3573 = vld [vmem:[%s5 + $0xd0] sm:$0xff]
    %v3574 = vld [vmem:[%s5 + $0xd8] sm:$0xff]
    %v3575 = vld [vmem:[%s5 + $0xe0] sm:$0xff]
    %v3576 = vld [vmem:[%s5 + $0xe8] sm:$0xff]
    %v3577 = vld [vmem:[%s5 + $0xf0] sm:$0xff]
    %v3578 = vld [vmem:[%s5 + $0xf8] sm:$0xff]
    %v3579 = vld [vmem:[%s5 + $0x100] sm:$0xff]
    %v3580 = vld [vmem:[%s5 + $0x108] sm:$0xff]
    %v3581 = vld [vmem:[%s5 + $0x110] sm:$0xff]
    %v3582 = vld [vmem:[%s5 + $0x118] sm:$0xff]
    %v3583 = vld [vmem:[%s5 + $0x120] sm:$0xff]
    %v3584 = vld [vmem:[%s5 + $0x128] sm:$0xff]
    %v3585 = vld [vmem:[%s5 + $0x130] sm:$0xff]
    %v3586 = vld [vmem:[%s5 + $0x138] sm:$0xff]
    %v3587 = vld [vmem:[%s5 + $0x140] sm:$0xff]
    %v3588 = vld [vmem:[%s5 + $0x148] sm:$0xff]
    %v3589 = vld [vmem:[%s5 + $0x150] sm:$0xff]
    %v3590 = vld [vmem:[%s5 + $0x158] sm:$0xff]
    %v3591 = vld [vmem:[%s5 + $0x160] sm:$0xff]
    %v3592 = vld [vmem:[%s5 + $0x168] sm:$0xff]
    %v3593 = vld [vmem:[%s5 + $0x170] sm:$0xff]
    %v3594 = vld [vmem:[%s5 + $0x178] sm:$0xff]
    %v3595 = vld [vmem:[%s5 + $0x180] sm:$0xff]
    %v3596 = vld [vmem:[%s5 + $0x188] sm:$0xff]
    %v3597 = vld [vmem:[%s5 + $0x190] sm:$0xff]
    %v3598 = vld [vmem:[%s5 + $0x198] sm:$0xff]
    %v3599 = vld [vmem:[%s5 + $0x1a0] sm:$0xff]
    %v3600 = vld [vmem:[%s5 + $0x1a8] sm:$0xff]
    %v3601 = vld [vmem:[%s5 + $0x1b0] sm:$0xff]
    %v3602 = vld [vmem:[%s5 + $0x1b8] sm:$0xff]
    %v3603 = vld [vmem:[%s5 + $0x1c0] sm:$0xff]
    %v3604 = vld [vmem:[%s5 + $0x1c8] sm:$0xff]
    %v3605 = vld [vmem:[%s5 + $0x1d0] sm:$0xff]
    %v3606 = vld [vmem:[%s5 + $0x1d8] sm:$0xff]
    %v3607 = vld [vmem:[%s5 + $0x1e0] sm:$0xff]
    %v3608 = vld [vmem:[%s5 + $0x1e8] sm:$0xff]
    %v3609 = vld [vmem:[%s5 + $0x1f0] sm:$0xff]
    %v3610 = vld [vmem:[%s5 + $0x1f8] sm:$0xff]
    %v3611 = vld [vmem:[%s5 + $0x200] sm:$0xff]
    %v3612 = vld [vmem:[%s5 + $0x208] sm:$0xff]
    %v3613 = vld [vmem:[%s5 + $0x210] sm:$0xff]
    %v3614 = vld [vmem:[%s5 + $0x218] sm:$0xff]
    %v3615 = vld [vmem:[%s5 + $0x220] sm:$0xff]
    %v3616 = vld [vmem:[%s5 + $0x228] sm:$0xff]
    %v3617 = vld [vmem:[%s5 + $0x230] sm:$0xff]
    %v3618 = vld [vmem:[%s5 + $0x238] sm:$0xff]
    %v3619 = vld [vmem:[%s5 + $0x240] sm:$0xff]
    %v3620 = vld [vmem:[%s5 + $0x248] sm:$0xff]
    %v3621 = vld [vmem:[%s5 + $0x250] sm:$0xff]
    %v3622 = vld [vmem:[%s5 + $0x258] sm:$0xff]
    %v3623 = vld [vmem:[%s5 + $0x260] sm:$0xff]
    %v3624 = vld [vmem:[%s5 + $0x268] sm:$0xff]
    %v3625 = vld [vmem:[%s5 + $0x270] sm:$0xff]
    %v3626 = vld [vmem:[%s5 + $0x278] sm:$0xff]
    %v3627 = vld [vmem:[%s5 + $0x280] sm:$0xff]
    %v3628 = vld [vmem:[%s5 + $0x288] sm:$0xff]
    %v3629 = vld [vmem:[%s5 + $0x290] sm:$0xff]
    %v3630 = vld [vmem:[%s5 + $0x298] sm:$0xff]
    %v3631 = vld [vmem:[%s5 + $0x2a0] sm:$0xff]
    %v3632 = vld [vmem:[%s5 + $0x2a8] sm:$0xff]
    %v3633 = vld [vmem:[%s5 + $0x2b0] sm:$0xff]
    %v3634 = vld [vmem:[%s5 + $0x2b8] sm:$0xff]
    %v3635 = vld [vmem:[%s5 + $0x2c0] sm:$0xff]
    %v3636 = vld [vmem:[%s5 + $0x2c8] sm:$0xff]
    %v3637 = vld [vmem:[%s5 + $0x2d0] sm:$0xff]
    %v3638 = vld [vmem:[%s5 + $0x2d8] sm:$0xff]
    %v3639 = vld [vmem:[%s5 + $0x2e0] sm:$0xff]
    %v3640 = vld [vmem:[%s5 + $0x2e8] sm:$0xff]
    %v3641 = vld [vmem:[%s5 + $0x2f0] sm:$0xff]
    %v3642 = vld [vmem:[%s5 + $0x2f8] sm:$0xff]
    %v3643 = vld [vmem:[%s5 + $0x300] sm:$0xff]
    %v3644 = vld [vmem:[%s5 + $0x308] sm:$0xff]
    %v3645 = vld [vmem:[%s5 + $0x310] sm:$0xff]
    %v3646 = vld [vmem:[%s5 + $0x318] sm:$0xff]
    %v3647 = vld [vmem:[%s5 + $0x320] sm:$0xff]
    %v3648 = vld [vmem:[%s5 + $0x328] sm:$0xff]
    %v3649 = vld [vmem:[%s5 + $0x330] sm:$0xff]
    %v3650 = vld [vmem:[%s5 + $0x338] sm:$0xff]
    %v3651 = vld [vmem:[%s5 + $0x340] sm:$0xff]
    %v3652 = vld [vmem:[%s5 + $0x348] sm:$0xff]
    %v3653 = vld [vmem:[%s5 + $0x350] sm:$0xff]
    %v3654 = vld [vmem:[%s5 + $0x358] sm:$0xff]
    %v3655 = vld [vmem:[%s5 + $0x360] sm:$0xff]
    %v3656 = vld [vmem:[%s5 + $0x368] sm:$0xff]
    %v3657 = vld [vmem:[%s5 + $0x370] sm:$0xff]
    %v3658 = vld [vmem:[%s5 + $0x378] sm:$0xff]
    %v3659 = vld [vmem:[%s5 + $0x380] sm:$0xff]
    %v3660 = vld [vmem:[%s5 + $0x388] sm:$0xff]
    %v3661 = vld [vmem:[%s5 + $0x390] sm:$0xff]
    %v3662 = vld [vmem:[%s5 + $0x398] sm:$0xff]
    %v3663 = vld [vmem:[%s5 + $0x3a0] sm:$0xff]
    %v3664 = vld [vmem:[%s5 + $0x3a8] sm:$0xff]
    %v3665 = vld [vmem:[%s5 + $0x3b0] sm:$0xff]
    %v3666 = vld [vmem:[%s5 + $0x3b8] sm:$0xff]
    %v3667 = vld [vmem:[%s5 + $0x3c0] sm:$0xff]
    %v3668 = vld [vmem:[%s5 + $0x3c8] sm:$0xff]
    %v3669 = vld [vmem:[%s5 + $0x3d0] sm:$0xff]
    %v3670 = vld [vmem:[%s5 + $0x3d8] sm:$0xff]
    %v3671 = vld [vmem:[%s5 + $0x3e0] sm:$0xff]
    %v3672 = vld [vmem:[%s5 + $0x3e8] sm:$0xff]
    %v3673 = vld [vmem:[%s5 + $0x3f0] sm:$0xff]
    %v3674 = vld [vmem:[%s5 + $0x3f8] sm:$0xff]
    %v3675 = vld [vmem:[%s6] sm:$0xff]
    %v3676 = vld [vmem:[%s6 + $0x8] sm:$0xff]
    %v3677 = vld [vmem:[%s6 + $0x10] sm:$0xff]
    %v3678 = vld [vmem:[%s6 + $0x18] sm:$0xff]
    %v3679 = vld [vmem:[%s6 + $0x20] sm:$0xff]
    %v3680 = vld [vmem:[%s6 + $0x28] sm:$0xff]
    %v3681 = vld [vmem:[%s6 + $0x30] sm:$0xff]
    %v3682 = vld [vmem:[%s6 + $0x38] sm:$0xff]
    %v3683 = vld [vmem:[%s6 + $0x40] sm:$0xff]
    %v3684 = vld [vmem:[%s6 + $0x48] sm:$0xff]
    %v3685 = vld [vmem:[%s6 + $0x50] sm:$0xff]
    %v3686 = vld [vmem:[%s6 + $0x58] sm:$0xff]
    %v3687 = vld [vmem:[%s6 + $0x60] sm:$0xff]
    %v3688 = vld [vmem:[%s6 + $0x68] sm:$0xff]
    %v3689 = vld [vmem:[%s6 + $0x70] sm:$0xff]
    %v3690 = vld [vmem:[%s6 + $0x78] sm:$0xff]
    %v3691 = vld [vmem:[%s6 + $0x80] sm:$0xff]
    %v3692 = vld [vmem:[%s6 + $0x88] sm:$0xff]
    %v3693 = vld [vmem:[%s6 + $0x90] sm:$0xff]
    %v3694 = vld [vmem:[%s6 + $0x98] sm:$0xff]
    %v3695 = vld [vmem:[%s6 + $0xa0] sm:$0xff]
    %v3696 = vld [vmem:[%s6 + $0xa8] sm:$0xff]
    %v3697 = vld [vmem:[%s6 + $0xb0] sm:$0xff]
    %v3698 = vld [vmem:[%s6 + $0xb8] sm:$0xff]
    %v3699 = vld [vmem:[%s6 + $0xc0] sm:$0xff]
    %v3700 = vld [vmem:[%s6 + $0xc8] sm:$0xff]
    %v3701 = vld [vmem:[%s6 + $0xd0] sm:$0xff]
    %v3702 = vld [vmem:[%s6 + $0xd8] sm:$0xff]
    %v3703 = vld [vmem:[%s6 + $0xe0] sm:$0xff]
    %v3704 = vld [vmem:[%s6 + $0xe8] sm:$0xff]
    %v3705 = vld [vmem:[%s6 + $0xf0] sm:$0xff]
    %v3706 = vld [vmem:[%s6 + $0xf8] sm:$0xff]
    %v3707 = vld [vmem:[%s6 + $0x100] sm:$0xff]
    %v3708 = vld [vmem:[%s6 + $0x108] sm:$0xff]
    %v3709 = vld [vmem:[%s6 + $0x110] sm:$0xff]
    %v3710 = vld [vmem:[%s6 + $0x118] sm:$0xff]
    %v3711 = vld [vmem:[%s6 + $0x120] sm:$0xff]
    %v3712 = vld [vmem:[%s6 + $0x128] sm:$0xff]
    %v3713 = vld [vmem:[%s6 + $0x130] sm:$0xff]
    %v3714 = vld [vmem:[%s6 + $0x138] sm:$0xff]
    %v3715 = vld [vmem:[%s6 + $0x140] sm:$0xff]
    %v3716 = vld [vmem:[%s6 + $0x148] sm:$0xff]
    %v3717 = vld [vmem:[%s6 + $0x150] sm:$0xff]
    %v3718 = vld [vmem:[%s6 + $0x158] sm:$0xff]
    %v3719 = vld [vmem:[%s6 + $0x160] sm:$0xff]
    %v3720 = vld [vmem:[%s6 + $0x168] sm:$0xff]
    %v3721 = vld [vmem:[%s6 + $0x170] sm:$0xff]
    %v3722 = vld [vmem:[%s6 + $0x178] sm:$0xff]
    %v3723 = vld [vmem:[%s6 + $0x180] sm:$0xff]
    %v3724 = vld [vmem:[%s6 + $0x188] sm:$0xff]
    %v3725 = vld [vmem:[%s6 + $0x190] sm:$0xff]
    %v3726 = vld [vmem:[%s6 + $0x198] sm:$0xff]
    %v3727 = vld [vmem:[%s6 + $0x1a0] sm:$0xff]
    %v3728 = vld [vmem:[%s6 + $0x1a8] sm:$0xff]
    %v3729 = vld [vmem:[%s6 + $0x1b0] sm:$0xff]
    %v3730 = vld [vmem:[%s6 + $0x1b8] sm:$0xff]
    %v3731 = vld [vmem:[%s6 + $0x1c0] sm:$0xff]
    %v3732 = vld [vmem:[%s6 + $0x1c8] sm:$0xff]
    %v3733 = vld [vmem:[%s6 + $0x1d0] sm:$0xff]
    %v3734 = vld [vmem:[%s6 + $0x1d8] sm:$0xff]
    %v3735 = vld [vmem:[%s6 + $0x1e0] sm:$0xff]
    %v3736 = vld [vmem:[%s6 + $0x1e8] sm:$0xff]
    %v3737 = vld [vmem:[%s6 + $0x1f0] sm:$0xff]
    %v3738 = vld [vmem:[%s6 + $0x1f8] sm:$0xff]
    %3739 = vmatpush.msra.mxu0 %v3735
    %3740 = vmatpush.msra.mxu0 %v3731
    %3741 = vmatpush.msra.mxu0 %v3727
    %3742 = vmatpush.msra.mxu0 %v3723
    %3743 = vmatpush.msra.mxu0 %v3719
    %3744 = vmatpush.msra.mxu0 %v3715
    %3745 = vmatpush.msra.mxu0 %v3711
    %3746 = vmatpush.msra.mxu0 %v3707
    %3747 = vmatpush.msra.mxu0 %v3703
    %3748 = vmatpush.msra.mxu0 %v3699
    %3749 = vmatpush.msra.mxu0 %v3695
    %3750 = vmatpush.msra.mxu0 %v3691
    %3751 = vmatpush.msra.mxu0 %v3687
    %3752 = vmatpush.msra.mxu0 %v3683
    %3753 = vmatpush.msra.mxu0 %v3679
    %3754 = vmatpush.msra.mxu0 %v3675
    %3755 = vmatmul.f32.gmra.mxu0 %v3546
    %v3756 = vpop.f32.mrf.mxu0
    %v3757 = vadd.f32 0.0, %v3756
    %3758 = vdwg.mxu0
    %3759 = vmatpush.msra.mxu0 %v3736
    %3760 = vmatpush.msra.mxu0 %v3732
    %3761 = vmatpush.msra.mxu0 %v3728
    %3762 = vmatpush.msra.mxu0 %v3724
    %3763 = vmatpush.msra.mxu0 %v3720
    %3764 = vmatpush.msra.mxu0 %v3716
    %3765 = vmatpush.msra.mxu0 %v3712
    %3766 = vmatpush.msra.mxu0 %v3708
    %3767 = vmatpush.msra.mxu0 %v3704
    %3768 = vmatpush.msra.mxu0 %v3700
    %3769 = vmatpush.msra.mxu0 %v3696
    %3770 = vmatpush.msra.mxu0 %v3692
    %3771 = vmatpush.msra.mxu0 %v3688
    %3772 = vmatpush.msra.mxu0 %v3684
    %3773 = vmatpush.msra.mxu0 %v3680
    %3774 = vmatpush.msra.mxu0 %v3676
    %3775 = vmatmul.f32.gmra.mxu0 %v3546
    %v3776 = vpop.f32.mrf.mxu0
    %v3777 = vadd.f32 0.0, %v3776
    %3778 = vdwg.mxu0
    %3779 = vmatpush.msra.mxu0 %v3737
    %3780 = vmatpush.msra.mxu0 %v3733
    %3781 = vmatpush.msra.mxu0 %v3729
    %3782 = vmatpush.msra.mxu0 %v3725
    %3783 = vmatpush.msra.mxu0 %v3721
    %3784 = vmatpush.msra.mxu0 %v3717
    %3785 = vmatpush.msra.mxu0 %v3713
    %3786 = vmatpush.msra.mxu0 %v3709
    %3787 = vmatpush.msra.mxu0 %v3705
    %3788 = vmatpush.msra.mxu0 %v3701
    %3789 = vmatpush.msra.mxu0 %v3697
    %3790 = vmatpush.msra.mxu0 %v3693
    %3791 = vmatpush.msra.mxu0 %v3689
    %3792 = vmatpush.msra.mxu0 %v3685
    %3793 = vmatpush.msra.mxu0 %v3681
    %3794 = vmatpush.msra.mxu0 %v3677
    %3795 = vmatmul.f32.gmra.mxu0 %v3546
    %v3796 = vpop.f32.mrf.mxu0
    %v3797 = vadd.f32 0.0, %v3796
    %3798 = vdwg.mxu0
    %3799 = vmatpush.msra.mxu0 %v3738
    %3800 = vmatpush.msra.mxu0 %v3734
    %3801 = vmatpush.msra.mxu0 %v3730
    %3802 = vmatpush.msra.mxu0 %v3726
    %3803 = vmatpush.msra.mxu0 %v3722
    %3804 = vmatpush.msra.mxu0 %v3718
    %3805 = vmatpush.msra.mxu0 %v3714
    %3806 = vmatpush.msra.mxu0 %v3710
    %3807 = vmatpush.msra.mxu0 %v3706
    %3808 = vmatpush.msra.mxu0 %v3702
    %3809 = vmatpush.msra.mxu0 %v3698
    %3810 = vmatpush.msra.mxu0 %v3694
    %3811 = vmatpush.msra.mxu0 %v3690
    %3812 = vmatpush.msra.mxu0 %v3686
    %3813 = vmatpush.msra.mxu0 %v3682
    %3814 = vmatpush.msra.mxu0 %v3678
    %3815 = vmatmul.f32.gmra.mxu0 %v3546
    %v3816 = vpop.f32.mrf.mxu0
    %v3817 = vadd.f32 0.0, %v3816
    %3818 = vdwg.mxu0
    %3819 = vmatpush.msra.mxu0 %v3607
    %3820 = vmatpush.msra.mxu0 %v3603
    %3821 = vmatpush.msra.mxu0 %v3599
    %3822 = vmatpush.msra.mxu0 %v3595
    %3823 = vmatpush.msra.mxu0 %v3591
    %3824 = vmatpush.msra.mxu0 %v3587
    %3825 = vmatpush.msra.mxu0 %v3583
    %3826 = vmatpush.msra.mxu0 %v3579
    %3827 = vmatpush.msra.mxu0 %v3575
    %3828 = vmatpush.msra.mxu0 %v3571
    %3829 = vmatpush.msra.mxu0 %v3567
    %3830 = vmatpush.msra.mxu0 %v3563
    %3831 = vmatpush.msra.mxu0 %v3559
    %3832 = vmatpush.msra.mxu0 %v3555
    %3833 = vmatpush.msra.mxu0 %v3551
    %3834 = vmatpush.msra.mxu0 %v3547
    %3835 = vmatmul.f32.gmra.mxu0 %v3460
    %v3836 = vpop.f32.mrf.mxu0
    %v3837 = vadd.f32 %v3757, %v3836
    %3838 = vdwg.mxu0
    %3839 = vmatpush.msra.mxu0 %v3671
    %3840 = vmatpush.msra.mxu0 %v3667
    %3841 = vmatpush.msra.mxu0 %v3663
    %3842 = vmatpush.msra.mxu0 %v3659
    %3843 = vmatpush.msra.mxu0 %v3655
    %3844 = vmatpush.msra.mxu0 %v3651
    %3845 = vmatpush.msra.mxu0 %v3647
    %3846 = vmatpush.msra.mxu0 %v3643
    %3847 = vmatpush.msra.mxu0 %v3639
    %3848 = vmatpush.msra.mxu0 %v3635
    %3849 = vmatpush.msra.mxu0 %v3631
    %3850 = vmatpush.msra.mxu0 %v3627
    %3851 = vmatpush.msra.mxu0 %v3623
    %3852 = vmatpush.msra.mxu0 %v3619
    %3853 = vmatpush.msra.mxu0 %v3615
    %3854 = vmatpush.msra.mxu0 %v3611
    %3855 = vmatmul.f32.gmra.mxu0 %v3381
    %v3856 = vpop.f32.mrf.mxu0
    %v3857 = vadd.f32 %v3837, %v3856
    %3858 = vdwg.mxu0
    %3859 = vmatpush.msra.mxu0 %v3608
    %3860 = vmatpush.msra.mxu0 %v3604
    %3861 = vmatpush.msra.mxu0 %v3600
    %3862 = vmatpush.msra.mxu0 %v3596
    %3863 = vmatpush.msra.mxu0 %v3592
    %3864 = vmatpush.msra.mxu0 %v3588
    %3865 = vmatpush.msra.mxu0 %v3584
    %3866 = vmatpush.msra.mxu0 %v3580
    %3867 = vmatpush.msra.mxu0 %v3576
    %3868 = vmatpush.msra.mxu0 %v3572
    %3869 = vmatpush.msra.mxu0 %v3568
    %3870 = vmatpush.msra.mxu0 %v3564
    %3871 = vmatpush.msra.mxu0 %v3560
    %3872 = vmatpush.msra.mxu0 %v3556
    %3873 = vmatpush.msra.mxu0 %v3552
    %3874 = vmatpush.msra.mxu0 %v3548
    %3875 = vmatmul.f32.gmra.mxu0 %v3460
    %v3876 = vpop.f32.mrf.mxu0
    %v3877 = vadd.f32 %v3777, %v3876
    %3878 = vdwg.mxu0
    %3879 = vmatpush.msra.mxu0 %v3672
    %3880 = vmatpush.msra.mxu0 %v3668
    %3881 = vmatpush.msra.mxu0 %v3664
    %3882 = vmatpush.msra.mxu0 %v3660
    %3883 = vmatpush.msra.mxu0 %v3656
    %3884 = vmatpush.msra.mxu0 %v3652
    %3885 = vmatpush.msra.mxu0 %v3648
    %3886 = vmatpush.msra.mxu0 %v3644
    %3887 = vmatpush.msra.mxu0 %v3640
    %3888 = vmatpush.msra.mxu0 %v3636
    %3889 = vmatpush.msra.mxu0 %v3632
    %3890 = vmatpush.msra.mxu0 %v3628
    %3891 = vmatpush.msra.mxu0 %v3624
    %3892 = vmatpush.msra.mxu0 %v3620
    %3893 = vmatpush.msra.mxu0 %v3616
    %3894 = vmatpush.msra.mxu0 %v3612
    %3895 = vmatmul.f32.gmra.mxu0 %v3381
    %v3896 = vpop.f32.mrf.mxu0
    %v3897 = vadd.f32 %v3877, %v3896
    %3898 = vdwg.mxu0
    %3899 = vmatpush.msra.mxu0 %v3609
    %3900 = vmatpush.msra.mxu0 %v3605
    %3901 = vmatpush.msra.mxu0 %v3601
    %3902 = vmatpush.msra.mxu0 %v3597
    %3903 = vmatpush.msra.mxu0 %v3593
    %3904 = vmatpush.msra.mxu0 %v3589
    %3905 = vmatpush.msra.mxu0 %v3585
    %3906 = vmatpush.msra.mxu0 %v3581
    %3907 = vmatpush.msra.mxu0 %v3577
    %3908 = vmatpush.msra.mxu0 %v3573
    %3909 = vmatpush.msra.mxu0 %v3569
    %3910 = vmatpush.msra.mxu0 %v3565
    %3911 = vmatpush.msra.mxu0 %v3561
    %3912 = vmatpush.msra.mxu0 %v3557
    %3913 = vmatpush.msra.mxu0 %v3553
    %3914 = vmatpush.msra.mxu0 %v3549
    %3915 = vmatmul.f32.gmra.mxu0 %v3460
    %v3916 = vpop.f32.mrf.mxu0
    %v3917 = vadd.f32 %v3797, %v3916
    %3918 = vdwg.mxu0
    %3919 = vmatpush.msra.mxu0 %v3673
    %3920 = vmatpush.msra.mxu0 %v3669
    %3921 = vmatpush.msra.mxu0 %v3665
    %3922 = vmatpush.msra.mxu0 %v3661
    %3923 = vmatpush.msra.mxu0 %v3657
    %3924 = vmatpush.msra.mxu0 %v3653
    %3925 = vmatpush.msra.mxu0 %v3649
    %3926 = vmatpush.msra.mxu0 %v3645
    %3927 = vmatpush.msra.mxu0 %v3641
    %3928 = vmatpush.msra.mxu0 %v3637
    %3929 = vmatpush.msra.mxu0 %v3633
    %3930 = vmatpush.msra.mxu0 %v3629
    %3931 = vmatpush.msra.mxu0 %v3625
    %3932 = vmatpush.msra.mxu0 %v3621
    %3933 = vmatpush.msra.mxu0 %v3617
    %3934 = vmatpush.msra.mxu0 %v3613
    %3935 = vmatmul.f32.gmra.mxu0 %v3381
    %v3936 = vpop.f32.mrf.mxu0
    %v3937 = vadd.f32 %v3917, %v3936
    %3938 = vdwg.mxu0
    %3939 = vmatpush.msra.mxu0 %v3610
    %3940 = vmatpush.msra.mxu0 %v3606
    %3941 = vmatpush.msra.mxu0 %v3602
    %3942 = vmatpush.msra.mxu0 %v3598
    %3943 = vmatpush.msra.mxu0 %v3594
    %3944 = vmatpush.msra.mxu0 %v3590
    %3945 = vmatpush.msra.mxu0 %v3586
    %3946 = vmatpush.msra.mxu0 %v3582
    %3947 = vmatpush.msra.mxu0 %v3578
    %3948 = vmatpush.msra.mxu0 %v3574
    %3949 = vmatpush.msra.mxu0 %v3570
    %3950 = vmatpush.msra.mxu0 %v3566
    %3951 = vmatpush.msra.mxu0 %v3562
    %3952 = vmatpush.msra.mxu0 %v3558
    %3953 = vmatpush.msra.mxu0 %v3554
    %3954 = vmatpush.msra.mxu0 %v3550
    %3955 = vmatmul.f32.gmra.mxu0 %v3460
    %v3956 = vpop.f32.mrf.mxu0
    %v3957 = vadd.f32 %v3817, %v3956
    %3958 = vdwg.mxu0
    %3959 = vmatpush.msra.mxu0 %v3674
    %3960 = vmatpush.msra.mxu0 %v3670
    %3961 = vmatpush.msra.mxu0 %v3666
    %3962 = vmatpush.msra.mxu0 %v3662
    %3963 = vmatpush.msra.mxu0 %v3658
    %3964 = vmatpush.msra.mxu0 %v3654
    %3965 = vmatpush.msra.mxu0 %v3650
    %3966 = vmatpush.msra.mxu0 %v3646
    %3967 = vmatpush.msra.mxu0 %v3642
    %3968 = vmatpush.msra.mxu0 %v3638
    %3969 = vmatpush.msra.mxu0 %v3634
    %3970 = vmatpush.msra.mxu0 %v3630
    %3971 = vmatpush.msra.mxu0 %v3626
    %3972 = vmatpush.msra.mxu0 %v3622
    %3973 = vmatpush.msra.mxu0 %v3618
    %3974 = vmatpush.msra.mxu0 %v3614
    %3975 = vmatmul.f32.gmra.mxu0 %v3381
    %v3976 = vpop.f32.mrf.mxu0
    %v3977 = vadd.f32 %v3957, %v3976
    %3978 = vdwg.mxu0
    %v3979 = vld [vmem:[%s7] sm:$0xf]
    %v3981 = vperm.slane %v3979, 0
    %v3982 = vperm.slane %v3979, 1
    %v3983 = vperm.slane %v3979, 2
    %v3984 = vperm.slane %v3979, 3
    %v3989 = vadd.f32 %v3857, %v3981
    %v3990 = vadd.f32 %v3897, %v3982
    %v3991 = vadd.f32 %v3937, %v3983
    %v3992 = vadd.f32 %v3977, %v3984
    %v3993 = vxor.u32 %v3989, 2147483648
    %v3994 = vmul.f32 %v3993, 1.442695
    %v3995 = vpow.pop %v3994
    %v3996 = vadd.f32 %v3995, 1.0
    %v3997 = vrcp.pop %v3996
    %v3998 = vmul.f32 %v3996, %v3997
    %v3999 = vsub.f32 1.0, %v3998
    %v4000 = vmul.f32 %v3997, %v3999
    %v4001 = vadd.f32 %v3997, %v4000
    %vm4002 = vweird.f32 %v3996
    %vm4003 = vweird.f32 %v3997
    %vm4004 = vmor %vm4002, %vm4003
    %v4005 = vsel %vm4004, %v3997, %v4001
    %v4006 = vand.u32 2147483647, %v3996
    %vm4007 = vcmp.eq.f32.partialorder %v4006, 8.507059e+37
    %v4008 = vand.u32 %v3996, 2147483648
    %v4009 = vor.u32 1.1754944e-38, %v4008
    %v4010 = vsel %vm4007, %v4009, %v4005
    %v4011 = vmul.f32 1.0, %v4010
    %v4012 = vxor.u32 %v3990, 2147483648
    %v4013 = vmul.f32 %v4012, 1.442695
    %v4014 = vpow.pop %v4013
    %v4015 = vadd.f32 %v4014, 1.0
    %v4016 = vrcp.pop %v4015
    %v4017 = vmul.f32 %v4015, %v4016
    %v4018 = vsub.f32 1.0, %v4017
    %v4019 = vmul.f32 %v4016, %v4018
    %v4020 = vadd.f32 %v4016, %v4019
    %vm4021 = vweird.f32 %v4015
    %vm4022 = vweird.f32 %v4016
    %vm4023 = vmor %vm4021, %vm4022
    %v4024 = vsel %vm4023, %v4016, %v4020
    %v4025 = vand.u32 2147483647, %v4015
    %vm4026 = vcmp.eq.f32.partialorder %v4025, 8.507059e+37
    %v4027 = vand.u32 %v4015, 2147483648
    %v4028 = vor.u32 1.1754944e-38, %v4027
    %v4029 = vsel %vm4026, %v4028, %v4024
    %v4030 = vmul.f32 1.0, %v4029
    %v4031 = vtanh.pop %v3991
    %v4032 = vxor.u32 %v3992, 2147483648
    %v4033 = vmul.f32 %v4032, 1.442695
    %v4034 = vpow.pop %v4033
    %v4035 = vadd.f32 %v4034, 1.0
    %v4036 = vrcp.pop %v4035
    %v4037 = vmul.f32 %v4035, %v4036
    %v4038 = vsub.f32 1.0, %v4037
    %v4039 = vmul.f32 %v4036, %v4038
    %v4040 = vadd.f32 %v4036, %v4039
    %vm4041 = vweird.f32 %v4035
    %vm4042 = vweird.f32 %v4036
    %vm4043 = vmor %vm4041, %vm4042
    %v4044 = vsel %vm4043, %v4036, %v4040
    %v4045 = vand.u32 2147483647, %v4035
    %vm4046 = vcmp.eq.f32.partialorder %v4045, 8.507059e+37
    %v4047 = vand.u32 %v4035, 2147483648
    %v4048 = vor.u32 1.1754944e-38, %v4047
    %v4049 = vsel %vm4046, %v4048, %v4044
    %v4050 = vmul.f32 1.0, %v4049
    %v4051 = vmul.f32 %v4030, %v3379
    %v4052 = vmul.f32 %v4011, %v4031
    %v4053 = vadd.f32 %v4051, %v4052
    %v4054 = vtanh.pop %v4053
    %v4055 = vmul.f32 %v4050, %v4054
    %v4056 = vld [vmem:[%s8] sm:$0xff]
    %v4057 = vld [vmem:[%s8 + $0x8] sm:$0xff]
    %v4058 = vld [vmem:[%s8 + $0x10] sm:$0xff]
    %v4059 = vld [vmem:[%s8 + $0x18] sm:$0xff]
    %v4060 = vld [vmem:[%s8 + $0x20] sm:$0xff]
    %v4061 = vld [vmem:[%s8 + $0x28] sm:$0xff]
    %v4062 = vld [vmem:[%s8 + $0x30] sm:$0xff]
    %v4063 = vld [vmem:[%s8 + $0x38] sm:$0xff]
    %v4064 = vld [vmem:[%s8 + $0x40] sm:$0xff]
    %v4065 = vld [vmem:[%s8 + $0x48] sm:$0xff]
    %v4066 = vld [vmem:[%s8 + $0x50] sm:$0xff]
    %v4067 = vld [vmem:[%s8 + $0x58] sm:$0xff]
    %v4068 = vld [vmem:[%s8 + $0x60] sm:$0xff]
    %v4069 = vld [vmem:[%s8 + $0x68] sm:$0xff]
    %v4070 = vld [vmem:[%s8 + $0x70] sm:$0xff]
    %v4071 = vld [vmem:[%s8 + $0x78] sm:$0xff]
    %v4072 = vld [vmem:[%s9] sm:$0x1]
    %v4074 = vperm.slane %v4072, 0
    %4076 = vmatpush.msra.mxu0 %v4071
    %4077 = vmatpush.msra.mxu0 %v4070
    %4078 = vmatpush.msra.mxu0 %v4069
    %4079 = vmatpush.msra.mxu0 %v4068
    %4080 = vmatpush.msra.mxu0 %v4067
    %4081 = vmatpush.msra.mxu0 %v4066
    %4082 = vmatpush.msra.mxu0 %v4065
    %4083 = vmatpush.msra.mxu0 %v4064
    %4084 = vmatpush.msra.mxu0 %v4063
    %4085 = vmatpush.msra.mxu0 %v4062
    %4086 = vmatpush.msra.mxu0 %v4061
    %4087 = vmatpush.msra.mxu0 %v4060
    %4088 = vmatpush.msra.mxu0 %v4059
    %4089 = vmatpush.msra.mxu0 %v4058
    %4090 = vmatpush.msra.mxu0 %v4057
    %4091 = vmatpush.msra.mxu0 %v4056
    %4092 = vmatmul.f32.gmra.mxu0 %v4055
    %v4093 = vpop.f32.mrf.mxu0
    %v4094 = vadd.f32 %v4074, %v4093
    %4095 = vdwg.mxu0
    %s4096 = scalar_lea.vmem %s10, 48
    %4097 = vst [vmem:[%s4096] sm:$0xff] %v4094
    %4098 = vmax.xlane.f32.xlu0 %v4094
    %v4099 = vpop.xlane.xlu0 %4098
    %vm4100 = vcmp.eq.f32.partialorder %v4094, %v4099
    %v4101 = vsel %vm4100, %v83, 128
    %v4102 = vand.u32 %v4101, 65535
    %v4103 = vshra.s32 %v4101, 16
    %v4104 = vcvt.s32.f32 %v4102
    %v4105 = vcvt.s32.f32 %v4103
    %4106 = vmin.xlane.f32.xlu0 %v4105
    %v4107 = vpop.xlane.xlu0 %4106
    %vm4108 = vcmp.eq.f32.partialorder %v4105, %v4107
    %v4109 = vsel %vm4108, %v4104, inf
    %4110 = vmin.xlane.f32.xlu0 %v4109
    %v4111 = vpop.xlane.xlu0 %4110
    %v4112 = vcvt.f32.s32 %v4111
    %v4113 = vcvt.f32.s32 %v4107
    %v4114 = vshll.u32 %v4113, 16
    %v4115 = vadd.s32 %v4114, %v4112
    %vm4116 = vcmp.eq.s32.totalorder %v83, %v4115
    %v4117 = vsel %vm4116, 1, 0
    %v4118 = vcvt.s32.f32 %v4117
    %s4119 = sld [smem:[#allocation2 + $0x6]]
    %s4120 = scvt.s32.f32 %s4119
    %s4121 = scalar_lea.vmem %s1, 48
    %v4122 = vld [vmem:[%s4121] sm:$0xff]
    %4123 = vset.pattern.permute.xlu0 0
    %4124 = vperm.xlu0 %4123, %v4122
    %v4125 = vpop.permute.xlu0 %4124
    %vm4126 = vcmp.eq.s32.totalorder %v83, %v4125
    %v4127 = vsel %vm4126, 1, 0
    %v4128 = vcvt.s32.f32 %v4127
    %v4129 = vstv %s4120
    %v4130 = vmul.f32 %v4129, %v4128
    %s4131 = ssub.f32 1.0, %s4120
    %v4132 = vstv %s4131
    %v4133 = vmul.f32 %v4132, %v4118
    %v4134 = vadd.f32 %v4130, %v4133
    %v4135 = vmul.f32 %v65, %v4055
    %v4136 = vmul.f32 %v66, %v4055
    %v4137 = vmul.f32 %v67, %v4055
    %v4138 = vmul.f32 %v68, %v4055
    %v4139 = vmul.f32 %v69, %v4055
    %v4140 = vmul.f32 %v70, %v4055
    %v4141 = vmul.f32 %v71, %v4055
    %v4142 = vmul.f32 %v72, %v4055
    %4143 = vadd.xlane.f32.xlu0 %v4135
    %v4144 = vpop.xlane.xlu0 %4143
    %4145 = vadd.xlane.f32.xlu0 %v4136
    %v4146 = vpop.xlane.xlu0 %4145
    %4147 = vadd.xlane.f32.xlu0 %v4137
    %v4148 = vpop.xlane.xlu0 %4147
    %4149 = vadd.xlane.f32.xlu0 %v4138
    %v4150 = vpop.xlane.xlu0 %4149
    %4151 = vadd.xlane.f32.xlu0 %v4139
    %v4152 = vpop.xlane.xlu0 %4151
    %4153 = vadd.xlane.f32.xlu0 %v4140
    %v4154 = vpop.xlane.xlu0 %4153
    %4155 = vadd.xlane.f32.xlu0 %v4141
    %v4156 = vpop.xlane.xlu0 %4155
    %4157 = vadd.xlane.f32.xlu0 %v4142
    %v4158 = vpop.xlane.xlu0 %4157
    %v4159 = vmax.f32 %v4144, %v4152
    %v4160 = vmax.f32 %v4146, %v4154
    %v4161 = vmax.f32 %v4148, %v4156
    %v4162 = vmax.f32 %v4150, %v4158
    %v4163 = vmax.f32 %v4159, %v4160
    %v4164 = vmax.f32 %v4161, %v4162
    %v4165 = vmax.f32 %v4163, %v4164
    %v4166 = vsub.f32 %v4144, %v4165
    %v4167 = vsub.f32 %v4146, %v4165
    %v4168 = vsub.f32 %v4148, %v4165
    %v4169 = vsub.f32 %v4150, %v4165
    %v4170 = vsub.f32 %v4152, %v4165
    %v4171 = vsub.f32 %v4154, %v4165
    %v4172 = vsub.f32 %v4156, %v4165
    %v4173 = vsub.f32 %v4158, %v4165
    %v4174 = vmul.f32 %v4166, 1.442695
    %v4175 = vpow.pop %v4174
    %v4176 = vmul.f32 %v4167, 1.442695
    %v4177 = vpow.pop %v4176
    %v4178 = vmul.f32 %v4168, 1.442695
    %v4179 = vpow.pop %v4178
    %v4180 = vmul.f32 %v4169, 1.442695
    %v4181 = vpow.pop %v4180
    %v4182 = vmul.f32 %v4170, 1.442695
    %v4183 = vpow.pop %v4182
    %v4184 = vmul.f32 %v4171, 1.442695
    %v4185 = vpow.pop %v4184
    %v4186 = vmul.f32 %v4172, 1.442695
    %v4187 = vpow.pop %v4186
    %v4188 = vmul.f32 %v4173, 1.442695
    %v4189 = vpow.pop %v4188
    %v4190 = vadd.f32 %v4175, %v4177
    %v4191 = vadd.f32 %v4190, %v4179
    %v4192 = vadd.f32 %v4191, %v4181
    %v4193 = vadd.f32 %v4192, %v4183
    %v4194 = vadd.f32 %v4193, %v4185
    %v4195 = vadd.f32 %v4194, %v4187
    %v4196 = vadd.f32 %v4195, %v4189
    %v4197 = vrcp.pop %v4196
    %v4198 = vmul.f32 %v4175, %v4197
    %v4199 = vmul.f32 %v4177, %v4197
    %v4200 = vmul.f32 %v4179, %v4197
    %v4201 = vmul.f32 %v4181, %v4197
    %v4202 = vmul.f32 %v4183, %v4197
    %v4203 = vmul.f32 %v4185, %v4197
    %v4204 = vmul.f32 %v4187, %v4197
    %v4205 = vmul.f32 %v4189, %v4197
    %v4206 = vmul.f32 %v4198, %v65
    %v4207 = vmul.f32 %v4199, %v66
    %v4208 = vmul.f32 %v4200, %v67
    %v4209 = vmul.f32 %v4201, %v68
    %v4210 = vmul.f32 %v4202, %v69
    %v4211 = vmul.f32 %v4203, %v70
    %v4212 = vmul.f32 %v4204, %v71
    %v4213 = vmul.f32 %v4205, %v72
    %v4214 = vadd.f32 %v4206, %v4207
    %v4215 = vadd.f32 %v4214, %v4208
    %v4216 = vadd.f32 %v4215, %v4209
    %v4217 = vadd.f32 %v4216, %v4210
    %v4218 = vadd.f32 %v4217, %v4211
    %v4219 = vadd.f32 %v4218, %v4212
    %v4220 = vadd.f32 %v4219, %v4213
    %v4221 = vld [vmem:[%s5] sm:$0xff]
    %v4222 = vld [vmem:[%s5 + $0x8] sm:$0xff]
    %v4223 = vld [vmem:[%s5 + $0x10] sm:$0xff]
    %v4224 = vld [vmem:[%s5 + $0x18] sm:$0xff]
    %v4225 = vld [vmem:[%s5 + $0x20] sm:$0xff]
    %v4226 = vld [vmem:[%s5 + $0x28] sm:$0xff]
    %v4227 = vld [vmem:[%s5 + $0x30] sm:$0xff]
    %v4228 = vld [vmem:[%s5 + $0x38] sm:$0xff]
    %v4229 = vld [vmem:[%s5 + $0x40] sm:$0xff]
    %v4230 = vld [vmem:[%s5 + $0x48] sm:$0xff]
    %v4231 = vld [vmem:[%s5 + $0x50] sm:$0xff]
    %v4232 = vld [vmem:[%s5 + $0x58] sm:$0xff]
    %v4233 = vld [vmem:[%s5 + $0x60] sm:$0xff]
    %v4234 = vld [vmem:[%s5 + $0x68] sm:$0xff]
    %v4235 = vld [vmem:[%s5 + $0x70] sm:$0xff]
    %v4236 = vld [vmem:[%s5 + $0x78] sm:$0xff]
    %v4237 = vld [vmem:[%s5 + $0x80] sm:$0xff]
    %v4238 = vld [vmem:[%s5 + $0x88] sm:$0xff]
    %v4239 = vld [vmem:[%s5 + $0x90] sm:$0xff]
    %v4240 = vld [vmem:[%s5 + $0x98] sm:$0xff]
    %v4241 = vld [vmem:[%s5 + $0xa0] sm:$0xff]
    %v4242 = vld [vmem:[%s5 + $0xa8] sm:$0xff]
    %v4243 = vld [vmem:[%s5 + $0xb0] sm:$0xff]
    %v4244 = vld [vmem:[%s5 + $0xb8] sm:$0xff]
    %v4245 = vld [vmem:[%s5 + $0xc0] sm:$0xff]
    %v4246 = vld [vmem:[%s5 + $0xc8] sm:$0xff]
    %v4247 = vld [vmem:[%s5 + $0xd0] sm:$0xff]
    %v4248 = vld [vmem:[%s5 + $0xd8] sm:$0xff]
    %v4249 = vld [vmem:[%s5 + $0xe0] sm:$0xff]
    %v4250 = vld [vmem:[%s5 + $0xe8] sm:$0xff]
    %v4251 = vld [vmem:[%s5 + $0xf0] sm:$0xff]
    %v4252 = vld [vmem:[%s5 + $0xf8] sm:$0xff]
    %v4253 = vld [vmem:[%s5 + $0x100] sm:$0xff]
    %v4254 = vld [vmem:[%s5 + $0x108] sm:$0xff]
    %v4255 = vld [vmem:[%s5 + $0x110] sm:$0xff]
    %v4256 = vld [vmem:[%s5 + $0x118] sm:$0xff]
    %v4257 = vld [vmem:[%s5 + $0x120] sm:$0xff]
    %v4258 = vld [vmem:[%s5 + $0x128] sm:$0xff]
    %v4259 = vld [vmem:[%s5 + $0x130] sm:$0xff]
    %v4260 = vld [vmem:[%s5 + $0x138] sm:$0xff]
    %v4261 = vld [vmem:[%s5 + $0x140] sm:$0xff]
    %v4262 = vld [vmem:[%s5 + $0x148] sm:$0xff]
    %v4263 = vld [vmem:[%s5 + $0x150] sm:$0xff]
    %v4264 = vld [vmem:[%s5 + $0x158] sm:$0xff]
    %v4265 = vld [vmem:[%s5 + $0x160] sm:$0xff]
    %v4266 = vld [vmem:[%s5 + $0x168] sm:$0xff]
    %v4267 = vld [vmem:[%s5 + $0x170] sm:$0xff]
    %v4268 = vld [vmem:[%s5 + $0x178] sm:$0xff]
    %v4269 = vld [vmem:[%s5 + $0x180] sm:$0xff]
    %v4270 = vld [vmem:[%s5 + $0x188] sm:$0xff]
    %v4271 = vld [vmem:[%s5 + $0x190] sm:$0xff]
    %v4272 = vld [vmem:[%s5 + $0x198] sm:$0xff]
    %v4273 = vld [vmem:[%s5 + $0x1a0] sm:$0xff]
    %v4274 = vld [vmem:[%s5 + $0x1a8] sm:$0xff]
    %v4275 = vld [vmem:[%s5 + $0x1b0] sm:$0xff]
    %v4276 = vld [vmem:[%s5 + $0x1b8] sm:$0xff]
    %v4277 = vld [vmem:[%s5 + $0x1c0] sm:$0xff]
    %v4278 = vld [vmem:[%s5 + $0x1c8] sm:$0xff]
    %v4279 = vld [vmem:[%s5 + $0x1d0] sm:$0xff]
    %v4280 = vld [vmem:[%s5 + $0x1d8] sm:$0xff]
    %v4281 = vld [vmem:[%s5 + $0x1e0] sm:$0xff]
    %v4282 = vld [vmem:[%s5 + $0x1e8] sm:$0xff]
    %v4283 = vld [vmem:[%s5 + $0x1f0] sm:$0xff]
    %v4284 = vld [vmem:[%s5 + $0x1f8] sm:$0xff]
    %v4285 = vld [vmem:[%s5 + $0x200] sm:$0xff]
    %v4286 = vld [vmem:[%s5 + $0x208] sm:$0xff]
    %v4287 = vld [vmem:[%s5 + $0x210] sm:$0xff]
    %v4288 = vld [vmem:[%s5 + $0x218] sm:$0xff]
    %v4289 = vld [vmem:[%s5 + $0x220] sm:$0xff]
    %v4290 = vld [vmem:[%s5 + $0x228] sm:$0xff]
    %v4291 = vld [vmem:[%s5 + $0x230] sm:$0xff]
    %v4292 = vld [vmem:[%s5 + $0x238] sm:$0xff]
    %v4293 = vld [vmem:[%s5 + $0x240] sm:$0xff]
    %v4294 = vld [vmem:[%s5 + $0x248] sm:$0xff]
    %v4295 = vld [vmem:[%s5 + $0x250] sm:$0xff]
    %v4296 = vld [vmem:[%s5 + $0x258] sm:$0xff]
    %v4297 = vld [vmem:[%s5 + $0x260] sm:$0xff]
    %v4298 = vld [vmem:[%s5 + $0x268] sm:$0xff]
    %v4299 = vld [vmem:[%s5 + $0x270] sm:$0xff]
    %v4300 = vld [vmem:[%s5 + $0x278] sm:$0xff]
    %v4301 = vld [vmem:[%s5 + $0x280] sm:$0xff]
    %v4302 = vld [vmem:[%s5 + $0x288] sm:$0xff]
    %v4303 = vld [vmem:[%s5 + $0x290] sm:$0xff]
    %v4304 = vld [vmem:[%s5 + $0x298] sm:$0xff]
    %v4305 = vld [vmem:[%s5 + $0x2a0] sm:$0xff]
    %v4306 = vld [vmem:[%s5 + $0x2a8] sm:$0xff]
    %v4307 = vld [vmem:[%s5 + $0x2b0] sm:$0xff]
    %v4308 = vld [vmem:[%s5 + $0x2b8] sm:$0xff]
    %v4309 = vld [vmem:[%s5 + $0x2c0] sm:$0xff]
    %v4310 = vld [vmem:[%s5 + $0x2c8] sm:$0xff]
    %v4311 = vld [vmem:[%s5 + $0x2d0] sm:$0xff]
    %v4312 = vld [vmem:[%s5 + $0x2d8] sm:$0xff]
    %v4313 = vld [vmem:[%s5 + $0x2e0] sm:$0xff]
    %v4314 = vld [vmem:[%s5 + $0x2e8] sm:$0xff]
    %v4315 = vld [vmem:[%s5 + $0x2f0] sm:$0xff]
    %v4316 = vld [vmem:[%s5 + $0x2f8] sm:$0xff]
    %v4317 = vld [vmem:[%s5 + $0x300] sm:$0xff]
    %v4318 = vld [vmem:[%s5 + $0x308] sm:$0xff]
    %v4319 = vld [vmem:[%s5 + $0x310] sm:$0xff]
    %v4320 = vld [vmem:[%s5 + $0x318] sm:$0xff]
    %v4321 = vld [vmem:[%s5 + $0x320] sm:$0xff]
    %v4322 = vld [vmem:[%s5 + $0x328] sm:$0xff]
    %v4323 = vld [vmem:[%s5 + $0x330] sm:$0xff]
    %v4324 = vld [vmem:[%s5 + $0x338] sm:$0xff]
    %v4325 = vld [vmem:[%s5 + $0x340] sm:$0xff]
    %v4326 = vld [vmem:[%s5 + $0x348] sm:$0xff]
    %v4327 = vld [vmem:[%s5 + $0x350] sm:$0xff]
    %v4328 = vld [vmem:[%s5 + $0x358] sm:$0xff]
    %v4329 = vld [vmem:[%s5 + $0x360] sm:$0xff]
    %v4330 = vld [vmem:[%s5 + $0x368] sm:$0xff]
    %v4331 = vld [vmem:[%s5 + $0x370] sm:$0xff]
    %v4332 = vld [vmem:[%s5 + $0x378] sm:$0xff]
    %v4333 = vld [vmem:[%s5 + $0x380] sm:$0xff]
    %v4334 = vld [vmem:[%s5 + $0x388] sm:$0xff]
    %v4335 = vld [vmem:[%s5 + $0x390] sm:$0xff]
    %v4336 = vld [vmem:[%s5 + $0x398] sm:$0xff]
    %v4337 = vld [vmem:[%s5 + $0x3a0] sm:$0xff]
    %v4338 = vld [vmem:[%s5 + $0x3a8] sm:$0xff]
    %v4339 = vld [vmem:[%s5 + $0x3b0] sm:$0xff]
    %v4340 = vld [vmem:[%s5 + $0x3b8] sm:$0xff]
    %v4341 = vld [vmem:[%s5 + $0x3c0] sm:$0xff]
    %v4342 = vld [vmem:[%s5 + $0x3c8] sm:$0xff]
    %v4343 = vld [vmem:[%s5 + $0x3d0] sm:$0xff]
    %v4344 = vld [vmem:[%s5 + $0x3d8] sm:$0xff]
    %v4345 = vld [vmem:[%s5 + $0x3e0] sm:$0xff]
    %v4346 = vld [vmem:[%s5 + $0x3e8] sm:$0xff]
    %v4347 = vld [vmem:[%s5 + $0x3f0] sm:$0xff]
    %v4348 = vld [vmem:[%s5 + $0x3f8] sm:$0xff]
    %v4349 = vld [vmem:[%s6] sm:$0xff]
    %v4350 = vld [vmem:[%s6 + $0x8] sm:$0xff]
    %v4351 = vld [vmem:[%s6 + $0x10] sm:$0xff]
    %v4352 = vld [vmem:[%s6 + $0x18] sm:$0xff]
    %v4353 = vld [vmem:[%s6 + $0x20] sm:$0xff]
    %v4354 = vld [vmem:[%s6 + $0x28] sm:$0xff]
    %v4355 = vld [vmem:[%s6 + $0x30] sm:$0xff]
    %v4356 = vld [vmem:[%s6 + $0x38] sm:$0xff]
    %v4357 = vld [vmem:[%s6 + $0x40] sm:$0xff]
    %v4358 = vld [vmem:[%s6 + $0x48] sm:$0xff]
    %v4359 = vld [vmem:[%s6 + $0x50] sm:$0xff]
    %v4360 = vld [vmem:[%s6 + $0x58] sm:$0xff]
    %v4361 = vld [vmem:[%s6 + $0x60] sm:$0xff]
    %v4362 = vld [vmem:[%s6 + $0x68] sm:$0xff]
    %v4363 = vld [vmem:[%s6 + $0x70] sm:$0xff]
    %v4364 = vld [vmem:[%s6 + $0x78] sm:$0xff]
    %v4365 = vld [vmem:[%s6 + $0x80] sm:$0xff]
    %v4366 = vld [vmem:[%s6 + $0x88] sm:$0xff]
    %v4367 = vld [vmem:[%s6 + $0x90] sm:$0xff]
    %v4368 = vld [vmem:[%s6 + $0x98] sm:$0xff]
    %v4369 = vld [vmem:[%s6 + $0xa0] sm:$0xff]
    %v4370 = vld [vmem:[%s6 + $0xa8] sm:$0xff]
    %v4371 = vld [vmem:[%s6 + $0xb0] sm:$0xff]
    %v4372 = vld [vmem:[%s6 + $0xb8] sm:$0xff]
    %v4373 = vld [vmem:[%s6 + $0xc0] sm:$0xff]
    %v4374 = vld [vmem:[%s6 + $0xc8] sm:$0xff]
    %v4375 = vld [vmem:[%s6 + $0xd0] sm:$0xff]
    %v4376 = vld [vmem:[%s6 + $0xd8] sm:$0xff]
    %v4377 = vld [vmem:[%s6 + $0xe0] sm:$0xff]
    %v4378 = vld [vmem:[%s6 + $0xe8] sm:$0xff]
    %v4379 = vld [vmem:[%s6 + $0xf0] sm:$0xff]
    %v4380 = vld [vmem:[%s6 + $0xf8] sm:$0xff]
    %v4381 = vld [vmem:[%s6 + $0x100] sm:$0xff]
    %v4382 = vld [vmem:[%s6 + $0x108] sm:$0xff]
    %v4383 = vld [vmem:[%s6 + $0x110] sm:$0xff]
    %v4384 = vld [vmem:[%s6 + $0x118] sm:$0xff]
    %v4385 = vld [vmem:[%s6 + $0x120] sm:$0xff]
    %v4386 = vld [vmem:[%s6 + $0x128] sm:$0xff]
    %v4387 = vld [vmem:[%s6 + $0x130] sm:$0xff]
    %v4388 = vld [vmem:[%s6 + $0x138] sm:$0xff]
    %v4389 = vld [vmem:[%s6 + $0x140] sm:$0xff]
    %v4390 = vld [vmem:[%s6 + $0x148] sm:$0xff]
    %v4391 = vld [vmem:[%s6 + $0x150] sm:$0xff]
    %v4392 = vld [vmem:[%s6 + $0x158] sm:$0xff]
    %v4393 = vld [vmem:[%s6 + $0x160] sm:$0xff]
    %v4394 = vld [vmem:[%s6 + $0x168] sm:$0xff]
    %v4395 = vld [vmem:[%s6 + $0x170] sm:$0xff]
    %v4396 = vld [vmem:[%s6 + $0x178] sm:$0xff]
    %v4397 = vld [vmem:[%s6 + $0x180] sm:$0xff]
    %v4398 = vld [vmem:[%s6 + $0x188] sm:$0xff]
    %v4399 = vld [vmem:[%s6 + $0x190] sm:$0xff]
    %v4400 = vld [vmem:[%s6 + $0x198] sm:$0xff]
    %v4401 = vld [vmem:[%s6 + $0x1a0] sm:$0xff]
    %v4402 = vld [vmem:[%s6 + $0x1a8] sm:$0xff]
    %v4403 = vld [vmem:[%s6 + $0x1b0] sm:$0xff]
    %v4404 = vld [vmem:[%s6 + $0x1b8] sm:$0xff]
    %v4405 = vld [vmem:[%s6 + $0x1c0] sm:$0xff]
    %v4406 = vld [vmem:[%s6 + $0x1c8] sm:$0xff]
    %v4407 = vld [vmem:[%s6 + $0x1d0] sm:$0xff]
    %v4408 = vld [vmem:[%s6 + $0x1d8] sm:$0xff]
    %v4409 = vld [vmem:[%s6 + $0x1e0] sm:$0xff]
    %v4410 = vld [vmem:[%s6 + $0x1e8] sm:$0xff]
    %v4411 = vld [vmem:[%s6 + $0x1f0] sm:$0xff]
    %v4412 = vld [vmem:[%s6 + $0x1f8] sm:$0xff]
    %4413 = vmatpush.msra.mxu0 %v4409
    %4414 = vmatpush.msra.mxu0 %v4405
    %4415 = vmatpush.msra.mxu0 %v4401
    %4416 = vmatpush.msra.mxu0 %v4397
    %4417 = vmatpush.msra.mxu0 %v4393
    %4418 = vmatpush.msra.mxu0 %v4389
    %4419 = vmatpush.msra.mxu0 %v4385
    %4420 = vmatpush.msra.mxu0 %v4381
    %4421 = vmatpush.msra.mxu0 %v4377
    %4422 = vmatpush.msra.mxu0 %v4373
    %4423 = vmatpush.msra.mxu0 %v4369
    %4424 = vmatpush.msra.mxu0 %v4365
    %4425 = vmatpush.msra.mxu0 %v4361
    %4426 = vmatpush.msra.mxu0 %v4357
    %4427 = vmatpush.msra.mxu0 %v4353
    %4428 = vmatpush.msra.mxu0 %v4349
    %4429 = vmatmul.f32.gmra.mxu0 %v4220
    %v4430 = vpop.f32.mrf.mxu0
    %v4431 = vadd.f32 0.0, %v4430
    %4432 = vdwg.mxu0
    %4433 = vmatpush.msra.mxu0 %v4410
    %4434 = vmatpush.msra.mxu0 %v4406
    %4435 = vmatpush.msra.mxu0 %v4402
    %4436 = vmatpush.msra.mxu0 %v4398
    %4437 = vmatpush.msra.mxu0 %v4394
    %4438 = vmatpush.msra.mxu0 %v4390
    %4439 = vmatpush.msra.mxu0 %v4386
    %4440 = vmatpush.msra.mxu0 %v4382
    %4441 = vmatpush.msra.mxu0 %v4378
    %4442 = vmatpush.msra.mxu0 %v4374
    %4443 = vmatpush.msra.mxu0 %v4370
    %4444 = vmatpush.msra.mxu0 %v4366
    %4445 = vmatpush.msra.mxu0 %v4362
    %4446 = vmatpush.msra.mxu0 %v4358
    %4447 = vmatpush.msra.mxu0 %v4354
    %4448 = vmatpush.msra.mxu0 %v4350
    %4449 = vmatmul.f32.gmra.mxu0 %v4220
    %v4450 = vpop.f32.mrf.mxu0
    %v4451 = vadd.f32 0.0, %v4450
    %4452 = vdwg.mxu0
    %4453 = vmatpush.msra.mxu0 %v4411
    %4454 = vmatpush.msra.mxu0 %v4407
    %4455 = vmatpush.msra.mxu0 %v4403
    %4456 = vmatpush.msra.mxu0 %v4399
    %4457 = vmatpush.msra.mxu0 %v4395
    %4458 = vmatpush.msra.mxu0 %v4391
    %4459 = vmatpush.msra.mxu0 %v4387
    %4460 = vmatpush.msra.mxu0 %v4383
    %4461 = vmatpush.msra.mxu0 %v4379
    %4462 = vmatpush.msra.mxu0 %v4375
    %4463 = vmatpush.msra.mxu0 %v4371
    %4464 = vmatpush.msra.mxu0 %v4367
    %4465 = vmatpush.msra.mxu0 %v4363
    %4466 = vmatpush.msra.mxu0 %v4359
    %4467 = vmatpush.msra.mxu0 %v4355
    %4468 = vmatpush.msra.mxu0 %v4351
    %4469 = vmatmul.f32.gmra.mxu0 %v4220
    %v4470 = vpop.f32.mrf.mxu0
    %v4471 = vadd.f32 0.0, %v4470
    %4472 = vdwg.mxu0
    %4473 = vmatpush.msra.mxu0 %v4412
    %4474 = vmatpush.msra.mxu0 %v4408
    %4475 = vmatpush.msra.mxu0 %v4404
    %4476 = vmatpush.msra.mxu0 %v4400
    %4477 = vmatpush.msra.mxu0 %v4396
    %4478 = vmatpush.msra.mxu0 %v4392
    %4479 = vmatpush.msra.mxu0 %v4388
    %4480 = vmatpush.msra.mxu0 %v4384
    %4481 = vmatpush.msra.mxu0 %v4380
    %4482 = vmatpush.msra.mxu0 %v4376
    %4483 = vmatpush.msra.mxu0 %v4372
    %4484 = vmatpush.msra.mxu0 %v4368
    %4485 = vmatpush.msra.mxu0 %v4364
    %4486 = vmatpush.msra.mxu0 %v4360
    %4487 = vmatpush.msra.mxu0 %v4356
    %4488 = vmatpush.msra.mxu0 %v4352
    %4489 = vmatmul.f32.gmra.mxu0 %v4220
    %v4490 = vpop.f32.mrf.mxu0
    %v4491 = vadd.f32 0.0, %v4490
    %4492 = vdwg.mxu0
    %4493 = vmatpush.msra.mxu0 %v4281
    %4494 = vmatpush.msra.mxu0 %v4277
    %4495 = vmatpush.msra.mxu0 %v4273
    %4496 = vmatpush.msra.mxu0 %v4269
    %4497 = vmatpush.msra.mxu0 %v4265
    %4498 = vmatpush.msra.mxu0 %v4261
    %4499 = vmatpush.msra.mxu0 %v4257
    %4500 = vmatpush.msra.mxu0 %v4253
    %4501 = vmatpush.msra.mxu0 %v4249
    %4502 = vmatpush.msra.mxu0 %v4245
    %4503 = vmatpush.msra.mxu0 %v4241
    %4504 = vmatpush.msra.mxu0 %v4237
    %4505 = vmatpush.msra.mxu0 %v4233
    %4506 = vmatpush.msra.mxu0 %v4229
    %4507 = vmatpush.msra.mxu0 %v4225
    %4508 = vmatpush.msra.mxu0 %v4221
    %4509 = vmatmul.f32.gmra.mxu0 %v4134
    %v4510 = vpop.f32.mrf.mxu0
    %v4511 = vadd.f32 %v4431, %v4510
    %4512 = vdwg.mxu0
    %4513 = vmatpush.msra.mxu0 %v4345
    %4514 = vmatpush.msra.mxu0 %v4341
    %4515 = vmatpush.msra.mxu0 %v4337
    %4516 = vmatpush.msra.mxu0 %v4333
    %4517 = vmatpush.msra.mxu0 %v4329
    %4518 = vmatpush.msra.mxu0 %v4325
    %4519 = vmatpush.msra.mxu0 %v4321
    %4520 = vmatpush.msra.mxu0 %v4317
    %4521 = vmatpush.msra.mxu0 %v4313
    %4522 = vmatpush.msra.mxu0 %v4309
    %4523 = vmatpush.msra.mxu0 %v4305
    %4524 = vmatpush.msra.mxu0 %v4301
    %4525 = vmatpush.msra.mxu0 %v4297
    %4526 = vmatpush.msra.mxu0 %v4293
    %4527 = vmatpush.msra.mxu0 %v4289
    %4528 = vmatpush.msra.mxu0 %v4285
    %4529 = vmatmul.f32.gmra.mxu0 %v4055
    %v4530 = vpop.f32.mrf.mxu0
    %v4531 = vadd.f32 %v4511, %v4530
    %4532 = vdwg.mxu0
    %4533 = vmatpush.msra.mxu0 %v4282
    %4534 = vmatpush.msra.mxu0 %v4278
    %4535 = vmatpush.msra.mxu0 %v4274
    %4536 = vmatpush.msra.mxu0 %v4270
    %4537 = vmatpush.msra.mxu0 %v4266
    %4538 = vmatpush.msra.mxu0 %v4262
    %4539 = vmatpush.msra.mxu0 %v4258
    %4540 = vmatpush.msra.mxu0 %v4254
    %4541 = vmatpush.msra.mxu0 %v4250
    %4542 = vmatpush.msra.mxu0 %v4246
    %4543 = vmatpush.msra.mxu0 %v4242
    %4544 = vmatpush.msra.mxu0 %v4238
    %4545 = vmatpush.msra.mxu0 %v4234
    %4546 = vmatpush.msra.mxu0 %v4230
    %4547 = vmatpush.msra.mxu0 %v4226
    %4548 = vmatpush.msra.mxu0 %v4222
    %4549 = vmatmul.f32.gmra.mxu0 %v4134
    %v4550 = vpop.f32.mrf.mxu0
    %v4551 = vadd.f32 %v4451, %v4550
    %4552 = vdwg.mxu0
    %4553 = vmatpush.msra.mxu0 %v4346
    %4554 = vmatpush.msra.mxu0 %v4342
    %4555 = vmatpush.msra.mxu0 %v4338
    %4556 = vmatpush.msra.mxu0 %v4334
    %4557 = vmatpush.msra.mxu0 %v4330
    %4558 = vmatpush.msra.mxu0 %v4326
    %4559 = vmatpush.msra.mxu0 %v4322
    %4560 = vmatpush.msra.mxu0 %v4318
    %4561 = vmatpush.msra.mxu0 %v4314
    %4562 = vmatpush.msra.mxu0 %v4310
    %4563 = vmatpush.msra.mxu0 %v4306
    %4564 = vmatpush.msra.mxu0 %v4302
    %4565 = vmatpush.msra.mxu0 %v4298
    %4566 = vmatpush.msra.mxu0 %v4294
    %4567 = vmatpush.msra.mxu0 %v4290
    %4568 = vmatpush.msra.mxu0 %v4286
    %4569 = vmatmul.f32.gmra.mxu0 %v4055
    %v4570 = vpop.f32.mrf.mxu0
    %v4571 = vadd.f32 %v4551, %v4570
    %4572 = vdwg.mxu0
    %4573 = vmatpush.msra.mxu0 %v4283
    %4574 = vmatpush.msra.mxu0 %v4279
    %4575 = vmatpush.msra.mxu0 %v4275
    %4576 = vmatpush.msra.mxu0 %v4271
    %4577 = vmatpush.msra.mxu0 %v4267
    %4578 = vmatpush.msra.mxu0 %v4263
    %4579 = vmatpush.msra.mxu0 %v4259
    %4580 = vmatpush.msra.mxu0 %v4255
    %4581 = vmatpush.msra.mxu0 %v4251
    %4582 = vmatpush.msra.mxu0 %v4247
    %4583 = vmatpush.msra.mxu0 %v4243
    %4584 = vmatpush.msra.mxu0 %v4239
    %4585 = vmatpush.msra.mxu0 %v4235
    %4586 = vmatpush.msra.mxu0 %v4231
    %4587 = vmatpush.msra.mxu0 %v4227
    %4588 = vmatpush.msra.mxu0 %v4223
    %4589 = vmatmul.f32.gmra.mxu0 %v4134
    %v4590 = vpop.f32.mrf.mxu0
    %v4591 = vadd.f32 %v4471, %v4590
    %4592 = vdwg.mxu0
    %4593 = vmatpush.msra.mxu0 %v4347
    %4594 = vmatpush.msra.mxu0 %v4343
    %4595 = vmatpush.msra.mxu0 %v4339
    %4596 = vmatpush.msra.mxu0 %v4335
    %4597 = vmatpush.msra.mxu0 %v4331
    %4598 = vmatpush.msra.mxu0 %v4327
    %4599 = vmatpush.msra.mxu0 %v4323
    %4600 = vmatpush.msra.mxu0 %v4319
    %4601 = vmatpush.msra.mxu0 %v4315
    %4602 = vmatpush.msra.mxu0 %v4311
    %4603 = vmatpush.msra.mxu0 %v4307
    %4604 = vmatpush.msra.mxu0 %v4303
    %4605 = vmatpush.msra.mxu0 %v4299
    %4606 = vmatpush.msra.mxu0 %v4295
    %4607 = vmatpush.msra.mxu0 %v4291
    %4608 = vmatpush.msra.mxu0 %v4287
    %4609 = vmatmul.f32.gmra.mxu0 %v4055
    %v4610 = vpop.f32.mrf.mxu0
    %v4611 = vadd.f32 %v4591, %v4610
    %4612 = vdwg.mxu0
    %4613 = vmatpush.msra.mxu0 %v4284
    %4614 = vmatpush.msra.mxu0 %v4280
    %4615 = vmatpush.msra.mxu0 %v4276
    %4616 = vmatpush.msra.mxu0 %v4272
    %4617 = vmatpush.msra.mxu0 %v4268
    %4618 = vmatpush.msra.mxu0 %v4264
    %4619 = vmatpush.msra.mxu0 %v4260
    %4620 = vmatpush.msra.mxu0 %v4256
    %4621 = vmatpush.msra.mxu0 %v4252
    %4622 = vmatpush.msra.mxu0 %v4248
    %4623 = vmatpush.msra.mxu0 %v4244
    %4624 = vmatpush.msra.mxu0 %v4240
    %4625 = vmatpush.msra.mxu0 %v4236
    %4626 = vmatpush.msra.mxu0 %v4232
    %4627 = vmatpush.msra.mxu0 %v4228
    %4628 = vmatpush.msra.mxu0 %v4224
    %4629 = vmatmul.f32.gmra.mxu0 %v4134
    %v4630 = vpop.f32.mrf.mxu0
    %v4631 = vadd.f32 %v4491, %v4630
    %4632 = vdwg.mxu0
    %4633 = vmatpush.msra.mxu0 %v4348
    %4634 = vmatpush.msra.mxu0 %v4344
    %4635 = vmatpush.msra.mxu0 %v4340
    %4636 = vmatpush.msra.mxu0 %v4336
    %4637 = vmatpush.msra.mxu0 %v4332
    %4638 = vmatpush.msra.mxu0 %v4328
    %4639 = vmatpush.msra.mxu0 %v4324
    %4640 = vmatpush.msra.mxu0 %v4320
    %4641 = vmatpush.msra.mxu0 %v4316
    %4642 = vmatpush.msra.mxu0 %v4312
    %4643 = vmatpush.msra.mxu0 %v4308
    %4644 = vmatpush.msra.mxu0 %v4304
    %4645 = vmatpush.msra.mxu0 %v4300
    %4646 = vmatpush.msra.mxu0 %v4296
    %4647 = vmatpush.msra.mxu0 %v4292
    %4648 = vmatpush.msra.mxu0 %v4288
    %4649 = vmatmul.f32.gmra.mxu0 %v4055
    %v4650 = vpop.f32.mrf.mxu0
    %v4651 = vadd.f32 %v4631, %v4650
    %4652 = vdwg.mxu0
    %v4653 = vld [vmem:[%s7] sm:$0xf]
    %v4655 = vperm.slane %v4653, 0
    %v4656 = vperm.slane %v4653, 1
    %v4657 = vperm.slane %v4653, 2
    %v4658 = vperm.slane %v4653, 3
    %v4663 = vadd.f32 %v4531, %v4655
    %v4664 = vadd.f32 %v4571, %v4656
    %v4665 = vadd.f32 %v4611, %v4657
    %v4666 = vadd.f32 %v4651, %v4658
    %v4667 = vxor.u32 %v4663, 2147483648
    %v4668 = vmul.f32 %v4667, 1.442695
    %v4669 = vpow.pop %v4668
    %v4670 = vadd.f32 %v4669, 1.0
    %v4671 = vrcp.pop %v4670
    %v4672 = vmul.f32 %v4670, %v4671
    %v4673 = vsub.f32 1.0, %v4672
    %v4674 = vmul.f32 %v4671, %v4673
    %v4675 = vadd.f32 %v4671, %v4674
    %vm4676 = vweird.f32 %v4670
    %vm4677 = vweird.f32 %v4671
    %vm4678 = vmor %vm4676, %vm4677
    %v4679 = vsel %vm4678, %v4671, %v4675
    %v4680 = vand.u32 2147483647, %v4670
    %vm4681 = vcmp.eq.f32.partialorder %v4680, 8.507059e+37
    %v4682 = vand.u32 %v4670, 2147483648
    %v4683 = vor.u32 1.1754944e-38, %v4682
    %v4684 = vsel %vm4681, %v4683, %v4679
    %v4685 = vmul.f32 1.0, %v4684
    %v4686 = vxor.u32 %v4664, 2147483648
    %v4687 = vmul.f32 %v4686, 1.442695
    %v4688 = vpow.pop %v4687
    %v4689 = vadd.f32 %v4688, 1.0
    %v4690 = vrcp.pop %v4689
    %v4691 = vmul.f32 %v4689, %v4690
    %v4692 = vsub.f32 1.0, %v4691
    %v4693 = vmul.f32 %v4690, %v4692
    %v4694 = vadd.f32 %v4690, %v4693
    %vm4695 = vweird.f32 %v4689
    %vm4696 = vweird.f32 %v4690
    %vm4697 = vmor %vm4695, %vm4696
    %v4698 = vsel %vm4697, %v4690, %v4694
    %v4699 = vand.u32 2147483647, %v4689
    %vm4700 = vcmp.eq.f32.partialorder %v4699, 8.507059e+37
    %v4701 = vand.u32 %v4689, 2147483648
    %v4702 = vor.u32 1.1754944e-38, %v4701
    %v4703 = vsel %vm4700, %v4702, %v4698
    %v4704 = vmul.f32 1.0, %v4703
    %v4705 = vtanh.pop %v4665
    %v4706 = vxor.u32 %v4666, 2147483648
    %v4707 = vmul.f32 %v4706, 1.442695
    %v4708 = vpow.pop %v4707
    %v4709 = vadd.f32 %v4708, 1.0
    %v4710 = vrcp.pop %v4709
    %v4711 = vmul.f32 %v4709, %v4710
    %v4712 = vsub.f32 1.0, %v4711
    %v4713 = vmul.f32 %v4710, %v4712
    %v4714 = vadd.f32 %v4710, %v4713
    %vm4715 = vweird.f32 %v4709
    %vm4716 = vweird.f32 %v4710
    %vm4717 = vmor %vm4715, %vm4716
    %v4718 = vsel %vm4717, %v4710, %v4714
    %v4719 = vand.u32 2147483647, %v4709
    %vm4720 = vcmp.eq.f32.partialorder %v4719, 8.507059e+37
    %v4721 = vand.u32 %v4709, 2147483648
    %v4722 = vor.u32 1.1754944e-38, %v4721
    %v4723 = vsel %vm4720, %v4722, %v4718
    %v4724 = vmul.f32 1.0, %v4723
    %v4725 = vmul.f32 %v4704, %v4053
    %v4726 = vmul.f32 %v4685, %v4705
    %v4727 = vadd.f32 %v4725, %v4726
    %v4728 = vtanh.pop %v4727
    %v4729 = vmul.f32 %v4724, %v4728
    %v4730 = vld [vmem:[%s8] sm:$0xff]
    %v4731 = vld [vmem:[%s8 + $0x8] sm:$0xff]
    %v4732 = vld [vmem:[%s8 + $0x10] sm:$0xff]
    %v4733 = vld [vmem:[%s8 + $0x18] sm:$0xff]
    %v4734 = vld [vmem:[%s8 + $0x20] sm:$0xff]
    %v4735 = vld [vmem:[%s8 + $0x28] sm:$0xff]
    %v4736 = vld [vmem:[%s8 + $0x30] sm:$0xff]
    %v4737 = vld [vmem:[%s8 + $0x38] sm:$0xff]
    %v4738 = vld [vmem:[%s8 + $0x40] sm:$0xff]
    %v4739 = vld [vmem:[%s8 + $0x48] sm:$0xff]
    %v4740 = vld [vmem:[%s8 + $0x50] sm:$0xff]
    %v4741 = vld [vmem:[%s8 + $0x58] sm:$0xff]
    %v4742 = vld [vmem:[%s8 + $0x60] sm:$0xff]
    %v4743 = vld [vmem:[%s8 + $0x68] sm:$0xff]
    %v4744 = vld [vmem:[%s8 + $0x70] sm:$0xff]
    %v4745 = vld [vmem:[%s8 + $0x78] sm:$0xff]
    %v4746 = vld [vmem:[%s9] sm:$0x1]
    %v4748 = vperm.slane %v4746, 0
    %4750 = vmatpush.msra.mxu0 %v4745
    %4751 = vmatpush.msra.mxu0 %v4744
    %4752 = vmatpush.msra.mxu0 %v4743
    %4753 = vmatpush.msra.mxu0 %v4742
    %4754 = vmatpush.msra.mxu0 %v4741
    %4755 = vmatpush.msra.mxu0 %v4740
    %4756 = vmatpush.msra.mxu0 %v4739
    %4757 = vmatpush.msra.mxu0 %v4738
    %4758 = vmatpush.msra.mxu0 %v4737
    %4759 = vmatpush.msra.mxu0 %v4736
    %4760 = vmatpush.msra.mxu0 %v4735
    %4761 = vmatpush.msra.mxu0 %v4734
    %4762 = vmatpush.msra.mxu0 %v4733
    %4763 = vmatpush.msra.mxu0 %v4732
    %4764 = vmatpush.msra.mxu0 %v4731
    %4765 = vmatpush.msra.mxu0 %v4730
    %4766 = vmatmul.f32.gmra.mxu0 %v4729
    %v4767 = vpop.f32.mrf.mxu0
    %v4768 = vadd.f32 %v4748, %v4767
    %4769 = vdwg.mxu0
    %s4770 = scalar_lea.vmem %s10, 56
    %4771 = vst [vmem:[%s4770] sm:$0xff] %v4768
    // Predicated region
    $region46: #{_seq2seq_forward_jit.3} parent=1 // pred_check
      _
    $region47: #{_seq2seq_forward_jit.3} parent=1 // pred_check_branch
      %4773 = sbr.rel (0) target = $region49
    $region48: #{_seq2seq_forward_jit.3} parent=1 // pred_region
      _
    $region49: #{_seq2seq_forward_jit.3} parent=1 // pred_fallthru
      _
    // Predicated region
    $region50: #{_seq2seq_forward_jit.3} parent=1 // pred_check
      _
    $region51: #{_seq2seq_forward_jit.3} parent=1 // pred_check_branch
      %4775 = sbr.rel (0) target = $region53
    $region52: #{_seq2seq_forward_jit.3} parent=1 // pred_region
      _
    $region53: #{_seq2seq_forward_jit.3} parent=1 // pred_fallthru
      _
    %4776 = vsyncpa [#allocation3], 1

</llo_original>
